<compile_context>
chip_gen: v5e
topology: v5e:2x2
jax: 0.10.0
libtpu: 0.0.40
codegen_flags: <defaults>
</compile_context>

<pallas_src>
import functools

import jax
import jax.numpy as jnp
from jax import lax
from jax.experimental import pallas as pl
from jax.experimental.pallas import tpu as pltpu

_EPS = 1e-5


def _round_up(x, m):
    return ((x + m - 1) // m) * m


@functools.lru_cache(maxsize=None)
def _vmem_limit():
    """Per-generation scoped-VMEM limit: 3/4 of physical VMEM, capped at 100 MiB."""
    cap = 64 * 1024 * 1024
    try:
        cap = int(getattr(pltpu.get_tpu_info(), "vmem_capacity_bytes", cap))
    except Exception:
        pass
    return int(min(cap * 3 // 4, 100 * 1024 * 1024))


def _pick_tiles(h_valid, w, c):
    """(rows per H tile, padded H).  Single tile for small H; otherwise the
    largest H tile whose per-step working set fits the generation's VMEM budget."""
    if h_valid <= 32:
        ht = max(2, _round_up(h_valid, 2))
        return ht, ht
    ht = _round_up(h_valid, 8)
    budget = _vmem_limit() // 2
    th_pick = 8
    for th in (8, 16, 32, 64, 128, 256):
        if th > ht or ht % th != 0:
            continue
        est = (4 * th * w * c * 2              # in/out blocks (bf16, double-buffered)
               + (th + 2) * (w + 2) * c * 4    # f32 window scratch
               + 4 * th * w * c * 4)           # f32 temporaries (main / acc / y)
        if est <= budget:
            th_pick = th
    return th_pick, ht


def _bn_fold(gamma, beta, mean, var):
    scale = gamma / jnp.sqrt(var + _EPS)
    shift = beta - mean * scale
    return scale, shift


# ----------------------------------------------------------------------------
# Kernel 1: tiled matmul + optional per-column affine + activation.
# Used only for the ConvTranspose2d (k=2,s=2) recast as a matmul.
# ----------------------------------------------------------------------------
def _mm_affine_kernel(act, has_scale, has_shift, *refs):
    x_ref, w_ref = refs[0], refs[1]
    p = 2
    scale_ref = shift_ref = None
    if has_scale:
        scale_ref = refs[p]; p += 1
    if has_shift:
        shift_ref = refs[p]; p += 1
    o_ref, acc_ref = refs[p], refs[p + 1]

    @pl.when(pl.program_id(2) == 0)
    def _():
        acc_ref[...] = jnp.zeros_like(acc_ref)

    acc_ref[...] += jnp.dot(x_ref[...], w_ref[...],
                            preferred_element_type=jnp.float32)

    @pl.when(pl.program_id(2) == pl.num_programs(2) - 1)
    def _():
        y = acc_ref[...]
        if has_scale:
            y = y * scale_ref[...]
        if has_shift:
            y = y + shift_ref[...]
        if act == "relu":
            y = jnp.maximum(y, 0.0)
        elif act == "sigmoid":
            y = jax.nn.sigmoid(y)
        o_ref[...] = y.astype(o_ref.dtype)


def matmul_affine(x, w, scale, shift, act="none", out_dtype=jnp.float32):
    """(M,K) @ (K,N) [* scale] [+ shift], optional relu/sigmoid.  bf16 MXU, f32 acc."""
    M, K = x.shape
    K2, N = w.shape
    assert K == K2
    tm = 256 if M >= 256 else _round_up(M, 8)
    tn = 256 if N >= 256 else _round_up(N, 128)
    if K >= 512 and K % 512 == 0:
        tk = 512
    elif K >= 256:
        tk = 256
    else:
        tk = _round_up(K, 128)
    Mp, Np, Kp = _round_up(M, tm), _round_up(N, tn), _round_up(K, tk)

    xp = x.astype(jnp.bfloat16)
    wp = w.astype(jnp.bfloat16)
    if (Mp, Kp) != (M, K):
        xp = jnp.pad(xp, ((0, Mp - M), (0, Kp - K)))
    if (Kp, Np) != (K, N):
        wp = jnp.pad(wp, ((0, Kp - K), (0, Np - N)))

    has_scale, has_shift = scale is not None, shift is not None
    inputs = [xp, wp]
    in_specs = [pl.BlockSpec((tm, tk), lambda i, j, k: (i, k)),
                pl.BlockSpec((tk, tn), lambda i, j, k: (k, j))]
    if has_scale:
        sc = jnp.pad(scale.reshape(1, N).astype(jnp.float32), ((0, 0), (0, Np - N)))
        inputs.append(sc)
        in_specs.append(pl.BlockSpec((1, tn), lambda i, j, k: (0, j)))
    if has_shift:
        sh = jnp.pad(shift.reshape(1, N).astype(jnp.float32), ((0, 0), (0, Np - N)))
        inputs.append(sh)
        in_specs.append(pl.BlockSpec((1, tn), lambda i, j, k: (0, j)))

    out = pl.pallas_call(
        functools.partial(_mm_affine_kernel, act, has_scale, has_shift),
        out_shape=jax.ShapeDtypeStruct((Mp, Np), out_dtype),
        grid=(Mp // tm, Np // tn, Kp // tk),
        in_specs=in_specs,
        out_specs=pl.BlockSpec((tm, tn), lambda i, j, k: (i, j)),
        scratch_shapes=[pltpu.VMEM((tm, tn), jnp.float32)],
        compiler_params=pltpu.CompilerParams(
            dimension_semantics=("parallel", "parallel", "arbitrary"),
            vmem_limit_bytes=_vmem_limit()),
    )(*inputs)
    if (Mp, Np) != (M, N):
        out = out[:M, :N]
    return out


# ----------------------------------------------------------------------------
# Kernel 2: fused DepthwiseSeparableConv(3x3 dw + 1x1 pw) + BN(eval) + ReLU,
# spatially tiled over H with in-kernel halo/border handling (no HBM pad),
#   * optional CoordinateAttention gating of the INPUT (fuses the previous
#     CA's `x * a_h * a_w`), and
#   * CA pooling epilogue (mean over W per row; per-tile partial sums over H).
# ----------------------------------------------------------------------------
def _dsconv_kernel(th, h_valid, mask_rows, gated, *refs):
    if gated:
        (x_ref, xt_ref, xb_ref, ahm_ref, aht_ref, ahb_ref, aw_ref,
         dw_ref, pw_ref, sc_ref, sh_ref,
         o_ref, xh_ref, xw_ref, win_ref) = refs
    else:
        (x_ref, xt_ref, xb_ref,
         dw_ref, pw_ref, sc_ref, sh_ref,
         o_ref, xh_ref, xw_ref, win_ref) = refs

    i = pl.program_id(1)
    W = o_ref.shape[2]
    Cout = o_ref.shape[3]
    C = x_ref.shape[3]

    main = x_ref[0].astype(jnp.float32)          # (th, W, C)
    top = xt_ref[0, 0].astype(jnp.float32)       # (W, C)   row i*th-1 (clamped)
    bot = xb_ref[0, 0].astype(jnp.float32)       # (W, C)   row i*th+th (clamped)

    if gated:                                    # fuse previous CA gating
        aw = aw_ref[0].astype(jnp.float32)                       # (W, C)
        main = main * ahm_ref[0].astype(jnp.float32) * aw[None, :, :]
        top = top * aht_ref[0, 0].astype(jnp.float32) * aw
        bot = bot * ahb_ref[0, 0].astype(jnp.float32) * aw

    # Zero the halo rows that fall on the conv zero-padding border.
    top = top * jnp.where(i > 0, 1.0, 0.0)
    bot = bot * jnp.where(i * th + th < h_valid, 1.0, 0.0)

    # Assemble the zero-padded (th+2, W+2, C) window and store it once (aligned).
    rows = jnp.concatenate([top[None], main, bot[None]], axis=0)    # (th+2, W, C)
    zcol = jnp.zeros((th + 2, 1, C), jnp.float32)
    win_ref[...] = jnp.concatenate([zcol, rows, zcol], axis=1)      # (th+2, W+2, C)

    # Depthwise 3x3 (VPU), f32 accumulation over the 9 taps.
    acc = jnp.zeros((th, W, C), jnp.float32)
    for dy in range(3):
        for dx in range(3):
            tap = dw_ref[dy, dx, :].astype(jnp.float32).reshape(1, 1, C)
            acc = acc + win_ref[pl.ds(dy, th), pl.ds(dx, W), :] * tap

    # Pointwise 1x1 conv (MXU, bf16 operands) + folded BN + ReLU epilogue.
    y = jnp.dot(acc.reshape(th * W, C).astype(jnp.bfloat16), pw_ref[...],
                preferred_element_type=jnp.float32)
    y = y * sc_ref[...] + sh_ref[...]
    y = jnp.maximum(y, 0.0)
    y3 = y.reshape(th, W, Cout)
    if mask_rows:
        row = i * th + lax.broadcasted_iota(jnp.int32, (th, 1, 1), 0)
        y3 = jnp.where(row < h_valid, y3, 0.0)

    o_ref[0] = y3.astype(o_ref.dtype)

    # CoordinateAttention pooling epilogue.
    xh_ref[0] = (jnp.sum(y3, axis=1) * (1.0 / W)).astype(xh_ref.dtype)   # mean over W
    xw_ref[0, 0] = jnp.sum(y3, axis=0).astype(xw_ref.dtype)              # partial H sum


def dsconv_bn_relu_pool(x, h_valid, dw_w_pt, pw_w_pt, bn, tiles, gates=None):
    """Fused dsconv+BN+ReLU (+ optional input gating, + CA pooling epilogue).

    x: (N, Hx, W, C) NHWC (rows >= h_valid, if any, must be zero).
    Returns:
      out   (N, Ht, W, Cout) bf16  (rows >= h_valid are zero)
      x_h   (N, Ht, Cout)    f32   mean over W
      x_w   (N, W,  Cout)    f32   mean over the h_valid valid rows
    """
    N, Hx, W, C = x.shape
    th, Ht = tiles
    assert Hx <= Ht
    if Hx < Ht:
        x = jnp.pad(x, ((0, 0), (0, Ht - Hx), (0, 0), (0, 0)))
    nH = Ht // th
    Cout = pw_w_pt.shape[0]

    x = x.astype(jnp.bfloat16)
    dw = jnp.transpose(dw_w_pt[:, 0], (1, 2, 0)).astype(jnp.float32)     # (3,3,C)
    pw = pw_w_pt.reshape(Cout, C).T.astype(jnp.bfloat16)                 # (C, Cout)
    scale, shift = _bn_fold(*bn)
    sc = scale.reshape(1, Cout).astype(jnp.float32)
    sh = shift.reshape(1, Cout).astype(jnp.float32)

    gated = gates is not None
    in_specs = [
        pl.BlockSpec((1, th, W, C), lambda n, i: (n, i, 0, 0)),                         # main
        pl.BlockSpec((1, 1, W, C), lambda n, i: (n, jnp.maximum(i * th - 1, 0), 0, 0)),  # top
        pl.BlockSpec((1, 1, W, C), lambda n, i: (n, jnp.minimum(i * th + th, Ht - 1), 0, 0)),  # bot
    ]
    inputs = [x, x, x]
    if gated:
        a_h, a_w = gates                                     # (N, Ht, C), (N, W, C)
        ah4 = a_h[:, :, None, :].astype(jnp.bfloat16)        # (N, Ht, 1, C)
        aw3 = a_w.astype(jnp.bfloat16)
        in_specs += [
            pl.BlockSpec((1, th, 1, C), lambda n, i: (n, i, 0, 0)),
            pl.BlockSpec((1, 1, 1, C), lambda n, i: (n, jnp.maximum(i * th - 1, 0), 0, 0)),
            pl.BlockSpec((1, 1, 1, C), lambda n, i: (n, jnp.minimum(i * th + th, Ht - 1), 0, 0)),
            pl.BlockSpec((1, W, C), lambda n, i: (n, 0, 0)),
        ]
        inputs += [ah4, ah4, ah4, aw3]
    in_specs += [
        pl.BlockSpec((3, 3, C), lambda n, i: (0, 0, 0)),
        pl.BlockSpec((C, Cout), lambda n, i: (0, 0)),
        pl.BlockSpec((1, Cout), lambda n, i: (0, 0)),
        pl.BlockSpec((1, Cout), lambda n, i: (0, 0)),
    ]
    inputs += [dw, pw, sc, sh]

    out, x_h, xw_part = pl.pallas_call(
        functools.partial(_dsconv_kernel, th, h_valid, Ht > h_valid, gated),
        out_shape=(
            jax.ShapeDtypeStruct((N, Ht, W, Cout), jnp.bfloat16),
            jax.ShapeDtypeStruct((N, Ht, Cout), jnp.float32),
            jax.ShapeDtypeStruct((N, nH, W, Cout), jnp.float32),
        ),
        grid=(N, nH),
        in_specs=in_specs,
        out_specs=(
            pl.BlockSpec((1, th, W, Cout), lambda n, i: (n, i, 0, 0)),
            pl.BlockSpec((1, th, Cout), lambda n, i: (n, i, 0)),
            pl.BlockSpec((1, 1, W, Cout), lambda n, i: (n, i, 0, 0)),
        ),
        scratch_shapes=[pltpu.VMEM((th + 2, W + 2, C), jnp.float32)],
        compiler_params=pltpu.CompilerParams(
            dimension_semantics=("parallel", "parallel"),
            vmem_limit_bytes=_vmem_limit()),
    )(*inputs)

    x_w = jnp.sum(xw_part, axis=1) * (1.0 / h_valid)        # tiny XLA reduction
    return out, x_h, x_w


# ----------------------------------------------------------------------------
# Kernel 3: fused CoordinateAttention gate computation:
#   shared conv1 (+bias+bn1 folded) + ReLU, then conv_h / conv_w + sigmoid.
# One small kernel per CA (replaces two padded matmul launches + concat/slice).
# ----------------------------------------------------------------------------
def _ca_gate_kernel(xh_ref, xw_ref, w1_ref, s1_ref, t1_ref,
                    wh_ref, bh_ref, ww_ref, bw_ref, ah_ref, aw_ref):
    def gate(x, wg_ref, bg_ref):
        y = jnp.dot(x.astype(jnp.bfloat16), w1_ref[...],
                    preferred_element_type=jnp.float32)
        y = jnp.maximum(y * s1_ref[...] + t1_ref[...], 0.0)
        g = jnp.dot(y.astype(jnp.bfloat16), wg_ref[...],
                    preferred_element_type=jnp.float32) + bg_ref[...]
        return jax.nn.sigmoid(g)

    ah_ref[0] = gate(xh_ref[0], wh_ref, bh_ref).astype(ah_ref.dtype)
    aw_ref[0] = gate(xw_ref[0], ww_ref, bw_ref).astype(aw_ref.dtype)


def ca_gates(x_h, x_w, p):
    """CoordinateAttention gates from the fused pooled features (bf16 outputs)."""
    N, Ht, C = x_h.shape
    W = x_w.shape[1]
    mip = p["conv1_w"].shape[0]

    w1 = p["conv1_w"].reshape(mip, C).T.astype(jnp.bfloat16)            # (C, mip)
    scale1 = p["bn_gamma"] / jnp.sqrt(p["bn_var"] + _EPS)
    shift1 = (p["conv1_b"] - p["bn_mean"]) * scale1 + p["bn_beta"]
    s1 = scale1.reshape(1, mip).astype(jnp.float32)
    t1 = shift1.reshape(1, mip).astype(jnp.float32)
    wh = p["conv_h_w"].reshape(C, mip).T.astype(jnp.bfloat16)           # (mip, C)
    bh = p["conv_h_b"].reshape(1, C).astype(jnp.float32)
    ww = p["conv_w_w"].reshape(C, mip).T.astype(jnp.bfloat16)
    bw = p["conv_w_b"].reshape(1, C).astype(jnp.float32)

    a_h, a_w = pl.pallas_call(
        _ca_gate_kernel,
        out_shape=(jax.ShapeDtypeStruct((N, Ht, C), jnp.bfloat16),
                   jax.ShapeDtypeStruct((N, W, C), jnp.bfloat16)),
        grid=(N,),
        in_specs=[
            pl.BlockSpec((1, Ht, C), lambda n: (n, 0, 0)),
            pl.BlockSpec((1, W, C), lambda n: (n, 0, 0)),
            pl.BlockSpec((C, mip), lambda n: (0, 0)),
            pl.BlockSpec((1, mip), lambda n: (0, 0)),
            pl.BlockSpec((1, mip), lambda n: (0, 0)),
            pl.BlockSpec((mip, C), lambda n: (0, 0)),
            pl.BlockSpec((1, C), lambda n: (0, 0)),
            pl.BlockSpec((mip, C), lambda n: (0, 0)),
            pl.BlockSpec((1, C), lambda n: (0, 0)),
        ],
        out_specs=(pl.BlockSpec((1, Ht, C), lambda n: (n, 0, 0)),
                   pl.BlockSpec((1, W, C), lambda n: (n, 0, 0))),
        compiler_params=pltpu.CompilerParams(
            dimension_semantics=("parallel",),
            vmem_limit_bytes=_vmem_limit()),
    )(x_h, x_w, w1, s1, t1, wh, bh, ww, bw)
    return a_h, a_w


# ----------------------------------------------------------------------------
# Kernel 4: final CoordinateAttention gating  out = x * a_h * a_w  (tiled).
# ----------------------------------------------------------------------------
def _ca_apply_kernel(x_ref, ah_ref, aw_ref, o_ref):
    x = x_ref[0].astype(jnp.float32)                         # (th, W, C)
    ah = ah_ref[0].astype(jnp.float32)                       # (th, 1, C)
    aw = aw_ref[0].astype(jnp.float32)                       # (W, C)
    o_ref[0] = (x * ah * aw[None, :, :]).astype(o_ref.dtype)


def ca_apply(x, a_h, a_w, tiles):
    N, Ht, W, C = x.shape
    th, ht = tiles
    assert Ht == ht and a_h.shape[1] == Ht and a_w.shape[1] == W
    nH = Ht // th
    ah4 = a_h[:, :, None, :]
    return pl.pallas_call(
        _ca_apply_kernel,
        out_shape=jax.ShapeDtypeStruct((N, Ht, W, C), jnp.float32),
        grid=(N, nH),
        in_specs=[
            pl.BlockSpec((1, th, W, C), lambda n, i: (n, i, 0, 0)),
            pl.BlockSpec((1, th, 1, C), lambda n, i: (n, i, 0, 0)),
            pl.BlockSpec((1, W, C), lambda n, i: (n, 0, 0)),
        ],
        out_specs=pl.BlockSpec((1, th, W, C), lambda n, i: (n, i, 0, 0)),
        compiler_params=pltpu.CompilerParams(
            dimension_semantics=("parallel", "parallel"),
            vmem_limit_bytes=_vmem_limit()),
    )(x, ah4, a_w)


# ----------------------------------------------------------------------------
# Module glue (plain JAX around the kernels above)
# ----------------------------------------------------------------------------
def double_conv(x, h_valid, p):
    W = x.shape[2]
    c_max = max(x.shape[3], p["pw1_w"].shape[0], p["pw2_w"].shape[0])
    tiles = _pick_tiles(h_valid, W, c_max)

    t1, xh1, xw1 = dsconv_bn_relu_pool(x, h_valid, p["dw1_w"], p["pw1_w"],
                                       p["bn1"], tiles)
    ah1, aw1 = ca_gates(xh1, xw1, p["ca1"])
    # CA1 gating is fused into dsconv2's input path.
    t2, xh2, xw2 = dsconv_bn_relu_pool(t1, h_valid, p["dw2_w"], p["pw2_w"],
                                       p["bn2"], tiles, gates=(ah1, aw1))
    ah2, aw2 = ca_gates(xh2, xw2, p["ca2"])
    return ca_apply(t2, ah2, aw2, tiles)                     # (N, Ht, W, Cout) f32


def up_forward(x1_nchw, x2_nchw, params):
    """Up.forward: ConvTranspose2d(k=2,s=2) upsample, pad, concat, DoubleConv."""
    x1 = jnp.transpose(x1_nchw, (0, 2, 3, 1)).astype(jnp.float32)   # NHWC
    x2 = jnp.transpose(x2_nchw, (0, 2, 3, 1)).astype(jnp.float32)   # NHWC
    N, H, W, Cin = x1.shape
    Cup = Cin // 2

    # ConvTranspose2d(Cin, Cin//2, kernel=2, stride=2) as a single tiled matmul
    # (bf16 output: the downstream dsconv consumes bf16 anyway).
    wt = params["up_w"]                                      # (Cin, Cup, 2, 2)
    bt = params["up_b"]                                      # (Cup,)
    wf = jnp.transpose(wt, (0, 2, 3, 1)).reshape(Cin, 4 * Cup)
    y = matmul_affine(x1.reshape(N * H * W, Cin), wf, None, jnp.tile(bt, 4),
                      out_dtype=jnp.bfloat16)

    # TODO(synk): pixel shuffle + F.pad + channel concat are still XLA glue
    # (now bf16); folding them into the first dsconv would remove these passes.
    y = y.reshape(N, H, W, 2, 2, Cup)
    y = jnp.transpose(y, (0, 1, 3, 2, 4, 5)).reshape(N, 2 * H, 2 * W, Cup)

    H2, W2 = x2.shape[1], x2.shape[2]
    dY, dX = H2 - 2 * H, W2 - 2 * W
    y = jnp.pad(y, ((0, 0), (dY // 2, dY - dY // 2), (dX // 2, dX - dX // 2), (0, 0)))
    x = jnp.concatenate([x2.astype(jnp.bfloat16), y], axis=-1)      # (N, H2, W2, Cin)

    out = double_conv(x, H2, params)                         # (N, Ht, W2, Cout)
    out = out[:, :H2]
    return jnp.transpose(out, (0, 3, 1, 2)).astype(jnp.float32)     # back to NCHW


# ----------------------------------------------------------------------------
# Deterministic parameter initialization (shapes follow the PyTorch __init__)
# ----------------------------------------------------------------------------
def init_params(key, in_ch, out_ch):
    keys = iter(jax.random.split(key, 64))

    def nrm(shape, s=0.1):
        return jax.random.normal(next(keys), shape, jnp.float32) * s

    def bn_params(c):
        gamma = 1.0 + nrm((c,), 0.05)
        beta = nrm((c,), 0.05)
        mean = nrm((c,), 0.05)
        var = jnp.abs(nrm((c,), 0.05)) + 1.0
        return (gamma, beta, mean, var)

    def ca_params(c):
        mip = max(8, c // 32)
        return dict(
            conv1_w=nrm((mip, c, 1, 1)), conv1_b=nrm((mip,)),
            bn_gamma=1.0 + nrm((mip,), 0.05), bn_beta=nrm((mip,), 0.05),
            bn_mean=nrm((mip,), 0.05), bn_var=jnp.abs(nrm((mip,), 0.05)) + 1.0,
            conv_h_w=nrm((c, mip, 1, 1)), conv_h_b=nrm((c,)),
            conv_w_w=nrm((c, mip, 1, 1)), conv_w_b=nrm((c,)),
        )

    mid = out_ch  # DoubleConv(in_ch, out_ch) -> mid_channels = out_ch
    return dict(
        up_w=nrm((in_ch, in_ch // 2, 2, 2)),
        up_b=nrm((in_ch // 2,)),
        dw1_w=nrm((in_ch, 1, 3, 3)),
        pw1_w=nrm((mid, in_ch, 1, 1)),
        bn1=bn_params(mid),
        ca1=ca_params(mid),
        dw2_w=nrm((mid, 1, 3, 3)),
        pw2_w=nrm((out_ch, mid, 1, 1)),
        bn2=bn_params(out_ch),
        ca2=ca_params(out_ch),
    )


# ----------------------------------------------------------------------------
if __name__ == "__main__":
    in_channels, out_channels = 8, 4
    N, H, W = 2, 8, 8               # x1 spatial; x2 is twice the size

    key = jax.random.PRNGKey(0)
    k1, k2, kp = jax.random.split(key, 3)
    x1 = jax.random.normal(k1, (N, in_channels, H, W), jnp.float32)          # NCHW
    x2 = jax.random.normal(k2, (N, in_channels // 2, 2 * H, 2 * W), jnp.float32)
    params = init_params(kp, in_channels, out_channels)

    fwd = jax.jit(up_forward)
    out = fwd(x1, x2, params)
    out = jax.block_until_ready(out)
    assert out.shape == (N, out_channels, 2 * H, 2 * W), out.shape
    assert bool(jnp.all(jnp.isfinite(out)))
    print("KERNEL_OK")
</pallas_src>

<mosaic_0001>
module attributes {stable_mosaic.version = 11 : i64} {
  func.func @_mm_affine_kernel(%arg0: i32, %arg1: i32, %arg2: i32, %arg3: memref<128x128xbf16, #tpu.memory_space<vmem>>, %arg4: memref<128x128xbf16, #tpu.memory_space<vmem>>, %arg5: memref<1x128xf32, #tpu.memory_space<vmem>>, %arg6: memref<128x128xbf16, #tpu.memory_space<vmem>>, %arg7: memref<128x128xf32, #tpu.memory_space<vmem>>) attributes {dimension_semantics = [#tpu.dimension_semantics<parallel>, #tpu.dimension_semantics<parallel>, #tpu.dimension_semantics<arbitrary>], iteration_bounds = array<i64: 1, 1, 1>, scalar_prefetch = 0 : i64, scratch_operands = 1 : i64, tpu.core_type = #tpu.core_type<tc>, window_params = [{transform_indices = @transform_0, window_bounds = array<i64: 128, 128>}, {transform_indices = @transform_1, window_bounds = array<i64: 128, 128>}, {transform_indices = @transform_2, window_bounds = array<i64: 1, 128>}, {transform_indices = @transform_3, window_bounds = array<i64: 128, 128>}]} {
    %c0_i32 = arith.constant 0 : i32
    %0 = arith.cmpi eq, %arg2, %c0_i32 : i32
    %1 = arith.extui %0 : i1 to i32
    %c0_i32_0 = arith.constant 0 : i32
    %2 = arith.cmpi ne, %1, %c0_i32_0 : i32
    scf.if %2 {
      %cst_10 = arith.constant 0.000000e+00 : f32
      %12 = vector.broadcast %cst_10 : f32 to vector<128x128xf32>
      %c0_11 = arith.constant 0 : index
      %c0_12 = arith.constant 0 : index
      %13 = vector.load %arg7[%c0_11, %c0_12] : memref<128x128xf32, #tpu.memory_space<vmem>>, vector<128x128xf32>
      tpu.vector_store %arg7[%c0_11, %c0_12], %12 {strides = array<i32>} : memref<128x128xf32, #tpu.memory_space<vmem>>, vector<128x128xf32>,
    } else {
    }
    %c0 = arith.constant 0 : index
    %c0_1 = arith.constant 0 : index
    %3 = vector.load %arg7[%c0, %c0_1] : memref<128x128xf32, #tpu.memory_space<vmem>>, vector<128x128xf32>
    %c0_2 = arith.constant 0 : index
    %c0_3 = arith.constant 0 : index
    %4 = vector.load %arg3[%c0_2, %c0_3] : memref<128x128xbf16, #tpu.memory_space<vmem>>, vector<128x128xbf16>
    %c0_4 = arith.constant 0 : index
    %c0_5 = arith.constant 0 : index
    %5 = vector.load %arg4[%c0_4, %c0_5] : memref<128x128xbf16, #tpu.memory_space<vmem>>, vector<128x128xbf16>
    %cst = arith.constant dense<0.000000e+00> : vector<128x128xf32>
    %6 = tpu.matmul %4, %5, %cst {dimension_numbers = #tpu.dot_dimension_numbers<[1], [0], [0], [1], [0, 0, 1, 1], [], []>} : vector<128x128xbf16>, vector<128x128xbf16>, vector<128x128xf32> -> vector<128x128xf32>
    %7 = arith.addf %3, %6 : vector<128x128xf32>
    %c0_6 = arith.constant 0 : index
    %c0_7 = arith.constant 0 : index
    %8 = vector.load %arg7[%c0_6, %c0_7] : memref<128x128xf32, #tpu.memory_space<vmem>>, vector<128x128xf32>
    tpu.vector_store %arg7[%c0_6, %c0_7], %7 {strides = array<i32>} : memref<128x128xf32, #tpu.memory_space<vmem>>, vector<128x128xf32>,
    %c0_i32_8 = arith.constant 0 : i32
    %9 = arith.cmpi eq, %arg2, %c0_i32_8 : i32
    %10 = arith.extui %9 : i1 to i32
    %c0_i32_9 = arith.constant 0 : i32
    %11 = arith.cmpi ne, %10, %c0_i32_9 : i32
    scf.if %11 {
      %c0_10 = arith.constant 0 : index
      %c0_11 = arith.constant 0 : index
      %12 = vector.load %arg7[%c0_10, %c0_11] : memref<128x128xf32, #tpu.memory_space<vmem>>, vector<128x128xf32>
      %c0_12 = arith.constant 0 : index
      %c0_13 = arith.constant 0 : index
      %13 = vector.load %arg5[%c0_12, %c0_13] : memref<1x128xf32, #tpu.memory_space<vmem>>, vector<1x128xf32>
      %14 = vector.broadcast %13 : vector<1x128xf32> to vector<128x128xf32>
      %15 = arith.addf %12, %14 : vector<128x128xf32>
      %16 = arith.truncf %15 : vector<128x128xf32> to vector<128x128xbf16>
      %c0_14 = arith.constant 0 : index
      %c0_15 = arith.constant 0 : index
      %17 = vector.load %arg6[%c0_14, %c0_15] : memref<128x128xbf16, #tpu.memory_space<vmem>>, vector<128x128xbf16>
      tpu.vector_store %arg6[%c0_14, %c0_15], %16 {strides = array<i32>} : memref<128x128xbf16, #tpu.memory_space<vmem>>, vector<128x128xbf16>,
    } else {
    }
    return
  }
  func.func @transform_0(%arg0: i32, %arg1: i32, %arg2: i32) -> (i32, i32) {
    %c0_i32 = arith.constant 0 : i32
    return %arg0, %arg2 : i32, i32
  }
  func.func @transform_1(%arg0: i32, %arg1: i32, %arg2: i32) -> (i32, i32) {
    %c0_i32 = arith.constant 0 : i32
    return %arg2, %arg1 : i32, i32
  }
  func.func @transform_2(%arg0: i32, %arg1: i32, %arg2: i32) -> (i32, i32) {
    %c0_i32 = arith.constant 0 : i32
    %c0_i32_0 = arith.constant 0 : i32
    return %c0_i32, %arg1 : i32, i32
  }
  func.func @transform_3(%arg0: i32, %arg1: i32, %arg2: i32) -> (i32, i32) {
    %c0_i32 = arith.constant 0 : i32
    return %arg0, %arg1 : i32, i32
  }
}

module attributes {stable_mosaic.version = 11 : i64} {
  func.func @_dsconv_kernel(%arg0: i32, %arg1: i32, %arg2: memref<1x16x16x8xbf16, #tpu.memory_space<vmem>>, %arg3: memref<1x1x16x8xbf16, #tpu.memory_space<vmem>>, %arg4: memref<1x1x16x8xbf16, #tpu.memory_space<vmem>>, %arg5: memref<3x3x8xf32, #tpu.memory_space<vmem>>, %arg6: memref<8x4xbf16, #tpu.memory_space<vmem>>, %arg7: memref<1x4xf32, #tpu.memory_space<vmem>>, %arg8: memref<1x4xf32, #tpu.memory_space<vmem>>, %arg9: memref<1x16x16x4xbf16, #tpu.memory_space<vmem>>, %arg10: memref<1x16x4xf32, #tpu.memory_space<vmem>>, %arg11: memref<1x1x16x4xf32, #tpu.memory_space<vmem>>, %arg12: memref<18x18x8xf32, #tpu.memory_space<vmem>>) attributes {dimension_semantics = [#tpu.dimension_semantics<parallel>, #tpu.dimension_semantics<parallel>], iteration_bounds = array<i64: 2, 1>, scalar_prefetch = 0 : i64, scratch_operands = 1 : i64, tpu.core_type = #tpu.core_type<tc>, window_params = [{transform_indices = @transform_0, window_bounds = array<i64: 1, 16, 16, 8>}, {transform_indices = @transform_1, window_bounds = array<i64: 1, 1, 16, 8>}, {transform_indices = @transform_2, window_bounds = array<i64: 1, 1, 16, 8>}, {pipeline_mode = #tpu.pipeline_mode<synchronous>, transform_indices = @transform_3, window_bounds = array<i64: 3, 3, 8>}, {pipeline_mode = #tpu.pipeline_mode<synchronous>, transform_indices = @transform_4, window_bounds = array<i64: 8, 4>}, {pipeline_mode = #tpu.pipeline_mode<synchronous>, transform_indices = @transform_5, window_bounds = array<i64: 1, 4>}, {pipeline_mode = #tpu.pipeline_mode<synchronous>, transform_indices = @transform_6, window_bounds = array<i64: 1, 4>}, {transform_indices = @transform_7, window_bounds = array<i64: 1, 16, 16, 4>}, {transform_indices = @transform_8, window_bounds = array<i64: 1, 16, 4>}, {transform_indices = @transform_9, window_bounds = array<i64: 1, 1, 16, 4>}]} {
    %c0 = arith.constant 0 : index
    %c0_0 = arith.constant 0 : index
    %c0_1 = arith.constant 0 : index
    %c0_2 = arith.constant 0 : index
    %0 = vector.load %arg2[%c0, %c0_0, %c0_1, %c0_2] : memref<1x16x16x8xbf16, #tpu.memory_space<vmem>>, vector<1x16x16x8xbf16>
    %1 = vector.shape_cast %0 : vector<1x16x16x8xbf16> to vector<16x16x8xbf16>
    %2 = arith.extf %1 : vector<16x16x8xbf16> to vector<16x16x8xf32>
    %c0_3 = arith.constant 0 : index
    %c0_4 = arith.constant 0 : index
    %c0_5 = arith.constant 0 : index
    %c0_6 = arith.constant 0 : index
    %3 = vector.load %arg3[%c0_3, %c0_4, %c0_5, %c0_6] : memref<1x1x16x8xbf16, #tpu.memory_space<vmem>>, vector<1x1x16x8xbf16>
    %4 = vector.shape_cast %3 : vector<1x1x16x8xbf16> to vector<16x8xbf16>
    %5 = arith.extf %4 : vector<16x8xbf16> to vector<16x8xf32>
    %c0_7 = arith.constant 0 : index
    %c0_8 = arith.constant 0 : index
    %c0_9 = arith.constant 0 : index
    %c0_10 = arith.constant 0 : index
    %6 = vector.load %arg4[%c0_7, %c0_8, %c0_9, %c0_10] : memref<1x1x16x8xbf16, #tpu.memory_space<vmem>>, vector<1x1x16x8xbf16>
    %7 = vector.shape_cast %6 : vector<1x1x16x8xbf16> to vector<16x8xbf16>
    %8 = arith.extf %7 : vector<16x8xbf16> to vector<16x8xf32>
    %c0_i32 = arith.constant 0 : i32
    %9 = arith.cmpi sgt, %arg1, %c0_i32 : i32
    %cst = arith.constant 1.000000e+00 : f32
    %cst_11 = arith.constant 0.000000e+00 : f32
    %10 = arith.select %9, %cst, %cst_11 : f32
    %11 = vector.broadcast %10 : f32 to vector<16x8xf32>
    %12 = arith.mulf %5, %11 : vector<16x8xf32>
    %c16_i32 = arith.constant 16 : i32
    %13 = arith.muli %arg1, %c16_i32 : i32
    %c16_i32_12 = arith.constant 16 : i32
    %14 = arith.addi %13, %c16_i32_12 : i32
    %c16_i32_13 = arith.constant 16 : i32
    %15 = arith.cmpi slt, %14, %c16_i32_13 : i32
    %cst_14 = arith.constant 1.000000e+00 : f32
    %cst_15 = arith.constant 0.000000e+00 : f32
    %16 = arith.select %15, %cst_14, %cst_15 : f32
    %17 = vector.broadcast %16 : f32 to vector<16x8xf32>
    %18 = arith.mulf %8, %17 : vector<16x8xf32>
    %19 = vector.shape_cast %12 : vector<16x8xf32> to vector<1x16x8xf32>
    %20 = vector.shape_cast %18 : vector<16x8xf32> to vector<1x16x8xf32>
    %21 = tpu.concatenate %19, %2, %20 in 0 : vector<1x16x8xf32>, vector<16x16x8xf32>, vector<1x16x8xf32> -> vector<18x16x8xf32>
    %cst_16 = arith.constant 0.000000e+00 : f32
    %22 = vector.broadcast %cst_16 : f32 to vector<18x1x8xf32>
    %23 = tpu.concatenate %22, %21, %22 in 1 : vector<18x1x8xf32>, vector<18x16x8xf32>, vector<18x1x8xf32> -> vector<18x18x8xf32>
    %c0_17 = arith.constant 0 : index
    %c0_18 = arith.constant 0 : index
    %c0_19 = arith.constant 0 : index
    %24 = vector.load %arg12[%c0_17, %c0_18, %c0_19] : memref<18x18x8xf32, #tpu.memory_space<vmem>>, vector<18x18x8xf32>
    tpu.vector_store %arg12[%c0_17, %c0_18, %c0_19], %23 {strides = array<i32>} : memref<18x18x8xf32, #tpu.memory_space<vmem>>, vector<18x18x8xf32>,
    %cst_20 = arith.constant 0.000000e+00 : f32
    %25 = vector.broadcast %cst_20 : f32 to vector<16x16x8xf32>
    %c0_21 = arith.constant 0 : index
    %c0_22 = arith.constant 0 : index
    %c0_23 = arith.constant 0 : index
    %26 = vector.load %arg5[%c0_21, %c0_22, %c0_23] : memref<3x3x8xf32, #tpu.memory_space<vmem>>, vector<1x1x8xf32>
    %27 = vector.shape_cast %26 : vector<1x1x8xf32> to vector<8xf32>
    %28 = vector.shape_cast %27 : vector<8xf32> to vector<1x1x8xf32>
    %c0_24 = arith.constant 0 : index
    %c0_25 = arith.constant 0 : index
    %c0_26 = arith.constant 0 : index
    %29 = vector.load %arg12[%c0_24, %c0_25, %c0_26] : memref<18x18x8xf32, #tpu.memory_space<vmem>>, vector<16x16x8xf32>
    %30 = vector.broadcast %28 : vector<1x1x8xf32> to vector<16x16x8xf32>
    %31 = arith.mulf %29, %30 : vector<16x16x8xf32>
    %32 = arith.addf %25, %31 : vector<16x16x8xf32>
    %c0_27 = arith.constant 0 : index
    %c1 = arith.constant 1 : index
    %c0_28 = arith.constant 0 : index
    %33 = vector.load %arg5[%c0_27, %c1, %c0_28] : memref<3x3x8xf32, #tpu.memory_space<vmem>>, vector<1x1x8xf32>
    %34 = vector.shape_cast %33 : vector<1x1x8xf32> to vector<8xf32>
    %35 = vector.shape_cast %34 : vector<8xf32> to vector<1x1x8xf32>
    %c0_29 = arith.constant 0 : index
    %c1_30 = arith.constant 1 : index
    %c0_31 = arith.constant 0 : index
    %36 = vector.load %arg12[%c0_29, %c1_30, %c0_31] : memref<18x18x8xf32, #tpu.memory_space<vmem>>, vector<16x16x8xf32>
    %37 = vector.broadcast %35 : vector<1x1x8xf32> to vector<16x16x8xf32>
    %38 = arith.mulf %36, %37 : vector<16x16x8xf32>
    %39 = arith.addf %32, %38 : vector<16x16x8xf32>
    %c0_32 = arith.constant 0 : index
    %c2 = arith.constant 2 : index
    %c0_33 = arith.constant 0 : index
    %40 = vector.load %arg5[%c0_32, %c2, %c0_33] : memref<3x3x8xf32, #tpu.memory_space<vmem>>, vector<1x1x8xf32>
    %41 = vector.shape_cast %40 : vector<1x1x8xf32> to vector<8xf32>
    %42 = vector.shape_cast %41 : vector<8xf32> to vector<1x1x8xf32>
    %c0_34 = arith.constant 0 : index
    %c2_35 = arith.constant 2 : index
    %c0_36 = arith.constant 0 : index
    %43 = vector.load %arg12[%c0_34, %c2_35, %c0_36] : memref<18x18x8xf32, #tpu.memory_space<vmem>>, vector<16x16x8xf32>
    %44 = vector.broadcast %42 : vector<1x1x8xf32> to vector<16x16x8xf32>
    %45 = arith.mulf %43, %44 : vector<16x16x8xf32>
    %46 = arith.addf %39, %45 : vector<16x16x8xf32>
    %c1_37 = arith.constant 1 : index
    %c0_38 = arith.constant 0 : index
    %c0_39 = arith.constant 0 : index
    %47 = vector.load %arg5[%c1_37, %c0_38, %c0_39] : memref<3x3x8xf32, #tpu.memory_space<vmem>>, vector<1x1x8xf32>
    %48 = vector.shape_cast %47 : vector<1x1x8xf32> to vector<8xf32>
    %49 = vector.shape_cast %48 : vector<8xf32> to vector<1x1x8xf32>
    %c1_40 = arith.constant 1 : index
    %c0_41 = arith.constant 0 : index
    %c0_42 = arith.constant 0 : index
    %50 = vector.load %arg12[%c1_40, %c0_41, %c0_42] : memref<18x18x8xf32, #tpu.memory_space<vmem>>, vector<16x16x8xf32>
    %51 = vector.broadcast %49 : vector<1x1x8xf32> to vector<16x16x8xf32>
    %52 = arith.mulf %50, %51 : vector<16x16x8xf32>
    %53 = arith.addf %46, %52 : vector<16x16x8xf32>
    %c1_43 = arith.constant 1 : index
    %c1_44 = arith.constant 1 : index
    %c0_45 = arith.constant 0 : index
    %54 = vector.load %arg5[%c1_43, %c1_44, %c0_45] : memref<3x3x8xf32, #tpu.memory_space<vmem>>, vector<1x1x8xf32>
    %55 = vector.shape_cast %54 : vector<1x1x8xf32> to vector<8xf32>
    %56 = vector.shape_cast %55 : vector<8xf32> to vector<1x1x8xf32>
    %c1_46 = arith.constant 1 : index
    %c1_47 = arith.constant 1 : index
    %c0_48 = arith.constant 0 : index
    %57 = vector.load %arg12[%c1_46, %c1_47, %c0_48] : memref<18x18x8xf32, #tpu.memory_space<vmem>>, vector<16x16x8xf32>
    %58 = vector.broadcast %56 : vector<1x1x8xf32> to vector<16x16x8xf32>
    %59 = arith.mulf %57, %58 : vector<16x16x8xf32>
    %60 = arith.addf %53, %59 : vector<16x16x8xf32>
    %c1_49 = arith.constant 1 : index
    %c2_50 = arith.constant 2 : index
    %c0_51 = arith.constant 0 : index
    %61 = vector.load %arg5[%c1_49, %c2_50, %c0_51] : memref<3x3x8xf32, #tpu.memory_space<vmem>>, vector<1x1x8xf32>
    %62 = vector.shape_cast %61 : vector<1x1x8xf32> to vector<8xf32>
    %63 = vector.shape_cast %62 : vector<8xf32> to vector<1x1x8xf32>
    %c1_52 = arith.constant 1 : index
    %c2_53 = arith.constant 2 : index
    %c0_54 = arith.constant 0 : index
    %64 = vector.load %arg12[%c1_52, %c2_53, %c0_54] : memref<18x18x8xf32, #tpu.memory_space<vmem>>, vector<16x16x8xf32>
    %65 = vector.broadcast %63 : vector<1x1x8xf32> to vector<16x16x8xf32>
    %66 = arith.mulf %64, %65 : vector<16x16x8xf32>
    %67 = arith.addf %60, %66 : vector<16x16x8xf32>
    %c2_55 = arith.constant 2 : index
    %c0_56 = arith.constant 0 : index
    %c0_57 = arith.constant 0 : index
    %68 = vector.load %arg5[%c2_55, %c0_56, %c0_57] : memref<3x3x8xf32, #tpu.memory_space<vmem>>, vector<1x1x8xf32>
    %69 = vector.shape_cast %68 : vector<1x1x8xf32> to vector<8xf32>
    %70 = vector.shape_cast %69 : vector<8xf32> to vector<1x1x8xf32>
    %c2_58 = arith.constant 2 : index
    %c0_59 = arith.constant 0 : index
    %c0_60 = arith.constant 0 : index
    %71 = vector.load %arg12[%c2_58, %c0_59, %c0_60] : memref<18x18x8xf32, #tpu.memory_space<vmem>>, vector<16x16x8xf32>
    %72 = vector.broadcast %70 : vector<1x1x8xf32> to vector<16x16x8xf32>
    %73 = arith.mulf %71, %72 : vector<16x16x8xf32>
    %74 = arith.addf %67, %73 : vector<16x16x8xf32>
    %c2_61 = arith.constant 2 : index
    %c1_62 = arith.constant 1 : index
    %c0_63 = arith.constant 0 : index
    %75 = vector.load %arg5[%c2_61, %c1_62, %c0_63] : memref<3x3x8xf32, #tpu.memory_space<vmem>>, vector<1x1x8xf32>
    %76 = vector.shape_cast %75 : vector<1x1x8xf32> to vector<8xf32>
    %77 = vector.shape_cast %76 : vector<8xf32> to vector<1x1x8xf32>
    %c2_64 = arith.constant 2 : index
    %c1_65 = arith.constant 1 : index
    %c0_66 = arith.constant 0 : index
    %78 = vector.load %arg12[%c2_64, %c1_65, %c0_66] : memref<18x18x8xf32, #tpu.memory_space<vmem>>, vector<16x16x8xf32>
    %79 = vector.broadcast %77 : vector<1x1x8xf32> to vector<16x16x8xf32>
    %80 = arith.mulf %78, %79 : vector<16x16x8xf32>
    %81 = arith.addf %74, %80 : vector<16x16x8xf32>
    %c2_67 = arith.constant 2 : index
    %c2_68 = arith.constant 2 : index
    %c0_69 = arith.constant 0 : index
    %82 = vector.load %arg5[%c2_67, %c2_68, %c0_69] : memref<3x3x8xf32, #tpu.memory_space<vmem>>, vector<1x1x8xf32>
    %83 = vector.shape_cast %82 : vector<1x1x8xf32> to vector<8xf32>
    %84 = vector.shape_cast %83 : vector<8xf32> to vector<1x1x8xf32>
    %c2_70 = arith.constant 2 : index
    %c2_71 = arith.constant 2 : index
    %c0_72 = arith.constant 0 : index
    %85 = vector.load %arg12[%c2_70, %c2_71, %c0_72] : memref<18x18x8xf32, #tpu.memory_space<vmem>>, vector<16x16x8xf32>
    %86 = vector.broadcast %84 : vector<1x1x8xf32> to vector<16x16x8xf32>
    %87 = arith.mulf %85, %86 : vector<16x16x8xf32>
    %88 = arith.addf %81, %87 : vector<16x16x8xf32>
    %89 = vector.shape_cast %88 : vector<16x16x8xf32> to vector<256x8xf32>
    %90 = arith.truncf %89 : vector<256x8xf32> to vector<256x8xbf16>
    %c0_73 = arith.constant 0 : index
    %c0_74 = arith.constant 0 : index
    %91 = vector.load %arg6[%c0_73, %c0_74] : memref<8x4xbf16, #tpu.memory_space<vmem>>, vector<8x4xbf16>
    %cst_75 = arith.constant dense<0.000000e+00> : vector<256x4xf32>
    %92 = tpu.matmul %90, %91, %cst_75 {dimension_numbers = #tpu.dot_dimension_numbers<[1], [0], [0], [1], [0, 0, 1, 1], [], []>} : vector<256x8xbf16>, vector<8x4xbf16>, vector<256x4xf32> -> vector<256x4xf32>
    %c0_76 = arith.constant 0 : index
    %c0_77 = arith.constant 0 : index
    %93 = vector.load %arg7[%c0_76, %c0_77] : memref<1x4xf32, #tpu.memory_space<vmem>>, vector<1x4xf32>
    %94 = vector.broadcast %93 : vector<1x4xf32> to vector<256x4xf32>
    %95 = arith.mulf %92, %94 : vector<256x4xf32>
    %c0_78 = arith.constant 0 : index
    %c0_79 = arith.constant 0 : index
    %96 = vector.load %arg8[%c0_78, %c0_79] : memref<1x4xf32, #tpu.memory_space<vmem>>, vector<1x4xf32>
    %97 = vector.broadcast %96 : vector<1x4xf32> to vector<256x4xf32>
    %98 = arith.addf %95, %97 : vector<256x4xf32>
    %cst_80 = arith.constant 0.000000e+00 : f32
    %99 = vector.broadcast %cst_80 : f32 to vector<256x4xf32>
    %100 = arith.maximumf %98, %99 : vector<256x4xf32>
    %101 = vector.shape_cast %100 : vector<256x4xf32> to vector<16x16x4xf32>
    %102 = arith.truncf %101 : vector<16x16x4xf32> to vector<16x16x4xbf16>
    %c0_81 = arith.constant 0 : index
    %c0_82 = arith.constant 0 : index
    %c0_83 = arith.constant 0 : index
    %c0_84 = arith.constant 0 : index
    %103 = vector.load %arg9[%c0_81, %c0_82, %c0_83, %c0_84] : memref<1x16x16x4xbf16, #tpu.memory_space<vmem>>, vector<1x16x16x4xbf16>
    %104 = vector.shape_cast %103 : vector<1x16x16x4xbf16> to vector<16x16x4xbf16>
    %105 = vector.shape_cast %102 : vector<16x16x4xbf16> to vector<1x16x16x4xbf16>
    tpu.vector_store %arg9[%c0_81, %c0_82, %c0_83, %c0_84], %105 {strides = array<i32>} : memref<1x16x16x4xbf16, #tpu.memory_space<vmem>>, vector<1x16x16x4xbf16>,
    %cst_85 = arith.constant dense<0.000000e+00> : vector<16x4xf32>
    %106 = vector.multi_reduction <add>, %101, %cst_85 [1] : vector<16x16x4xf32> to vector<16x4xf32>
    %cst_86 = arith.constant 6.250000e-02 : f32
    %107 = vector.broadcast %cst_86 : f32 to vector<16x4xf32>
    %108 = arith.mulf %106, %107 : vector<16x4xf32>
    %c0_87 = arith.constant 0 : index
    %c0_88 = arith.constant 0 : index
    %c0_89 = arith.constant 0 : index
    %109 = vector.load %arg10[%c0_87, %c0_88, %c0_89] : memref<1x16x4xf32, #tpu.memory_space<vmem>>, vector<1x16x4xf32>
    %110 = vector.shape_cast %109 : vector<1x16x4xf32> to vector<16x4xf32>
    %111 = vector.shape_cast %108 : vector<16x4xf32> to vector<1x16x4xf32>
    tpu.vector_store %arg10[%c0_87, %c0_88, %c0_89], %111 {strides = array<i32>} : memref<1x16x4xf32, #tpu.memory_space<vmem>>, vector<1x16x4xf32>,
    %cst_90 = arith.constant dense<0.000000e+00> : vector<16x4xf32>
    %112 = vector.multi_reduction <add>, %101, %cst_90 [0] : vector<16x16x4xf32> to vector<16x4xf32>
    %c0_91 = arith.constant 0 : index
    %c0_92 = arith.constant 0 : index
    %c0_93 = arith.constant 0 : index
    %c0_94 = arith.constant 0 : index
    %113 = vector.load %arg11[%c0_91, %c0_92, %c0_93, %c0_94] : memref<1x1x16x4xf32, #tpu.memory_space<vmem>>, vector<1x1x16x4xf32>
    %114 = vector.shape_cast %113 : vector<1x1x16x4xf32> to vector<16x4xf32>
    %115 = vector.shape_cast %112 : vector<16x4xf32> to vector<1x1x16x4xf32>
    tpu.vector_store %arg11[%c0_91, %c0_92, %c0_93, %c0_94], %115 {strides = array<i32>} : memref<1x1x16x4xf32, #tpu.memory_space<vmem>>, vector<1x1x16x4xf32>,
    return
  }
  func.func @transform_0(%arg0: i32, %arg1: i32) -> (i32, i32, i32, i32) {
    %c0_i32 = arith.constant 0 : i32
    %c0_i32_0 = arith.constant 0 : i32
    %c0_i32_1 = arith.constant 0 : i32
    return %arg0, %arg1, %c0_i32, %c0_i32_0 : i32, i32, i32, i32
  }
  func.func @transform_1(%arg0: i32, %arg1: i32) -> (i32, i32, i32, i32) {
    %c16_i32 = arith.constant 16 : i32
    %0 = arith.muli %arg1, %c16_i32 : i32
    %c1_i32 = arith.constant 1 : i32
    %1 = arith.subi %0, %c1_i32 : i32
    %c0_i32 = arith.constant 0 : i32
    %2 = arith.maxsi %1, %c0_i32 : i32
    %c0_i32_0 = arith.constant 0 : i32
    %c0_i32_1 = arith.constant 0 : i32
    %c0_i32_2 = arith.constant 0 : i32
    return %arg0, %2, %c0_i32_0, %c0_i32_1 : i32, i32, i32, i32
  }
  func.func @transform_2(%arg0: i32, %arg1: i32) -> (i32, i32, i32, i32) {
    %c16_i32 = arith.constant 16 : i32
    %0 = arith.muli %arg1, %c16_i32 : i32
    %c16_i32_0 = arith.constant 16 : i32
    %1 = arith.addi %0, %c16_i32_0 : i32
    %c15_i32 = arith.constant 15 : i32
    %2 = arith.minsi %1, %c15_i32 : i32
    %c0_i32 = arith.constant 0 : i32
    %c0_i32_1 = arith.constant 0 : i32
    %c0_i32_2 = arith.constant 0 : i32
    return %arg0, %2, %c0_i32, %c0_i32_1 : i32, i32, i32, i32
  }
  func.func @transform_3(%arg0: i32, %arg1: i32) -> (i32, i32, i32) {
    %c0_i32 = arith.constant 0 : i32
    %c0_i32_0 = arith.constant 0 : i32
    %c0_i32_1 = arith.constant 0 : i32
    %c0_i32_2 = arith.constant 0 : i32
    return %c0_i32, %c0_i32_0, %c0_i32_1 : i32, i32, i32
  }
  func.func @transform_4(%arg0: i32, %arg1: i32) -> (i32, i32) {
    %c0_i32 = arith.constant 0 : i32
    %c0_i32_0 = arith.constant 0 : i32
    %c0_i32_1 = arith.constant 0 : i32
    return %c0_i32, %c0_i32_0 : i32, i32
  }
  func.func @transform_5(%arg0: i32, %arg1: i32) -> (i32, i32) {
    %c0_i32 = arith.constant 0 : i32
    %c0_i32_0 = arith.constant 0 : i32
    %c0_i32_1 = arith.constant 0 : i32
    return %c0_i32, %c0_i32_0 : i32, i32
  }
  func.func @transform_6(%arg0: i32, %arg1: i32) -> (i32, i32) {
    %c0_i32 = arith.constant 0 : i32
    %c0_i32_0 = arith.constant 0 : i32
    %c0_i32_1 = arith.constant 0 : i32
    return %c0_i32, %c0_i32_0 : i32, i32
  }
  func.func @transform_7(%arg0: i32, %arg1: i32) -> (i32, i32, i32, i32) {
    %c0_i32 = arith.constant 0 : i32
    %c0_i32_0 = arith.constant 0 : i32
    %c0_i32_1 = arith.constant 0 : i32
    return %arg0, %arg1, %c0_i32, %c0_i32_0 : i32, i32, i32, i32
  }
  func.func @transform_8(%arg0: i32, %arg1: i32) -> (i32, i32, i32) {
    %c0_i32 = arith.constant 0 : i32
    %c0_i32_0 = arith.constant 0 : i32
    return %arg0, %arg1, %c0_i32 : i32, i32, i32
  }
  func.func @transform_9(%arg0: i32, %arg1: i32) -> (i32, i32, i32, i32) {
    %c0_i32 = arith.constant 0 : i32
    %c0_i32_0 = arith.constant 0 : i32
    %c0_i32_1 = arith.constant 0 : i32
    return %arg0, %arg1, %c0_i32, %c0_i32_0 : i32, i32, i32, i32
  }
}

module attributes {stable_mosaic.version = 11 : i64} {
  func.func @_ca_gate_kernel(%arg0: i32, %arg1: memref<1x16x4xf32, #tpu.memory_space<vmem>>, %arg2: memref<1x16x4xf32, #tpu.memory_space<vmem>>, %arg3: memref<4x8xbf16, #tpu.memory_space<vmem>>, %arg4: memref<1x8xf32, #tpu.memory_space<vmem>>, %arg5: memref<1x8xf32, #tpu.memory_space<vmem>>, %arg6: memref<8x4xbf16, #tpu.memory_space<vmem>>, %arg7: memref<1x4xf32, #tpu.memory_space<vmem>>, %arg8: memref<8x4xbf16, #tpu.memory_space<vmem>>, %arg9: memref<1x4xf32, #tpu.memory_space<vmem>>, %arg10: memref<1x16x4xbf16, #tpu.memory_space<vmem>>, %arg11: memref<1x16x4xbf16, #tpu.memory_space<vmem>>) attributes {dimension_semantics = [#tpu.dimension_semantics<parallel>], iteration_bounds = array<i64: 2>, scalar_prefetch = 0 : i64, scratch_operands = 0 : i64, tpu.core_type = #tpu.core_type<tc>, window_params = [{transform_indices = @transform_0, window_bounds = array<i64: 1, 16, 4>}, {transform_indices = @transform_1, window_bounds = array<i64: 1, 16, 4>}, {pipeline_mode = #tpu.pipeline_mode<synchronous>, transform_indices = @transform_2, window_bounds = array<i64: 4, 8>}, {pipeline_mode = #tpu.pipeline_mode<synchronous>, transform_indices = @transform_3, window_bounds = array<i64: 1, 8>}, {pipeline_mode = #tpu.pipeline_mode<synchronous>, transform_indices = @transform_4, window_bounds = array<i64: 1, 8>}, {pipeline_mode = #tpu.pipeline_mode<synchronous>, transform_indices = @transform_5, window_bounds = array<i64: 8, 4>}, {pipeline_mode = #tpu.pipeline_mode<synchronous>, transform_indices = @transform_6, window_bounds = array<i64: 1, 4>}, {pipeline_mode = #tpu.pipeline_mode<synchronous>, transform_indices = @transform_7, window_bounds = array<i64: 8, 4>}, {pipeline_mode = #tpu.pipeline_mode<synchronous>, transform_indices = @transform_8, window_bounds = array<i64: 1, 4>}, {transform_indices = @transform_9, window_bounds = array<i64: 1, 16, 4>}, {transform_indices = @transform_10, window_bounds = array<i64: 1, 16, 4>}]} {
    %c0 = arith.constant 0 : index
    %c0_0 = arith.constant 0 : index
    %c0_1 = arith.constant 0 : index
    %0 = vector.load %arg1[%c0, %c0_0, %c0_1] : memref<1x16x4xf32, #tpu.memory_space<vmem>>, vector<1x16x4xf32>
    %1 = vector.shape_cast %0 : vector<1x16x4xf32> to vector<16x4xf32>
    %2 = arith.truncf %1 : vector<16x4xf32> to vector<16x4xbf16>
    %c0_2 = arith.constant 0 : index
    %c0_3 = arith.constant 0 : index
    %3 = vector.load %arg3[%c0_2, %c0_3] : memref<4x8xbf16, #tpu.memory_space<vmem>>, vector<4x8xbf16>
    %cst = arith.constant dense<0.000000e+00> : vector<16x8xf32>
    %4 = tpu.matmul %2, %3, %cst {dimension_numbers = #tpu.dot_dimension_numbers<[1], [0], [0], [1], [0, 0, 1, 1], [], []>} : vector<16x4xbf16>, vector<4x8xbf16>, vector<16x8xf32> -> vector<16x8xf32>
    %c0_4 = arith.constant 0 : index
    %c0_5 = arith.constant 0 : index
    %5 = vector.load %arg4[%c0_4, %c0_5] : memref<1x8xf32, #tpu.memory_space<vmem>>, vector<1x8xf32>
    %6 = vector.broadcast %5 : vector<1x8xf32> to vector<16x8xf32>
    %7 = arith.mulf %4, %6 : vector<16x8xf32>
    %c0_6 = arith.constant 0 : index
    %c0_7 = arith.constant 0 : index
    %8 = vector.load %arg5[%c0_6, %c0_7] : memref<1x8xf32, #tpu.memory_space<vmem>>, vector<1x8xf32>
    %9 = vector.broadcast %8 : vector<1x8xf32> to vector<16x8xf32>
    %10 = arith.addf %7, %9 : vector<16x8xf32>
    %cst_8 = arith.constant 0.000000e+00 : f32
    %11 = vector.broadcast %cst_8 : f32 to vector<16x8xf32>
    %12 = arith.maximumf %10, %11 : vector<16x8xf32>
    %13 = arith.truncf %12 : vector<16x8xf32> to vector<16x8xbf16>
    %c0_9 = arith.constant 0 : index
    %c0_10 = arith.constant 0 : index
    %14 = vector.load %arg6[%c0_9, %c0_10] : memref<8x4xbf16, #tpu.memory_space<vmem>>, vector<8x4xbf16>
    %cst_11 = arith.constant dense<0.000000e+00> : vector<16x4xf32>
    %15 = tpu.matmul %13, %14, %cst_11 {dimension_numbers = #tpu.dot_dimension_numbers<[1], [0], [0], [1], [0, 0, 1, 1], [], []>} : vector<16x8xbf16>, vector<8x4xbf16>, vector<16x4xf32> -> vector<16x4xf32>
    %c0_12 = arith.constant 0 : index
    %c0_13 = arith.constant 0 : index
    %16 = vector.load %arg7[%c0_12, %c0_13] : memref<1x4xf32, #tpu.memory_space<vmem>>, vector<1x4xf32>
    %17 = vector.broadcast %16 : vector<1x4xf32> to vector<16x4xf32>
    %18 = arith.addf %15, %17 : vector<16x4xf32>
    %19 = arith.negf %18 : vector<16x4xf32>
    %20 = math.exp %19 : vector<16x4xf32>
    %cst_14 = arith.constant 1.000000e+00 : f32
    %21 = vector.broadcast %cst_14 : f32 to vector<16x4xf32>
    %22 = arith.addf %21, %20 : vector<16x4xf32>
    %23 = arith.divf %21, %22 : vector<16x4xf32>
    %24 = arith.truncf %23 : vector<16x4xf32> to vector<16x4xbf16>
    %c0_15 = arith.constant 0 : index
    %c0_16 = arith.constant 0 : index
    %c0_17 = arith.constant 0 : index
    %25 = vector.load %arg10[%c0_15, %c0_16, %c0_17] : memref<1x16x4xbf16, #tpu.memory_space<vmem>>, vector<1x16x4xbf16>
    %26 = vector.shape_cast %25 : vector<1x16x4xbf16> to vector<16x4xbf16>
    %27 = vector.shape_cast %24 : vector<16x4xbf16> to vector<1x16x4xbf16>
    tpu.vector_store %arg10[%c0_15, %c0_16, %c0_17], %27 {strides = array<i32>} : memref<1x16x4xbf16, #tpu.memory_space<vmem>>, vector<1x16x4xbf16>,
    %c0_18 = arith.constant 0 : index
    %c0_19 = arith.constant 0 : index
    %c0_20 = arith.constant 0 : index
    %28 = vector.load %arg2[%c0_18, %c0_19, %c0_20] : memref<1x16x4xf32, #tpu.memory_space<vmem>>, vector<1x16x4xf32>
    %29 = vector.shape_cast %28 : vector<1x16x4xf32> to vector<16x4xf32>
    %30 = arith.truncf %29 : vector<16x4xf32> to vector<16x4xbf16>
    %c0_21 = arith.constant 0 : index
    %c0_22 = arith.constant 0 : index
    %31 = vector.load %arg3[%c0_21, %c0_22] : memref<4x8xbf16, #tpu.memory_space<vmem>>, vector<4x8xbf16>
    %cst_23 = arith.constant dense<0.000000e+00> : vector<16x8xf32>
    %32 = tpu.matmul %30, %31, %cst_23 {dimension_numbers = #tpu.dot_dimension_numbers<[1], [0], [0], [1], [0, 0, 1, 1], [], []>} : vector<16x4xbf16>, vector<4x8xbf16>, vector<16x8xf32> -> vector<16x8xf32>
    %c0_24 = arith.constant 0 : index
    %c0_25 = arith.constant 0 : index
    %33 = vector.load %arg4[%c0_24, %c0_25] : memref<1x8xf32, #tpu.memory_space<vmem>>, vector<1x8xf32>
    %34 = vector.broadcast %33 : vector<1x8xf32> to vector<16x8xf32>
    %35 = arith.mulf %32, %34 : vector<16x8xf32>
    %c0_26 = arith.constant 0 : index
    %c0_27 = arith.constant 0 : index
    %36 = vector.load %arg5[%c0_26, %c0_27] : memref<1x8xf32, #tpu.memory_space<vmem>>, vector<1x8xf32>
    %37 = vector.broadcast %36 : vector<1x8xf32> to vector<16x8xf32>
    %38 = arith.addf %35, %37 : vector<16x8xf32>
    %cst_28 = arith.constant 0.000000e+00 : f32
    %39 = vector.broadcast %cst_28 : f32 to vector<16x8xf32>
    %40 = arith.maximumf %38, %39 : vector<16x8xf32>
    %41 = arith.truncf %40 : vector<16x8xf32> to vector<16x8xbf16>
    %c0_29 = arith.constant 0 : index
    %c0_30 = arith.constant 0 : index
    %42 = vector.load %arg8[%c0_29, %c0_30] : memref<8x4xbf16, #tpu.memory_space<vmem>>, vector<8x4xbf16>
    %cst_31 = arith.constant dense<0.000000e+00> : vector<16x4xf32>
    %43 = tpu.matmul %41, %42, %cst_31 {dimension_numbers = #tpu.dot_dimension_numbers<[1], [0], [0], [1], [0, 0, 1, 1], [], []>} : vector<16x8xbf16>, vector<8x4xbf16>, vector<16x4xf32> -> vector<16x4xf32>
    %c0_32 = arith.constant 0 : index
    %c0_33 = arith.constant 0 : index
    %44 = vector.load %arg9[%c0_32, %c0_33] : memref<1x4xf32, #tpu.memory_space<vmem>>, vector<1x4xf32>
    %45 = vector.broadcast %44 : vector<1x4xf32> to vector<16x4xf32>
    %46 = arith.addf %43, %45 : vector<16x4xf32>
    %47 = arith.negf %46 : vector<16x4xf32>
    %48 = math.exp %47 : vector<16x4xf32>
    %cst_34 = arith.constant 1.000000e+00 : f32
    %49 = vector.broadcast %cst_34 : f32 to vector<16x4xf32>
    %50 = arith.addf %49, %48 : vector<16x4xf32>
    %51 = arith.divf %49, %50 : vector<16x4xf32>
    %52 = arith.truncf %51 : vector<16x4xf32> to vector<16x4xbf16>
    %c0_35 = arith.constant 0 : index
    %c0_36 = arith.constant 0 : index
    %c0_37 = arith.constant 0 : index
    %53 = vector.load %arg11[%c0_35, %c0_36, %c0_37] : memref<1x16x4xbf16, #tpu.memory_space<vmem>>, vector<1x16x4xbf16>
    %54 = vector.shape_cast %53 : vector<1x16x4xbf16> to vector<16x4xbf16>
    %55 = vector.shape_cast %52 : vector<16x4xbf16> to vector<1x16x4xbf16>
    tpu.vector_store %arg11[%c0_35, %c0_36, %c0_37], %55 {strides = array<i32>} : memref<1x16x4xbf16, #tpu.memory_space<vmem>>, vector<1x16x4xbf16>,
    return
  }
  func.func @transform_0(%arg0: i32) -> (i32, i32, i32) {
    %c0_i32 = arith.constant 0 : i32
    %c0_i32_0 = arith.constant 0 : i32
    %c0_i32_1 = arith.constant 0 : i32
    return %arg0, %c0_i32, %c0_i32_0 : i32, i32, i32
  }
  func.func @transform_1(%arg0: i32) -> (i32, i32, i32) {
    %c0_i32 = arith.constant 0 : i32
    %c0_i32_0 = arith.constant 0 : i32
    %c0_i32_1 = arith.constant 0 : i32
    return %arg0, %c0_i32, %c0_i32_0 : i32, i32, i32
  }
  func.func @transform_2(%arg0: i32) -> (i32, i32) {
    %c0_i32 = arith.constant 0 : i32
    %c0_i32_0 = arith.constant 0 : i32
    %c0_i32_1 = arith.constant 0 : i32
    return %c0_i32, %c0_i32_0 : i32, i32
  }
  func.func @transform_3(%arg0: i32) -> (i32, i32) {
    %c0_i32 = arith.constant 0 : i32
    %c0_i32_0 = arith.constant 0 : i32
    %c0_i32_1 = arith.constant 0 : i32
    return %c0_i32, %c0_i32_0 : i32, i32
  }
  func.func @transform_4(%arg0: i32) -> (i32, i32) {
    %c0_i32 = arith.constant 0 : i32
    %c0_i32_0 = arith.constant 0 : i32
    %c0_i32_1 = arith.constant 0 : i32
    return %c0_i32, %c0_i32_0 : i32, i32
  }
  func.func @transform_5(%arg0: i32) -> (i32, i32) {
    %c0_i32 = arith.constant 0 : i32
    %c0_i32_0 = arith.constant 0 : i32
    %c0_i32_1 = arith.constant 0 : i32
    return %c0_i32, %c0_i32_0 : i32, i32
  }
  func.func @transform_6(%arg0: i32) -> (i32, i32) {
    %c0_i32 = arith.constant 0 : i32
    %c0_i32_0 = arith.constant 0 : i32
    %c0_i32_1 = arith.constant 0 : i32
    return %c0_i32, %c0_i32_0 : i32, i32
  }
  func.func @transform_7(%arg0: i32) -> (i32, i32) {
    %c0_i32 = arith.constant 0 : i32
    %c0_i32_0 = arith.constant 0 : i32
    %c0_i32_1 = arith.constant 0 : i32
    return %c0_i32, %c0_i32_0 : i32, i32
  }
  func.func @transform_8(%arg0: i32) -> (i32, i32) {
    %c0_i32 = arith.constant 0 : i32
    %c0_i32_0 = arith.constant 0 : i32
    %c0_i32_1 = arith.constant 0 : i32
    return %c0_i32, %c0_i32_0 : i32, i32
  }
  func.func @transform_9(%arg0: i32) -> (i32, i32, i32) {
    %c0_i32 = arith.constant 0 : i32
    %c0_i32_0 = arith.constant 0 : i32
    %c0_i32_1 = arith.constant 0 : i32
    return %arg0, %c0_i32, %c0_i32_0 : i32, i32, i32
  }
  func.func @transform_10(%arg0: i32) -> (i32, i32, i32) {
    %c0_i32 = arith.constant 0 : i32
    %c0_i32_0 = arith.constant 0 : i32
    %c0_i32_1 = arith.constant 0 : i32
    return %arg0, %c0_i32, %c0_i32_0 : i32, i32, i32
  }
}

module attributes {stable_mosaic.version = 11 : i64} {
  func.func @_ca_apply_kernel(%arg0: i32, %arg1: i32, %arg2: memref<1x16x16x4xbf16, #tpu.memory_space<vmem>>, %arg3: memref<1x16x1x4xbf16, #tpu.memory_space<vmem>>, %arg4: memref<1x16x4xbf16, #tpu.memory_space<vmem>>, %arg5: memref<1x16x16x4xf32, #tpu.memory_space<vmem>>) attributes {dimension_semantics = [#tpu.dimension_semantics<parallel>, #tpu.dimension_semantics<parallel>], iteration_bounds = array<i64: 2, 1>, scalar_prefetch = 0 : i64, scratch_operands = 0 : i64, tpu.core_type = #tpu.core_type<tc>, window_params = [{transform_indices = @transform_0, window_bounds = array<i64: 1, 16, 16, 4>}, {transform_indices = @transform_1, window_bounds = array<i64: 1, 16, 1, 4>}, {transform_indices = @transform_2, window_bounds = array<i64: 1, 16, 4>}, {transform_indices = @transform_3, window_bounds = array<i64: 1, 16, 16, 4>}]} {
    %c0 = arith.constant 0 : index
    %c0_0 = arith.constant 0 : index
    %c0_1 = arith.constant 0 : index
    %c0_2 = arith.constant 0 : index
    %0 = vector.load %arg2[%c0, %c0_0, %c0_1, %c0_2] : memref<1x16x16x4xbf16, #tpu.memory_space<vmem>>, vector<1x16x16x4xbf16>
    %1 = vector.shape_cast %0 : vector<1x16x16x4xbf16> to vector<16x16x4xbf16>
    %2 = arith.extf %1 : vector<16x16x4xbf16> to vector<16x16x4xf32>
    %c0_3 = arith.constant 0 : index
    %c0_4 = arith.constant 0 : index
    %c0_5 = arith.constant 0 : index
    %c0_6 = arith.constant 0 : index
    %3 = vector.load %arg3[%c0_3, %c0_4, %c0_5, %c0_6] : memref<1x16x1x4xbf16, #tpu.memory_space<vmem>>, vector<1x16x1x4xbf16>
    %4 = vector.shape_cast %3 : vector<1x16x1x4xbf16> to vector<16x1x4xbf16>
    %5 = arith.extf %4 : vector<16x1x4xbf16> to vector<16x1x4xf32>
    %c0_7 = arith.constant 0 : index
    %c0_8 = arith.constant 0 : index
    %c0_9 = arith.constant 0 : index
    %6 = vector.load %arg4[%c0_7, %c0_8, %c0_9] : memref<1x16x4xbf16, #tpu.memory_space<vmem>>, vector<1x16x4xbf16>
    %7 = vector.shape_cast %6 : vector<1x16x4xbf16> to vector<16x4xbf16>
    %8 = arith.extf %7 : vector<16x4xbf16> to vector<16x4xf32>
    %9 = vector.broadcast %5 : vector<16x1x4xf32> to vector<16x16x4xf32>
    %10 = arith.mulf %2, %9 : vector<16x16x4xf32>
    %11 = vector.shape_cast %8 : vector<16x4xf32> to vector<1x16x4xf32>
    %12 = vector.broadcast %11 : vector<1x16x4xf32> to vector<16x16x4xf32>
    %13 = arith.mulf %10, %12 : vector<16x16x4xf32>
    %c0_10 = arith.constant 0 : index
    %c0_11 = arith.constant 0 : index
    %c0_12 = arith.constant 0 : index
    %c0_13 = arith.constant 0 : index
    %14 = vector.load %arg5[%c0_10, %c0_11, %c0_12, %c0_13] : memref<1x16x16x4xf32, #tpu.memory_space<vmem>>, vector<1x16x16x4xf32>
    %15 = vector.shape_cast %14 : vector<1x16x16x4xf32> to vector<16x16x4xf32>
    %16 = vector.shape_cast %13 : vector<16x16x4xf32> to vector<1x16x16x4xf32>
    tpu.vector_store %arg5[%c0_10, %c0_11, %c0_12, %c0_13], %16 {strides = array<i32>} : memref<1x16x16x4xf32, #tpu.memory_space<vmem>>, vector<1x16x16x4xf32>,
    return
  }
  func.func @transform_0(%arg0: i32, %arg1: i32) -> (i32, i32, i32, i32) {
    %c0_i32 = arith.constant 0 : i32
    %c0_i32_0 = arith.constant 0 : i32
    %c0_i32_1 = arith.constant 0 : i32
    return %arg0, %arg1, %c0_i32, %c0_i32_0 : i32, i32, i32, i32
  }
  func.func @transform_1(%arg0: i32, %arg1: i32) -> (i32, i32, i32, i32) {
    %c0_i32 = arith.constant 0 : i32
    %c0_i32_0 = arith.constant 0 : i32
    %c0_i32_1 = arith.constant 0 : i32
    return %arg0, %arg1, %c0_i32, %c0_i32_0 : i32, i32, i32, i32
  }
  func.func @transform_2(%arg0: i32, %arg1: i32) -> (i32, i32, i32) {
    %c0_i32 = arith.constant 0 : i32
    %c0_i32_0 = arith.constant 0 : i32
    %c0_i32_1 = arith.constant 0 : i32
    return %arg0, %c0_i32, %c0_i32_0 : i32, i32, i32
  }
  func.func @transform_3(%arg0: i32, %arg1: i32) -> (i32, i32, i32, i32) {
    %c0_i32 = arith.constant 0 : i32
    %c0_i32_0 = arith.constant 0 : i32
    %c0_i32_1 = arith.constant 0 : i32
    return %arg0, %arg1, %c0_i32, %c0_i32_0 : i32, i32, i32, i32
  }
}

module attributes {stable_mosaic.version = 11 : i64} {
  func.func @_dsconv_kernel(%arg0: i32, %arg1: i32, %arg2: memref<1x16x16x4xbf16, #tpu.memory_space<vmem>>, %arg3: memref<1x1x16x4xbf16, #tpu.memory_space<vmem>>, %arg4: memref<1x1x16x4xbf16, #tpu.memory_space<vmem>>, %arg5: memref<1x16x1x4xbf16, #tpu.memory_space<vmem>>, %arg6: memref<1x1x1x4xbf16, #tpu.memory_space<vmem>>, %arg7: memref<1x1x1x4xbf16, #tpu.memory_space<vmem>>, %arg8: memref<1x16x4xbf16, #tpu.memory_space<vmem>>, %arg9: memref<3x3x4xf32, #tpu.memory_space<vmem>>, %arg10: memref<4x4xbf16, #tpu.memory_space<vmem>>, %arg11: memref<1x4xf32, #tpu.memory_space<vmem>>, %arg12: memref<1x4xf32, #tpu.memory_space<vmem>>, %arg13: memref<1x16x16x4xbf16, #tpu.memory_space<vmem>>, %arg14: memref<1x16x4xf32, #tpu.memory_space<vmem>>, %arg15: memref<1x1x16x4xf32, #tpu.memory_space<vmem>>, %arg16: memref<18x18x4xf32, #tpu.memory_space<vmem>>) attributes {dimension_semantics = [#tpu.dimension_semantics<parallel>, #tpu.dimension_semantics<parallel>], iteration_bounds = array<i64: 2, 1>, scalar_prefetch = 0 : i64, scratch_operands = 1 : i64, tpu.core_type = #tpu.core_type<tc>, window_params = [{transform_indices = @transform_0, window_bounds = array<i64: 1, 16, 16, 4>}, {transform_indices = @transform_1, window_bounds = array<i64: 1, 1, 16, 4>}, {transform_indices = @transform_2, window_bounds = array<i64: 1, 1, 16, 4>}, {transform_indices = @transform_3, window_bounds = array<i64: 1, 16, 1, 4>}, {transform_indices = @transform_4, window_bounds = array<i64: 1, 1, 1, 4>}, {transform_indices = @transform_5, window_bounds = array<i64: 1, 1, 1, 4>}, {transform_indices = @transform_6, window_bounds = array<i64: 1, 16, 4>}, {pipeline_mode = #tpu.pipeline_mode<synchronous>, transform_indices = @transform_7, window_bounds = array<i64: 3, 3, 4>}, {pipeline_mode = #tpu.pipeline_mode<synchronous>, transform_indices = @transform_8, window_bounds = array<i64: 4, 4>}, {pipeline_mode = #tpu.pipeline_mode<synchronous>, transform_indices = @transform_9, window_bounds = array<i64: 1, 4>}, {pipeline_mode = #tpu.pipeline_mode<synchronous>, transform_indices = @transform_10, window_bounds = array<i64: 1, 4>}, {transform_indices = @transform_11, window_bounds = array<i64: 1, 16, 16, 4>}, {transform_indices = @transform_12, window_bounds = array<i64: 1, 16, 4>}, {transform_indices = @transform_13, window_bounds = array<i64: 1, 1, 16, 4>}]} {
    %c0 = arith.constant 0 : index
    %c0_0 = arith.constant 0 : index
    %c0_1 = arith.constant 0 : index
    %c0_2 = arith.constant 0 : index
    %0 = vector.load %arg2[%c0, %c0_0, %c0_1, %c0_2] : memref<1x16x16x4xbf16, #tpu.memory_space<vmem>>, vector<1x16x16x4xbf16>
    %1 = vector.shape_cast %0 : vector<1x16x16x4xbf16> to vector<16x16x4xbf16>
    %2 = arith.extf %1 : vector<16x16x4xbf16> to vector<16x16x4xf32>
    %c0_3 = arith.constant 0 : index
    %c0_4 = arith.constant 0 : index
    %c0_5 = arith.constant 0 : index
    %c0_6 = arith.constant 0 : index
    %3 = vector.load %arg3[%c0_3, %c0_4, %c0_5, %c0_6] : memref<1x1x16x4xbf16, #tpu.memory_space<vmem>>, vector<1x1x16x4xbf16>
    %4 = vector.shape_cast %3 : vector<1x1x16x4xbf16> to vector<16x4xbf16>
    %5 = arith.extf %4 : vector<16x4xbf16> to vector<16x4xf32>
    %c0_7 = arith.constant 0 : index
    %c0_8 = arith.constant 0 : index
    %c0_9 = arith.constant 0 : index
    %c0_10 = arith.constant 0 : index
    %6 = vector.load %arg4[%c0_7, %c0_8, %c0_9, %c0_10] : memref<1x1x16x4xbf16, #tpu.memory_space<vmem>>, vector<1x1x16x4xbf16>
    %7 = vector.shape_cast %6 : vector<1x1x16x4xbf16> to vector<16x4xbf16>
    %8 = arith.extf %7 : vector<16x4xbf16> to vector<16x4xf32>
    %c0_11 = arith.constant 0 : index
    %c0_12 = arith.constant 0 : index
    %c0_13 = arith.constant 0 : index
    %9 = vector.load %arg8[%c0_11, %c0_12, %c0_13] : memref<1x16x4xbf16, #tpu.memory_space<vmem>>, vector<1x16x4xbf16>
    %10 = vector.shape_cast %9 : vector<1x16x4xbf16> to vector<16x4xbf16>
    %11 = arith.extf %10 : vector<16x4xbf16> to vector<16x4xf32>
    %c0_14 = arith.constant 0 : index
    %c0_15 = arith.constant 0 : index
    %c0_16 = arith.constant 0 : index
    %c0_17 = arith.constant 0 : index
    %12 = vector.load %arg5[%c0_14, %c0_15, %c0_16, %c0_17] : memref<1x16x1x4xbf16, #tpu.memory_space<vmem>>, vector<1x16x1x4xbf16>
    %13 = vector.shape_cast %12 : vector<1x16x1x4xbf16> to vector<16x1x4xbf16>
    %14 = arith.extf %13 : vector<16x1x4xbf16> to vector<16x1x4xf32>
    %15 = vector.broadcast %14 : vector<16x1x4xf32> to vector<16x16x4xf32>
    %16 = arith.mulf %2, %15 : vector<16x16x4xf32>
    %17 = vector.shape_cast %11 : vector<16x4xf32> to vector<1x16x4xf32>
    %18 = vector.broadcast %17 : vector<1x16x4xf32> to vector<16x16x4xf32>
    %19 = arith.mulf %16, %18 : vector<16x16x4xf32>
    %c0_18 = arith.constant 0 : index
    %c0_19 = arith.constant 0 : index
    %c0_20 = arith.constant 0 : index
    %c0_21 = arith.constant 0 : index
    %20 = vector.load %arg6[%c0_18, %c0_19, %c0_20, %c0_21] : memref<1x1x1x4xbf16, #tpu.memory_space<vmem>>, vector<1x1x1x4xbf16>
    %21 = vector.shape_cast %20 : vector<1x1x1x4xbf16> to vector<1x4xbf16>
    %22 = arith.extf %21 : vector<1x4xbf16> to vector<1x4xf32>
    %23 = vector.broadcast %22 : vector<1x4xf32> to vector<16x4xf32>
    %24 = arith.mulf %5, %23 : vector<16x4xf32>
    %25 = arith.mulf %24, %11 : vector<16x4xf32>
    %c0_22 = arith.constant 0 : index
    %c0_23 = arith.constant 0 : index
    %c0_24 = arith.constant 0 : index
    %c0_25 = arith.constant 0 : index
    %26 = vector.load %arg7[%c0_22, %c0_23, %c0_24, %c0_25] : memref<1x1x1x4xbf16, #tpu.memory_space<vmem>>, vector<1x1x1x4xbf16>
    %27 = vector.shape_cast %26 : vector<1x1x1x4xbf16> to vector<1x4xbf16>
    %28 = arith.extf %27 : vector<1x4xbf16> to vector<1x4xf32>
    %29 = vector.broadcast %28 : vector<1x4xf32> to vector<16x4xf32>
    %30 = arith.mulf %8, %29 : vector<16x4xf32>
    %31 = arith.mulf %30, %11 : vector<16x4xf32>
    %c0_i32 = arith.constant 0 : i32
    %32 = arith.cmpi sgt, %arg1, %c0_i32 : i32
    %cst = arith.constant 1.000000e+00 : f32
    %cst_26 = arith.constant 0.000000e+00 : f32
    %33 = arith.select %32, %cst, %cst_26 : f32
    %34 = vector.broadcast %33 : f32 to vector<16x4xf32>
    %35 = arith.mulf %25, %34 : vector<16x4xf32>
    %c16_i32 = arith.constant 16 : i32
    %36 = arith.muli %arg1, %c16_i32 : i32
    %c16_i32_27 = arith.constant 16 : i32
    %37 = arith.addi %36, %c16_i32_27 : i32
    %c16_i32_28 = arith.constant 16 : i32
    %38 = arith.cmpi slt, %37, %c16_i32_28 : i32
    %cst_29 = arith.constant 1.000000e+00 : f32
    %cst_30 = arith.constant 0.000000e+00 : f32
    %39 = arith.select %38, %cst_29, %cst_30 : f32
    %40 = vector.broadcast %39 : f32 to vector<16x4xf32>
    %41 = arith.mulf %31, %40 : vector<16x4xf32>
    %42 = vector.shape_cast %35 : vector<16x4xf32> to vector<1x16x4xf32>
    %43 = vector.shape_cast %41 : vector<16x4xf32> to vector<1x16x4xf32>
    %44 = tpu.concatenate %42, %19, %43 in 0 : vector<1x16x4xf32>, vector<16x16x4xf32>, vector<1x16x4xf32> -> vector<18x16x4xf32>
    %cst_31 = arith.constant 0.000000e+00 : f32
    %45 = vector.broadcast %cst_31 : f32 to vector<18x1x4xf32>
    %46 = tpu.concatenate %45, %44, %45 in 1 : vector<18x1x4xf32>, vector<18x16x4xf32>, vector<18x1x4xf32> -> vector<18x18x4xf32>
    %c0_32 = arith.constant 0 : index
    %c0_33 = arith.constant 0 : index
    %c0_34 = arith.constant 0 : index
    %47 = vector.load %arg16[%c0_32, %c0_33, %c0_34] : memref<18x18x4xf32, #tpu.memory_space<vmem>>, vector<18x18x4xf32>
    tpu.vector_store %arg16[%c0_32, %c0_33, %c0_34], %46 {strides = array<i32>} : memref<18x18x4xf32, #tpu.memory_space<vmem>>, vector<18x18x4xf32>,
    %cst_35 = arith.constant 0.000000e+00 : f32
    %48 = vector.broadcast %cst_35 : f32 to vector<16x16x4xf32>
    %c0_36 = arith.constant 0 : index
    %c0_37 = arith.constant 0 : index
    %c0_38 = arith.constant 0 : index
    %49 = vector.load %arg9[%c0_36, %c0_37, %c0_38] : memref<3x3x4xf32, #tpu.memory_space<vmem>>, vector<1x1x4xf32>
    %50 = vector.shape_cast %49 : vector<1x1x4xf32> to vector<4xf32>
    %51 = vector.shape_cast %50 : vector<4xf32> to vector<1x1x4xf32>
    %c0_39 = arith.constant 0 : index
    %c0_40 = arith.constant 0 : index
    %c0_41 = arith.constant 0 : index
    %52 = vector.load %arg16[%c0_39, %c0_40, %c0_41] : memref<18x18x4xf32, #tpu.memory_space<vmem>>, vector<16x16x4xf32>
    %53 = vector.broadcast %51 : vector<1x1x4xf32> to vector<16x16x4xf32>
    %54 = arith.mulf %52, %53 : vector<16x16x4xf32>
    %55 = arith.addf %48, %54 : vector<16x16x4xf32>
    %c0_42 = arith.constant 0 : index
    %c1 = arith.constant 1 : index
    %c0_43 = arith.constant 0 : index
    %56 = vector.load %arg9[%c0_42, %c1, %c0_43] : memref<3x3x4xf32, #tpu.memory_space<vmem>>, vector<1x1x4xf32>
    %57 = vector.shape_cast %56 : vector<1x1x4xf32> to vector<4xf32>
    %58 = vector.shape_cast %57 : vector<4xf32> to vector<1x1x4xf32>
    %c0_44 = arith.constant 0 : index
    %c1_45 = arith.constant 1 : index
    %c0_46 = arith.constant 0 : index
    %59 = vector.load %arg16[%c0_44, %c1_45, %c0_46] : memref<18x18x4xf32, #tpu.memory_space<vmem>>, vector<16x16x4xf32>
    %60 = vector.broadcast %58 : vector<1x1x4xf32> to vector<16x16x4xf32>
    %61 = arith.mulf %59, %60 : vector<16x16x4xf32>
    %62 = arith.addf %55, %61 : vector<16x16x4xf32>
    %c0_47 = arith.constant 0 : index
    %c2 = arith.constant 2 : index
    %c0_48 = arith.constant 0 : index
    %63 = vector.load %arg9[%c0_47, %c2, %c0_48] : memref<3x3x4xf32, #tpu.memory_space<vmem>>, vector<1x1x4xf32>
    %64 = vector.shape_cast %63 : vector<1x1x4xf32> to vector<4xf32>
    %65 = vector.shape_cast %64 : vector<4xf32> to vector<1x1x4xf32>
    %c0_49 = arith.constant 0 : index
    %c2_50 = arith.constant 2 : index
    %c0_51 = arith.constant 0 : index
    %66 = vector.load %arg16[%c0_49, %c2_50, %c0_51] : memref<18x18x4xf32, #tpu.memory_space<vmem>>, vector<16x16x4xf32>
    %67 = vector.broadcast %65 : vector<1x1x4xf32> to vector<16x16x4xf32>
    %68 = arith.mulf %66, %67 : vector<16x16x4xf32>
    %69 = arith.addf %62, %68 : vector<16x16x4xf32>
    %c1_52 = arith.constant 1 : index
    %c0_53 = arith.constant 0 : index
    %c0_54 = arith.constant 0 : index
    %70 = vector.load %arg9[%c1_52, %c0_53, %c0_54] : memref<3x3x4xf32, #tpu.memory_space<vmem>>, vector<1x1x4xf32>
    %71 = vector.shape_cast %70 : vector<1x1x4xf32> to vector<4xf32>
    %72 = vector.shape_cast %71 : vector<4xf32> to vector<1x1x4xf32>
    %c1_55 = arith.constant 1 : index
    %c0_56 = arith.constant 0 : index
    %c0_57 = arith.constant 0 : index
    %73 = vector.load %arg16[%c1_55, %c0_56, %c0_57] : memref<18x18x4xf32, #tpu.memory_space<vmem>>, vector<16x16x4xf32>
    %74 = vector.broadcast %72 : vector<1x1x4xf32> to vector<16x16x4xf32>
    %75 = arith.mulf %73, %74 : vector<16x16x4xf32>
    %76 = arith.addf %69, %75 : vector<16x16x4xf32>
    %c1_58 = arith.constant 1 : index
    %c1_59 = arith.constant 1 : index
    %c0_60 = arith.constant 0 : index
    %77 = vector.load %arg9[%c1_58, %c1_59, %c0_60] : memref<3x3x4xf32, #tpu.memory_space<vmem>>, vector<1x1x4xf32>
    %78 = vector.shape_cast %77 : vector<1x1x4xf32> to vector<4xf32>
    %79 = vector.shape_cast %78 : vector<4xf32> to vector<1x1x4xf32>
    %c1_61 = arith.constant 1 : index
    %c1_62 = arith.constant 1 : index
    %c0_63 = arith.constant 0 : index
    %80 = vector.load %arg16[%c1_61, %c1_62, %c0_63] : memref<18x18x4xf32, #tpu.memory_space<vmem>>, vector<16x16x4xf32>
    %81 = vector.broadcast %79 : vector<1x1x4xf32> to vector<16x16x4xf32>
    %82 = arith.mulf %80, %81 : vector<16x16x4xf32>
    %83 = arith.addf %76, %82 : vector<16x16x4xf32>
    %c1_64 = arith.constant 1 : index
    %c2_65 = arith.constant 2 : index
    %c0_66 = arith.constant 0 : index
    %84 = vector.load %arg9[%c1_64, %c2_65, %c0_66] : memref<3x3x4xf32, #tpu.memory_space<vmem>>, vector<1x1x4xf32>
    %85 = vector.shape_cast %84 : vector<1x1x4xf32> to vector<4xf32>
    %86 = vector.shape_cast %85 : vector<4xf32> to vector<1x1x4xf32>
    %c1_67 = arith.constant 1 : index
    %c2_68 = arith.constant 2 : index
    %c0_69 = arith.constant 0 : index
    %87 = vector.load %arg16[%c1_67, %c2_68, %c0_69] : memref<18x18x4xf32, #tpu.memory_space<vmem>>, vector<16x16x4xf32>
    %88 = vector.broadcast %86 : vector<1x1x4xf32> to vector<16x16x4xf32>
    %89 = arith.mulf %87, %88 : vector<16x16x4xf32>
    %90 = arith.addf %83, %89 : vector<16x16x4xf32>
    %c2_70 = arith.constant 2 : index
    %c0_71 = arith.constant 0 : index
    %c0_72 = arith.constant 0 : index
    %91 = vector.load %arg9[%c2_70, %c0_71, %c0_72] : memref<3x3x4xf32, #tpu.memory_space<vmem>>, vector<1x1x4xf32>
    %92 = vector.shape_cast %91 : vector<1x1x4xf32> to vector<4xf32>
    %93 = vector.shape_cast %92 : vector<4xf32> to vector<1x1x4xf32>
    %c2_73 = arith.constant 2 : index
    %c0_74 = arith.constant 0 : index
    %c0_75 = arith.constant 0 : index
    %94 = vector.load %arg16[%c2_73, %c0_74, %c0_75] : memref<18x18x4xf32, #tpu.memory_space<vmem>>, vector<16x16x4xf32>
    %95 = vector.broadcast %93 : vector<1x1x4xf32> to vector<16x16x4xf32>
    %96 = arith.mulf %94, %95 : vector<16x16x4xf32>
    %97 = arith.addf %90, %96 : vector<16x16x4xf32>
    %c2_76 = arith.constant 2 : index
    %c1_77 = arith.constant 1 : index
    %c0_78 = arith.constant 0 : index
    %98 = vector.load %arg9[%c2_76, %c1_77, %c0_78] : memref<3x3x4xf32, #tpu.memory_space<vmem>>, vector<1x1x4xf32>
    %99 = vector.shape_cast %98 : vector<1x1x4xf32> to vector<4xf32>
    %100 = vector.shape_cast %99 : vector<4xf32> to vector<1x1x4xf32>
    %c2_79 = arith.constant 2 : index
    %c1_80 = arith.constant 1 : index
    %c0_81 = arith.constant 0 : index
    %101 = vector.load %arg16[%c2_79, %c1_80, %c0_81] : memref<18x18x4xf32, #tpu.memory_space<vmem>>, vector<16x16x4xf32>
    %102 = vector.broadcast %100 : vector<1x1x4xf32> to vector<16x16x4xf32>
    %103 = arith.mulf %101, %102 : vector<16x16x4xf32>
    %104 = arith.addf %97, %103 : vector<16x16x4xf32>
    %c2_82 = arith.constant 2 : index
    %c2_83 = arith.constant 2 : index
    %c0_84 = arith.constant 0 : index
    %105 = vector.load %arg9[%c2_82, %c2_83, %c0_84] : memref<3x3x4xf32, #tpu.memory_space<vmem>>, vector<1x1x4xf32>
    %106 = vector.shape_cast %105 : vector<1x1x4xf32> to vector<4xf32>
    %107 = vector.shape_cast %106 : vector<4xf32> to vector<1x1x4xf32>
    %c2_85 = arith.constant 2 : index
    %c2_86 = arith.constant 2 : index
    %c0_87 = arith.constant 0 : index
    %108 = vector.load %arg16[%c2_85, %c2_86, %c0_87] : memref<18x18x4xf32, #tpu.memory_space<vmem>>, vector<16x16x4xf32>
    %109 = vector.broadcast %107 : vector<1x1x4xf32> to vector<16x16x4xf32>
    %110 = arith.mulf %108, %109 : vector<16x16x4xf32>
    %111 = arith.addf %104, %110 : vector<16x16x4xf32>
    %112 = vector.shape_cast %111 : vector<16x16x4xf32> to vector<256x4xf32>
    %113 = arith.truncf %112 : vector<256x4xf32> to vector<256x4xbf16>
    %c0_88 = arith.constant 0 : index
    %c0_89 = arith.constant 0 : index
    %114 = vector.load %arg10[%c0_88, %c0_89] : memref<4x4xbf16, #tpu.memory_space<vmem>>, vector<4x4xbf16>
    %cst_90 = arith.constant dense<0.000000e+00> : vector<256x4xf32>
    %115 = tpu.matmul %113, %114, %cst_90 {dimension_numbers = #tpu.dot_dimension_numbers<[1], [0], [0], [1], [0, 0, 1, 1], [], []>} : vector<256x4xbf16>, vector<4x4xbf16>, vector<256x4xf32> -> vector<256x4xf32>
    %c0_91 = arith.constant 0 : index
    %c0_92 = arith.constant 0 : index
    %116 = vector.load %arg11[%c0_91, %c0_92] : memref<1x4xf32, #tpu.memory_space<vmem>>, vector<1x4xf32>
    %117 = vector.broadcast %116 : vector<1x4xf32> to vector<256x4xf32>
    %118 = arith.mulf %115, %117 : vector<256x4xf32>
    %c0_93 = arith.constant 0 : index
    %c0_94 = arith.constant 0 : index
    %119 = vector.load %arg12[%c0_93, %c0_94] : memref<1x4xf32, #tpu.memory_space<vmem>>, vector<1x4xf32>
    %120 = vector.broadcast %119 : vector<1x4xf32> to vector<256x4xf32>
    %121 = arith.addf %118, %120 : vector<256x4xf32>
    %cst_95 = arith.constant 0.000000e+00 : f32
    %122 = vector.broadcast %cst_95 : f32 to vector<256x4xf32>
    %123 = arith.maximumf %121, %122 : vector<256x4xf32>
    %124 = vector.shape_cast %123 : vector<256x4xf32> to vector<16x16x4xf32>
    %125 = arith.truncf %124 : vector<16x16x4xf32> to vector<16x16x4xbf16>
    %c0_96 = arith.constant 0 : index
    %c0_97 = arith.constant 0 : index
    %c0_98 = arith.constant 0 : index
    %c0_99 = arith.constant 0 : index
    %126 = vector.load %arg13[%c0_96, %c0_97, %c0_98, %c0_99] : memref<1x16x16x4xbf16, #tpu.memory_space<vmem>>, vector<1x16x16x4xbf16>
    %127 = vector.shape_cast %126 : vector<1x16x16x4xbf16> to vector<16x16x4xbf16>
    %128 = vector.shape_cast %125 : vector<16x16x4xbf16> to vector<1x16x16x4xbf16>
    tpu.vector_store %arg13[%c0_96, %c0_97, %c0_98, %c0_99], %128 {strides = array<i32>} : memref<1x16x16x4xbf16, #tpu.memory_space<vmem>>, vector<1x16x16x4xbf16>,
    %cst_100 = arith.constant dense<0.000000e+00> : vector<16x4xf32>
    %129 = vector.multi_reduction <add>, %124, %cst_100 [1] : vector<16x16x4xf32> to vector<16x4xf32>
    %cst_101 = arith.constant 6.250000e-02 : f32
    %130 = vector.broadcast %cst_101 : f32 to vector<16x4xf32>
    %131 = arith.mulf %129, %130 : vector<16x4xf32>
    %c0_102 = arith.constant 0 : index
    %c0_103 = arith.constant 0 : index
    %c0_104 = arith.constant 0 : index
    %132 = vector.load %arg14[%c0_102, %c0_103, %c0_104] : memref<1x16x4xf32, #tpu.memory_space<vmem>>, vector<1x16x4xf32>
    %133 = vector.shape_cast %132 : vector<1x16x4xf32> to vector<16x4xf32>
    %134 = vector.shape_cast %131 : vector<16x4xf32> to vector<1x16x4xf32>
    tpu.vector_store %arg14[%c0_102, %c0_103, %c0_104], %134 {strides = array<i32>} : memref<1x16x4xf32, #tpu.memory_space<vmem>>, vector<1x16x4xf32>,
    %cst_105 = arith.constant dense<0.000000e+00> : vector<16x4xf32>
    %135 = vector.multi_reduction <add>, %124, %cst_105 [0] : vector<16x16x4xf32> to vector<16x4xf32>
    %c0_106 = arith.constant 0 : index
    %c0_107 = arith.constant 0 : index
    %c0_108 = arith.constant 0 : index
    %c0_109 = arith.constant 0 : index
    %136 = vector.load %arg15[%c0_106, %c0_107, %c0_108, %c0_109] : memref<1x1x16x4xf32, #tpu.memory_space<vmem>>, vector<1x1x16x4xf32>
    %137 = vector.shape_cast %136 : vector<1x1x16x4xf32> to vector<16x4xf32>
    %138 = vector.shape_cast %135 : vector<16x4xf32> to vector<1x1x16x4xf32>
    tpu.vector_store %arg15[%c0_106, %c0_107, %c0_108, %c0_109], %138 {strides = array<i32>} : memref<1x1x16x4xf32, #tpu.memory_space<vmem>>, vector<1x1x16x4xf32>,
    return
  }
  func.func @transform_0(%arg0: i32, %arg1: i32) -> (i32, i32, i32, i32) {
    %c0_i32 = arith.constant 0 : i32
    %c0_i32_0 = arith.constant 0 : i32
    %c0_i32_1 = arith.constant 0 : i32
    return %arg0, %arg1, %c0_i32, %c0_i32_0 : i32, i32, i32, i32
  }
  func.func @transform_1(%arg0: i32, %arg1: i32) -> (i32, i32, i32, i32) {
    %c16_i32 = arith.constant 16 : i32
    %0 = arith.muli %arg1, %c16_i32 : i32
    %c1_i32 = arith.constant 1 : i32
    %1 = arith.subi %0, %c1_i32 : i32
    %c0_i32 = arith.constant 0 : i32
    %2 = arith.maxsi %1, %c0_i32 : i32
    %c0_i32_0 = arith.constant 0 : i32
    %c0_i32_1 = arith.constant 0 : i32
    %c0_i32_2 = arith.constant 0 : i32
    return %arg0, %2, %c0_i32_0, %c0_i32_1 : i32, i32, i32, i32
  }
  func.func @transform_2(%arg0: i32, %arg1: i32) -> (i32, i32, i32, i32) {
    %c16_i32 = arith.constant 16 : i32
    %0 = arith.muli %arg1, %c16_i32 : i32
    %c16_i32_0 = arith.constant 16 : i32
    %1 = arith.addi %0, %c16_i32_0 : i32
    %c15_i32 = arith.constant 15 : i32
    %2 = arith.minsi %1, %c15_i32 : i32
    %c0_i32 = arith.constant 0 : i32
    %c0_i32_1 = arith.constant 0 : i32
    %c0_i32_2 = arith.constant 0 : i32
    return %arg0, %2, %c0_i32, %c0_i32_1 : i32, i32, i32, i32
  }
  func.func @transform_3(%arg0: i32, %arg1: i32) -> (i32, i32, i32, i32) {
    %c0_i32 = arith.constant 0 : i32
    %c0_i32_0 = arith.constant 0 : i32
    %c0_i32_1 = arith.constant 0 : i32
    return %arg0, %arg1, %c0_i32, %c0_i32_0 : i32, i32, i32, i32
  }
  func.func @transform_4(%arg0: i32, %arg1: i32) -> (i32, i32, i32, i32) {
    %c16_i32 = arith.constant 16 : i32
    %0 = arith.muli %arg1, %c16_i32 : i32
    %c1_i32 = arith.constant 1 : i32
    %1 = arith.subi %0, %c1_i32 : i32
    %c0_i32 = arith.constant 0 : i32
    %2 = arith.maxsi %1, %c0_i32 : i32
    %c0_i32_0 = arith.constant 0 : i32
    %c0_i32_1 = arith.constant 0 : i32
    %c0_i32_2 = arith.constant 0 : i32
    return %arg0, %2, %c0_i32_0, %c0_i32_1 : i32, i32, i32, i32
  }
  func.func @transform_5(%arg0: i32, %arg1: i32) -> (i32, i32, i32, i32) {
    %c16_i32 = arith.constant 16 : i32
    %0 = arith.muli %arg1, %c16_i32 : i32
    %c16_i32_0 = arith.constant 16 : i32
    %1 = arith.addi %0, %c16_i32_0 : i32
    %c15_i32 = arith.constant 15 : i32
    %2 = arith.minsi %1, %c15_i32 : i32
    %c0_i32 = arith.constant 0 : i32
    %c0_i32_1 = arith.constant 0 : i32
    %c0_i32_2 = arith.constant 0 : i32
    return %arg0, %2, %c0_i32, %c0_i32_1 : i32, i32, i32, i32
  }
  func.func @transform_6(%arg0: i32, %arg1: i32) -> (i32, i32, i32) {
    %c0_i32 = arith.constant 0 : i32
    %c0_i32_0 = arith.constant 0 : i32
    %c0_i32_1 = arith.constant 0 : i32
    return %arg0, %c0_i32, %c0_i32_0 : i32, i32, i32
  }
  func.func @transform_7(%arg0: i32, %arg1: i32) -> (i32, i32, i32) {
    %c0_i32 = arith.constant 0 : i32
    %c0_i32_0 = arith.constant 0 : i32
    %c0_i32_1 = arith.constant 0 : i32
    %c0_i32_2 = arith.constant 0 : i32
    return %c0_i32, %c0_i32_0, %c0_i32_1 : i32, i32, i32
  }
  func.func @transform_8(%arg0: i32, %arg1: i32) -> (i32, i32) {
    %c0_i32 = arith.constant 0 : i32
    %c0_i32_0 = arith.constant 0 : i32
    %c0_i32_1 = arith.constant 0 : i32
    return %c0_i32, %c0_i32_0 : i32, i32
  }
  func.func @transform_9(%arg0: i32, %arg1: i32) -> (i32, i32) {
    %c0_i32 = arith.constant 0 : i32
    %c0_i32_0 = arith.constant 0 : i32
    %c0_i32_1 = arith.constant 0 : i32
    return %c0_i32, %c0_i32_0 : i32, i32
  }
  func.func @transform_10(%arg0: i32, %arg1: i32) -> (i32, i32) {
    %c0_i32 = arith.constant 0 : i32
    %c0_i32_0 = arith.constant 0 : i32
    %c0_i32_1 = arith.constant 0 : i32
    return %c0_i32, %c0_i32_0 : i32, i32
  }
  func.func @transform_11(%arg0: i32, %arg1: i32) -> (i32, i32, i32, i32) {
    %c0_i32 = arith.constant 0 : i32
    %c0_i32_0 = arith.constant 0 : i32
    %c0_i32_1 = arith.constant 0 : i32
    return %arg0, %arg1, %c0_i32, %c0_i32_0 : i32, i32, i32, i32
  }
  func.func @transform_12(%arg0: i32, %arg1: i32) -> (i32, i32, i32) {
    %c0_i32 = arith.constant 0 : i32
    %c0_i32_0 = arith.constant 0 : i32
    return %arg0, %arg1, %c0_i32 : i32, i32, i32
  }
  func.func @transform_13(%arg0: i32, %arg1: i32) -> (i32, i32, i32, i32) {
    %c0_i32 = arith.constant 0 : i32
    %c0_i32_0 = arith.constant 0 : i32
    %c0_i32_1 = arith.constant 0 : i32
    return %arg0, %arg1, %c0_i32, %c0_i32_0 : i32, i32, i32, i32
  }
}

</mosaic_0001>

<llo_original>
// kernel: tile.8
$region0: #{tile.8}
  #allocation0 [shape = 's32[1]{0}', space=sflag, size = 0x4, scoped, tag = 'scoped memory for tile.8']
  %s0 = inlined_call_operand.vmem [shape: f32[4], index: 0, kind: input, shape index: {}]
  %s1 = inlined_call_operand.vmem [shape: f32[4,4], index: 1, kind: output, shape index: {}]
  // Predicated region
  $region2: #{tile.8} parent=0 // pred_check
    _
  $region3: #{tile.8} parent=0 // pred_check_branch
    %3 = sbr.rel (0) target = $region5
  $region4: #{tile.8} parent=0 // pred_region
    _
  $region5: #{tile.8} parent=0 // pred_fallthru
    _
  %v4 = vld [vmem:[%s0] ss:$0 sm:$0xff]
  %5 = vst [vmem:[%s1] sm:$0xf] %v4

// kernel: tile.9
$region0: #{tile.9}
  %s0 = inlined_call_operand.vmem [shape: f32[4,4], index: 0, kind: input, shape index: {}]
  %s1 = inlined_call_operand.vmem [shape: f32[1,16], index: 1, kind: output, shape index: {}]
  $region1: #{tile.9} parent=0
    #allocation0 [shape = 'u8[4096]{0}', space=vmem, size = 0x1000, scoped, tag = 'scoped mem for output reshape']
    #allocation1 [shape = 'u8[4096]{0}', space=vmem, size = 0x1000, scoped, tag = 'scoped mem for input reshape']
    %s3 = ssub.s32 16, 1
    %v4 = vld [vmem:[%s0] sm:%s3]
    %5 = vst [vmem:[#allocation1] sm:%s3] %v4
    %v6 = vld [vmem:[#allocation1] sm:$0x1]
    %vm7 = vcmask 31744
    %8 = vst.msk [vmem:[#allocation0] sm:$0x1] %vm7, %v6
    %s9 = scalar_lea.vmem [#allocation1], 3
    %v10 = vld [vmem:[%s9] sm:$0x1]
    %11 = vrot.lane.b32.xlu0 %v10, 12
    %v12 = vpop.permute.xlu0 %11
    %vm13 = vcmask 130144
    %14 = vst.msk [vmem:[#allocation0] sm:$0x1] %vm13, %v12
    %s15 = scalar_lea.vmem [#allocation1], 2
    %v16 = vld [vmem:[%s15] sm:$0x1]
    %17 = vrot.lane.b32.xlu0 %v16, 8
    %v18 = vpop.permute.xlu0 %17
    %vm19 = vcmask 97344
    %20 = vst.msk [vmem:[#allocation0] sm:$0x1] %vm19, %v18
    %s21 = scalar_lea.vmem [#allocation1], 1
    %v22 = vld [vmem:[%s21] sm:$0x1]
    %23 = vrot.lane.b32.xlu0 %v22, 4
    %v24 = vpop.permute.xlu0 %23
    %vm25 = vcmask 64544
    %26 = vst.msk [vmem:[#allocation0] sm:$0x1] %vm25, %v24
    %s28 = ssub.s32 2, 1
    %v29 = vld [vmem:[#allocation0] sm:%s28]
    %s31 = ssub.s32 2, 1
    %32 = vst [vmem:[%s1] sm:%s31] %v29

// kernel: up_forward.6
$region0: #{up_forward.6}
  #allocation0 [shape = 'u32[]', space=smem, size = 0x4, offset = 0x4, fixed_abs, tag = 'smem constant byte address 0x4 - core index']
  #allocation1 [shape = 'u32[72,128]{1,0:T(1,128)}', space=vmem, size = 0x9000, scoped, tag = 'internal scratch']
  #allocation2 [shape = 'f32[128,128]{1,0:T(8,128)}', space=vmem, size = 0x10000, scoped, tag = 'scratch operand']
  %s0 = inlined_call_operand.vmem [shape: bf16[128,128], index: 0, kind: input, shape index: {}]
  %s1 = inlined_call_operand.vmem [shape: bf16[128,128], index: 1, kind: input, shape index: {}]
  %s2 = inlined_call_operand.vmem [shape: f32[1,128], index: 2, kind: input, shape index: {}]
  %s3 = inlined_call_operand.vmem [shape: bf16[128,128], index: 3, kind: output, shape index: {}]
  %s4 = sld [smem:[#allocation0]]
  $region30: #{up_forward.6} parent=0
    _
  %s6 = ssub.s32 1, %s4
  %s7 = scalar_select 0, %s6, %s4
  // Predicated region
  $region2: #{up_forward.6} parent=0 // pred_check
    _
  $region3: #{up_forward.6} parent=0 // pred_check_branch
    %9 = sbr.rel (0) target = $region5
  $region4: #{up_forward.6} parent=0 // pred_region
    _
  $region5: #{up_forward.6} parent=0 // pred_fallthru
    _
  // Predicated region
  $region6: #{up_forward.6} parent=0 // pred_check
    _
  $region7: #{up_forward.6} parent=0 // pred_check_branch
    %11 = sbr.rel (0) target = $region9
  $region8: #{up_forward.6} parent=0 // pred_region
    _
  $region9: #{up_forward.6} parent=0 // pred_fallthru
    _
  // Predicated region
  $region10: #{up_forward.6} parent=0 // pred_check
    _
  $region11: #{up_forward.6} parent=0 // pred_check_branch
    %13 = sbr.rel (0) target = $region13
  $region12: #{up_forward.6} parent=0 // pred_region
    _
  $region13: #{up_forward.6} parent=0 // pred_fallthru
    _
  %p14 = scmp.eq.s32.totalorder 0, 0
  // Predicated region
  $region14: #{up_forward.6} parent=0 // pred_check
    %p15 = pneg %p14
  $region15: #{up_forward.6} parent=0 // pred_check_branch
    %17 = sbr.rel (%p15) target = $region17
  $region16: #{up_forward.6} parent=0 // pred_region
    %18 = vst [vmem:[#allocation2] sm:$0xff] 0.0
    %19 = vst [vmem:[#allocation2 + $0x8] sm:$0xff] 0.0
    %20 = vst [vmem:[#allocation2 + $0x10] sm:$0xff] 0.0
    %21 = vst [vmem:[#allocation2 + $0x18] sm:$0xff] 0.0
    %22 = vst [vmem:[#allocation2 + $0x20] sm:$0xff] 0.0
    %23 = vst [vmem:[#allocation2 + $0x28] sm:$0xff] 0.0
    %24 = vst [vmem:[#allocation2 + $0x30] sm:$0xff] 0.0
    %25 = vst [vmem:[#allocation2 + $0x38] sm:$0xff] 0.0
    %26 = vst [vmem:[#allocation2 + $0x40] sm:$0xff] 0.0
    %27 = vst [vmem:[#allocation2 + $0x48] sm:$0xff] 0.0
    %28 = vst [vmem:[#allocation2 + $0x50] sm:$0xff] 0.0
    %29 = vst [vmem:[#allocation2 + $0x58] sm:$0xff] 0.0
    %30 = vst [vmem:[#allocation2 + $0x60] sm:$0xff] 0.0
    %31 = vst [vmem:[#allocation2 + $0x68] sm:$0xff] 0.0
    %32 = vst [vmem:[#allocation2 + $0x70] sm:$0xff] 0.0
    %33 = vst [vmem:[#allocation2 + $0x78] sm:$0xff] 0.0
  $region17: #{up_forward.6} parent=0 // pred_fallthru
    _
  %v34 = vld [vmem:[#allocation2] sm:$0xff]
  %v35 = vld [vmem:[#allocation2 + $0x8] sm:$0xff]
  %v36 = vld [vmem:[#allocation2 + $0x10] sm:$0xff]
  %v37 = vld [vmem:[#allocation2 + $0x18] sm:$0xff]
  %v38 = vld [vmem:[#allocation2 + $0x20] sm:$0xff]
  %v39 = vld [vmem:[#allocation2 + $0x28] sm:$0xff]
  %v40 = vld [vmem:[#allocation2 + $0x30] sm:$0xff]
  %v41 = vld [vmem:[#allocation2 + $0x38] sm:$0xff]
  %v42 = vld [vmem:[#allocation2 + $0x40] sm:$0xff]
  %v43 = vld [vmem:[#allocation2 + $0x48] sm:$0xff]
  %v44 = vld [vmem:[#allocation2 + $0x50] sm:$0xff]
  %v45 = vld [vmem:[#allocation2 + $0x58] sm:$0xff]
  %v46 = vld [vmem:[#allocation2 + $0x60] sm:$0xff]
  %v47 = vld [vmem:[#allocation2 + $0x68] sm:$0xff]
  %v48 = vld [vmem:[#allocation2 + $0x70] sm:$0xff]
  %v49 = vld [vmem:[#allocation2 + $0x78] sm:$0xff]
  %v50 = vld [vmem:[%s0] sm:$0xf]
  %v51 = vld [vmem:[%s0 + $0x4] sm:$0xf]
  %v52 = vld [vmem:[%s0 + $0x8] sm:$0xf]
  %v53 = vld [vmem:[%s0 + $0xc] sm:$0xf]
  %v54 = vld [vmem:[%s0 + $0x10] sm:$0xf]
  %v55 = vld [vmem:[%s0 + $0x14] sm:$0xf]
  %v56 = vld [vmem:[%s0 + $0x18] sm:$0xf]
  %v57 = vld [vmem:[%s0 + $0x1c] sm:$0xf]
  %v58 = vld [vmem:[%s0 + $0x20] sm:$0xf]
  %v59 = vld [vmem:[%s0 + $0x24] sm:$0xf]
  %v60 = vld [vmem:[%s0 + $0x28] sm:$0xf]
  %v61 = vld [vmem:[%s0 + $0x2c] sm:$0xf]
  %v62 = vld [vmem:[%s0 + $0x30] sm:$0xf]
  %v63 = vld [vmem:[%s0 + $0x34] sm:$0xf]
  %v64 = vld [vmem:[%s0 + $0x38] sm:$0xf]
  %v65 = vld [vmem:[%s0 + $0x3c] sm:$0xf]
  %v66 = vld [vmem:[%s1] sm:$0xf]
  %v67 = vld [vmem:[%s1 + $0x4] sm:$0xf]
  %v68 = vld [vmem:[%s1 + $0x8] sm:$0xf]
  %v69 = vld [vmem:[%s1 + $0xc] sm:$0xf]
  %v70 = vld [vmem:[%s1 + $0x10] sm:$0xf]
  %v71 = vld [vmem:[%s1 + $0x14] sm:$0xf]
  %v72 = vld [vmem:[%s1 + $0x18] sm:$0xf]
  %v73 = vld [vmem:[%s1 + $0x1c] sm:$0xf]
  %v74 = vld [vmem:[%s1 + $0x20] sm:$0xf]
  %v75 = vld [vmem:[%s1 + $0x24] sm:$0xf]
  %v76 = vld [vmem:[%s1 + $0x28] sm:$0xf]
  %v77 = vld [vmem:[%s1 + $0x2c] sm:$0xf]
  %v78 = vld [vmem:[%s1 + $0x30] sm:$0xf]
  %v79 = vld [vmem:[%s1 + $0x34] sm:$0xf]
  %v80 = vld [vmem:[%s1 + $0x38] sm:$0xf]
  %v81 = vld [vmem:[%s1 + $0x3c] sm:$0xf]
  %v98 = vunpack.c.l.b16 %v50
  %v99 = vunpack.c.l.b16 %v51
  %v100 = vunpack.c.l.b16 %v52
  %v101 = vunpack.c.l.b16 %v53
  %v102 = vunpack.c.l.b16 %v54
  %v103 = vunpack.c.l.b16 %v55
  %v104 = vunpack.c.l.b16 %v56
  %v105 = vunpack.c.l.b16 %v57
  %v106 = vunpack.c.l.b16 %v58
  %v107 = vunpack.c.l.b16 %v59
  %v108 = vunpack.c.l.b16 %v60
  %v109 = vunpack.c.l.b16 %v61
  %v110 = vunpack.c.l.b16 %v62
  %v111 = vunpack.c.l.b16 %v63
  %v112 = vunpack.c.l.b16 %v64
  %v113 = vunpack.c.l.b16 %v65
  %v114 = vpack.c.b16 %v99, %v98
  %v115 = vpack.c.b16 %v101, %v100
  %v116 = vpack.c.b16 %v103, %v102
  %v117 = vpack.c.b16 %v105, %v104
  %v118 = vpack.c.b16 %v107, %v106
  %v119 = vpack.c.b16 %v109, %v108
  %v120 = vpack.c.b16 %v111, %v110
  %v121 = vpack.c.b16 %v113, %v112
  %v146 = vunpack.c.l.b16 %v66
  %v147 = vunpack.c.l.b16 %v67
  %v148 = vunpack.c.l.b16 %v68
  %v149 = vunpack.c.l.b16 %v69
  %v150 = vunpack.c.l.b16 %v70
  %v151 = vunpack.c.l.b16 %v71
  %v152 = vunpack.c.l.b16 %v72
  %v153 = vunpack.c.l.b16 %v73
  %v154 = vunpack.c.l.b16 %v74
  %v155 = vunpack.c.l.b16 %v75
  %v156 = vunpack.c.l.b16 %v76
  %v157 = vunpack.c.l.b16 %v77
  %v158 = vunpack.c.l.b16 %v78
  %v159 = vunpack.c.l.b16 %v79
  %v160 = vunpack.c.l.b16 %v80
  %v161 = vunpack.c.l.b16 %v81
  %v162 = vpack.c.b16 %v147, %v146
  %v163 = vpack.c.b16 %v149, %v148
  %v164 = vpack.c.b16 %v151, %v150
  %v165 = vpack.c.b16 %v153, %v152
  %v166 = vpack.c.b16 %v155, %v154
  %v167 = vpack.c.b16 %v157, %v156
  %v168 = vpack.c.b16 %v159, %v158
  %v169 = vpack.c.b16 %v161, %v160
  %178 = vmatpush.bf16.msra.mxu0 %v169
  %179 = vmatpush.bf16.msra.mxu0 %v168
  %180 = vmatpush.bf16.msra.mxu0 %v167
  %181 = vmatpush.bf16.msra.mxu0 %v166
  %182 = vmatpush.bf16.msra.mxu0 %v165
  %183 = vmatpush.bf16.msra.mxu0 %v164
  %184 = vmatpush.bf16.msra.mxu0 %v163
  %185 = vmatpush.bf16.msra.mxu0 %v162
  %186 = vmatmul.bf16.gmra.mxu0 %v114
  %v187 = vpop.f32.mrf.mxu0
  %v188 = vadd.f32 0.0, %v187
  %v189 = vpop.f32.mrf.mxu0
  %v190 = vadd.f32 0.0, %v189
  %191 = vmatmul.bf16.gmra.mxu0 %v115
  %v192 = vpop.f32.mrf.mxu0
  %v193 = vadd.f32 0.0, %v192
  %v194 = vpop.f32.mrf.mxu0
  %v195 = vadd.f32 0.0, %v194
  %196 = vmatmul.bf16.gmra.mxu0 %v116
  %v197 = vpop.f32.mrf.mxu0
  %v198 = vadd.f32 0.0, %v197
  %v199 = vpop.f32.mrf.mxu0
  %v200 = vadd.f32 0.0, %v199
  %201 = vmatmul.bf16.gmra.mxu0 %v117
  %v202 = vpop.f32.mrf.mxu0
  %v203 = vadd.f32 0.0, %v202
  %v204 = vpop.f32.mrf.mxu0
  %v205 = vadd.f32 0.0, %v204
  %206 = vmatmul.bf16.gmra.mxu0 %v118
  %v207 = vpop.f32.mrf.mxu0
  %v208 = vadd.f32 0.0, %v207
  %v209 = vpop.f32.mrf.mxu0
  %v210 = vadd.f32 0.0, %v209
  %211 = vmatmul.bf16.gmra.mxu0 %v119
  %v212 = vpop.f32.mrf.mxu0
  %v213 = vadd.f32 0.0, %v212
  %v214 = vpop.f32.mrf.mxu0
  %v215 = vadd.f32 0.0, %v214
  %216 = vmatmul.bf16.gmra.mxu0 %v120
  %v217 = vpop.f32.mrf.mxu0
  %v218 = vadd.f32 0.0, %v217
  %v219 = vpop.f32.mrf.mxu0
  %v220 = vadd.f32 0.0, %v219
  %221 = vmatmul.bf16.gmra.mxu0 %v121
  %v222 = vpop.f32.mrf.mxu0
  %v223 = vadd.f32 0.0, %v222
  %v224 = vpop.f32.mrf.mxu0
  %v225 = vadd.f32 0.0, %v224
  %226 = vdwg.mxu0
  %v227 = vadd.f32 %v34, %v188
  %v228 = vadd.f32 %v35, %v190
  %v229 = vadd.f32 %v36, %v193
  %v230 = vadd.f32 %v37, %v195
  %v231 = vadd.f32 %v38, %v198
  %v232 = vadd.f32 %v39, %v200
  %v233 = vadd.f32 %v40, %v203
  %v234 = vadd.f32 %v41, %v205
  %v235 = vadd.f32 %v42, %v208
  %v236 = vadd.f32 %v43, %v210
  %v237 = vadd.f32 %v44, %v213
  %v238 = vadd.f32 %v45, %v215
  %v239 = vadd.f32 %v46, %v218
  %v240 = vadd.f32 %v47, %v220
  %v241 = vadd.f32 %v48, %v223
  %v242 = vadd.f32 %v49, %v225
  %243 = vst [vmem:[#allocation2] sm:$0xff] %v227
  %244 = vst [vmem:[#allocation2 + $0x8] sm:$0xff] %v228
  %245 = vst [vmem:[#allocation2 + $0x10] sm:$0xff] %v229
  %246 = vst [vmem:[#allocation2 + $0x18] sm:$0xff] %v230
  %247 = vst [vmem:[#allocation2 + $0x20] sm:$0xff] %v231
  %248 = vst [vmem:[#allocation2 + $0x28] sm:$0xff] %v232
  %249 = vst [vmem:[#allocation2 + $0x30] sm:$0xff] %v233
  %250 = vst [vmem:[#allocation2 + $0x38] sm:$0xff] %v234
  %251 = vst [vmem:[#allocation2 + $0x40] sm:$0xff] %v235
  %252 = vst [vmem:[#allocation2 + $0x48] sm:$0xff] %v236
  %253 = vst [vmem:[#allocation2 + $0x50] sm:$0xff] %v237
  %254 = vst [vmem:[#allocation2 + $0x58] sm:$0xff] %v238
  %255 = vst [vmem:[#allocation2 + $0x60] sm:$0xff] %v239
  %256 = vst [vmem:[#allocation2 + $0x68] sm:$0xff] %v240
  %257 = vst [vmem:[#allocation2 + $0x70] sm:$0xff] %v241
  %258 = vst [vmem:[#allocation2 + $0x78] sm:$0xff] %v242
  // Predicated region
  $region18: #{up_forward.6} parent=0 // pred_check
    %p259 = pneg %p14
  $region19: #{up_forward.6} parent=0 // pred_check_branch
    %261 = sbr.rel (%p259) target = $region21
  $region20: #{up_forward.6} parent=0 // pred_region
    %v262 = vld [vmem:[#allocation2] sm:$0xff]
    %v263 = vld [vmem:[#allocation2 + $0x8] sm:$0xff]
    %v264 = vld [vmem:[#allocation2 + $0x10] sm:$0xff]
    %v265 = vld [vmem:[#allocation2 + $0x18] sm:$0xff]
    %v266 = vld [vmem:[#allocation2 + $0x20] sm:$0xff]
    %v267 = vld [vmem:[#allocation2 + $0x28] sm:$0xff]
    %v268 = vld [vmem:[#allocation2 + $0x30] sm:$0xff]
    %v269 = vld [vmem:[#allocation2 + $0x38] sm:$0xff]
    %v270 = vld [vmem:[#allocation2 + $0x40] sm:$0xff]
    %v271 = vld [vmem:[#allocation2 + $0x48] sm:$0xff]
    %v272 = vld [vmem:[#allocation2 + $0x50] sm:$0xff]
    %v273 = vld [vmem:[#allocation2 + $0x58] sm:$0xff]
    %v274 = vld [vmem:[#allocation2 + $0x60] sm:$0xff]
    %v275 = vld [vmem:[#allocation2 + $0x68] sm:$0xff]
    %v276 = vld [vmem:[#allocation2 + $0x70] sm:$0xff]
    %v277 = vld [vmem:[#allocation2 + $0x78] sm:$0xff]
    %v278 = vld [vmem:[%s2] sm:$0x1]
    %v280 = vperm.slane %v278, 0
    %v282 = vadd.f32 %v262, %v280
    %v283 = vadd.f32 %v263, %v280
    %v284 = vadd.f32 %v264, %v280
    %v285 = vadd.f32 %v265, %v280
    %v286 = vadd.f32 %v266, %v280
    %v287 = vadd.f32 %v267, %v280
    %v288 = vadd.f32 %v268, %v280
    %v289 = vadd.f32 %v269, %v280
    %v290 = vadd.f32 %v270, %v280
    %v291 = vadd.f32 %v271, %v280
    %v292 = vadd.f32 %v272, %v280
    %v293 = vadd.f32 %v273, %v280
    %v294 = vadd.f32 %v274, %v280
    %v295 = vadd.f32 %v275, %v280
    %v296 = vadd.f32 %v276, %v280
    %v297 = vadd.f32 %v277, %v280
    %v298 = vpack.c.bf16 %v282, %v282
    %v299 = vpack.c.bf16 %v283, %v283
    %v300 = vpack.c.bf16 %v284, %v284
    %v301 = vpack.c.bf16 %v285, %v285
    %v302 = vpack.c.bf16 %v286, %v286
    %v303 = vpack.c.bf16 %v287, %v287
    %v304 = vpack.c.bf16 %v288, %v288
    %v305 = vpack.c.bf16 %v289, %v289
    %v306 = vpack.c.bf16 %v290, %v290
    %v307 = vpack.c.bf16 %v291, %v291
    %v308 = vpack.c.bf16 %v292, %v292
    %v309 = vpack.c.bf16 %v293, %v293
    %v310 = vpack.c.bf16 %v294, %v294
    %v311 = vpack.c.bf16 %v295, %v295
    %v312 = vpack.c.bf16 %v296, %v296
    %v313 = vpack.c.bf16 %v297, %v297
    %314 = vst [vmem:[%s3] sm:$0xf] %v298
    %315 = vst [vmem:[%s3 + $0x4] sm:$0xf] %v299
    %316 = vst [vmem:[%s3 + $0x8] sm:$0xf] %v300
    %317 = vst [vmem:[%s3 + $0xc] sm:$0xf] %v301
    %318 = vst [vmem:[%s3 + $0x10] sm:$0xf] %v302
    %319 = vst [vmem:[%s3 + $0x14] sm:$0xf] %v303
    %320 = vst [vmem:[%s3 + $0x18] sm:$0xf] %v304
    %321 = vst [vmem:[%s3 + $0x1c] sm:$0xf] %v305
    %322 = vst [vmem:[%s3 + $0x20] sm:$0xf] %v306
    %323 = vst [vmem:[%s3 + $0x24] sm:$0xf] %v307
    %324 = vst [vmem:[%s3 + $0x28] sm:$0xf] %v308
    %325 = vst [vmem:[%s3 + $0x2c] sm:$0xf] %v309
    %326 = vst [vmem:[%s3 + $0x30] sm:$0xf] %v310
    %327 = vst [vmem:[%s3 + $0x34] sm:$0xf] %v311
    %328 = vst [vmem:[%s3 + $0x38] sm:$0xf] %v312
    %329 = vst [vmem:[%s3 + $0x3c] sm:$0xf] %v313
  $region21: #{up_forward.6} parent=0 // pred_fallthru
    _
  // Predicated region
  $region22: #{up_forward.6} parent=0 // pred_check
    _
  $region23: #{up_forward.6} parent=0 // pred_check_branch
    %331 = sbr.rel (0) target = $region25
  $region24: #{up_forward.6} parent=0 // pred_region
    _
  $region25: #{up_forward.6} parent=0 // pred_fallthru
    _
  // Predicated region
  $region26: #{up_forward.6} parent=0 // pred_check
    _
  $region27: #{up_forward.6} parent=0 // pred_check_branch
    %333 = sbr.rel (0) target = $region29
  $region28: #{up_forward.6} parent=0 // pred_region
    _
  $region29: #{up_forward.6} parent=0 // pred_fallthru
    _

// kernel: up_forward.8
$region0: #{up_forward.8}
  #allocation0 [shape = 'u32[]', space=smem, size = 0x4, offset = 0x4, fixed_abs, tag = 'smem constant byte address 0x4 - core index']
  #allocation1 [shape = 'u32[72,128]{1,0:T(1,128)}', space=vmem, size = 0x9000, scoped, tag = 'internal scratch']
  %s0 = inlined_call_operand.vmem [shape: f32[2,16,4], index: 0, kind: input, shape index: {}]
  %s1 = inlined_call_operand.vmem [shape: f32[2,16,4], index: 1, kind: input, shape index: {}]
  %s2 = inlined_call_operand.vmem [shape: bf16[4,8], index: 2, kind: input, shape index: {}]
  %s3 = inlined_call_operand.vmem [shape: f32[1,8], index: 3, kind: input, shape index: {}]
  %s4 = inlined_call_operand.vmem [shape: f32[1,8], index: 4, kind: input, shape index: {}]
  %s5 = inlined_call_operand.vmem [shape: bf16[8,4], index: 5, kind: input, shape index: {}]
  %s6 = inlined_call_operand.vmem [shape: f32[1,4], index: 6, kind: input, shape index: {}]
  %s7 = inlined_call_operand.vmem [shape: bf16[8,4], index: 7, kind: input, shape index: {}]
  %s8 = inlined_call_operand.vmem [shape: f32[1,4], index: 8, kind: input, shape index: {}]
  %s9 = inlined_call_operand.vmem [shape: bf16[2,16,4], index: 9, kind: output, shape index: {0}]
  %s10 = inlined_call_operand.vmem [shape: bf16[2,16,4], index: 10, kind: output, shape index: {1}]
  %11 = xla_tuple %s9, %s10
  %s12 = sld [smem:[#allocation0]]
  $region77: #{up_forward.8} parent=0
    _
  %s14 = ssub.s32 1, %s12
  %s15 = scalar_select 0, %s14, %s12
  loop: start=0, step=1, limit=4
  $region2: #{up_forward.8} parent=0 // loop_pre_header
    _
  $region3: #{up_forward.8} parent=0 // loop_header
    %s17 = sphi 0, %s21
    %p18 = scmp.ge.s32.totalorder %s17, 4
    %s27 = sphi 0, %s29
    %s30 = sphi 0, %s27
    %s31 = sphi 0, %s30
    %s47 = sphi 0, %s31
    %s53 = sphi 0, %s55
    %s56 = sphi 0, %s53
    %s57 = sphi 0, %s56
    %s73 = sphi 0, %s57
    %s77 = sphi 0, %s77
    %s79 = sphi 0, %s77
    %s80 = sphi 0, %s79
    %s94 = sphi 0, %s80
    %s98 = sphi 0, %s98
    %s100 = sphi 0, %s98
    %s101 = sphi 0, %s100
    %s115 = sphi 0, %s101
    %s119 = sphi 0, %s119
    %s121 = sphi 0, %s119
    %s122 = sphi 0, %s121
    %s136 = sphi 0, %s122
    %s140 = sphi 0, %s140
    %s142 = sphi 0, %s140
    %s143 = sphi 0, %s142
    %s157 = sphi 0, %s143
    %s161 = sphi 0, %s161
    %s163 = sphi 0, %s161
    %s164 = sphi 0, %s163
    %s178 = sphi 0, %s164
    %s182 = sphi 0, %s182
    %s184 = sphi 0, %s182
    %s185 = sphi 0, %s184
    %s199 = sphi 0, %s185
    %s203 = sphi 0, %s203
    %s205 = sphi 0, %s203
    %s206 = sphi 0, %s205
    %s220 = sphi 0, %s206
    %s226 = sphi 0, %s228
    %s229 = sphi 0, %s226
    %s230 = sphi 0, %s229
    %s246 = sphi 0, %s230
    %s252 = sphi 0, %s254
    %s255 = sphi 0, %s252
    %s256 = sphi 0, %s255
    %s272 = sphi 0, %s256
  $region4: #{up_forward.8} parent=0 // loop_header_branch
    %20 = sbr.rel (%p18) target = $region8
  $region5: #{up_forward.8} parent=0 // loop_body
    %s22 = ssub.s32 %s17, 1
    %s23 = ssub.s32 %s17, 2
    %s24 = sadd.s32 %s17, 1
    %s25 = ssub.s32 %s17, %s24
    %p26 = scmp.eq.s32.totalorder %s25, 0
    %s28 = sadd.s32 %s27, 1
    %s29 = scalar_select %p26, %s27, %s28
    %p32 = pneg %p26
    %p33 = scmp.eq.s32.totalorder %s17, 1
    %p34 = por %p32, %p33
    %p35 = scmp.ne.s32.totalorder %s27, %s30
    %p36 = scmp.eq.s32.totalorder %s17, 0
    %p37 = por %p35, %p36
    %p38 = scmp.ne.s32.totalorder %s27, %s30
    %p39 = scmp.eq.s32.totalorder %s22, 1
    %p40 = por %p38, %p39
    %p41 = scmp.ne.s32.totalorder %s30, %s31
    %p42 = scmp.eq.s32.totalorder %s22, 0
    %p43 = por %p41, %p42
    %p44 = scmp.ne.s32.totalorder %s30, %s31
    %p45 = scmp.eq.s32.totalorder %s23, 1
    %p46 = por %p44, %p45
    %p48 = scmp.ne.s32.totalorder %s31, %s47
    %p49 = scmp.eq.s32.totalorder %s23, 0
    %p50 = por %p48, %p49
    %s51 = ssub.s32 %s17, %s24
    %p52 = scmp.eq.s32.totalorder %s51, 0
    %s54 = sadd.s32 %s53, 1
    %s55 = scalar_select %p52, %s53, %s54
    %p58 = pneg %p52
    %p59 = scmp.eq.s32.totalorder %s17, 1
    %p60 = por %p58, %p59
    %p61 = scmp.ne.s32.totalorder %s53, %s56
    %p62 = scmp.eq.s32.totalorder %s17, 0
    %p63 = por %p61, %p62
    %p64 = scmp.ne.s32.totalorder %s53, %s56
    %p65 = scmp.eq.s32.totalorder %s22, 1
    %p66 = por %p64, %p65
    %p67 = scmp.ne.s32.totalorder %s56, %s57
    %p68 = scmp.eq.s32.totalorder %s22, 0
    %p69 = por %p67, %p68
    %p70 = scmp.ne.s32.totalorder %s56, %s57
    %p71 = scmp.eq.s32.totalorder %s23, 1
    %p72 = por %p70, %p71
    %p74 = scmp.ne.s32.totalorder %s57, %s73
    %p75 = scmp.eq.s32.totalorder %s23, 0
    %p76 = por %p74, %p75
    %s78 = sadd.s32 %s77, 1
    %p81 = scmp.eq.s32.totalorder %s17, 1
    %p82 = scmp.ne.s32.totalorder %s77, %s79
    %p83 = scmp.eq.s32.totalorder %s17, 0
    %p84 = por %p82, %p83
    %p85 = scmp.ne.s32.totalorder %s77, %s79
    %p86 = scmp.eq.s32.totalorder %s22, 1
    %p87 = por %p85, %p86
    %p88 = scmp.ne.s32.totalorder %s79, %s80
    %p89 = scmp.eq.s32.totalorder %s22, 0
    %p90 = por %p88, %p89
    %p91 = scmp.ne.s32.totalorder %s79, %s80
    %p92 = scmp.eq.s32.totalorder %s23, 1
    %p93 = por %p91, %p92
    %p95 = scmp.ne.s32.totalorder %s80, %s94
    %p96 = scmp.eq.s32.totalorder %s23, 0
    %p97 = por %p95, %p96
    %s99 = sadd.s32 %s98, 1
    %p102 = scmp.eq.s32.totalorder %s17, 1
    %p103 = scmp.ne.s32.totalorder %s98, %s100
    %p104 = scmp.eq.s32.totalorder %s17, 0
    %p105 = por %p103, %p104
    %p106 = scmp.ne.s32.totalorder %s98, %s100
    %p107 = scmp.eq.s32.totalorder %s22, 1
    %p108 = por %p106, %p107
    %p109 = scmp.ne.s32.totalorder %s100, %s101
    %p110 = scmp.eq.s32.totalorder %s22, 0
    %p111 = por %p109, %p110
    %p112 = scmp.ne.s32.totalorder %s100, %s101
    %p113 = scmp.eq.s32.totalorder %s23, 1
    %p114 = por %p112, %p113
    %p116 = scmp.ne.s32.totalorder %s101, %s115
    %p117 = scmp.eq.s32.totalorder %s23, 0
    %p118 = por %p116, %p117
    %s120 = sadd.s32 %s119, 1
    %p123 = scmp.eq.s32.totalorder %s17, 1
    %p124 = scmp.ne.s32.totalorder %s119, %s121
    %p125 = scmp.eq.s32.totalorder %s17, 0
    %p126 = por %p124, %p125
    %p127 = scmp.ne.s32.totalorder %s119, %s121
    %p128 = scmp.eq.s32.totalorder %s22, 1
    %p129 = por %p127, %p128
    %p130 = scmp.ne.s32.totalorder %s121, %s122
    %p131 = scmp.eq.s32.totalorder %s22, 0
    %p132 = por %p130, %p131
    %p133 = scmp.ne.s32.totalorder %s121, %s122
    %p134 = scmp.eq.s32.totalorder %s23, 1
    %p135 = por %p133, %p134
    %p137 = scmp.ne.s32.totalorder %s122, %s136
    %p138 = scmp.eq.s32.totalorder %s23, 0
    %p139 = por %p137, %p138
    %s141 = sadd.s32 %s140, 1
    %p144 = scmp.eq.s32.totalorder %s17, 1
    %p145 = scmp.ne.s32.totalorder %s140, %s142
    %p146 = scmp.eq.s32.totalorder %s17, 0
    %p147 = por %p145, %p146
    %p148 = scmp.ne.s32.totalorder %s140, %s142
    %p149 = scmp.eq.s32.totalorder %s22, 1
    %p150 = por %p148, %p149
    %p151 = scmp.ne.s32.totalorder %s142, %s143
    %p152 = scmp.eq.s32.totalorder %s22, 0
    %p153 = por %p151, %p152
    %p154 = scmp.ne.s32.totalorder %s142, %s143
    %p155 = scmp.eq.s32.totalorder %s23, 1
    %p156 = por %p154, %p155
    %p158 = scmp.ne.s32.totalorder %s143, %s157
    %p159 = scmp.eq.s32.totalorder %s23, 0
    %p160 = por %p158, %p159
    %s162 = sadd.s32 %s161, 1
    %p165 = scmp.eq.s32.totalorder %s17, 1
    %p166 = scmp.ne.s32.totalorder %s161, %s163
    %p167 = scmp.eq.s32.totalorder %s17, 0
    %p168 = por %p166, %p167
    %p169 = scmp.ne.s32.totalorder %s161, %s163
    %p170 = scmp.eq.s32.totalorder %s22, 1
    %p171 = por %p169, %p170
    %p172 = scmp.ne.s32.totalorder %s163, %s164
    %p173 = scmp.eq.s32.totalorder %s22, 0
    %p174 = por %p172, %p173
    %p175 = scmp.ne.s32.totalorder %s163, %s164
    %p176 = scmp.eq.s32.totalorder %s23, 1
    %p177 = por %p175, %p176
    %p179 = scmp.ne.s32.totalorder %s164, %s178
    %p180 = scmp.eq.s32.totalorder %s23, 0
    %p181 = por %p179, %p180
    %s183 = sadd.s32 %s182, 1
    %p186 = scmp.eq.s32.totalorder %s17, 1
    %p187 = scmp.ne.s32.totalorder %s182, %s184
    %p188 = scmp.eq.s32.totalorder %s17, 0
    %p189 = por %p187, %p188
    %p190 = scmp.ne.s32.totalorder %s182, %s184
    %p191 = scmp.eq.s32.totalorder %s22, 1
    %p192 = por %p190, %p191
    %p193 = scmp.ne.s32.totalorder %s184, %s185
    %p194 = scmp.eq.s32.totalorder %s22, 0
    %p195 = por %p193, %p194
    %p196 = scmp.ne.s32.totalorder %s184, %s185
    %p197 = scmp.eq.s32.totalorder %s23, 1
    %p198 = por %p196, %p197
    %p200 = scmp.ne.s32.totalorder %s185, %s199
    %p201 = scmp.eq.s32.totalorder %s23, 0
    %p202 = por %p200, %p201
    %s204 = sadd.s32 %s203, 1
    %p207 = scmp.eq.s32.totalorder %s17, 1
    %p208 = scmp.ne.s32.totalorder %s203, %s205
    %p209 = scmp.eq.s32.totalorder %s17, 0
    %p210 = por %p208, %p209
    %p211 = scmp.ne.s32.totalorder %s203, %s205
    %p212 = scmp.eq.s32.totalorder %s22, 1
    %p213 = por %p211, %p212
    %p214 = scmp.ne.s32.totalorder %s205, %s206
    %p215 = scmp.eq.s32.totalorder %s22, 0
    %p216 = por %p214, %p215
    %p217 = scmp.ne.s32.totalorder %s205, %s206
    %p218 = scmp.eq.s32.totalorder %s23, 1
    %p219 = por %p217, %p218
    %p221 = scmp.ne.s32.totalorder %s206, %s220
    %p222 = scmp.eq.s32.totalorder %s23, 0
    %p223 = por %p221, %p222
    %s224 = ssub.s32 %s17, %s24
    %p225 = scmp.eq.s32.totalorder %s224, 0
    %s227 = sadd.s32 %s226, 1
    %s228 = scalar_select %p225, %s226, %s227
    %p231 = pneg %p225
    %p232 = scmp.eq.s32.totalorder %s17, 1
    %p233 = por %p231, %p232
    %p234 = scmp.ne.s32.totalorder %s226, %s229
    %p235 = scmp.eq.s32.totalorder %s17, 0
    %p236 = por %p234, %p235
    %p237 = scmp.ne.s32.totalorder %s226, %s229
    %p238 = scmp.eq.s32.totalorder %s22, 1
    %p239 = por %p237, %p238
    %p240 = scmp.ne.s32.totalorder %s229, %s230
    %p241 = scmp.eq.s32.totalorder %s22, 0
    %p242 = por %p240, %p241
    %p243 = scmp.ne.s32.totalorder %s229, %s230
    %p244 = scmp.eq.s32.totalorder %s23, 1
    %p245 = por %p243, %p244
    %p247 = scmp.ne.s32.totalorder %s230, %s246
    %p248 = scmp.eq.s32.totalorder %s23, 0
    %p249 = por %p247, %p248
    %s250 = ssub.s32 %s17, %s24
    %p251 = scmp.eq.s32.totalorder %s250, 0
    %s253 = sadd.s32 %s252, 1
    %s254 = scalar_select %p251, %s252, %s253
    %p257 = pneg %p251
    %p258 = scmp.eq.s32.totalorder %s17, 1
    %p259 = por %p257, %p258
    %p260 = scmp.ne.s32.totalorder %s252, %s255
    %p261 = scmp.eq.s32.totalorder %s17, 0
    %p262 = por %p260, %p261
    %p263 = scmp.ne.s32.totalorder %s252, %s255
    %p264 = scmp.eq.s32.totalorder %s22, 1
    %p265 = por %p263, %p264
    %p266 = scmp.ne.s32.totalorder %s255, %s256
    %p267 = scmp.eq.s32.totalorder %s22, 0
    %p268 = por %p266, %p267
    %p269 = scmp.ne.s32.totalorder %s255, %s256
    %p270 = scmp.eq.s32.totalorder %s23, 1
    %p271 = por %p269, %p270
    %p273 = scmp.ne.s32.totalorder %s256, %s272
    %p274 = scmp.eq.s32.totalorder %s23, 0
    %p275 = por %p273, %p274
    %p276 = scmp.le.s32.totalorder 1, %s17
    %p277 = scmp.lt.s32.totalorder %s17, 3
    %p278 = pnand %p276, %p277
    %p279 = pneg %p278
    // Predicated region
    $region9: #{up_forward.8} parent=5 // pred_check
      _
    $region10: #{up_forward.8} parent=5 // pred_check_branch
      %281 = sbr.rel (%p278) target = $region12
    $region11: #{up_forward.8} parent=5 // pred_region
      %s282 = ssub.s32 %s17, 1
      // Predicated region
      $region13: #{up_forward.8} parent=11 // pred_check
        %p283 = pneg %p90
      $region14: #{up_forward.8} parent=11 // pred_check_branch
        %285 = sbr.rel (%p283) target = $region16
      $region15: #{up_forward.8} parent=11 // pred_region
        _
      $region16: #{up_forward.8} parent=11 // pred_fallthru
        _
      // Predicated region
      $region17: #{up_forward.8} parent=11 // pred_check
        %p286 = pneg %p111
      $region18: #{up_forward.8} parent=11 // pred_check_branch
        %288 = sbr.rel (%p286) target = $region20
      $region19: #{up_forward.8} parent=11 // pred_region
        _
      $region20: #{up_forward.8} parent=11 // pred_fallthru
        _
      // Predicated region
      $region21: #{up_forward.8} parent=11 // pred_check
        %p289 = pneg %p132
      $region22: #{up_forward.8} parent=11 // pred_check_branch
        %291 = sbr.rel (%p289) target = $region24
      $region23: #{up_forward.8} parent=11 // pred_region
        _
      $region24: #{up_forward.8} parent=11 // pred_fallthru
        _
      // Predicated region
      $region25: #{up_forward.8} parent=11 // pred_check
        %p292 = pneg %p153
      $region26: #{up_forward.8} parent=11 // pred_check_branch
        %294 = sbr.rel (%p292) target = $region28
      $region27: #{up_forward.8} parent=11 // pred_region
        _
      $region28: #{up_forward.8} parent=11 // pred_fallthru
        _
      // Predicated region
      $region29: #{up_forward.8} parent=11 // pred_check
        %p295 = pneg %p174
      $region30: #{up_forward.8} parent=11 // pred_check_branch
        %297 = sbr.rel (%p295) target = $region32
      $region31: #{up_forward.8} parent=11 // pred_region
        _
      $region32: #{up_forward.8} parent=11 // pred_fallthru
        _
      // Predicated region
      $region33: #{up_forward.8} parent=11 // pred_check
        %p298 = pneg %p195
      $region34: #{up_forward.8} parent=11 // pred_check_branch
        %300 = sbr.rel (%p298) target = $region36
      $region35: #{up_forward.8} parent=11 // pred_region
        _
      $region36: #{up_forward.8} parent=11 // pred_fallthru
        _
      // Predicated region
      $region37: #{up_forward.8} parent=11 // pred_check
        %p301 = pneg %p216
      $region38: #{up_forward.8} parent=11 // pred_check_branch
        %303 = sbr.rel (%p301) target = $region40
      $region39: #{up_forward.8} parent=11 // pred_region
        _
      $region40: #{up_forward.8} parent=11 // pred_fallthru
        _
    $region12: #{up_forward.8} parent=5 // pred_fallthru
      _
    %p304 = scmp.lt.s32.totalorder %s17, 2
    // Predicated region
    $region41: #{up_forward.8} parent=5 // pred_check
      %p305 = pneg %p304
    $region42: #{up_forward.8} parent=5 // pred_check_branch
      %307 = sbr.rel (%p305) target = $region44
    $region43: #{up_forward.8} parent=5 // pred_region
      // Predicated region
      $region45: #{up_forward.8} parent=43 // pred_check
        %p308 = pneg %p37
      $region46: #{up_forward.8} parent=43 // pred_check_branch
        %310 = sbr.rel (%p308) target = $region48
      $region47: #{up_forward.8} parent=43 // pred_region
        %p311 = scmp.lt.s32.totalorder %s17, 1
        %s312 = scalar_select %p311, %s17, 1
        %s313 = smul.addr %s312, 2
        %s314 = smul.addr %s313, 8
        %s315 = scalar_lea.vmem %s0, %s314
      $region48: #{up_forward.8} parent=43 // pred_fallthru
        _
      // Predicated region
      $region49: #{up_forward.8} parent=43 // pred_check
        %p316 = pneg %p63
      $region50: #{up_forward.8} parent=43 // pred_check_branch
        %318 = sbr.rel (%p316) target = $region52
      $region51: #{up_forward.8} parent=43 // pred_region
        %p319 = scmp.lt.s32.totalorder %s17, 1
        %s320 = scalar_select %p319, %s17, 1
        %s321 = smul.addr %s320, 2
        %s322 = smul.addr %s321, 8
        %s323 = scalar_lea.vmem %s1, %s322
      $region52: #{up_forward.8} parent=43 // pred_fallthru
        _
    $region44: #{up_forward.8} parent=5 // pred_fallthru
      _
    %p324 = scmp.le.s32.totalorder 1, %s17
    %p325 = scmp.lt.s32.totalorder %s17, 3
    %p326 = pnand %p324, %p325
    %p327 = pneg %p326
    // Predicated region
    $region53: #{up_forward.8} parent=5 // pred_check
      _
    $region54: #{up_forward.8} parent=5 // pred_check_branch
      %329 = sbr.rel (%p326) target = $region56
    $region55: #{up_forward.8} parent=5 // pred_region
      %s330 = ssub.s32 %s17, 1
      %p331 = scmp.lt.s32.totalorder %s22, 1
      %s332 = scalar_select %p331, %s22, 1
      %s333 = smul.addr %s332, 2
      %s334 = smul.addr %s333, 8
      %s335 = scalar_lea.vmem %s0, %s334
      %p336 = pneg %p43
      %p337 = pneg %p40
      %p338 = scmp.lt.s32.totalorder %s22, 1
      %s339 = scalar_select %p338, %s22, 1
      %s340 = smul.addr %s339, 2
      %s341 = smul.addr %s340, 8
      %s342 = scalar_lea.vmem %s1, %s341
      %p343 = pneg %p69
      %p344 = pneg %p66
      %p345 = pneg %p90
      %p346 = pneg %p87
      %p347 = pneg %p111
      %p348 = pneg %p108
      %p349 = pneg %p132
      %p350 = pneg %p129
      %p351 = pneg %p153
      %p352 = pneg %p150
      %p353 = pneg %p174
      %p354 = pneg %p171
      %p355 = pneg %p195
      %p356 = pneg %p192
      %p357 = pneg %p216
      %p358 = pneg %p213
      %p359 = pneg %p242
      %p360 = pneg %p239
      %p361 = scmp.lt.s32.totalorder %s22, 1
      %s362 = scalar_select %p361, %s22, 1
      %s363 = smul.addr %s362, 2
      %s364 = smul.addr %s363, 4
      %s365 = scalar_lea.vmem %s9, %s364
      %p366 = pneg %p268
      %p367 = pneg %p265
      %p368 = scmp.lt.s32.totalorder %s22, 1
      %s369 = scalar_select %p368, %s22, 1
      %s370 = smul.addr %s369, 2
      %s371 = smul.addr %s370, 4
      %s372 = scalar_lea.vmem %s10, %s371
      %p373 = scmp.lt.s32.totalorder %s22, 1
      %s374 = scalar_select %p373, %s22, 1
      %s375 = smul.addr %s374, 2
      %s376 = smul.addr %s375, 8
      %s377 = scalar_lea.vmem %s0, %s376
      %p378 = scmp.lt.s32.totalorder %s22, 1
      %s379 = scalar_select %p378, %s22, 1
      %s380 = smul.addr %s379, 2
      %s381 = smul.addr %s380, 8
      %s382 = scalar_lea.vmem %s1, %s381
      %p383 = scmp.lt.s32.totalorder %s22, 1
      %s384 = scalar_select %p383, %s22, 1
      %s385 = smul.addr %s384, 2
      %s386 = smul.addr %s385, 4
      %s387 = scalar_lea.vmem %s9, %s386
      %p388 = scmp.lt.s32.totalorder %s22, 1
      %s389 = scalar_select %p388, %s22, 1
      %s390 = smul.addr %s389, 2
      %s391 = smul.addr %s390, 4
      %s392 = scalar_lea.vmem %s10, %s391
      %v394 = vld [vmem:[%s377] sm:$0xff]
      %v395 = vld [vmem:[%s377 + $0x8] sm:$0xff]
      %v396 = vpack.c.bf16 %v395, %v394
      %v397 = vld [vmem:[%s2] sm:$0x3]
      %vm398 = vcmask 31744
      %v400 = vsel %vm398, %v396, 0
      %vm402 = vcmask 1041408
      %v404 = vsel %vm402, %v397, 0
      %406 = vmatpush.bf16.msra.mxu0 0
      %407 = vmatpush.bf16.msra.mxu0 0
      %408 = vmatpush.bf16.msra.mxu0 0
      %409 = vmatpush.bf16.msra.mxu0 0
      %410 = vmatpush.bf16.msra.mxu0 0
      %411 = vmatpush.bf16.msra.mxu0 0
      %412 = vmatpush.bf16.msra.mxu0 0
      %413 = vmatpush.bf16.msra.mxu0 %v404
      %414 = vmatmul.bf16.gmra.mxu0 %v400
      %v415 = vpop.f32.mrf.mxu0
      %v416 = vadd.f32 0.0, %v415
      %v417 = vpop.f32.mrf.mxu0
      %v418 = vadd.f32 0.0, %v417
      %419 = vdwg.mxu0
      %v420 = vld [vmem:[%s3] sm:$0x1]
      %v422 = vperm.slane %v420, 0
      %v424 = vmul.f32 %v416, %v422
      %v425 = vmul.f32 %v418, %v422
      %v426 = vld [vmem:[%s4] sm:$0x1]
      %v428 = vperm.slane %v426, 0
      %v430 = vadd.f32 %v424, %v428
      %v431 = vadd.f32 %v425, %v428
      %v432 = vmax.f32 %v430, 0.0
      %v433 = vmax.f32 %v431, 0.0
      %v434 = vpack.c.bf16 %v433, %v432
      %v435 = vld [vmem:[%s5] sm:$0xf]
      %v436 = vld [vmem:[%s6] sm:$0x1]
      %v438 = vperm.slane %v436, 0
      %vm440 = vcmask 64512
      %v442 = vsel %vm440, %v434, 0
      %vm444 = vcmask 1043456
      %v446 = vsel %vm444, %v435, 0
      %448 = vmatpush.bf16.msra.mxu0 0
      %449 = vmatpush.bf16.msra.mxu0 0
      %450 = vmatpush.bf16.msra.mxu0 0
      %451 = vmatpush.bf16.msra.mxu0 0
      %452 = vmatpush.bf16.msra.mxu0 0
      %453 = vmatpush.bf16.msra.mxu0 0
      %454 = vmatpush.bf16.msra.mxu0 0
      %455 = vmatpush.bf16.msra.mxu0 %v446
      %456 = vmatmul.bf16.gmra.mxu0 %v442
      %v457 = vpop.f32.mrf.mxu0
      %v458 = vadd.f32 %v438, %v457
      %v459 = vpop.f32.mrf.mxu0
      %v460 = vadd.f32 %v438, %v459
      %461 = vdwg.mxu0
      %v462 = vxor.u32 %v458, 2147483648
      %v463 = vxor.u32 %v460, 2147483648
      %v464 = vmul.f32 %v462, 1.442695
      %v465 = vpow.pop %v464
      %v466 = vmul.f32 %v463, 1.442695
      %v467 = vpow.pop %v466
      %v468 = vadd.f32 %v465, 1.0
      %v469 = vadd.f32 %v467, 1.0
      %v470 = vrcp.pop %v468
      %v471 = vmul.f32 %v468, %v470
      %v472 = vsub.f32 1.0, %v471
      %v473 = vmul.f32 %v470, %v472
      %v474 = vadd.f32 %v470, %v473
      %vm475 = vweird.f32 %v468
      %vm476 = vweird.f32 %v470
      %vm477 = vmor %vm475, %vm476
      %v478 = vsel %vm477, %v470, %v474
      %v479 = vand.u32 2147483647, %v468
      %vm480 = vcmp.eq.f32.partialorder %v479, 8.507059e+37
      %v481 = vand.u32 %v468, 2147483648
      %v482 = vor.u32 1.1754944e-38, %v481
      %v483 = vsel %vm480, %v482, %v478
      %v484 = vmul.f32 1.0, %v483
      %v485 = vrcp.pop %v469
      %v486 = vmul.f32 %v469, %v485
      %v487 = vsub.f32 1.0, %v486
      %v488 = vmul.f32 %v485, %v487
      %v489 = vadd.f32 %v485, %v488
      %vm490 = vweird.f32 %v469
      %vm491 = vweird.f32 %v485
      %vm492 = vmor %vm490, %vm491
      %v493 = vsel %vm492, %v485, %v489
      %v494 = vand.u32 2147483647, %v469
      %vm495 = vcmp.eq.f32.partialorder %v494, 8.507059e+37
      %v496 = vand.u32 %v469, 2147483648
      %v497 = vor.u32 1.1754944e-38, %v496
      %v498 = vsel %vm495, %v497, %v493
      %v499 = vmul.f32 1.0, %v498
      %v500 = vpack.c.bf16 %v484, %v484
      %v501 = vpack.c.bf16 %v499, %v499
      %vm502 = vcmask 27648
      %503 = vst.msk [vmem:[%s387] sm:$0xf] %vm502, %v500
      %504 = vst.msk [vmem:[%s387 + $0x4] sm:$0xf] %vm502, %v501
      %v505 = vld [vmem:[%s382] sm:$0xff]
      %v506 = vld [vmem:[%s382 + $0x8] sm:$0xff]
      %v507 = vpack.c.bf16 %v506, %v505
      %v508 = vld [vmem:[%s2] sm:$0x3]
      %v510 = vsel %vm398, %v507, 0
      %v513 = vsel %vm402, %v508, 0
      %515 = vmatpush.bf16.msra.mxu0 0
      %516 = vmatpush.bf16.msra.mxu0 0
      %517 = vmatpush.bf16.msra.mxu0 0
      %518 = vmatpush.bf16.msra.mxu0 0
      %519 = vmatpush.bf16.msra.mxu0 0
      %520 = vmatpush.bf16.msra.mxu0 0
      %521 = vmatpush.bf16.msra.mxu0 0
      %522 = vmatpush.bf16.msra.mxu0 %v513
      %523 = vmatmul.bf16.gmra.mxu0 %v510
      %v524 = vpop.f32.mrf.mxu0
      %v525 = vadd.f32 0.0, %v524
      %v526 = vpop.f32.mrf.mxu0
      %v527 = vadd.f32 0.0, %v526
      %528 = vdwg.mxu0
      %v529 = vld [vmem:[%s3] sm:$0x1]
      %v531 = vperm.slane %v529, 0
      %v533 = vmul.f32 %v525, %v531
      %v534 = vmul.f32 %v527, %v531
      %v535 = vld [vmem:[%s4] sm:$0x1]
      %v537 = vperm.slane %v535, 0
      %v539 = vadd.f32 %v533, %v537
      %v540 = vadd.f32 %v534, %v537
      %v541 = vmax.f32 %v539, 0.0
      %v542 = vmax.f32 %v540, 0.0
      %v543 = vpack.c.bf16 %v542, %v541
      %v544 = vld [vmem:[%s7] sm:$0xf]
      %v545 = vld [vmem:[%s8] sm:$0x1]
      %v547 = vperm.slane %v545, 0
      %v550 = vsel %vm440, %v543, 0
      %v553 = vsel %vm444, %v544, 0
      %555 = vmatpush.bf16.msra.mxu0 0
      %556 = vmatpush.bf16.msra.mxu0 0
      %557 = vmatpush.bf16.msra.mxu0 0
      %558 = vmatpush.bf16.msra.mxu0 0
      %559 = vmatpush.bf16.msra.mxu0 0
      %560 = vmatpush.bf16.msra.mxu0 0
      %561 = vmatpush.bf16.msra.mxu0 0
      %562 = vmatpush.bf16.msra.mxu0 %v553
      %563 = vmatmul.bf16.gmra.mxu0 %v550
      %v564 = vpop.f32.mrf.mxu0
      %v565 = vadd.f32 %v547, %v564
      %v566 = vpop.f32.mrf.mxu0
      %v567 = vadd.f32 %v547, %v566
      %568 = vdwg.mxu0
      %v569 = vxor.u32 %v565, 2147483648
      %v570 = vxor.u32 %v567, 2147483648
      %v571 = vmul.f32 %v569, 1.442695
      %v572 = vpow.pop %v571
      %v573 = vmul.f32 %v570, 1.442695
      %v574 = vpow.pop %v573
      %v575 = vadd.f32 %v572, 1.0
      %v576 = vadd.f32 %v574, 1.0
      %v577 = vrcp.pop %v575
      %v578 = vmul.f32 %v575, %v577
      %v579 = vsub.f32 1.0, %v578
      %v580 = vmul.f32 %v577, %v579
      %v581 = vadd.f32 %v577, %v580
      %vm582 = vweird.f32 %v575
      %vm583 = vweird.f32 %v577
      %vm584 = vmor %vm582, %vm583
      %v585 = vsel %vm584, %v577, %v581
      %v586 = vand.u32 2147483647, %v575
      %vm587 = vcmp.eq.f32.partialorder %v586, 8.507059e+37
      %v588 = vand.u32 %v575, 2147483648
      %v589 = vor.u32 1.1754944e-38, %v588
      %v590 = vsel %vm587, %v589, %v585
      %v591 = vmul.f32 1.0, %v590
      %v592 = vrcp.pop %v576
      %v593 = vmul.f32 %v576, %v592
      %v594 = vsub.f32 1.0, %v593
      %v595 = vmul.f32 %v592, %v594
      %v596 = vadd.f32 %v592, %v595
      %vm597 = vweird.f32 %v576
      %vm598 = vweird.f32 %v592
      %vm599 = vmor %vm597, %vm598
      %v600 = vsel %vm599, %v592, %v596
      %v601 = vand.u32 2147483647, %v576
      %vm602 = vcmp.eq.f32.partialorder %v601, 8.507059e+37
      %v603 = vand.u32 %v576, 2147483648
      %v604 = vor.u32 1.1754944e-38, %v603
      %v605 = vsel %vm602, %v604, %v600
      %v606 = vmul.f32 1.0, %v605
      %v607 = vpack.c.bf16 %v591, %v591
      %v608 = vpack.c.bf16 %v606, %v606
      %609 = vst.msk [vmem:[%s392] sm:$0xf] %vm502, %v607
      %610 = vst.msk [vmem:[%s392 + $0x4] sm:$0xf] %vm502, %v608
      %p611 = scmp.lt.s32.totalorder %s22, 1
      %s612 = scalar_select %p611, %s22, 1
      %s613 = smul.addr %s612, 2
      %s614 = smul.addr %s613, 4
      %s615 = scalar_lea.vmem %s9, %s614
      %p616 = scmp.lt.s32.totalorder %s22, 1
      %s617 = scalar_select %p616, %s22, 1
      %s618 = smul.addr %s617, 2
      %s619 = smul.addr %s618, 4
      %s620 = scalar_lea.vmem %s10, %s619
      // Predicated region
      $region57: #{up_forward.8} parent=55 // pred_check
        %p621 = pneg %p239
      $region58: #{up_forward.8} parent=55 // pred_check_branch
        %623 = sbr.rel (%p621) target = $region60
      $region59: #{up_forward.8} parent=55 // pred_region
        _
      $region60: #{up_forward.8} parent=55 // pred_fallthru
        _
      // Predicated region
      $region61: #{up_forward.8} parent=55 // pred_check
        %p624 = pneg %p265
      $region62: #{up_forward.8} parent=55 // pred_check_branch
        %626 = sbr.rel (%p624) target = $region64
      $region63: #{up_forward.8} parent=55 // pred_region
        _
      $region64: #{up_forward.8} parent=55 // pred_fallthru
        _
    $region56: #{up_forward.8} parent=5 // pred_fallthru
      _
    %p627 = scmp.le.s32.totalorder 2, %s17
    // Predicated region
    $region65: #{up_forward.8} parent=5 // pred_check
      %p628 = pneg %p627
    $region66: #{up_forward.8} parent=5 // pred_check_branch
      %630 = sbr.rel (%p628) target = $region68
    $region67: #{up_forward.8} parent=5 // pred_region
      %s631 = ssub.s32 %s17, 2
      // Predicated region
      $region69: #{up_forward.8} parent=67 // pred_check
        %p632 = pneg %p245
      $region70: #{up_forward.8} parent=67 // pred_check_branch
        %634 = sbr.rel (%p632) target = $region72
      $region71: #{up_forward.8} parent=67 // pred_region
        %p635 = scmp.lt.s32.totalorder %s23, 1
        %s636 = scalar_select %p635, %s23, 1
        %s637 = smul.addr %s636, 2
        %s638 = smul.addr %s637, 4
        %s639 = scalar_lea.vmem %s9, %s638
      $region72: #{up_forward.8} parent=67 // pred_fallthru
        _
      // Predicated region
      $region73: #{up_forward.8} parent=67 // pred_check
        %p640 = pneg %p271
      $region74: #{up_forward.8} parent=67 // pred_check_branch
        %642 = sbr.rel (%p640) target = $region76
      $region75: #{up_forward.8} parent=67 // pred_region
        %p643 = scmp.lt.s32.totalorder %s23, 1
        %s644 = scalar_select %p643, %s23, 1
        %s645 = smul.addr %s644, 2
        %s646 = smul.addr %s645, 4
        %s647 = scalar_lea.vmem %s10, %s646
      $region76: #{up_forward.8} parent=67 // pred_fallthru
        _
    $region68: #{up_forward.8} parent=5 // pred_fallthru
      _
  $region6: #{up_forward.8} parent=0 // loop_footer
    %s21 = sadd.s32 1, %s17
  $region7: #{up_forward.8} parent=0 // loop_footer_branch
    %16 = sbr.rel target = $region3
  $region8: #{up_forward.8} parent=0 // loop_exit
    _

// kernel: up_forward.11
$region0: #{up_forward.11}
  #allocation0 [shape = 'u32[]', space=smem, size = 0x4, offset = 0x4, fixed_abs, tag = 'smem constant byte address 0x4 - core index']
  #allocation1 [shape = 'u32[72,128]{1,0:T(1,128)}', space=vmem, size = 0x9000, scoped, tag = 'internal scratch']
  %s0 = inlined_call_operand.vmem [shape: bf16[2,16,16,4], index: 0, kind: input, shape index: {}]
  %s1 = inlined_call_operand.vmem [shape: bf16[2,16,1,4], index: 1, kind: input, shape index: {}]
  %s2 = inlined_call_operand.vmem [shape: bf16[2,16,4], index: 2, kind: input, shape index: {}]
  %s3 = inlined_call_operand.vmem [shape: f32[2,16,16,4], index: 3, kind: output, shape index: {}]
  %s4 = sld [smem:[#allocation0]]
  $region45: #{up_forward.11} parent=0
    _
  %s6 = ssub.s32 1, %s4
  %s7 = scalar_select 0, %s6, %s4
  loop: start=0, step=1, limit=4
  $region2: #{up_forward.11} parent=0 // loop_pre_header
    _
  $region3: #{up_forward.11} parent=0 // loop_header
    %s9 = sphi 0, %s13
    %p10 = scmp.ge.s32.totalorder %s9, 4
    %s16 = sphi 0, %s28
    %s17 = sphi 0, %s24
    %s18 = sphi 0, %s16
    %s19 = sphi 0, %s17
    %s20 = sphi 0, %s18
    %s21 = sphi 0, %s19
    %s33 = sphi 0, %s35
    %s36 = sphi 0, %s33
    %s37 = sphi 0, %s36
    %s53 = sphi 0, %s37
    %s61 = sphi 0, %s63
    %s64 = sphi 0, %s61
    %s65 = sphi 0, %s64
    %s81 = sphi 0, %s65
    %s87 = sphi 0, %s89
    %s90 = sphi 0, %s87
    %s91 = sphi 0, %s90
    %s107 = sphi 0, %s91
    %s115 = sphi 0, %s117
    %s118 = sphi 0, %s115
    %s119 = sphi 0, %s118
    %s135 = sphi 0, %s119
  $region4: #{up_forward.11} parent=0 // loop_header_branch
    %12 = sbr.rel (%p10) target = $region8
  $region5: #{up_forward.11} parent=0 // loop_body
    %s14 = ssub.s32 %s9, 1
    %s15 = ssub.s32 %s9, 2
    %s22 = sadd.s32 1, %s17
    %p23 = scmp.ge.s32.totalorder %s22, 1
    %s24 = scalar_select %p23, 0, %s22
    %s25 = sadd.s32 1, %s16
    %s26 = scalar_select %p23, %s25, %s16
    %p27 = scmp.ge.s32.totalorder %s26, 2
    %s28 = scalar_select %p27, 0, %s26
    %s29 = ssub.s32 %s16, %s28
    %s30 = ssub.s32 %s17, %s24
    %s31 = sor.u32 %s29, %s30
    %p32 = scmp.eq.s32.totalorder %s31, 0
    %s34 = sadd.s32 %s33, 1
    %s35 = scalar_select %p32, %s33, %s34
    %p38 = pneg %p32
    %p39 = scmp.eq.s32.totalorder %s9, 1
    %p40 = por %p38, %p39
    %p41 = scmp.ne.s32.totalorder %s33, %s36
    %p42 = scmp.eq.s32.totalorder %s9, 0
    %p43 = por %p41, %p42
    %p44 = scmp.ne.s32.totalorder %s33, %s36
    %p45 = scmp.eq.s32.totalorder %s14, 1
    %p46 = por %p44, %p45
    %p47 = scmp.ne.s32.totalorder %s36, %s37
    %p48 = scmp.eq.s32.totalorder %s14, 0
    %p49 = por %p47, %p48
    %p50 = scmp.ne.s32.totalorder %s36, %s37
    %p51 = scmp.eq.s32.totalorder %s15, 1
    %p52 = por %p50, %p51
    %p54 = scmp.ne.s32.totalorder %s37, %s53
    %p55 = scmp.eq.s32.totalorder %s15, 0
    %p56 = por %p54, %p55
    %s57 = ssub.s32 %s16, %s28
    %s58 = ssub.s32 %s17, %s24
    %s59 = sor.u32 %s57, %s58
    %p60 = scmp.eq.s32.totalorder %s59, 0
    %s62 = sadd.s32 %s61, 1
    %s63 = scalar_select %p60, %s61, %s62
    %p66 = pneg %p60
    %p67 = scmp.eq.s32.totalorder %s9, 1
    %p68 = por %p66, %p67
    %p69 = scmp.ne.s32.totalorder %s61, %s64
    %p70 = scmp.eq.s32.totalorder %s9, 0
    %p71 = por %p69, %p70
    %p72 = scmp.ne.s32.totalorder %s61, %s64
    %p73 = scmp.eq.s32.totalorder %s14, 1
    %p74 = por %p72, %p73
    %p75 = scmp.ne.s32.totalorder %s64, %s65
    %p76 = scmp.eq.s32.totalorder %s14, 0
    %p77 = por %p75, %p76
    %p78 = scmp.ne.s32.totalorder %s64, %s65
    %p79 = scmp.eq.s32.totalorder %s15, 1
    %p80 = por %p78, %p79
    %p82 = scmp.ne.s32.totalorder %s65, %s81
    %p83 = scmp.eq.s32.totalorder %s15, 0
    %p84 = por %p82, %p83
    %s85 = ssub.s32 %s16, %s28
    %p86 = scmp.eq.s32.totalorder %s85, 0
    %s88 = sadd.s32 %s87, 1
    %s89 = scalar_select %p86, %s87, %s88
    %p92 = pneg %p86
    %p93 = scmp.eq.s32.totalorder %s9, 1
    %p94 = por %p92, %p93
    %p95 = scmp.ne.s32.totalorder %s87, %s90
    %p96 = scmp.eq.s32.totalorder %s9, 0
    %p97 = por %p95, %p96
    %p98 = scmp.ne.s32.totalorder %s87, %s90
    %p99 = scmp.eq.s32.totalorder %s14, 1
    %p100 = por %p98, %p99
    %p101 = scmp.ne.s32.totalorder %s90, %s91
    %p102 = scmp.eq.s32.totalorder %s14, 0
    %p103 = por %p101, %p102
    %p104 = scmp.ne.s32.totalorder %s90, %s91
    %p105 = scmp.eq.s32.totalorder %s15, 1
    %p106 = por %p104, %p105
    %p108 = scmp.ne.s32.totalorder %s91, %s107
    %p109 = scmp.eq.s32.totalorder %s15, 0
    %p110 = por %p108, %p109
    %s111 = ssub.s32 %s16, %s28
    %s112 = ssub.s32 %s17, %s24
    %s113 = sor.u32 %s111, %s112
    %p114 = scmp.eq.s32.totalorder %s113, 0
    %s116 = sadd.s32 %s115, 1
    %s117 = scalar_select %p114, %s115, %s116
    %p120 = pneg %p114
    %p121 = scmp.eq.s32.totalorder %s9, 1
    %p122 = por %p120, %p121
    %p123 = scmp.ne.s32.totalorder %s115, %s118
    %p124 = scmp.eq.s32.totalorder %s9, 0
    %p125 = por %p123, %p124
    %p126 = scmp.ne.s32.totalorder %s115, %s118
    %p127 = scmp.eq.s32.totalorder %s14, 1
    %p128 = por %p126, %p127
    %p129 = scmp.ne.s32.totalorder %s118, %s119
    %p130 = scmp.eq.s32.totalorder %s14, 0
    %p131 = por %p129, %p130
    %p132 = scmp.ne.s32.totalorder %s118, %s119
    %p133 = scmp.eq.s32.totalorder %s15, 1
    %p134 = por %p132, %p133
    %p136 = scmp.ne.s32.totalorder %s119, %s135
    %p137 = scmp.eq.s32.totalorder %s15, 0
    %p138 = por %p136, %p137
    %p139 = scmp.le.s32.totalorder 1, %s9
    %p140 = scmp.lt.s32.totalorder %s9, 3
    %p141 = pnand %p139, %p140
    %p142 = pneg %p141
    // Predicated region
    $region9: #{up_forward.11} parent=5 // pred_check
      _
    $region10: #{up_forward.11} parent=5 // pred_check_branch
      %144 = sbr.rel (%p141) target = $region12
    $region11: #{up_forward.11} parent=5 // pred_region
      %s145 = ssub.s32 %s9, 1
    $region12: #{up_forward.11} parent=5 // pred_fallthru
      _
    %p146 = scmp.lt.s32.totalorder %s9, 2
    // Predicated region
    $region13: #{up_forward.11} parent=5 // pred_check
      %p147 = pneg %p146
    $region14: #{up_forward.11} parent=5 // pred_check_branch
      %149 = sbr.rel (%p147) target = $region16
    $region15: #{up_forward.11} parent=5 // pred_region
      // Predicated region
      $region17: #{up_forward.11} parent=15 // pred_check
        %p150 = pneg %p43
      $region18: #{up_forward.11} parent=15 // pred_check_branch
        %152 = sbr.rel (%p150) target = $region20
      $region19: #{up_forward.11} parent=15 // pred_region
        %s153 = smul.u32 16, %s17
        %p154 = scmp.lt.s32.totalorder %s16, 1
        %s155 = scalar_select %p154, %s16, 1
        %p156 = scmp.lt.s32.totalorder %s153, 15
        %s157 = scalar_select %p156, %s153, 15
        %s158 = smul.addr %s157, 2
        %s159 = smul.addr %s155, 32
        %s160 = sadd.s32 %s158, %s159
        %s161 = smul.addr %s160, 4
        %s162 = scalar_lea.vmem %s0, %s161
        %s163 = smul.u32 16, %s17
      $region20: #{up_forward.11} parent=15 // pred_fallthru
        _
      // Predicated region
      $region21: #{up_forward.11} parent=15 // pred_check
        %p164 = pneg %p71
      $region22: #{up_forward.11} parent=15 // pred_check_branch
        %166 = sbr.rel (%p164) target = $region24
      $region23: #{up_forward.11} parent=15 // pred_region
        %s167 = smul.u32 16, %s17
        %p168 = scmp.lt.s32.totalorder %s16, 1
        %s169 = scalar_select %p168, %s16, 1
        %p170 = scmp.lt.s32.totalorder %s167, 15
        %s171 = scalar_select %p170, %s167, 15
        %s172 = smul.addr %s169, 16
        %s173 = sadd.s32 %s171, %s172
        %s174 = scalar_lea.vmem %s1, %s173
        %s175 = smul.u32 16, %s17
      $region24: #{up_forward.11} parent=15 // pred_fallthru
        _
      // Predicated region
      $region25: #{up_forward.11} parent=15 // pred_check
        %p176 = pneg %p97
      $region26: #{up_forward.11} parent=15 // pred_check_branch
        %178 = sbr.rel (%p176) target = $region28
      $region27: #{up_forward.11} parent=15 // pred_region
        %p179 = scmp.lt.s32.totalorder %s16, 1
        %s180 = scalar_select %p179, %s16, 1
        %s181 = smul.addr %s180, 2
        %s182 = smul.addr %s181, 4
        %s183 = scalar_lea.vmem %s2, %s182
      $region28: #{up_forward.11} parent=15 // pred_fallthru
        _
    $region16: #{up_forward.11} parent=5 // pred_fallthru
      _
    %p184 = scmp.le.s32.totalorder 1, %s9
    %p185 = scmp.lt.s32.totalorder %s9, 3
    %p186 = pnand %p184, %p185
    %p187 = pneg %p186
    // Predicated region
    $region29: #{up_forward.11} parent=5 // pred_check
      _
    $region30: #{up_forward.11} parent=5 // pred_check_branch
      %189 = sbr.rel (%p186) target = $region32
    $region31: #{up_forward.11} parent=5 // pred_region
      %s190 = ssub.s32 %s9, 1
      %s191 = smul.u32 16, %s19
      %p192 = scmp.lt.s32.totalorder %s18, 1
      %s193 = scalar_select %p192, %s18, 1
      %p194 = scmp.lt.s32.totalorder %s191, 15
      %s195 = scalar_select %p194, %s191, 15
      %s196 = smul.addr %s195, 2
      %s197 = smul.addr %s193, 32
      %s198 = sadd.s32 %s196, %s197
      %s199 = smul.addr %s198, 4
      %s200 = scalar_lea.vmem %s0, %s199
      %p201 = pneg %p49
      %p202 = pneg %p46
      %s203 = smul.u32 16, %s19
      %p204 = scmp.lt.s32.totalorder %s18, 1
      %s205 = scalar_select %p204, %s18, 1
      %p206 = scmp.lt.s32.totalorder %s203, 15
      %s207 = scalar_select %p206, %s203, 15
      %s208 = smul.addr %s205, 16
      %s209 = sadd.s32 %s207, %s208
      %s210 = scalar_lea.vmem %s1, %s209
      %p211 = pneg %p77
      %p212 = pneg %p74
      %p213 = scmp.lt.s32.totalorder %s18, 1
      %s214 = scalar_select %p213, %s18, 1
      %s215 = smul.addr %s214, 2
      %s216 = smul.addr %s215, 4
      %s217 = scalar_lea.vmem %s2, %s216
      %p218 = pneg %p103
      %p219 = pneg %p100
      %p220 = pneg %p131
      %p221 = pneg %p128
      %s222 = smul.u32 16, %s19
      %p223 = scmp.lt.s32.totalorder %s18, 1
      %s224 = scalar_select %p223, %s18, 1
      %p225 = scmp.lt.s32.totalorder %s222, 15
      %s226 = scalar_select %p225, %s222, 15
      %s227 = smul.addr %s226, 2
      %s228 = smul.addr %s224, 32
      %s229 = sadd.s32 %s227, %s228
      %s230 = smul.addr %s229, 8
      %s231 = scalar_lea.vmem %s3, %s230
      %s232 = smul.u32 16, %s19
      %p233 = scmp.lt.s32.totalorder %s18, 1
      %s234 = scalar_select %p233, %s18, 1
      %p235 = scmp.lt.s32.totalorder %s232, 15
      %s236 = scalar_select %p235, %s232, 15
      %s237 = smul.addr %s236, 2
      %s238 = smul.addr %s234, 32
      %s239 = sadd.s32 %s237, %s238
      %s240 = smul.addr %s239, 4
      %s241 = scalar_lea.vmem %s0, %s240
      %s242 = smul.u32 16, %s19
      %s243 = smul.u32 16, %s19
      %p244 = scmp.lt.s32.totalorder %s18, 1
      %s245 = scalar_select %p244, %s18, 1
      %p246 = scmp.lt.s32.totalorder %s243, 15
      %s247 = scalar_select %p246, %s243, 15
      %s248 = smul.addr %s245, 16
      %s249 = sadd.s32 %s247, %s248
      %s250 = scalar_lea.vmem %s1, %s249
      %s251 = smul.u32 16, %s19
      %p252 = scmp.lt.s32.totalorder %s18, 1
      %s253 = scalar_select %p252, %s18, 1
      %s254 = smul.addr %s253, 2
      %s255 = smul.addr %s254, 4
      %s256 = scalar_lea.vmem %s2, %s255
      %s257 = smul.u32 16, %s19
      %p258 = scmp.lt.s32.totalorder %s18, 1
      %s259 = scalar_select %p258, %s18, 1
      %p260 = scmp.lt.s32.totalorder %s257, 15
      %s261 = scalar_select %p260, %s257, 15
      %s262 = smul.addr %s261, 2
      %s263 = smul.addr %s259, 32
      %s264 = sadd.s32 %s262, %s263
      %s265 = smul.addr %s264, 8
      %s266 = scalar_lea.vmem %s3, %s265
      %s267 = smul.u32 16, %s19
      %v268 = vld [vmem:[%s241] sm:$0xf]
      %v269 = vld [vmem:[%s241 + $0x4] sm:$0xf]
      %v270 = vld [vmem:[%s241 + $0x8] sm:$0xf]
      %v271 = vld [vmem:[%s241 + $0xc] sm:$0xf]
      %v272 = vld [vmem:[%s241 + $0x10] sm:$0xf]
      %v273 = vld [vmem:[%s241 + $0x14] sm:$0xf]
      %v274 = vld [vmem:[%s241 + $0x18] sm:$0xf]
      %v275 = vld [vmem:[%s241 + $0x1c] sm:$0xf]
      %v276 = vld [vmem:[%s241 + $0x20] sm:$0xf]
      %v277 = vld [vmem:[%s241 + $0x24] sm:$0xf]
      %v278 = vld [vmem:[%s241 + $0x28] sm:$0xf]
      %v279 = vld [vmem:[%s241 + $0x2c] sm:$0xf]
      %v280 = vld [vmem:[%s241 + $0x30] sm:$0xf]
      %v281 = vld [vmem:[%s241 + $0x34] sm:$0xf]
      %v282 = vld [vmem:[%s241 + $0x38] sm:$0xf]
      %v283 = vld [vmem:[%s241 + $0x3c] sm:$0xf]
      %v284 = vld [vmem:[%s241 + $0x40] sm:$0xf]
      %v285 = vld [vmem:[%s241 + $0x44] sm:$0xf]
      %v286 = vld [vmem:[%s241 + $0x48] sm:$0xf]
      %v287 = vld [vmem:[%s241 + $0x4c] sm:$0xf]
      %v288 = vld [vmem:[%s241 + $0x50] sm:$0xf]
      %v289 = vld [vmem:[%s241 + $0x54] sm:$0xf]
      %v290 = vld [vmem:[%s241 + $0x58] sm:$0xf]
      %v291 = vld [vmem:[%s241 + $0x5c] sm:$0xf]
      %v292 = vld [vmem:[%s241 + $0x60] sm:$0xf]
      %v293 = vld [vmem:[%s241 + $0x64] sm:$0xf]
      %v294 = vld [vmem:[%s241 + $0x68] sm:$0xf]
      %v295 = vld [vmem:[%s241 + $0x6c] sm:$0xf]
      %v296 = vld [vmem:[%s241 + $0x70] sm:$0xf]
      %v297 = vld [vmem:[%s241 + $0x74] sm:$0xf]
      %v298 = vld [vmem:[%s241 + $0x78] sm:$0xf]
      %v299 = vld [vmem:[%s241 + $0x7c] sm:$0xf]
      %v300 = vunpack.c.l.bf16 %v268
      %v301 = vunpack.c.l.bf16 %v269
      %v302 = vunpack.c.l.bf16 %v270
      %v303 = vunpack.c.l.bf16 %v271
      %v304 = vunpack.c.l.bf16 %v272
      %v305 = vunpack.c.l.bf16 %v273
      %v306 = vunpack.c.l.bf16 %v274
      %v307 = vunpack.c.l.bf16 %v275
      %v308 = vunpack.c.l.bf16 %v276
      %v309 = vunpack.c.l.bf16 %v277
      %v310 = vunpack.c.l.bf16 %v278
      %v311 = vunpack.c.l.bf16 %v279
      %v312 = vunpack.c.l.bf16 %v280
      %v313 = vunpack.c.l.bf16 %v281
      %v314 = vunpack.c.l.bf16 %v282
      %v315 = vunpack.c.l.bf16 %v283
      %v316 = vunpack.c.l.bf16 %v284
      %v317 = vunpack.c.l.bf16 %v285
      %v318 = vunpack.c.l.bf16 %v286
      %v319 = vunpack.c.l.bf16 %v287
      %v320 = vunpack.c.l.bf16 %v288
      %v321 = vunpack.c.l.bf16 %v289
      %v322 = vunpack.c.l.bf16 %v290
      %v323 = vunpack.c.l.bf16 %v291
      %v324 = vunpack.c.l.bf16 %v292
      %v325 = vunpack.c.l.bf16 %v293
      %v326 = vunpack.c.l.bf16 %v294
      %v327 = vunpack.c.l.bf16 %v295
      %v328 = vunpack.c.l.bf16 %v296
      %v329 = vunpack.c.l.bf16 %v297
      %v330 = vunpack.c.l.bf16 %v298
      %v331 = vunpack.c.l.bf16 %v299
      %v332 = vld [vmem:[%s250] sm:$0x1]
      %v333 = vld [vmem:[%s250 + $0x1] sm:$0x1]
      %v334 = vld [vmem:[%s250 + $0x2] sm:$0x1]
      %v335 = vld [vmem:[%s250 + $0x3] sm:$0x1]
      %v336 = vld [vmem:[%s250 + $0x4] sm:$0x1]
      %v337 = vld [vmem:[%s250 + $0x5] sm:$0x1]
      %v338 = vld [vmem:[%s250 + $0x6] sm:$0x1]
      %v339 = vld [vmem:[%s250 + $0x7] sm:$0x1]
      %v340 = vld [vmem:[%s250 + $0x8] sm:$0x1]
      %v341 = vld [vmem:[%s250 + $0x9] sm:$0x1]
      %v342 = vld [vmem:[%s250 + $0xa] sm:$0x1]
      %v343 = vld [vmem:[%s250 + $0xb] sm:$0x1]
      %v344 = vld [vmem:[%s250 + $0xc] sm:$0x1]
      %v345 = vld [vmem:[%s250 + $0xd] sm:$0x1]
      %v346 = vld [vmem:[%s250 + $0xe] sm:$0x1]
      %v347 = vld [vmem:[%s250 + $0xf] sm:$0x1]
      %v348 = vunpack.c.l.bf16 %v332
      %v349 = vunpack.c.l.bf16 %v333
      %v350 = vunpack.c.l.bf16 %v334
      %v351 = vunpack.c.l.bf16 %v335
      %v352 = vunpack.c.l.bf16 %v336
      %v353 = vunpack.c.l.bf16 %v337
      %v354 = vunpack.c.l.bf16 %v338
      %v355 = vunpack.c.l.bf16 %v339
      %v356 = vunpack.c.l.bf16 %v340
      %v357 = vunpack.c.l.bf16 %v341
      %v358 = vunpack.c.l.bf16 %v342
      %v359 = vunpack.c.l.bf16 %v343
      %v360 = vunpack.c.l.bf16 %v344
      %v361 = vunpack.c.l.bf16 %v345
      %v362 = vunpack.c.l.bf16 %v346
      %v363 = vunpack.c.l.bf16 %v347
      %v364 = vld [vmem:[%s256] sm:$0xf]
      %v365 = vld [vmem:[%s256 + $0x4] sm:$0xf]
      %v366 = vunpack.c.l.bf16 %v364
      %v367 = vunpack.c.l.bf16 %v365
      %v368 = vperm.slane %v348, 0
      %v369 = vperm.slane %v349, 0
      %v370 = vperm.slane %v350, 0
      %v371 = vperm.slane %v351, 0
      %v372 = vperm.slane %v352, 0
      %v373 = vperm.slane %v353, 0
      %v374 = vperm.slane %v354, 0
      %v375 = vperm.slane %v355, 0
      %v376 = vperm.slane %v356, 0
      %v377 = vperm.slane %v357, 0
      %v378 = vperm.slane %v358, 0
      %v379 = vperm.slane %v359, 0
      %v380 = vperm.slane %v360, 0
      %v381 = vperm.slane %v361, 0
      %v382 = vperm.slane %v362, 0
      %v383 = vperm.slane %v363, 0
      %v384 = vmul.f32 %v300, %v368
      %v385 = vmul.f32 %v301, %v368
      %v386 = vmul.f32 %v302, %v369
      %v387 = vmul.f32 %v303, %v369
      %v388 = vmul.f32 %v304, %v370
      %v389 = vmul.f32 %v305, %v370
      %v390 = vmul.f32 %v306, %v371
      %v391 = vmul.f32 %v307, %v371
      %v392 = vmul.f32 %v308, %v372
      %v393 = vmul.f32 %v309, %v372
      %v394 = vmul.f32 %v310, %v373
      %v395 = vmul.f32 %v311, %v373
      %v396 = vmul.f32 %v312, %v374
      %v397 = vmul.f32 %v313, %v374
      %v398 = vmul.f32 %v314, %v375
      %v399 = vmul.f32 %v315, %v375
      %v400 = vmul.f32 %v316, %v376
      %v401 = vmul.f32 %v317, %v376
      %v402 = vmul.f32 %v318, %v377
      %v403 = vmul.f32 %v319, %v377
      %v404 = vmul.f32 %v320, %v378
      %v405 = vmul.f32 %v321, %v378
      %v406 = vmul.f32 %v322, %v379
      %v407 = vmul.f32 %v323, %v379
      %v408 = vmul.f32 %v324, %v380
      %v409 = vmul.f32 %v325, %v380
      %v410 = vmul.f32 %v326, %v381
      %v411 = vmul.f32 %v327, %v381
      %v412 = vmul.f32 %v328, %v382
      %v413 = vmul.f32 %v329, %v382
      %v414 = vmul.f32 %v330, %v383
      %v415 = vmul.f32 %v331, %v383
      %v416 = vmul.f32 %v384, %v366
      %v417 = vmul.f32 %v385, %v367
      %v418 = vmul.f32 %v386, %v366
      %v419 = vmul.f32 %v387, %v367
      %v420 = vmul.f32 %v388, %v366
      %v421 = vmul.f32 %v389, %v367
      %v422 = vmul.f32 %v390, %v366
      %v423 = vmul.f32 %v391, %v367
      %v424 = vmul.f32 %v392, %v366
      %v425 = vmul.f32 %v393, %v367
      %v426 = vmul.f32 %v394, %v366
      %v427 = vmul.f32 %v395, %v367
      %v428 = vmul.f32 %v396, %v366
      %v429 = vmul.f32 %v397, %v367
      %v430 = vmul.f32 %v398, %v366
      %v431 = vmul.f32 %v399, %v367
      %v432 = vmul.f32 %v400, %v366
      %v433 = vmul.f32 %v401, %v367
      %v434 = vmul.f32 %v402, %v366
      %v435 = vmul.f32 %v403, %v367
      %v436 = vmul.f32 %v404, %v366
      %v437 = vmul.f32 %v405, %v367
      %v438 = vmul.f32 %v406, %v366
      %v439 = vmul.f32 %v407, %v367
      %v440 = vmul.f32 %v408, %v366
      %v441 = vmul.f32 %v409, %v367
      %v442 = vmul.f32 %v410, %v366
      %v443 = vmul.f32 %v411, %v367
      %v444 = vmul.f32 %v412, %v366
      %v445 = vmul.f32 %v413, %v367
      %v446 = vmul.f32 %v414, %v366
      %v447 = vmul.f32 %v415, %v367
      %vm448 = vcmask 31744
      %449 = vst.msk [vmem:[%s266] sm:$0xff] %vm448, %v416
      %450 = vst.msk [vmem:[%s266 + $0x8] sm:$0xff] %vm448, %v417
      %451 = vst.msk [vmem:[%s266 + $0x10] sm:$0xff] %vm448, %v418
      %452 = vst.msk [vmem:[%s266 + $0x18] sm:$0xff] %vm448, %v419
      %453 = vst.msk [vmem:[%s266 + $0x20] sm:$0xff] %vm448, %v420
      %454 = vst.msk [vmem:[%s266 + $0x28] sm:$0xff] %vm448, %v421
      %455 = vst.msk [vmem:[%s266 + $0x30] sm:$0xff] %vm448, %v422
      %456 = vst.msk [vmem:[%s266 + $0x38] sm:$0xff] %vm448, %v423
      %457 = vst.msk [vmem:[%s266 + $0x40] sm:$0xff] %vm448, %v424
      %458 = vst.msk [vmem:[%s266 + $0x48] sm:$0xff] %vm448, %v425
      %459 = vst.msk [vmem:[%s266 + $0x50] sm:$0xff] %vm448, %v426
      %460 = vst.msk [vmem:[%s266 + $0x58] sm:$0xff] %vm448, %v427
      %461 = vst.msk [vmem:[%s266 + $0x60] sm:$0xff] %vm448, %v428
      %462 = vst.msk [vmem:[%s266 + $0x68] sm:$0xff] %vm448, %v429
      %463 = vst.msk [vmem:[%s266 + $0x70] sm:$0xff] %vm448, %v430
      %464 = vst.msk [vmem:[%s266 + $0x78] sm:$0xff] %vm448, %v431
      %465 = vst.msk [vmem:[%s266 + $0x80] sm:$0xff] %vm448, %v432
      %466 = vst.msk [vmem:[%s266 + $0x88] sm:$0xff] %vm448, %v433
      %467 = vst.msk [vmem:[%s266 + $0x90] sm:$0xff] %vm448, %v434
      %468 = vst.msk [vmem:[%s266 + $0x98] sm:$0xff] %vm448, %v435
      %469 = vst.msk [vmem:[%s266 + $0xa0] sm:$0xff] %vm448, %v436
      %470 = vst.msk [vmem:[%s266 + $0xa8] sm:$0xff] %vm448, %v437
      %471 = vst.msk [vmem:[%s266 + $0xb0] sm:$0xff] %vm448, %v438
      %472 = vst.msk [vmem:[%s266 + $0xb8] sm:$0xff] %vm448, %v439
      %473 = vst.msk [vmem:[%s266 + $0xc0] sm:$0xff] %vm448, %v440
      %474 = vst.msk [vmem:[%s266 + $0xc8] sm:$0xff] %vm448, %v441
      %475 = vst.msk [vmem:[%s266 + $0xd0] sm:$0xff] %vm448, %v442
      %476 = vst.msk [vmem:[%s266 + $0xd8] sm:$0xff] %vm448, %v443
      %477 = vst.msk [vmem:[%s266 + $0xe0] sm:$0xff] %vm448, %v444
      %478 = vst.msk [vmem:[%s266 + $0xe8] sm:$0xff] %vm448, %v445
      %479 = vst.msk [vmem:[%s266 + $0xf0] sm:$0xff] %vm448, %v446
      %480 = vst.msk [vmem:[%s266 + $0xf8] sm:$0xff] %vm448, %v447
      %s481 = smul.u32 16, %s19
      %p482 = scmp.lt.s32.totalorder %s18, 1
      %s483 = scalar_select %p482, %s18, 1
      %p484 = scmp.lt.s32.totalorder %s481, 15
      %s485 = scalar_select %p484, %s481, 15
      %s486 = smul.addr %s485, 2
      %s487 = smul.addr %s483, 32
      %s488 = sadd.s32 %s486, %s487
      %s489 = smul.addr %s488, 8
      %s490 = scalar_lea.vmem %s3, %s489
      // Predicated region
      $region33: #{up_forward.11} parent=31 // pred_check
        %p491 = pneg %p128
      $region34: #{up_forward.11} parent=31 // pred_check_branch
        %493 = sbr.rel (%p491) target = $region36
      $region35: #{up_forward.11} parent=31 // pred_region
        %s494 = smul.u32 16, %s19
      $region36: #{up_forward.11} parent=31 // pred_fallthru
        _
    $region32: #{up_forward.11} parent=5 // pred_fallthru
      _
    %p495 = scmp.le.s32.totalorder 2, %s9
    // Predicated region
    $region37: #{up_forward.11} parent=5 // pred_check
      %p496 = pneg %p495
    $region38: #{up_forward.11} parent=5 // pred_check_branch
      %498 = sbr.rel (%p496) target = $region40
    $region39: #{up_forward.11} parent=5 // pred_region
      %s499 = ssub.s32 %s9, 2
      // Predicated region
      $region41: #{up_forward.11} parent=39 // pred_check
        %p500 = pneg %p134
      $region42: #{up_forward.11} parent=39 // pred_check_branch
        %502 = sbr.rel (%p500) target = $region44
      $region43: #{up_forward.11} parent=39 // pred_region
        %s503 = smul.u32 16, %s21
        %p504 = scmp.lt.s32.totalorder %s20, 1
        %s505 = scalar_select %p504, %s20, 1
        %p506 = scmp.lt.s32.totalorder %s503, 15
        %s507 = scalar_select %p506, %s503, 15
        %s508 = smul.addr %s507, 2
        %s509 = smul.addr %s505, 32
        %s510 = sadd.s32 %s508, %s509
        %s511 = smul.addr %s510, 8
        %s512 = scalar_lea.vmem %s3, %s511
      $region44: #{up_forward.11} parent=39 // pred_fallthru
        _
    $region40: #{up_forward.11} parent=5 // pred_fallthru
      _
  $region6: #{up_forward.11} parent=0 // loop_footer
    %s13 = sadd.s32 1, %s9
  $region7: #{up_forward.11} parent=0 // loop_footer_branch
    %8 = sbr.rel target = $region3
  $region8: #{up_forward.11} parent=0 // loop_exit
    _

// kernel: up_forward.7
$region0: #{up_forward.7}
  #allocation0 [shape = 'u32[]', space=smem, size = 0x4, offset = 0x4, fixed_abs, tag = 'smem constant byte address 0x4 - core index']
  #allocation1 [shape = 'u32[72,128]{1,0:T(1,128)}', space=vmem, size = 0x9000, scoped, tag = 'internal scratch']
  #allocation2 [shape = 'f32[18,18,8]{2,1,0:T(8,128)}', space=vmem, size = 0x36000, scoped, tag = 'scratch operand']
  %s0 = inlined_call_operand.vmem [shape: bf16[2,16,16,8], index: 0, kind: input, shape index: {}, may-alias: {0,1,2}]
  %s1 = inlined_call_operand.vmem [shape: bf16[2,16,16,8], index: 1, kind: input, shape index: {}, may-alias: {0,1,2}]
  %s2 = inlined_call_operand.vmem [shape: bf16[2,16,16,8], index: 2, kind: input, shape index: {}, may-alias: {0,1,2}]
  %s3 = inlined_call_operand.vmem [shape: f32[3,3,8], index: 3, kind: input, shape index: {}]
  %s4 = inlined_call_operand.vmem [shape: bf16[8,4], index: 4, kind: input, shape index: {}]
  %s5 = inlined_call_operand.vmem [shape: f32[1,4], index: 5, kind: input, shape index: {}]
  %s6 = inlined_call_operand.vmem [shape: f32[1,4], index: 6, kind: input, shape index: {}]
  %s7 = inlined_call_operand.vmem [shape: bf16[2,16,16,4], index: 7, kind: output, shape index: {0}]
  %s8 = inlined_call_operand.vmem [shape: f32[2,16,4], index: 8, kind: output, shape index: {1}]
  %s9 = inlined_call_operand.vmem [shape: f32[2,1,16,4], index: 9, kind: output, shape index: {2}]
  %10 = xla_tuple %s7, %s8, %s9
  %s11 = sld [smem:[#allocation0]]
  $region77: #{up_forward.7} parent=0
    _
  %s13 = ssub.s32 1, %s11
  %s14 = scalar_select 0, %s13, %s11
  loop: start=0, step=1, limit=4
  $region2: #{up_forward.7} parent=0 // loop_pre_header
    _
  $region3: #{up_forward.7} parent=0 // loop_header
    %s16 = sphi 0, %s20
    %p17 = scmp.ge.s32.totalorder %s16, 4
    %s23 = sphi 0, %s35
    %s24 = sphi 0, %s31
    %s25 = sphi 0, %s23
    %s26 = sphi 0, %s24
    %s27 = sphi 0, %s25
    %s28 = sphi 0, %s26
    %s40 = sphi 0, %s42
    %s43 = sphi 0, %s40
    %s44 = sphi 0, %s43
    %s60 = sphi 0, %s44
    %s76 = sphi 0, %s78
    %s79 = sphi 0, %s76
    %s80 = sphi 0, %s79
    %s96 = sphi 0, %s80
    %s112 = sphi 0, %s114
    %s115 = sphi 0, %s112
    %s116 = sphi 0, %s115
    %s132 = sphi 0, %s116
    %s136 = sphi 0, %s136
    %s138 = sphi 0, %s136
    %s139 = sphi 0, %s138
    %s153 = sphi 0, %s139
    %s157 = sphi 0, %s157
    %s159 = sphi 0, %s157
    %s160 = sphi 0, %s159
    %s174 = sphi 0, %s160
    %s178 = sphi 0, %s178
    %s180 = sphi 0, %s178
    %s181 = sphi 0, %s180
    %s195 = sphi 0, %s181
    %s199 = sphi 0, %s199
    %s201 = sphi 0, %s199
    %s202 = sphi 0, %s201
    %s216 = sphi 0, %s202
    %s224 = sphi 0, %s226
    %s227 = sphi 0, %s224
    %s228 = sphi 0, %s227
    %s244 = sphi 0, %s228
    %s252 = sphi 0, %s254
    %s255 = sphi 0, %s252
    %s256 = sphi 0, %s255
    %s272 = sphi 0, %s256
    %s280 = sphi 0, %s282
    %s283 = sphi 0, %s280
    %s284 = sphi 0, %s283
    %s300 = sphi 0, %s284
  $region4: #{up_forward.7} parent=0 // loop_header_branch
    %19 = sbr.rel (%p17) target = $region8
  $region5: #{up_forward.7} parent=0 // loop_body
    %s21 = ssub.s32 %s16, 1
    %s22 = ssub.s32 %s16, 2
    %s29 = sadd.s32 1, %s24
    %p30 = scmp.ge.s32.totalorder %s29, 1
    %s31 = scalar_select %p30, 0, %s29
    %s32 = sadd.s32 1, %s23
    %s33 = scalar_select %p30, %s32, %s23
    %p34 = scmp.ge.s32.totalorder %s33, 2
    %s35 = scalar_select %p34, 0, %s33
    %s36 = ssub.s32 %s23, %s35
    %s37 = ssub.s32 %s24, %s31
    %s38 = sor.u32 %s36, %s37
    %p39 = scmp.eq.s32.totalorder %s38, 0
    %s41 = sadd.s32 %s40, 1
    %s42 = scalar_select %p39, %s40, %s41
    %p45 = pneg %p39
    %p46 = scmp.eq.s32.totalorder %s16, 1
    %p47 = por %p45, %p46
    %p48 = scmp.ne.s32.totalorder %s40, %s43
    %p49 = scmp.eq.s32.totalorder %s16, 0
    %p50 = por %p48, %p49
    %p51 = scmp.ne.s32.totalorder %s40, %s43
    %p52 = scmp.eq.s32.totalorder %s21, 1
    %p53 = por %p51, %p52
    %p54 = scmp.ne.s32.totalorder %s43, %s44
    %p55 = scmp.eq.s32.totalorder %s21, 0
    %p56 = por %p54, %p55
    %p57 = scmp.ne.s32.totalorder %s43, %s44
    %p58 = scmp.eq.s32.totalorder %s22, 1
    %p59 = por %p57, %p58
    %p61 = scmp.ne.s32.totalorder %s44, %s60
    %p62 = scmp.eq.s32.totalorder %s22, 0
    %p63 = por %p61, %p62
    %s64 = smul.u32 %s24, 16
    %s65 = ssub.s32 %s64, 1
    %p66 = scmp.gt.s32.totalorder %s65, 0
    %s67 = scalar_select %p66, %s65, 0
    %s68 = smul.u32 %s31, 16
    %s69 = ssub.s32 %s68, 1
    %p70 = scmp.gt.s32.totalorder %s69, 0
    %s71 = scalar_select %p70, %s69, 0
    %s72 = ssub.s32 %s23, %s35
    %s73 = ssub.s32 %s67, %s71
    %s74 = sor.u32 %s72, %s73
    %p75 = scmp.eq.s32.totalorder %s74, 0
    %s77 = sadd.s32 %s76, 1
    %s78 = scalar_select %p75, %s76, %s77
    %p81 = pneg %p75
    %p82 = scmp.eq.s32.totalorder %s16, 1
    %p83 = por %p81, %p82
    %p84 = scmp.ne.s32.totalorder %s76, %s79
    %p85 = scmp.eq.s32.totalorder %s16, 0
    %p86 = por %p84, %p85
    %p87 = scmp.ne.s32.totalorder %s76, %s79
    %p88 = scmp.eq.s32.totalorder %s21, 1
    %p89 = por %p87, %p88
    %p90 = scmp.ne.s32.totalorder %s79, %s80
    %p91 = scmp.eq.s32.totalorder %s21, 0
    %p92 = por %p90, %p91
    %p93 = scmp.ne.s32.totalorder %s79, %s80
    %p94 = scmp.eq.s32.totalorder %s22, 1
    %p95 = por %p93, %p94
    %p97 = scmp.ne.s32.totalorder %s80, %s96
    %p98 = scmp.eq.s32.totalorder %s22, 0
    %p99 = por %p97, %p98
    %s100 = smul.u32 %s24, 16
    %s101 = sadd.s32 %s100, 16
    %p102 = scmp.lt.s32.totalorder %s101, 15
    %s103 = scalar_select %p102, %s101, 15
    %s104 = smul.u32 %s31, 16
    %s105 = sadd.s32 %s104, 16
    %p106 = scmp.lt.s32.totalorder %s105, 15
    %s107 = scalar_select %p106, %s105, 15
    %s108 = ssub.s32 %s23, %s35
    %s109 = ssub.s32 %s103, %s107
    %s110 = sor.u32 %s108, %s109
    %p111 = scmp.eq.s32.totalorder %s110, 0
    %s113 = sadd.s32 %s112, 1
    %s114 = scalar_select %p111, %s112, %s113
    %p117 = pneg %p111
    %p118 = scmp.eq.s32.totalorder %s16, 1
    %p119 = por %p117, %p118
    %p120 = scmp.ne.s32.totalorder %s112, %s115
    %p121 = scmp.eq.s32.totalorder %s16, 0
    %p122 = por %p120, %p121
    %p123 = scmp.ne.s32.totalorder %s112, %s115
    %p124 = scmp.eq.s32.totalorder %s21, 1
    %p125 = por %p123, %p124
    %p126 = scmp.ne.s32.totalorder %s115, %s116
    %p127 = scmp.eq.s32.totalorder %s21, 0
    %p128 = por %p126, %p127
    %p129 = scmp.ne.s32.totalorder %s115, %s116
    %p130 = scmp.eq.s32.totalorder %s22, 1
    %p131 = por %p129, %p130
    %p133 = scmp.ne.s32.totalorder %s116, %s132
    %p134 = scmp.eq.s32.totalorder %s22, 0
    %p135 = por %p133, %p134
    %s137 = sadd.s32 %s136, 1
    %p140 = scmp.eq.s32.totalorder %s16, 1
    %p141 = scmp.ne.s32.totalorder %s136, %s138
    %p142 = scmp.eq.s32.totalorder %s16, 0
    %p143 = por %p141, %p142
    %p144 = scmp.ne.s32.totalorder %s136, %s138
    %p145 = scmp.eq.s32.totalorder %s21, 1
    %p146 = por %p144, %p145
    %p147 = scmp.ne.s32.totalorder %s138, %s139
    %p148 = scmp.eq.s32.totalorder %s21, 0
    %p149 = por %p147, %p148
    %p150 = scmp.ne.s32.totalorder %s138, %s139
    %p151 = scmp.eq.s32.totalorder %s22, 1
    %p152 = por %p150, %p151
    %p154 = scmp.ne.s32.totalorder %s139, %s153
    %p155 = scmp.eq.s32.totalorder %s22, 0
    %p156 = por %p154, %p155
    %s158 = sadd.s32 %s157, 1
    %p161 = scmp.eq.s32.totalorder %s16, 1
    %p162 = scmp.ne.s32.totalorder %s157, %s159
    %p163 = scmp.eq.s32.totalorder %s16, 0
    %p164 = por %p162, %p163
    %p165 = scmp.ne.s32.totalorder %s157, %s159
    %p166 = scmp.eq.s32.totalorder %s21, 1
    %p167 = por %p165, %p166
    %p168 = scmp.ne.s32.totalorder %s159, %s160
    %p169 = scmp.eq.s32.totalorder %s21, 0
    %p170 = por %p168, %p169
    %p171 = scmp.ne.s32.totalorder %s159, %s160
    %p172 = scmp.eq.s32.totalorder %s22, 1
    %p173 = por %p171, %p172
    %p175 = scmp.ne.s32.totalorder %s160, %s174
    %p176 = scmp.eq.s32.totalorder %s22, 0
    %p177 = por %p175, %p176
    %s179 = sadd.s32 %s178, 1
    %p182 = scmp.eq.s32.totalorder %s16, 1
    %p183 = scmp.ne.s32.totalorder %s178, %s180
    %p184 = scmp.eq.s32.totalorder %s16, 0
    %p185 = por %p183, %p184
    %p186 = scmp.ne.s32.totalorder %s178, %s180
    %p187 = scmp.eq.s32.totalorder %s21, 1
    %p188 = por %p186, %p187
    %p189 = scmp.ne.s32.totalorder %s180, %s181
    %p190 = scmp.eq.s32.totalorder %s21, 0
    %p191 = por %p189, %p190
    %p192 = scmp.ne.s32.totalorder %s180, %s181
    %p193 = scmp.eq.s32.totalorder %s22, 1
    %p194 = por %p192, %p193
    %p196 = scmp.ne.s32.totalorder %s181, %s195
    %p197 = scmp.eq.s32.totalorder %s22, 0
    %p198 = por %p196, %p197
    %s200 = sadd.s32 %s199, 1
    %p203 = scmp.eq.s32.totalorder %s16, 1
    %p204 = scmp.ne.s32.totalorder %s199, %s201
    %p205 = scmp.eq.s32.totalorder %s16, 0
    %p206 = por %p204, %p205
    %p207 = scmp.ne.s32.totalorder %s199, %s201
    %p208 = scmp.eq.s32.totalorder %s21, 1
    %p209 = por %p207, %p208
    %p210 = scmp.ne.s32.totalorder %s201, %s202
    %p211 = scmp.eq.s32.totalorder %s21, 0
    %p212 = por %p210, %p211
    %p213 = scmp.ne.s32.totalorder %s201, %s202
    %p214 = scmp.eq.s32.totalorder %s22, 1
    %p215 = por %p213, %p214
    %p217 = scmp.ne.s32.totalorder %s202, %s216
    %p218 = scmp.eq.s32.totalorder %s22, 0
    %p219 = por %p217, %p218
    %s220 = ssub.s32 %s23, %s35
    %s221 = ssub.s32 %s24, %s31
    %s222 = sor.u32 %s220, %s221
    %p223 = scmp.eq.s32.totalorder %s222, 0
    %s225 = sadd.s32 %s224, 1
    %s226 = scalar_select %p223, %s224, %s225
    %p229 = pneg %p223
    %p230 = scmp.eq.s32.totalorder %s16, 1
    %p231 = por %p229, %p230
    %p232 = scmp.ne.s32.totalorder %s224, %s227
    %p233 = scmp.eq.s32.totalorder %s16, 0
    %p234 = por %p232, %p233
    %p235 = scmp.ne.s32.totalorder %s224, %s227
    %p236 = scmp.eq.s32.totalorder %s21, 1
    %p237 = por %p235, %p236
    %p238 = scmp.ne.s32.totalorder %s227, %s228
    %p239 = scmp.eq.s32.totalorder %s21, 0
    %p240 = por %p238, %p239
    %p241 = scmp.ne.s32.totalorder %s227, %s228
    %p242 = scmp.eq.s32.totalorder %s22, 1
    %p243 = por %p241, %p242
    %p245 = scmp.ne.s32.totalorder %s228, %s244
    %p246 = scmp.eq.s32.totalorder %s22, 0
    %p247 = por %p245, %p246
    %s248 = ssub.s32 %s23, %s35
    %s249 = ssub.s32 %s24, %s31
    %s250 = sor.u32 %s248, %s249
    %p251 = scmp.eq.s32.totalorder %s250, 0
    %s253 = sadd.s32 %s252, 1
    %s254 = scalar_select %p251, %s252, %s253
    %p257 = pneg %p251
    %p258 = scmp.eq.s32.totalorder %s16, 1
    %p259 = por %p257, %p258
    %p260 = scmp.ne.s32.totalorder %s252, %s255
    %p261 = scmp.eq.s32.totalorder %s16, 0
    %p262 = por %p260, %p261
    %p263 = scmp.ne.s32.totalorder %s252, %s255
    %p264 = scmp.eq.s32.totalorder %s21, 1
    %p265 = por %p263, %p264
    %p266 = scmp.ne.s32.totalorder %s255, %s256
    %p267 = scmp.eq.s32.totalorder %s21, 0
    %p268 = por %p266, %p267
    %p269 = scmp.ne.s32.totalorder %s255, %s256
    %p270 = scmp.eq.s32.totalorder %s22, 1
    %p271 = por %p269, %p270
    %p273 = scmp.ne.s32.totalorder %s256, %s272
    %p274 = scmp.eq.s32.totalorder %s22, 0
    %p275 = por %p273, %p274
    %s276 = ssub.s32 %s23, %s35
    %s277 = ssub.s32 %s24, %s31
    %s278 = sor.u32 %s276, %s277
    %p279 = scmp.eq.s32.totalorder %s278, 0
    %s281 = sadd.s32 %s280, 1
    %s282 = scalar_select %p279, %s280, %s281
    %p285 = pneg %p279
    %p286 = scmp.eq.s32.totalorder %s16, 1
    %p287 = por %p285, %p286
    %p288 = scmp.ne.s32.totalorder %s280, %s283
    %p289 = scmp.eq.s32.totalorder %s16, 0
    %p290 = por %p288, %p289
    %p291 = scmp.ne.s32.totalorder %s280, %s283
    %p292 = scmp.eq.s32.totalorder %s21, 1
    %p293 = por %p291, %p292
    %p294 = scmp.ne.s32.totalorder %s283, %s284
    %p295 = scmp.eq.s32.totalorder %s21, 0
    %p296 = por %p294, %p295
    %p297 = scmp.ne.s32.totalorder %s283, %s284
    %p298 = scmp.eq.s32.totalorder %s22, 1
    %p299 = por %p297, %p298
    %p301 = scmp.ne.s32.totalorder %s284, %s300
    %p302 = scmp.eq.s32.totalorder %s22, 0
    %p303 = por %p301, %p302
    %p304 = scmp.le.s32.totalorder 1, %s16
    %p305 = scmp.lt.s32.totalorder %s16, 3
    %p306 = pnand %p304, %p305
    %p307 = pneg %p306
    // Predicated region
    $region9: #{up_forward.7} parent=5 // pred_check
      _
    $region10: #{up_forward.7} parent=5 // pred_check_branch
      %309 = sbr.rel (%p306) target = $region12
    $region11: #{up_forward.7} parent=5 // pred_region
      %s310 = ssub.s32 %s16, 1
      // Predicated region
      $region13: #{up_forward.7} parent=11 // pred_check
        %p311 = pneg %p149
      $region14: #{up_forward.7} parent=11 // pred_check_branch
        %313 = sbr.rel (%p311) target = $region16
      $region15: #{up_forward.7} parent=11 // pred_region
        _
      $region16: #{up_forward.7} parent=11 // pred_fallthru
        _
      // Predicated region
      $region17: #{up_forward.7} parent=11 // pred_check
        %p314 = pneg %p170
      $region18: #{up_forward.7} parent=11 // pred_check_branch
        %316 = sbr.rel (%p314) target = $region20
      $region19: #{up_forward.7} parent=11 // pred_region
        _
      $region20: #{up_forward.7} parent=11 // pred_fallthru
        _
      // Predicated region
      $region21: #{up_forward.7} parent=11 // pred_check
        %p317 = pneg %p191
      $region22: #{up_forward.7} parent=11 // pred_check_branch
        %319 = sbr.rel (%p317) target = $region24
      $region23: #{up_forward.7} parent=11 // pred_region
        _
      $region24: #{up_forward.7} parent=11 // pred_fallthru
        _
      // Predicated region
      $region25: #{up_forward.7} parent=11 // pred_check
        %p320 = pneg %p212
      $region26: #{up_forward.7} parent=11 // pred_check_branch
        %322 = sbr.rel (%p320) target = $region28
      $region27: #{up_forward.7} parent=11 // pred_region
        _
      $region28: #{up_forward.7} parent=11 // pred_fallthru
        _
    $region12: #{up_forward.7} parent=5 // pred_fallthru
      _
    %p323 = scmp.lt.s32.totalorder %s16, 2
    // Predicated region
    $region29: #{up_forward.7} parent=5 // pred_check
      %p324 = pneg %p323
    $region30: #{up_forward.7} parent=5 // pred_check_branch
      %326 = sbr.rel (%p324) target = $region32
    $region31: #{up_forward.7} parent=5 // pred_region
      // Predicated region
      $region33: #{up_forward.7} parent=31 // pred_check
        %p327 = pneg %p50
      $region34: #{up_forward.7} parent=31 // pred_check_branch
        %329 = sbr.rel (%p327) target = $region36
      $region35: #{up_forward.7} parent=31 // pred_region
        %s330 = smul.u32 16, %s24
        %p331 = scmp.lt.s32.totalorder %s23, 1
        %s332 = scalar_select %p331, %s23, 1
        %p333 = scmp.lt.s32.totalorder %s330, 15
        %s334 = scalar_select %p333, %s330, 15
        %s335 = smul.addr %s334, 2
        %s336 = smul.addr %s332, 32
        %s337 = sadd.s32 %s335, %s336
        %s338 = smul.addr %s337, 4
        %s339 = scalar_lea.vmem %s0, %s338
        %s340 = smul.u32 16, %s24
      $region36: #{up_forward.7} parent=31 // pred_fallthru
        _
      // Predicated region
      $region37: #{up_forward.7} parent=31 // pred_check
        %p341 = pneg %p86
      $region38: #{up_forward.7} parent=31 // pred_check_branch
        %343 = sbr.rel (%p341) target = $region40
      $region39: #{up_forward.7} parent=31 // pred_region
        %s344 = smul.u32 %s24, 16
        %s345 = ssub.s32 %s344, 1
        %p346 = scmp.gt.s32.totalorder %s345, 0
        %s347 = scalar_select %p346, %s345, 0
        %p348 = scmp.lt.s32.totalorder %s23, 1
        %s349 = scalar_select %p348, %s23, 1
        %p350 = scmp.lt.s32.totalorder %s347, 15
        %s351 = scalar_select %p350, %s347, 15
        %s352 = smul.addr %s351, 2
        %s353 = smul.addr %s349, 32
        %s354 = sadd.s32 %s352, %s353
        %s355 = smul.addr %s354, 4
        %s356 = scalar_lea.vmem %s1, %s355
        %s357 = smul.u32 %s24, 16
        %s358 = ssub.s32 %s357, 1
        %p359 = scmp.gt.s32.totalorder %s358, 0
        %s360 = scalar_select %p359, %s358, 0
      $region40: #{up_forward.7} parent=31 // pred_fallthru
        _
      // Predicated region
      $region41: #{up_forward.7} parent=31 // pred_check
        %p361 = pneg %p122
      $region42: #{up_forward.7} parent=31 // pred_check_branch
        %363 = sbr.rel (%p361) target = $region44
      $region43: #{up_forward.7} parent=31 // pred_region
        %s364 = smul.u32 %s24, 16
        %s365 = sadd.s32 %s364, 16
        %p366 = scmp.lt.s32.totalorder %s365, 15
        %s367 = scalar_select %p366, %s365, 15
        %p368 = scmp.lt.s32.totalorder %s23, 1
        %s369 = scalar_select %p368, %s23, 1
        %p370 = scmp.lt.s32.totalorder %s367, 15
        %s371 = scalar_select %p370, %s367, 15
        %s372 = smul.addr %s371, 2
        %s373 = smul.addr %s369, 32
        %s374 = sadd.s32 %s372, %s373
        %s375 = smul.addr %s374, 4
        %s376 = scalar_lea.vmem %s2, %s375
        %s377 = smul.u32 %s24, 16
        %s378 = sadd.s32 %s377, 16
        %p379 = scmp.lt.s32.totalorder %s378, 15
        %s380 = scalar_select %p379, %s378, 15
      $region44: #{up_forward.7} parent=31 // pred_fallthru
        _
    $region32: #{up_forward.7} parent=5 // pred_fallthru
      _
    %p381 = scmp.le.s32.totalorder 1, %s16
    %p382 = scmp.lt.s32.totalorder %s16, 3
    %p383 = pnand %p381, %p382
    %p384 = pneg %p383
    // Predicated region
    $region45: #{up_forward.7} parent=5 // pred_check
      _
    $region46: #{up_forward.7} parent=5 // pred_check_branch
      %386 = sbr.rel (%p383) target = $region48
    $region47: #{up_forward.7} parent=5 // pred_region
      %s387 = ssub.s32 %s16, 1
      %s388 = smul.u32 16, %s26
      %p389 = scmp.lt.s32.totalorder %s25, 1
      %s390 = scalar_select %p389, %s25, 1
      %p391 = scmp.lt.s32.totalorder %s388, 15
      %s392 = scalar_select %p391, %s388, 15
      %s393 = smul.addr %s392, 2
      %s394 = smul.addr %s390, 32
      %s395 = sadd.s32 %s393, %s394
      %s396 = smul.addr %s395, 4
      %s397 = scalar_lea.vmem %s0, %s396
      %p398 = pneg %p56
      %p399 = pneg %p53
      %s400 = smul.u32 %s26, 16
      %s401 = ssub.s32 %s400, 1
      %p402 = scmp.gt.s32.totalorder %s401, 0
      %s403 = scalar_select %p402, %s401, 0
      %p404 = scmp.lt.s32.totalorder %s25, 1
      %s405 = scalar_select %p404, %s25, 1
      %p406 = scmp.lt.s32.totalorder %s403, 15
      %s407 = scalar_select %p406, %s403, 15
      %s408 = smul.addr %s407, 2
      %s409 = smul.addr %s405, 32
      %s410 = sadd.s32 %s408, %s409
      %s411 = smul.addr %s410, 4
      %s412 = scalar_lea.vmem %s1, %s411
      %p413 = pneg %p92
      %p414 = pneg %p89
      %s415 = smul.u32 %s26, 16
      %s416 = sadd.s32 %s415, 16
      %p417 = scmp.lt.s32.totalorder %s416, 15
      %s418 = scalar_select %p417, %s416, 15
      %p419 = scmp.lt.s32.totalorder %s25, 1
      %s420 = scalar_select %p419, %s25, 1
      %p421 = scmp.lt.s32.totalorder %s418, 15
      %s422 = scalar_select %p421, %s418, 15
      %s423 = smul.addr %s422, 2
      %s424 = smul.addr %s420, 32
      %s425 = sadd.s32 %s423, %s424
      %s426 = smul.addr %s425, 4
      %s427 = scalar_lea.vmem %s2, %s426
      %p428 = pneg %p128
      %p429 = pneg %p125
      %p430 = pneg %p149
      %p431 = pneg %p146
      %p432 = pneg %p170
      %p433 = pneg %p167
      %p434 = pneg %p191
      %p435 = pneg %p188
      %p436 = pneg %p212
      %p437 = pneg %p209
      %p438 = pneg %p240
      %p439 = pneg %p237
      %s440 = smul.u32 16, %s26
      %p441 = scmp.lt.s32.totalorder %s25, 1
      %s442 = scalar_select %p441, %s25, 1
      %p443 = scmp.lt.s32.totalorder %s440, 15
      %s444 = scalar_select %p443, %s440, 15
      %s445 = smul.addr %s444, 2
      %s446 = smul.addr %s442, 32
      %s447 = sadd.s32 %s445, %s446
      %s448 = smul.addr %s447, 4
      %s449 = scalar_lea.vmem %s7, %s448
      %p450 = pneg %p268
      %p451 = pneg %p265
      %s452 = smul.u32 2, %s26
      %p453 = scmp.lt.s32.totalorder %s25, 1
      %s454 = scalar_select %p453, %s25, 1
      %p455 = scmp.lt.s32.totalorder %s452, 1
      %s456 = scalar_select %p455, %s452, 1
      %s457 = smul.addr %s454, 2
      %s458 = sadd.s32 %s456, %s457
      %s459 = smul.addr %s458, 8
      %s460 = scalar_lea.vmem %s8, %s459
      %p461 = pneg %p296
      %p462 = pneg %p293
      %p463 = scmp.lt.s32.totalorder %s25, 1
      %s464 = scalar_select %p463, %s25, 1
      %p465 = scmp.lt.s32.totalorder %s26, 0
      %s466 = scalar_select %p465, %s26, 0
      %s467 = smul.addr %s466, 2
      %s468 = smul.addr %s464, 2
      %s469 = sadd.s32 %s467, %s468
      %s470 = smul.addr %s469, 8
      %s471 = scalar_lea.vmem %s9, %s470
      %s472 = smul.u32 16, %s26
      %p473 = scmp.lt.s32.totalorder %s25, 1
      %s474 = scalar_select %p473, %s25, 1
      %p475 = scmp.lt.s32.totalorder %s472, 15
      %s476 = scalar_select %p475, %s472, 15
      %s477 = smul.addr %s476, 2
      %s478 = smul.addr %s474, 32
      %s479 = sadd.s32 %s477, %s478
      %s480 = smul.addr %s479, 4
      %s481 = scalar_lea.vmem %s0, %s480
      %s482 = smul.u32 16, %s26
      %s483 = smul.u32 %s26, 16
      %s484 = ssub.s32 %s483, 1
      %p485 = scmp.gt.s32.totalorder %s484, 0
      %s486 = scalar_select %p485, %s484, 0
      %p487 = scmp.lt.s32.totalorder %s25, 1
      %s488 = scalar_select %p487, %s25, 1
      %p489 = scmp.lt.s32.totalorder %s486, 15
      %s490 = scalar_select %p489, %s486, 15
      %s491 = smul.addr %s490, 2
      %s492 = smul.addr %s488, 32
      %s493 = sadd.s32 %s491, %s492
      %s494 = smul.addr %s493, 4
      %s495 = scalar_lea.vmem %s1, %s494
      %s496 = smul.u32 %s26, 16
      %s497 = ssub.s32 %s496, 1
      %p498 = scmp.gt.s32.totalorder %s497, 0
      %s499 = scalar_select %p498, %s497, 0
      %s500 = smul.u32 %s26, 16
      %s501 = sadd.s32 %s500, 16
      %p502 = scmp.lt.s32.totalorder %s501, 15
      %s503 = scalar_select %p502, %s501, 15
      %p504 = scmp.lt.s32.totalorder %s25, 1
      %s505 = scalar_select %p504, %s25, 1
      %p506 = scmp.lt.s32.totalorder %s503, 15
      %s507 = scalar_select %p506, %s503, 15
      %s508 = smul.addr %s507, 2
      %s509 = smul.addr %s505, 32
      %s510 = sadd.s32 %s508, %s509
      %s511 = smul.addr %s510, 4
      %s512 = scalar_lea.vmem %s2, %s511
      %s513 = smul.u32 %s26, 16
      %s514 = sadd.s32 %s513, 16
      %p515 = scmp.lt.s32.totalorder %s514, 15
      %s516 = scalar_select %p515, %s514, 15
      %s517 = smul.u32 16, %s26
      %p518 = scmp.lt.s32.totalorder %s25, 1
      %s519 = scalar_select %p518, %s25, 1
      %p520 = scmp.lt.s32.totalorder %s517, 15
      %s521 = scalar_select %p520, %s517, 15
      %s522 = smul.addr %s521, 2
      %s523 = smul.addr %s519, 32
      %s524 = sadd.s32 %s522, %s523
      %s525 = smul.addr %s524, 4
      %s526 = scalar_lea.vmem %s7, %s525
      %s527 = smul.u32 16, %s26
      %s528 = smul.u32 2, %s26
      %p529 = scmp.lt.s32.totalorder %s25, 1
      %s530 = scalar_select %p529, %s25, 1
      %p531 = scmp.lt.s32.totalorder %s528, 1
      %s532 = scalar_select %p531, %s528, 1
      %s533 = smul.addr %s530, 2
      %s534 = sadd.s32 %s532, %s533
      %s535 = smul.addr %s534, 8
      %s536 = scalar_lea.vmem %s8, %s535
      %s537 = smul.u32 2, %s26
      %p538 = scmp.lt.s32.totalorder %s25, 1
      %s539 = scalar_select %p538, %s25, 1
      %p540 = scmp.lt.s32.totalorder %s26, 0
      %s541 = scalar_select %p540, %s26, 0
      %s542 = smul.addr %s541, 2
      %s543 = smul.addr %s539, 2
      %s544 = sadd.s32 %s542, %s543
      %s545 = smul.addr %s544, 8
      %s546 = scalar_lea.vmem %s9, %s545
      %v548 = vld [vmem:[%s481] sm:$0xf]
      %v549 = vld [vmem:[%s481 + $0x4] sm:$0xf]
      %v550 = vld [vmem:[%s481 + $0x8] sm:$0xf]
      %v551 = vld [vmem:[%s481 + $0xc] sm:$0xf]
      %v552 = vld [vmem:[%s481 + $0x10] sm:$0xf]
      %v553 = vld [vmem:[%s481 + $0x14] sm:$0xf]
      %v554 = vld [vmem:[%s481 + $0x18] sm:$0xf]
      %v555 = vld [vmem:[%s481 + $0x1c] sm:$0xf]
      %v556 = vld [vmem:[%s481 + $0x20] sm:$0xf]
      %v557 = vld [vmem:[%s481 + $0x24] sm:$0xf]
      %v558 = vld [vmem:[%s481 + $0x28] sm:$0xf]
      %v559 = vld [vmem:[%s481 + $0x2c] sm:$0xf]
      %v560 = vld [vmem:[%s481 + $0x30] sm:$0xf]
      %v561 = vld [vmem:[%s481 + $0x34] sm:$0xf]
      %v562 = vld [vmem:[%s481 + $0x38] sm:$0xf]
      %v563 = vld [vmem:[%s481 + $0x3c] sm:$0xf]
      %v564 = vld [vmem:[%s481 + $0x40] sm:$0xf]
      %v565 = vld [vmem:[%s481 + $0x44] sm:$0xf]
      %v566 = vld [vmem:[%s481 + $0x48] sm:$0xf]
      %v567 = vld [vmem:[%s481 + $0x4c] sm:$0xf]
      %v568 = vld [vmem:[%s481 + $0x50] sm:$0xf]
      %v569 = vld [vmem:[%s481 + $0x54] sm:$0xf]
      %v570 = vld [vmem:[%s481 + $0x58] sm:$0xf]
      %v571 = vld [vmem:[%s481 + $0x5c] sm:$0xf]
      %v572 = vld [vmem:[%s481 + $0x60] sm:$0xf]
      %v573 = vld [vmem:[%s481 + $0x64] sm:$0xf]
      %v574 = vld [vmem:[%s481 + $0x68] sm:$0xf]
      %v575 = vld [vmem:[%s481 + $0x6c] sm:$0xf]
      %v576 = vld [vmem:[%s481 + $0x70] sm:$0xf]
      %v577 = vld [vmem:[%s481 + $0x74] sm:$0xf]
      %v578 = vld [vmem:[%s481 + $0x78] sm:$0xf]
      %v579 = vld [vmem:[%s481 + $0x7c] sm:$0xf]
      %v580 = vunpack.c.l.bf16 %v548
      %v581 = vunpack.c.l.bf16 %v549
      %v582 = vunpack.c.l.bf16 %v550
      %v583 = vunpack.c.l.bf16 %v551
      %v584 = vunpack.c.l.bf16 %v552
      %v585 = vunpack.c.l.bf16 %v553
      %v586 = vunpack.c.l.bf16 %v554
      %v587 = vunpack.c.l.bf16 %v555
      %v588 = vunpack.c.l.bf16 %v556
      %v589 = vunpack.c.l.bf16 %v557
      %v590 = vunpack.c.l.bf16 %v558
      %v591 = vunpack.c.l.bf16 %v559
      %v592 = vunpack.c.l.bf16 %v560
      %v593 = vunpack.c.l.bf16 %v561
      %v594 = vunpack.c.l.bf16 %v562
      %v595 = vunpack.c.l.bf16 %v563
      %v596 = vunpack.c.l.bf16 %v564
      %v597 = vunpack.c.l.bf16 %v565
      %v598 = vunpack.c.l.bf16 %v566
      %v599 = vunpack.c.l.bf16 %v567
      %v600 = vunpack.c.l.bf16 %v568
      %v601 = vunpack.c.l.bf16 %v569
      %v602 = vunpack.c.l.bf16 %v570
      %v603 = vunpack.c.l.bf16 %v571
      %v604 = vunpack.c.l.bf16 %v572
      %v605 = vunpack.c.l.bf16 %v573
      %v606 = vunpack.c.l.bf16 %v574
      %v607 = vunpack.c.l.bf16 %v575
      %v608 = vunpack.c.l.bf16 %v576
      %v609 = vunpack.c.l.bf16 %v577
      %v610 = vunpack.c.l.bf16 %v578
      %v611 = vunpack.c.l.bf16 %v579
      %v612 = vld [vmem:[%s495] sm:$0xf]
      %v613 = vld [vmem:[%s495 + $0x4] sm:$0xf]
      %v614 = vunpack.c.l.bf16 %v612
      %v615 = vunpack.c.l.bf16 %v613
      %v616 = vld [vmem:[%s512] sm:$0xf]
      %v617 = vld [vmem:[%s512 + $0x4] sm:$0xf]
      %v618 = vunpack.c.l.bf16 %v616
      %v619 = vunpack.c.l.bf16 %v617
      %p620 = scmp.gt.s32.totalorder %s26, 0
      %s621 = scalar_select %p620, 1.0, 0.0
      %v622 = vstv %s621
      %v623 = vmul.f32 %v614, %v622
      %v624 = vmul.f32 %v615, %v622
      %s625 = smul.u32 %s26, 16
      %s626 = sadd.s32 %s625, 16
      %p627 = scmp.lt.s32.totalorder %s626, 16
      %s628 = scalar_select %p627, 1.0, 0.0
      %v629 = vstv %s628
      %v630 = vmul.f32 %v618, %v629
      %v631 = vmul.f32 %v619, %v629
      %vm668 = vcmask 1040384
      %v669 = vrot.slane %v623, 7
      %v670 = vrot.slane %v624, 7
      %v671 = vsel %vm668, %v669, %v670
      %v672 = vrot.slane %v580, 7
      %v673 = vrot.slane %v581, 7
      %v674 = vsel %vm668, %v672, %v673
      %v675 = vrot.slane %v582, 7
      %v676 = vrot.slane %v583, 7
      %v677 = vsel %vm668, %v675, %v676
      %v678 = vrot.slane %v584, 7
      %v679 = vrot.slane %v585, 7
      %v680 = vsel %vm668, %v678, %v679
      %v681 = vrot.slane %v586, 7
      %v682 = vrot.slane %v587, 7
      %v683 = vsel %vm668, %v681, %v682
      %v684 = vrot.slane %v588, 7
      %v685 = vrot.slane %v589, 7
      %v686 = vsel %vm668, %v684, %v685
      %v687 = vrot.slane %v590, 7
      %v688 = vrot.slane %v591, 7
      %v689 = vsel %vm668, %v687, %v688
      %v690 = vrot.slane %v592, 7
      %v691 = vrot.slane %v593, 7
      %v692 = vsel %vm668, %v690, %v691
      %v693 = vrot.slane %v594, 7
      %v694 = vrot.slane %v595, 7
      %v695 = vsel %vm668, %v693, %v694
      %v696 = vrot.slane %v596, 7
      %v697 = vrot.slane %v597, 7
      %v698 = vsel %vm668, %v696, %v697
      %v699 = vrot.slane %v598, 7
      %v700 = vrot.slane %v599, 7
      %v701 = vsel %vm668, %v699, %v700
      %v702 = vrot.slane %v600, 7
      %v703 = vrot.slane %v601, 7
      %v704 = vsel %vm668, %v702, %v703
      %v705 = vrot.slane %v602, 7
      %v706 = vrot.slane %v603, 7
      %v707 = vsel %vm668, %v705, %v706
      %v708 = vrot.slane %v604, 7
      %v709 = vrot.slane %v605, 7
      %v710 = vsel %vm668, %v708, %v709
      %v711 = vrot.slane %v606, 7
      %v712 = vrot.slane %v607, 7
      %v713 = vsel %vm668, %v711, %v712
      %v714 = vrot.slane %v608, 7
      %v715 = vrot.slane %v609, 7
      %v716 = vsel %vm668, %v714, %v715
      %v717 = vrot.slane %v610, 7
      %v718 = vrot.slane %v611, 7
      %v719 = vsel %vm668, %v717, %v718
      %v720 = vrot.slane %v630, 7
      %v721 = vrot.slane %v631, 7
      %v722 = vsel %vm668, %v720, %v721
      %v777 = vsel %vm668, 0.0, %v669
      %v778 = vsel %vm668, 0.0, %v672
      %v779 = vsel %vm668, 0.0, %v675
      %v780 = vsel %vm668, 0.0, %v678
      %v781 = vsel %vm668, 0.0, %v681
      %v782 = vsel %vm668, 0.0, %v684
      %v783 = vsel %vm668, 0.0, %v687
      %v784 = vsel %vm668, 0.0, %v690
      %v785 = vsel %vm668, 0.0, %v693
      %v786 = vsel %vm668, 0.0, %v696
      %v787 = vsel %vm668, 0.0, %v699
      %v788 = vsel %vm668, 0.0, %v702
      %v789 = vsel %vm668, 0.0, %v705
      %v790 = vsel %vm668, 0.0, %v708
      %v791 = vsel %vm668, 0.0, %v711
      %v792 = vsel %vm668, 0.0, %v714
      %v793 = vsel %vm668, 0.0, %v717
      %v794 = vsel %vm668, 0.0, %v720
      %v795 = vsel %vm668, %v670, 0.0
      %v796 = vsel %vm668, %v673, 0.0
      %v797 = vsel %vm668, %v676, 0.0
      %v798 = vsel %vm668, %v679, 0.0
      %v799 = vsel %vm668, %v682, 0.0
      %v800 = vsel %vm668, %v685, 0.0
      %v801 = vsel %vm668, %v688, 0.0
      %v802 = vsel %vm668, %v691, 0.0
      %v803 = vsel %vm668, %v694, 0.0
      %v804 = vsel %vm668, %v697, 0.0
      %v805 = vsel %vm668, %v700, 0.0
      %v806 = vsel %vm668, %v703, 0.0
      %v807 = vsel %vm668, %v706, 0.0
      %v808 = vsel %vm668, %v709, 0.0
      %v809 = vsel %vm668, %v712, 0.0
      %v810 = vsel %vm668, %v715, 0.0
      %v811 = vsel %vm668, %v718, 0.0
      %v812 = vsel %vm668, %v721, 0.0
      %vm813 = vcmask 64512
      %814 = vst.msk [vmem:[#allocation2] sm:$0xff] %vm813, %v777
      %815 = vst.msk [vmem:[#allocation2 + $0x8] sm:$0xff] %vm813, %v671
      %vm816 = vcmask 58368
      %817 = vst.msk [vmem:[#allocation2 + $0x10] sm:$0x3] %vm816, %v795
      %818 = vst.msk [vmem:[#allocation2 + $0x18] sm:$0xff] %vm813, %v778
      %819 = vst.msk [vmem:[#allocation2 + $0x20] sm:$0xff] %vm813, %v674
      %820 = vst.msk [vmem:[#allocation2 + $0x28] sm:$0x3] %vm816, %v796
      %821 = vst.msk [vmem:[#allocation2 + $0x30] sm:$0xff] %vm813, %v779
      %822 = vst.msk [vmem:[#allocation2 + $0x38] sm:$0xff] %vm813, %v677
      %823 = vst.msk [vmem:[#allocation2 + $0x40] sm:$0x3] %vm816, %v797
      %824 = vst.msk [vmem:[#allocation2 + $0x48] sm:$0xff] %vm813, %v780
      %825 = vst.msk [vmem:[#allocation2 + $0x50] sm:$0xff] %vm813, %v680
      %826 = vst.msk [vmem:[#allocation2 + $0x58] sm:$0x3] %vm816, %v798
      %827 = vst.msk [vmem:[#allocation2 + $0x60] sm:$0xff] %vm813, %v781
      %828 = vst.msk [vmem:[#allocation2 + $0x68] sm:$0xff] %vm813, %v683
      %829 = vst.msk [vmem:[#allocation2 + $0x70] sm:$0x3] %vm816, %v799
      %830 = vst.msk [vmem:[#allocation2 + $0x78] sm:$0xff] %vm813, %v782
      %831 = vst.msk [vmem:[#allocation2 + $0x80] sm:$0xff] %vm813, %v686
      %832 = vst.msk [vmem:[#allocation2 + $0x88] sm:$0x3] %vm816, %v800
      %833 = vst.msk [vmem:[#allocation2 + $0x90] sm:$0xff] %vm813, %v783
      %834 = vst.msk [vmem:[#allocation2 + $0x98] sm:$0xff] %vm813, %v689
      %835 = vst.msk [vmem:[#allocation2 + $0xa0] sm:$0x3] %vm816, %v801
      %836 = vst.msk [vmem:[#allocation2 + $0xa8] sm:$0xff] %vm813, %v784
      %837 = vst.msk [vmem:[#allocation2 + $0xb0] sm:$0xff] %vm813, %v692
      %838 = vst.msk [vmem:[#allocation2 + $0xb8] sm:$0x3] %vm816, %v802
      %839 = vst.msk [vmem:[#allocation2 + $0xc0] sm:$0xff] %vm813, %v785
      %840 = vst.msk [vmem:[#allocation2 + $0xc8] sm:$0xff] %vm813, %v695
      %841 = vst.msk [vmem:[#allocation2 + $0xd0] sm:$0x3] %vm816, %v803
      %842 = vst.msk [vmem:[#allocation2 + $0xd8] sm:$0xff] %vm813, %v786
      %843 = vst.msk [vmem:[#allocation2 + $0xe0] sm:$0xff] %vm813, %v698
      %844 = vst.msk [vmem:[#allocation2 + $0xe8] sm:$0x3] %vm816, %v804
      %845 = vst.msk [vmem:[#allocation2 + $0xf0] sm:$0xff] %vm813, %v787
      %846 = vst.msk [vmem:[#allocation2 + $0xf8] sm:$0xff] %vm813, %v701
      %847 = vst.msk [vmem:[#allocation2 + $0x100] sm:$0x3] %vm816, %v805
      %848 = vst.msk [vmem:[#allocation2 + $0x108] sm:$0xff] %vm813, %v788
      %849 = vst.msk [vmem:[#allocation2 + $0x110] sm:$0xff] %vm813, %v704
      %850 = vst.msk [vmem:[#allocation2 + $0x118] sm:$0x3] %vm816, %v806
      %851 = vst.msk [vmem:[#allocation2 + $0x120] sm:$0xff] %vm813, %v789
      %852 = vst.msk [vmem:[#allocation2 + $0x128] sm:$0xff] %vm813, %v707
      %853 = vst.msk [vmem:[#allocation2 + $0x130] sm:$0x3] %vm816, %v807
      %854 = vst.msk [vmem:[#allocation2 + $0x138] sm:$0xff] %vm813, %v790
      %855 = vst.msk [vmem:[#allocation2 + $0x140] sm:$0xff] %vm813, %v710
      %856 = vst.msk [vmem:[#allocation2 + $0x148] sm:$0x3] %vm816, %v808
      %857 = vst.msk [vmem:[#allocation2 + $0x150] sm:$0xff] %vm813, %v791
      %858 = vst.msk [vmem:[#allocation2 + $0x158] sm:$0xff] %vm813, %v713
      %859 = vst.msk [vmem:[#allocation2 + $0x160] sm:$0x3] %vm816, %v809
      %860 = vst.msk [vmem:[#allocation2 + $0x168] sm:$0xff] %vm813, %v792
      %861 = vst.msk [vmem:[#allocation2 + $0x170] sm:$0xff] %vm813, %v716
      %862 = vst.msk [vmem:[#allocation2 + $0x178] sm:$0x3] %vm816, %v810
      %863 = vst.msk [vmem:[#allocation2 + $0x180] sm:$0xff] %vm813, %v793
      %864 = vst.msk [vmem:[#allocation2 + $0x188] sm:$0xff] %vm813, %v719
      %865 = vst.msk [vmem:[#allocation2 + $0x190] sm:$0x3] %vm816, %v811
      %866 = vst.msk [vmem:[#allocation2 + $0x198] sm:$0xff] %vm813, %v794
      %867 = vst.msk [vmem:[#allocation2 + $0x1a0] sm:$0xff] %vm813, %v722
      %868 = vst.msk [vmem:[#allocation2 + $0x1a8] sm:$0x3] %vm816, %v812
      %v869 = vld [vmem:[%s3] sm:$0x1]
      %v870 = vld [vmem:[#allocation2] sm:$0xff]
      %v871 = vld [vmem:[#allocation2 + $0x8] sm:$0xff]
      %v872 = vld [vmem:[#allocation2 + $0x18] sm:$0xff]
      %v873 = vld [vmem:[#allocation2 + $0x20] sm:$0xff]
      %v874 = vld [vmem:[#allocation2 + $0x30] sm:$0xff]
      %v875 = vld [vmem:[#allocation2 + $0x38] sm:$0xff]
      %v876 = vld [vmem:[#allocation2 + $0x48] sm:$0xff]
      %v877 = vld [vmem:[#allocation2 + $0x50] sm:$0xff]
      %v878 = vld [vmem:[#allocation2 + $0x60] sm:$0xff]
      %v879 = vld [vmem:[#allocation2 + $0x68] sm:$0xff]
      %v880 = vld [vmem:[#allocation2 + $0x78] sm:$0xff]
      %v881 = vld [vmem:[#allocation2 + $0x80] sm:$0xff]
      %v882 = vld [vmem:[#allocation2 + $0x90] sm:$0xff]
      %v883 = vld [vmem:[#allocation2 + $0x98] sm:$0xff]
      %v884 = vld [vmem:[#allocation2 + $0xa8] sm:$0xff]
      %v885 = vld [vmem:[#allocation2 + $0xb0] sm:$0xff]
      %v886 = vld [vmem:[#allocation2 + $0xc0] sm:$0xff]
      %v887 = vld [vmem:[#allocation2 + $0xc8] sm:$0xff]
      %v888 = vld [vmem:[#allocation2 + $0xd8] sm:$0xff]
      %v889 = vld [vmem:[#allocation2 + $0xe0] sm:$0xff]
      %v890 = vld [vmem:[#allocation2 + $0xf0] sm:$0xff]
      %v891 = vld [vmem:[#allocation2 + $0xf8] sm:$0xff]
      %v892 = vld [vmem:[#allocation2 + $0x108] sm:$0xff]
      %v893 = vld [vmem:[#allocation2 + $0x110] sm:$0xff]
      %v894 = vld [vmem:[#allocation2 + $0x120] sm:$0xff]
      %v895 = vld [vmem:[#allocation2 + $0x128] sm:$0xff]
      %v896 = vld [vmem:[#allocation2 + $0x138] sm:$0xff]
      %v897 = vld [vmem:[#allocation2 + $0x140] sm:$0xff]
      %v898 = vld [vmem:[#allocation2 + $0x150] sm:$0xff]
      %v899 = vld [vmem:[#allocation2 + $0x158] sm:$0xff]
      %v900 = vld [vmem:[#allocation2 + $0x168] sm:$0xff]
      %v901 = vld [vmem:[#allocation2 + $0x170] sm:$0xff]
      %v902 = vperm.slane %v869, 0
      %v903 = vmul.f32 %v870, %v902
      %v904 = vmul.f32 %v871, %v902
      %v905 = vmul.f32 %v872, %v902
      %v906 = vmul.f32 %v873, %v902
      %v907 = vmul.f32 %v874, %v902
      %v908 = vmul.f32 %v875, %v902
      %v909 = vmul.f32 %v876, %v902
      %v910 = vmul.f32 %v877, %v902
      %v911 = vmul.f32 %v878, %v902
      %v912 = vmul.f32 %v879, %v902
      %v913 = vmul.f32 %v880, %v902
      %v914 = vmul.f32 %v881, %v902
      %v915 = vmul.f32 %v882, %v902
      %v916 = vmul.f32 %v883, %v902
      %v917 = vmul.f32 %v884, %v902
      %v918 = vmul.f32 %v885, %v902
      %v919 = vmul.f32 %v886, %v902
      %v920 = vmul.f32 %v887, %v902
      %v921 = vmul.f32 %v888, %v902
      %v922 = vmul.f32 %v889, %v902
      %v923 = vmul.f32 %v890, %v902
      %v924 = vmul.f32 %v891, %v902
      %v925 = vmul.f32 %v892, %v902
      %v926 = vmul.f32 %v893, %v902
      %v927 = vmul.f32 %v894, %v902
      %v928 = vmul.f32 %v895, %v902
      %v929 = vmul.f32 %v896, %v902
      %v930 = vmul.f32 %v897, %v902
      %v931 = vmul.f32 %v898, %v902
      %v932 = vmul.f32 %v899, %v902
      %v933 = vmul.f32 %v900, %v902
      %v934 = vmul.f32 %v901, %v902
      %v935 = vadd.f32 %v903, 0.0
      %v936 = vadd.f32 %v904, 0.0
      %v937 = vadd.f32 %v905, 0.0
      %v938 = vadd.f32 %v906, 0.0
      %v939 = vadd.f32 %v907, 0.0
      %v940 = vadd.f32 %v908, 0.0
      %v941 = vadd.f32 %v909, 0.0
      %v942 = vadd.f32 %v910, 0.0
      %v943 = vadd.f32 %v911, 0.0
      %v944 = vadd.f32 %v912, 0.0
      %v945 = vadd.f32 %v913, 0.0
      %v946 = vadd.f32 %v914, 0.0
      %v947 = vadd.f32 %v915, 0.0
      %v948 = vadd.f32 %v916, 0.0
      %v949 = vadd.f32 %v917, 0.0
      %v950 = vadd.f32 %v918, 0.0
      %v951 = vadd.f32 %v919, 0.0
      %v952 = vadd.f32 %v920, 0.0
      %v953 = vadd.f32 %v921, 0.0
      %v954 = vadd.f32 %v922, 0.0
      %v955 = vadd.f32 %v923, 0.0
      %v956 = vadd.f32 %v924, 0.0
      %v957 = vadd.f32 %v925, 0.0
      %v958 = vadd.f32 %v926, 0.0
      %v959 = vadd.f32 %v927, 0.0
      %v960 = vadd.f32 %v928, 0.0
      %v961 = vadd.f32 %v929, 0.0
      %v962 = vadd.f32 %v930, 0.0
      %v963 = vadd.f32 %v931, 0.0
      %v964 = vadd.f32 %v932, 0.0
      %v965 = vadd.f32 %v933, 0.0
      %v966 = vadd.f32 %v934, 0.0
      %v967 = vld [vmem:[%s3 + $0x1] sm:$0x1]
      %v968 = vld [vmem:[#allocation2 + $0x1] sm:$0xff]
      %v969 = vld [vmem:[#allocation2 + $0x9] sm:$0xff]
      %v970 = vld [vmem:[#allocation2 + $0x19] sm:$0xff]
      %v971 = vld [vmem:[#allocation2 + $0x21] sm:$0xff]
      %v972 = vld [vmem:[#allocation2 + $0x31] sm:$0xff]
      %v973 = vld [vmem:[#allocation2 + $0x39] sm:$0xff]
      %v974 = vld [vmem:[#allocation2 + $0x49] sm:$0xff]
      %v975 = vld [vmem:[#allocation2 + $0x51] sm:$0xff]
      %v976 = vld [vmem:[#allocation2 + $0x61] sm:$0xff]
      %v977 = vld [vmem:[#allocation2 + $0x69] sm:$0xff]
      %v978 = vld [vmem:[#allocation2 + $0x79] sm:$0xff]
      %v979 = vld [vmem:[#allocation2 + $0x81] sm:$0xff]
      %v980 = vld [vmem:[#allocation2 + $0x91] sm:$0xff]
      %v981 = vld [vmem:[#allocation2 + $0x99] sm:$0xff]
      %v982 = vld [vmem:[#allocation2 + $0xa9] sm:$0xff]
      %v983 = vld [vmem:[#allocation2 + $0xb1] sm:$0xff]
      %v984 = vld [vmem:[#allocation2 + $0xc1] sm:$0xff]
      %v985 = vld [vmem:[#allocation2 + $0xc9] sm:$0xff]
      %v986 = vld [vmem:[#allocation2 + $0xd9] sm:$0xff]
      %v987 = vld [vmem:[#allocation2 + $0xe1] sm:$0xff]
      %v988 = vld [vmem:[#allocation2 + $0xf1] sm:$0xff]
      %v989 = vld [vmem:[#allocation2 + $0xf9] sm:$0xff]
      %v990 = vld [vmem:[#allocation2 + $0x109] sm:$0xff]
      %v991 = vld [vmem:[#allocation2 + $0x111] sm:$0xff]
      %v992 = vld [vmem:[#allocation2 + $0x121] sm:$0xff]
      %v993 = vld [vmem:[#allocation2 + $0x129] sm:$0xff]
      %v994 = vld [vmem:[#allocation2 + $0x139] sm:$0xff]
      %v995 = vld [vmem:[#allocation2 + $0x141] sm:$0xff]
      %v996 = vld [vmem:[#allocation2 + $0x151] sm:$0xff]
      %v997 = vld [vmem:[#allocation2 + $0x159] sm:$0xff]
      %v998 = vld [vmem:[#allocation2 + $0x169] sm:$0xff]
      %v999 = vld [vmem:[#allocation2 + $0x171] sm:$0xff]
      %v1000 = vperm.slane %v967, 0
      %v1001 = vmul.f32 %v968, %v1000
      %v1002 = vmul.f32 %v969, %v1000
      %v1003 = vmul.f32 %v970, %v1000
      %v1004 = vmul.f32 %v971, %v1000
      %v1005 = vmul.f32 %v972, %v1000
      %v1006 = vmul.f32 %v973, %v1000
      %v1007 = vmul.f32 %v974, %v1000
      %v1008 = vmul.f32 %v975, %v1000
      %v1009 = vmul.f32 %v976, %v1000
      %v1010 = vmul.f32 %v977, %v1000
      %v1011 = vmul.f32 %v978, %v1000
      %v1012 = vmul.f32 %v979, %v1000
      %v1013 = vmul.f32 %v980, %v1000
      %v1014 = vmul.f32 %v981, %v1000
      %v1015 = vmul.f32 %v982, %v1000
      %v1016 = vmul.f32 %v983, %v1000
      %v1017 = vmul.f32 %v984, %v1000
      %v1018 = vmul.f32 %v985, %v1000
      %v1019 = vmul.f32 %v986, %v1000
      %v1020 = vmul.f32 %v987, %v1000
      %v1021 = vmul.f32 %v988, %v1000
      %v1022 = vmul.f32 %v989, %v1000
      %v1023 = vmul.f32 %v990, %v1000
      %v1024 = vmul.f32 %v991, %v1000
      %v1025 = vmul.f32 %v992, %v1000
      %v1026 = vmul.f32 %v993, %v1000
      %v1027 = vmul.f32 %v994, %v1000
      %v1028 = vmul.f32 %v995, %v1000
      %v1029 = vmul.f32 %v996, %v1000
      %v1030 = vmul.f32 %v997, %v1000
      %v1031 = vmul.f32 %v998, %v1000
      %v1032 = vmul.f32 %v999, %v1000
      %v1033 = vadd.f32 %v935, %v1001
      %v1034 = vadd.f32 %v936, %v1002
      %v1035 = vadd.f32 %v937, %v1003
      %v1036 = vadd.f32 %v938, %v1004
      %v1037 = vadd.f32 %v939, %v1005
      %v1038 = vadd.f32 %v940, %v1006
      %v1039 = vadd.f32 %v941, %v1007
      %v1040 = vadd.f32 %v942, %v1008
      %v1041 = vadd.f32 %v943, %v1009
      %v1042 = vadd.f32 %v944, %v1010
      %v1043 = vadd.f32 %v945, %v1011
      %v1044 = vadd.f32 %v946, %v1012
      %v1045 = vadd.f32 %v947, %v1013
      %v1046 = vadd.f32 %v948, %v1014
      %v1047 = vadd.f32 %v949, %v1015
      %v1048 = vadd.f32 %v950, %v1016
      %v1049 = vadd.f32 %v951, %v1017
      %v1050 = vadd.f32 %v952, %v1018
      %v1051 = vadd.f32 %v953, %v1019
      %v1052 = vadd.f32 %v954, %v1020
      %v1053 = vadd.f32 %v955, %v1021
      %v1054 = vadd.f32 %v956, %v1022
      %v1055 = vadd.f32 %v957, %v1023
      %v1056 = vadd.f32 %v958, %v1024
      %v1057 = vadd.f32 %v959, %v1025
      %v1058 = vadd.f32 %v960, %v1026
      %v1059 = vadd.f32 %v961, %v1027
      %v1060 = vadd.f32 %v962, %v1028
      %v1061 = vadd.f32 %v963, %v1029
      %v1062 = vadd.f32 %v964, %v1030
      %v1063 = vadd.f32 %v965, %v1031
      %v1064 = vadd.f32 %v966, %v1032
      %v1065 = vld [vmem:[%s3 + $0x2] sm:$0x1]
      %v1066 = vld [vmem:[#allocation2 + $0x2] sm:$0xff]
      %v1067 = vld [vmem:[#allocation2 + $0xa] sm:$0xff]
      %v1068 = vld [vmem:[#allocation2 + $0x1a] sm:$0xff]
      %v1069 = vld [vmem:[#allocation2 + $0x22] sm:$0xff]
      %v1070 = vld [vmem:[#allocation2 + $0x32] sm:$0xff]
      %v1071 = vld [vmem:[#allocation2 + $0x3a] sm:$0xff]
      %v1072 = vld [vmem:[#allocation2 + $0x4a] sm:$0xff]
      %v1073 = vld [vmem:[#allocation2 + $0x52] sm:$0xff]
      %v1074 = vld [vmem:[#allocation2 + $0x62] sm:$0xff]
      %v1075 = vld [vmem:[#allocation2 + $0x6a] sm:$0xff]
      %v1076 = vld [vmem:[#allocation2 + $0x7a] sm:$0xff]
      %v1077 = vld [vmem:[#allocation2 + $0x82] sm:$0xff]
      %v1078 = vld [vmem:[#allocation2 + $0x92] sm:$0xff]
      %v1079 = vld [vmem:[#allocation2 + $0x9a] sm:$0xff]
      %v1080 = vld [vmem:[#allocation2 + $0xaa] sm:$0xff]
      %v1081 = vld [vmem:[#allocation2 + $0xb2] sm:$0xff]
      %v1082 = vld [vmem:[#allocation2 + $0xc2] sm:$0xff]
      %v1083 = vld [vmem:[#allocation2 + $0xca] sm:$0xff]
      %v1084 = vld [vmem:[#allocation2 + $0xda] sm:$0xff]
      %v1085 = vld [vmem:[#allocation2 + $0xe2] sm:$0xff]
      %v1086 = vld [vmem:[#allocation2 + $0xf2] sm:$0xff]
      %v1087 = vld [vmem:[#allocation2 + $0xfa] sm:$0xff]
      %v1088 = vld [vmem:[#allocation2 + $0x10a] sm:$0xff]
      %v1089 = vld [vmem:[#allocation2 + $0x112] sm:$0xff]
      %v1090 = vld [vmem:[#allocation2 + $0x122] sm:$0xff]
      %v1091 = vld [vmem:[#allocation2 + $0x12a] sm:$0xff]
      %v1092 = vld [vmem:[#allocation2 + $0x13a] sm:$0xff]
      %v1093 = vld [vmem:[#allocation2 + $0x142] sm:$0xff]
      %v1094 = vld [vmem:[#allocation2 + $0x152] sm:$0xff]
      %v1095 = vld [vmem:[#allocation2 + $0x15a] sm:$0xff]
      %v1096 = vld [vmem:[#allocation2 + $0x16a] sm:$0xff]
      %v1097 = vld [vmem:[#allocation2 + $0x172] sm:$0xff]
      %v1098 = vperm.slane %v1065, 0
      %v1099 = vmul.f32 %v1066, %v1098
      %v1100 = vmul.f32 %v1067, %v1098
      %v1101 = vmul.f32 %v1068, %v1098
      %v1102 = vmul.f32 %v1069, %v1098
      %v1103 = vmul.f32 %v1070, %v1098
      %v1104 = vmul.f32 %v1071, %v1098
      %v1105 = vmul.f32 %v1072, %v1098
      %v1106 = vmul.f32 %v1073, %v1098
      %v1107 = vmul.f32 %v1074, %v1098
      %v1108 = vmul.f32 %v1075, %v1098
      %v1109 = vmul.f32 %v1076, %v1098
      %v1110 = vmul.f32 %v1077, %v1098
      %v1111 = vmul.f32 %v1078, %v1098
      %v1112 = vmul.f32 %v1079, %v1098
      %v1113 = vmul.f32 %v1080, %v1098
      %v1114 = vmul.f32 %v1081, %v1098
      %v1115 = vmul.f32 %v1082, %v1098
      %v1116 = vmul.f32 %v1083, %v1098
      %v1117 = vmul.f32 %v1084, %v1098
      %v1118 = vmul.f32 %v1085, %v1098
      %v1119 = vmul.f32 %v1086, %v1098
      %v1120 = vmul.f32 %v1087, %v1098
      %v1121 = vmul.f32 %v1088, %v1098
      %v1122 = vmul.f32 %v1089, %v1098
      %v1123 = vmul.f32 %v1090, %v1098
      %v1124 = vmul.f32 %v1091, %v1098
      %v1125 = vmul.f32 %v1092, %v1098
      %v1126 = vmul.f32 %v1093, %v1098
      %v1127 = vmul.f32 %v1094, %v1098
      %v1128 = vmul.f32 %v1095, %v1098
      %v1129 = vmul.f32 %v1096, %v1098
      %v1130 = vmul.f32 %v1097, %v1098
      %v1131 = vadd.f32 %v1033, %v1099
      %v1132 = vadd.f32 %v1034, %v1100
      %v1133 = vadd.f32 %v1035, %v1101
      %v1134 = vadd.f32 %v1036, %v1102
      %v1135 = vadd.f32 %v1037, %v1103
      %v1136 = vadd.f32 %v1038, %v1104
      %v1137 = vadd.f32 %v1039, %v1105
      %v1138 = vadd.f32 %v1040, %v1106
      %v1139 = vadd.f32 %v1041, %v1107
      %v1140 = vadd.f32 %v1042, %v1108
      %v1141 = vadd.f32 %v1043, %v1109
      %v1142 = vadd.f32 %v1044, %v1110
      %v1143 = vadd.f32 %v1045, %v1111
      %v1144 = vadd.f32 %v1046, %v1112
      %v1145 = vadd.f32 %v1047, %v1113
      %v1146 = vadd.f32 %v1048, %v1114
      %v1147 = vadd.f32 %v1049, %v1115
      %v1148 = vadd.f32 %v1050, %v1116
      %v1149 = vadd.f32 %v1051, %v1117
      %v1150 = vadd.f32 %v1052, %v1118
      %v1151 = vadd.f32 %v1053, %v1119
      %v1152 = vadd.f32 %v1054, %v1120
      %v1153 = vadd.f32 %v1055, %v1121
      %v1154 = vadd.f32 %v1056, %v1122
      %v1155 = vadd.f32 %v1057, %v1123
      %v1156 = vadd.f32 %v1058, %v1124
      %v1157 = vadd.f32 %v1059, %v1125
      %v1158 = vadd.f32 %v1060, %v1126
      %v1159 = vadd.f32 %v1061, %v1127
      %v1160 = vadd.f32 %v1062, %v1128
      %v1161 = vadd.f32 %v1063, %v1129
      %v1162 = vadd.f32 %v1064, %v1130
      %s1163 = scalar_lea.vmem %s3, 4
      %v1164 = vld [vmem:[%s1163] sm:$0x1]
      %s1165 = scalar_lea.vmem [#allocation2], 24
      %v1166 = vld [vmem:[%s1165] sm:$0xff]
      %v1167 = vld [vmem:[%s1165 + $0x8] sm:$0xff]
      %v1168 = vld [vmem:[%s1165 + $0x18] sm:$0xff]
      %v1169 = vld [vmem:[%s1165 + $0x20] sm:$0xff]
      %v1170 = vld [vmem:[%s1165 + $0x30] sm:$0xff]
      %v1171 = vld [vmem:[%s1165 + $0x38] sm:$0xff]
      %v1172 = vld [vmem:[%s1165 + $0x48] sm:$0xff]
      %v1173 = vld [vmem:[%s1165 + $0x50] sm:$0xff]
      %v1174 = vld [vmem:[%s1165 + $0x60] sm:$0xff]
      %v1175 = vld [vmem:[%s1165 + $0x68] sm:$0xff]
      %v1176 = vld [vmem:[%s1165 + $0x78] sm:$0xff]
      %v1177 = vld [vmem:[%s1165 + $0x80] sm:$0xff]
      %v1178 = vld [vmem:[%s1165 + $0x90] sm:$0xff]
      %v1179 = vld [vmem:[%s1165 + $0x98] sm:$0xff]
      %v1180 = vld [vmem:[%s1165 + $0xa8] sm:$0xff]
      %v1181 = vld [vmem:[%s1165 + $0xb0] sm:$0xff]
      %v1182 = vld [vmem:[%s1165 + $0xc0] sm:$0xff]
      %v1183 = vld [vmem:[%s1165 + $0xc8] sm:$0xff]
      %v1184 = vld [vmem:[%s1165 + $0xd8] sm:$0xff]
      %v1185 = vld [vmem:[%s1165 + $0xe0] sm:$0xff]
      %v1186 = vld [vmem:[%s1165 + $0xf0] sm:$0xff]
      %v1187 = vld [vmem:[%s1165 + $0xf8] sm:$0xff]
      %v1188 = vld [vmem:[%s1165 + $0x108] sm:$0xff]
      %v1189 = vld [vmem:[%s1165 + $0x110] sm:$0xff]
      %v1190 = vld [vmem:[%s1165 + $0x120] sm:$0xff]
      %v1191 = vld [vmem:[%s1165 + $0x128] sm:$0xff]
      %v1192 = vld [vmem:[%s1165 + $0x138] sm:$0xff]
      %v1193 = vld [vmem:[%s1165 + $0x140] sm:$0xff]
      %v1194 = vld [vmem:[%s1165 + $0x150] sm:$0xff]
      %v1195 = vld [vmem:[%s1165 + $0x158] sm:$0xff]
      %v1196 = vld [vmem:[%s1165 + $0x168] sm:$0xff]
      %v1197 = vld [vmem:[%s1165 + $0x170] sm:$0xff]
      %v1198 = vperm.slane %v1164, 0
      %v1199 = vmul.f32 %v1166, %v1198
      %v1200 = vmul.f32 %v1167, %v1198
      %v1201 = vmul.f32 %v1168, %v1198
      %v1202 = vmul.f32 %v1169, %v1198
      %v1203 = vmul.f32 %v1170, %v1198
      %v1204 = vmul.f32 %v1171, %v1198
      %v1205 = vmul.f32 %v1172, %v1198
      %v1206 = vmul.f32 %v1173, %v1198
      %v1207 = vmul.f32 %v1174, %v1198
      %v1208 = vmul.f32 %v1175, %v1198
      %v1209 = vmul.f32 %v1176, %v1198
      %v1210 = vmul.f32 %v1177, %v1198
      %v1211 = vmul.f32 %v1178, %v1198
      %v1212 = vmul.f32 %v1179, %v1198
      %v1213 = vmul.f32 %v1180, %v1198
      %v1214 = vmul.f32 %v1181, %v1198
      %v1215 = vmul.f32 %v1182, %v1198
      %v1216 = vmul.f32 %v1183, %v1198
      %v1217 = vmul.f32 %v1184, %v1198
      %v1218 = vmul.f32 %v1185, %v1198
      %v1219 = vmul.f32 %v1186, %v1198
      %v1220 = vmul.f32 %v1187, %v1198
      %v1221 = vmul.f32 %v1188, %v1198
      %v1222 = vmul.f32 %v1189, %v1198
      %v1223 = vmul.f32 %v1190, %v1198
      %v1224 = vmul.f32 %v1191, %v1198
      %v1225 = vmul.f32 %v1192, %v1198
      %v1226 = vmul.f32 %v1193, %v1198
      %v1227 = vmul.f32 %v1194, %v1198
      %v1228 = vmul.f32 %v1195, %v1198
      %v1229 = vmul.f32 %v1196, %v1198
      %v1230 = vmul.f32 %v1197, %v1198
      %v1231 = vadd.f32 %v1131, %v1199
      %v1232 = vadd.f32 %v1132, %v1200
      %v1233 = vadd.f32 %v1133, %v1201
      %v1234 = vadd.f32 %v1134, %v1202
      %v1235 = vadd.f32 %v1135, %v1203
      %v1236 = vadd.f32 %v1136, %v1204
      %v1237 = vadd.f32 %v1137, %v1205
      %v1238 = vadd.f32 %v1138, %v1206
      %v1239 = vadd.f32 %v1139, %v1207
      %v1240 = vadd.f32 %v1140, %v1208
      %v1241 = vadd.f32 %v1141, %v1209
      %v1242 = vadd.f32 %v1142, %v1210
      %v1243 = vadd.f32 %v1143, %v1211
      %v1244 = vadd.f32 %v1144, %v1212
      %v1245 = vadd.f32 %v1145, %v1213
      %v1246 = vadd.f32 %v1146, %v1214
      %v1247 = vadd.f32 %v1147, %v1215
      %v1248 = vadd.f32 %v1148, %v1216
      %v1249 = vadd.f32 %v1149, %v1217
      %v1250 = vadd.f32 %v1150, %v1218
      %v1251 = vadd.f32 %v1151, %v1219
      %v1252 = vadd.f32 %v1152, %v1220
      %v1253 = vadd.f32 %v1153, %v1221
      %v1254 = vadd.f32 %v1154, %v1222
      %v1255 = vadd.f32 %v1155, %v1223
      %v1256 = vadd.f32 %v1156, %v1224
      %v1257 = vadd.f32 %v1157, %v1225
      %v1258 = vadd.f32 %v1158, %v1226
      %v1259 = vadd.f32 %v1159, %v1227
      %v1260 = vadd.f32 %v1160, %v1228
      %v1261 = vadd.f32 %v1161, %v1229
      %v1262 = vadd.f32 %v1162, %v1230
      %v1263 = vld [vmem:[%s1163 + $0x1] sm:$0x1]
      %v1264 = vld [vmem:[%s1165 + $0x1] sm:$0xff]
      %v1265 = vld [vmem:[%s1165 + $0x9] sm:$0xff]
      %v1266 = vld [vmem:[%s1165 + $0x19] sm:$0xff]
      %v1267 = vld [vmem:[%s1165 + $0x21] sm:$0xff]
      %v1268 = vld [vmem:[%s1165 + $0x31] sm:$0xff]
      %v1269 = vld [vmem:[%s1165 + $0x39] sm:$0xff]
      %v1270 = vld [vmem:[%s1165 + $0x49] sm:$0xff]
      %v1271 = vld [vmem:[%s1165 + $0x51] sm:$0xff]
      %v1272 = vld [vmem:[%s1165 + $0x61] sm:$0xff]
      %v1273 = vld [vmem:[%s1165 + $0x69] sm:$0xff]
      %v1274 = vld [vmem:[%s1165 + $0x79] sm:$0xff]
      %v1275 = vld [vmem:[%s1165 + $0x81] sm:$0xff]
      %v1276 = vld [vmem:[%s1165 + $0x91] sm:$0xff]
      %v1277 = vld [vmem:[%s1165 + $0x99] sm:$0xff]
      %v1278 = vld [vmem:[%s1165 + $0xa9] sm:$0xff]
      %v1279 = vld [vmem:[%s1165 + $0xb1] sm:$0xff]
      %v1280 = vld [vmem:[%s1165 + $0xc1] sm:$0xff]
      %v1281 = vld [vmem:[%s1165 + $0xc9] sm:$0xff]
      %v1282 = vld [vmem:[%s1165 + $0xd9] sm:$0xff]
      %v1283 = vld [vmem:[%s1165 + $0xe1] sm:$0xff]
      %v1284 = vld [vmem:[%s1165 + $0xf1] sm:$0xff]
      %v1285 = vld [vmem:[%s1165 + $0xf9] sm:$0xff]
      %v1286 = vld [vmem:[%s1165 + $0x109] sm:$0xff]
      %v1287 = vld [vmem:[%s1165 + $0x111] sm:$0xff]
      %v1288 = vld [vmem:[%s1165 + $0x121] sm:$0xff]
      %v1289 = vld [vmem:[%s1165 + $0x129] sm:$0xff]
      %v1290 = vld [vmem:[%s1165 + $0x139] sm:$0xff]
      %v1291 = vld [vmem:[%s1165 + $0x141] sm:$0xff]
      %v1292 = vld [vmem:[%s1165 + $0x151] sm:$0xff]
      %v1293 = vld [vmem:[%s1165 + $0x159] sm:$0xff]
      %v1294 = vld [vmem:[%s1165 + $0x169] sm:$0xff]
      %v1295 = vld [vmem:[%s1165 + $0x171] sm:$0xff]
      %v1296 = vperm.slane %v1263, 0
      %v1297 = vmul.f32 %v1264, %v1296
      %v1298 = vmul.f32 %v1265, %v1296
      %v1299 = vmul.f32 %v1266, %v1296
      %v1300 = vmul.f32 %v1267, %v1296
      %v1301 = vmul.f32 %v1268, %v1296
      %v1302 = vmul.f32 %v1269, %v1296
      %v1303 = vmul.f32 %v1270, %v1296
      %v1304 = vmul.f32 %v1271, %v1296
      %v1305 = vmul.f32 %v1272, %v1296
      %v1306 = vmul.f32 %v1273, %v1296
      %v1307 = vmul.f32 %v1274, %v1296
      %v1308 = vmul.f32 %v1275, %v1296
      %v1309 = vmul.f32 %v1276, %v1296
      %v1310 = vmul.f32 %v1277, %v1296
      %v1311 = vmul.f32 %v1278, %v1296
      %v1312 = vmul.f32 %v1279, %v1296
      %v1313 = vmul.f32 %v1280, %v1296
      %v1314 = vmul.f32 %v1281, %v1296
      %v1315 = vmul.f32 %v1282, %v1296
      %v1316 = vmul.f32 %v1283, %v1296
      %v1317 = vmul.f32 %v1284, %v1296
      %v1318 = vmul.f32 %v1285, %v1296
      %v1319 = vmul.f32 %v1286, %v1296
      %v1320 = vmul.f32 %v1287, %v1296
      %v1321 = vmul.f32 %v1288, %v1296
      %v1322 = vmul.f32 %v1289, %v1296
      %v1323 = vmul.f32 %v1290, %v1296
      %v1324 = vmul.f32 %v1291, %v1296
      %v1325 = vmul.f32 %v1292, %v1296
      %v1326 = vmul.f32 %v1293, %v1296
      %v1327 = vmul.f32 %v1294, %v1296
      %v1328 = vmul.f32 %v1295, %v1296
      %v1329 = vadd.f32 %v1231, %v1297
      %v1330 = vadd.f32 %v1232, %v1298
      %v1331 = vadd.f32 %v1233, %v1299
      %v1332 = vadd.f32 %v1234, %v1300
      %v1333 = vadd.f32 %v1235, %v1301
      %v1334 = vadd.f32 %v1236, %v1302
      %v1335 = vadd.f32 %v1237, %v1303
      %v1336 = vadd.f32 %v1238, %v1304
      %v1337 = vadd.f32 %v1239, %v1305
      %v1338 = vadd.f32 %v1240, %v1306
      %v1339 = vadd.f32 %v1241, %v1307
      %v1340 = vadd.f32 %v1242, %v1308
      %v1341 = vadd.f32 %v1243, %v1309
      %v1342 = vadd.f32 %v1244, %v1310
      %v1343 = vadd.f32 %v1245, %v1311
      %v1344 = vadd.f32 %v1246, %v1312
      %v1345 = vadd.f32 %v1247, %v1313
      %v1346 = vadd.f32 %v1248, %v1314
      %v1347 = vadd.f32 %v1249, %v1315
      %v1348 = vadd.f32 %v1250, %v1316
      %v1349 = vadd.f32 %v1251, %v1317
      %v1350 = vadd.f32 %v1252, %v1318
      %v1351 = vadd.f32 %v1253, %v1319
      %v1352 = vadd.f32 %v1254, %v1320
      %v1353 = vadd.f32 %v1255, %v1321
      %v1354 = vadd.f32 %v1256, %v1322
      %v1355 = vadd.f32 %v1257, %v1323
      %v1356 = vadd.f32 %v1258, %v1324
      %v1357 = vadd.f32 %v1259, %v1325
      %v1358 = vadd.f32 %v1260, %v1326
      %v1359 = vadd.f32 %v1261, %v1327
      %v1360 = vadd.f32 %v1262, %v1328
      %v1361 = vld [vmem:[%s1163 + $0x2] sm:$0x1]
      %v1362 = vld [vmem:[%s1165 + $0x2] sm:$0xff]
      %v1363 = vld [vmem:[%s1165 + $0xa] sm:$0xff]
      %v1364 = vld [vmem:[%s1165 + $0x1a] sm:$0xff]
      %v1365 = vld [vmem:[%s1165 + $0x22] sm:$0xff]
      %v1366 = vld [vmem:[%s1165 + $0x32] sm:$0xff]
      %v1367 = vld [vmem:[%s1165 + $0x3a] sm:$0xff]
      %v1368 = vld [vmem:[%s1165 + $0x4a] sm:$0xff]
      %v1369 = vld [vmem:[%s1165 + $0x52] sm:$0xff]
      %v1370 = vld [vmem:[%s1165 + $0x62] sm:$0xff]
      %v1371 = vld [vmem:[%s1165 + $0x6a] sm:$0xff]
      %v1372 = vld [vmem:[%s1165 + $0x7a] sm:$0xff]
      %v1373 = vld [vmem:[%s1165 + $0x82] sm:$0xff]
      %v1374 = vld [vmem:[%s1165 + $0x92] sm:$0xff]
      %v1375 = vld [vmem:[%s1165 + $0x9a] sm:$0xff]
      %v1376 = vld [vmem:[%s1165 + $0xaa] sm:$0xff]
      %v1377 = vld [vmem:[%s1165 + $0xb2] sm:$0xff]
      %v1378 = vld [vmem:[%s1165 + $0xc2] sm:$0xff]
      %v1379 = vld [vmem:[%s1165 + $0xca] sm:$0xff]
      %v1380 = vld [vmem:[%s1165 + $0xda] sm:$0xff]
      %v1381 = vld [vmem:[%s1165 + $0xe2] sm:$0xff]
      %v1382 = vld [vmem:[%s1165 + $0xf2] sm:$0xff]
      %v1383 = vld [vmem:[%s1165 + $0xfa] sm:$0xff]
      %v1384 = vld [vmem:[%s1165 + $0x10a] sm:$0xff]
      %v1385 = vld [vmem:[%s1165 + $0x112] sm:$0xff]
      %v1386 = vld [vmem:[%s1165 + $0x122] sm:$0xff]
      %v1387 = vld [vmem:[%s1165 + $0x12a] sm:$0xff]
      %v1388 = vld [vmem:[%s1165 + $0x13a] sm:$0xff]
      %v1389 = vld [vmem:[%s1165 + $0x142] sm:$0xff]
      %v1390 = vld [vmem:[%s1165 + $0x152] sm:$0xff]
      %v1391 = vld [vmem:[%s1165 + $0x15a] sm:$0xff]
      %v1392 = vld [vmem:[%s1165 + $0x16a] sm:$0xff]
      %v1393 = vld [vmem:[%s1165 + $0x172] sm:$0xff]
      %v1394 = vperm.slane %v1361, 0
      %v1395 = vmul.f32 %v1362, %v1394
      %v1396 = vmul.f32 %v1363, %v1394
      %v1397 = vmul.f32 %v1364, %v1394
      %v1398 = vmul.f32 %v1365, %v1394
      %v1399 = vmul.f32 %v1366, %v1394
      %v1400 = vmul.f32 %v1367, %v1394
      %v1401 = vmul.f32 %v1368, %v1394
      %v1402 = vmul.f32 %v1369, %v1394
      %v1403 = vmul.f32 %v1370, %v1394
      %v1404 = vmul.f32 %v1371, %v1394
      %v1405 = vmul.f32 %v1372, %v1394
      %v1406 = vmul.f32 %v1373, %v1394
      %v1407 = vmul.f32 %v1374, %v1394
      %v1408 = vmul.f32 %v1375, %v1394
      %v1409 = vmul.f32 %v1376, %v1394
      %v1410 = vmul.f32 %v1377, %v1394
      %v1411 = vmul.f32 %v1378, %v1394
      %v1412 = vmul.f32 %v1379, %v1394
      %v1413 = vmul.f32 %v1380, %v1394
      %v1414 = vmul.f32 %v1381, %v1394
      %v1415 = vmul.f32 %v1382, %v1394
      %v1416 = vmul.f32 %v1383, %v1394
      %v1417 = vmul.f32 %v1384, %v1394
      %v1418 = vmul.f32 %v1385, %v1394
      %v1419 = vmul.f32 %v1386, %v1394
      %v1420 = vmul.f32 %v1387, %v1394
      %v1421 = vmul.f32 %v1388, %v1394
      %v1422 = vmul.f32 %v1389, %v1394
      %v1423 = vmul.f32 %v1390, %v1394
      %v1424 = vmul.f32 %v1391, %v1394
      %v1425 = vmul.f32 %v1392, %v1394
      %v1426 = vmul.f32 %v1393, %v1394
      %v1427 = vadd.f32 %v1329, %v1395
      %v1428 = vadd.f32 %v1330, %v1396
      %v1429 = vadd.f32 %v1331, %v1397
      %v1430 = vadd.f32 %v1332, %v1398
      %v1431 = vadd.f32 %v1333, %v1399
      %v1432 = vadd.f32 %v1334, %v1400
      %v1433 = vadd.f32 %v1335, %v1401
      %v1434 = vadd.f32 %v1336, %v1402
      %v1435 = vadd.f32 %v1337, %v1403
      %v1436 = vadd.f32 %v1338, %v1404
      %v1437 = vadd.f32 %v1339, %v1405
      %v1438 = vadd.f32 %v1340, %v1406
      %v1439 = vadd.f32 %v1341, %v1407
      %v1440 = vadd.f32 %v1342, %v1408
      %v1441 = vadd.f32 %v1343, %v1409
      %v1442 = vadd.f32 %v1344, %v1410
      %v1443 = vadd.f32 %v1345, %v1411
      %v1444 = vadd.f32 %v1346, %v1412
      %v1445 = vadd.f32 %v1347, %v1413
      %v1446 = vadd.f32 %v1348, %v1414
      %v1447 = vadd.f32 %v1349, %v1415
      %v1448 = vadd.f32 %v1350, %v1416
      %v1449 = vadd.f32 %v1351, %v1417
      %v1450 = vadd.f32 %v1352, %v1418
      %v1451 = vadd.f32 %v1353, %v1419
      %v1452 = vadd.f32 %v1354, %v1420
      %v1453 = vadd.f32 %v1355, %v1421
      %v1454 = vadd.f32 %v1356, %v1422
      %v1455 = vadd.f32 %v1357, %v1423
      %v1456 = vadd.f32 %v1358, %v1424
      %v1457 = vadd.f32 %v1359, %v1425
      %v1458 = vadd.f32 %v1360, %v1426
      %s1459 = scalar_lea.vmem %s3, 8
      %v1460 = vld [vmem:[%s1459] sm:$0x1]
      %s1461 = scalar_lea.vmem [#allocation2], 48
      %v1462 = vld [vmem:[%s1461] sm:$0xff]
      %v1463 = vld [vmem:[%s1461 + $0x8] sm:$0xff]
      %v1464 = vld [vmem:[%s1461 + $0x18] sm:$0xff]
      %v1465 = vld [vmem:[%s1461 + $0x20] sm:$0xff]
      %v1466 = vld [vmem:[%s1461 + $0x30] sm:$0xff]
      %v1467 = vld [vmem:[%s1461 + $0x38] sm:$0xff]
      %v1468 = vld [vmem:[%s1461 + $0x48] sm:$0xff]
      %v1469 = vld [vmem:[%s1461 + $0x50] sm:$0xff]
      %v1470 = vld [vmem:[%s1461 + $0x60] sm:$0xff]
      %v1471 = vld [vmem:[%s1461 + $0x68] sm:$0xff]
      %v1472 = vld [vmem:[%s1461 + $0x78] sm:$0xff]
      %v1473 = vld [vmem:[%s1461 + $0x80] sm:$0xff]
      %v1474 = vld [vmem:[%s1461 + $0x90] sm:$0xff]
      %v1475 = vld [vmem:[%s1461 + $0x98] sm:$0xff]
      %v1476 = vld [vmem:[%s1461 + $0xa8] sm:$0xff]
      %v1477 = vld [vmem:[%s1461 + $0xb0] sm:$0xff]
      %v1478 = vld [vmem:[%s1461 + $0xc0] sm:$0xff]
      %v1479 = vld [vmem:[%s1461 + $0xc8] sm:$0xff]
      %v1480 = vld [vmem:[%s1461 + $0xd8] sm:$0xff]
      %v1481 = vld [vmem:[%s1461 + $0xe0] sm:$0xff]
      %v1482 = vld [vmem:[%s1461 + $0xf0] sm:$0xff]
      %v1483 = vld [vmem:[%s1461 + $0xf8] sm:$0xff]
      %v1484 = vld [vmem:[%s1461 + $0x108] sm:$0xff]
      %v1485 = vld [vmem:[%s1461 + $0x110] sm:$0xff]
      %v1486 = vld [vmem:[%s1461 + $0x120] sm:$0xff]
      %v1487 = vld [vmem:[%s1461 + $0x128] sm:$0xff]
      %v1488 = vld [vmem:[%s1461 + $0x138] sm:$0xff]
      %v1489 = vld [vmem:[%s1461 + $0x140] sm:$0xff]
      %v1490 = vld [vmem:[%s1461 + $0x150] sm:$0xff]
      %v1491 = vld [vmem:[%s1461 + $0x158] sm:$0xff]
      %v1492 = vld [vmem:[%s1461 + $0x168] sm:$0xff]
      %v1493 = vld [vmem:[%s1461 + $0x170] sm:$0xff]
      %v1494 = vperm.slane %v1460, 0
      %v1495 = vmul.f32 %v1462, %v1494
      %v1496 = vmul.f32 %v1463, %v1494
      %v1497 = vmul.f32 %v1464, %v1494
      %v1498 = vmul.f32 %v1465, %v1494
      %v1499 = vmul.f32 %v1466, %v1494
      %v1500 = vmul.f32 %v1467, %v1494
      %v1501 = vmul.f32 %v1468, %v1494
      %v1502 = vmul.f32 %v1469, %v1494
      %v1503 = vmul.f32 %v1470, %v1494
      %v1504 = vmul.f32 %v1471, %v1494
      %v1505 = vmul.f32 %v1472, %v1494
      %v1506 = vmul.f32 %v1473, %v1494
      %v1507 = vmul.f32 %v1474, %v1494
      %v1508 = vmul.f32 %v1475, %v1494
      %v1509 = vmul.f32 %v1476, %v1494
      %v1510 = vmul.f32 %v1477, %v1494
      %v1511 = vmul.f32 %v1478, %v1494
      %v1512 = vmul.f32 %v1479, %v1494
      %v1513 = vmul.f32 %v1480, %v1494
      %v1514 = vmul.f32 %v1481, %v1494
      %v1515 = vmul.f32 %v1482, %v1494
      %v1516 = vmul.f32 %v1483, %v1494
      %v1517 = vmul.f32 %v1484, %v1494
      %v1518 = vmul.f32 %v1485, %v1494
      %v1519 = vmul.f32 %v1486, %v1494
      %v1520 = vmul.f32 %v1487, %v1494
      %v1521 = vmul.f32 %v1488, %v1494
      %v1522 = vmul.f32 %v1489, %v1494
      %v1523 = vmul.f32 %v1490, %v1494
      %v1524 = vmul.f32 %v1491, %v1494
      %v1525 = vmul.f32 %v1492, %v1494
      %v1526 = vmul.f32 %v1493, %v1494
      %v1527 = vadd.f32 %v1427, %v1495
      %v1528 = vadd.f32 %v1428, %v1496
      %v1529 = vadd.f32 %v1429, %v1497
      %v1530 = vadd.f32 %v1430, %v1498
      %v1531 = vadd.f32 %v1431, %v1499
      %v1532 = vadd.f32 %v1432, %v1500
      %v1533 = vadd.f32 %v1433, %v1501
      %v1534 = vadd.f32 %v1434, %v1502
      %v1535 = vadd.f32 %v1435, %v1503
      %v1536 = vadd.f32 %v1436, %v1504
      %v1537 = vadd.f32 %v1437, %v1505
      %v1538 = vadd.f32 %v1438, %v1506
      %v1539 = vadd.f32 %v1439, %v1507
      %v1540 = vadd.f32 %v1440, %v1508
      %v1541 = vadd.f32 %v1441, %v1509
      %v1542 = vadd.f32 %v1442, %v1510
      %v1543 = vadd.f32 %v1443, %v1511
      %v1544 = vadd.f32 %v1444, %v1512
      %v1545 = vadd.f32 %v1445, %v1513
      %v1546 = vadd.f32 %v1446, %v1514
      %v1547 = vadd.f32 %v1447, %v1515
      %v1548 = vadd.f32 %v1448, %v1516
      %v1549 = vadd.f32 %v1449, %v1517
      %v1550 = vadd.f32 %v1450, %v1518
      %v1551 = vadd.f32 %v1451, %v1519
      %v1552 = vadd.f32 %v1452, %v1520
      %v1553 = vadd.f32 %v1453, %v1521
      %v1554 = vadd.f32 %v1454, %v1522
      %v1555 = vadd.f32 %v1455, %v1523
      %v1556 = vadd.f32 %v1456, %v1524
      %v1557 = vadd.f32 %v1457, %v1525
      %v1558 = vadd.f32 %v1458, %v1526
      %v1559 = vld [vmem:[%s1459 + $0x1] sm:$0x1]
      %v1560 = vld [vmem:[%s1461 + $0x1] sm:$0xff]
      %v1561 = vld [vmem:[%s1461 + $0x9] sm:$0xff]
      %v1562 = vld [vmem:[%s1461 + $0x19] sm:$0xff]
      %v1563 = vld [vmem:[%s1461 + $0x21] sm:$0xff]
      %v1564 = vld [vmem:[%s1461 + $0x31] sm:$0xff]
      %v1565 = vld [vmem:[%s1461 + $0x39] sm:$0xff]
      %v1566 = vld [vmem:[%s1461 + $0x49] sm:$0xff]
      %v1567 = vld [vmem:[%s1461 + $0x51] sm:$0xff]
      %v1568 = vld [vmem:[%s1461 + $0x61] sm:$0xff]
      %v1569 = vld [vmem:[%s1461 + $0x69] sm:$0xff]
      %v1570 = vld [vmem:[%s1461 + $0x79] sm:$0xff]
      %v1571 = vld [vmem:[%s1461 + $0x81] sm:$0xff]
      %v1572 = vld [vmem:[%s1461 + $0x91] sm:$0xff]
      %v1573 = vld [vmem:[%s1461 + $0x99] sm:$0xff]
      %v1574 = vld [vmem:[%s1461 + $0xa9] sm:$0xff]
      %v1575 = vld [vmem:[%s1461 + $0xb1] sm:$0xff]
      %v1576 = vld [vmem:[%s1461 + $0xc1] sm:$0xff]
      %v1577 = vld [vmem:[%s1461 + $0xc9] sm:$0xff]
      %v1578 = vld [vmem:[%s1461 + $0xd9] sm:$0xff]
      %v1579 = vld [vmem:[%s1461 + $0xe1] sm:$0xff]
      %v1580 = vld [vmem:[%s1461 + $0xf1] sm:$0xff]
      %v1581 = vld [vmem:[%s1461 + $0xf9] sm:$0xff]
      %v1582 = vld [vmem:[%s1461 + $0x109] sm:$0xff]
      %v1583 = vld [vmem:[%s1461 + $0x111] sm:$0xff]
      %v1584 = vld [vmem:[%s1461 + $0x121] sm:$0xff]
      %v1585 = vld [vmem:[%s1461 + $0x129] sm:$0xff]
      %v1586 = vld [vmem:[%s1461 + $0x139] sm:$0xff]
      %v1587 = vld [vmem:[%s1461 + $0x141] sm:$0xff]
      %v1588 = vld [vmem:[%s1461 + $0x151] sm:$0xff]
      %v1589 = vld [vmem:[%s1461 + $0x159] sm:$0xff]
      %v1590 = vld [vmem:[%s1461 + $0x169] sm:$0xff]
      %v1591 = vld [vmem:[%s1461 + $0x171] sm:$0xff]
      %v1592 = vperm.slane %v1559, 0
      %v1593 = vmul.f32 %v1560, %v1592
      %v1594 = vmul.f32 %v1561, %v1592
      %v1595 = vmul.f32 %v1562, %v1592
      %v1596 = vmul.f32 %v1563, %v1592
      %v1597 = vmul.f32 %v1564, %v1592
      %v1598 = vmul.f32 %v1565, %v1592
      %v1599 = vmul.f32 %v1566, %v1592
      %v1600 = vmul.f32 %v1567, %v1592
      %v1601 = vmul.f32 %v1568, %v1592
      %v1602 = vmul.f32 %v1569, %v1592
      %v1603 = vmul.f32 %v1570, %v1592
      %v1604 = vmul.f32 %v1571, %v1592
      %v1605 = vmul.f32 %v1572, %v1592
      %v1606 = vmul.f32 %v1573, %v1592
      %v1607 = vmul.f32 %v1574, %v1592
      %v1608 = vmul.f32 %v1575, %v1592
      %v1609 = vmul.f32 %v1576, %v1592
      %v1610 = vmul.f32 %v1577, %v1592
      %v1611 = vmul.f32 %v1578, %v1592
      %v1612 = vmul.f32 %v1579, %v1592
      %v1613 = vmul.f32 %v1580, %v1592
      %v1614 = vmul.f32 %v1581, %v1592
      %v1615 = vmul.f32 %v1582, %v1592
      %v1616 = vmul.f32 %v1583, %v1592
      %v1617 = vmul.f32 %v1584, %v1592
      %v1618 = vmul.f32 %v1585, %v1592
      %v1619 = vmul.f32 %v1586, %v1592
      %v1620 = vmul.f32 %v1587, %v1592
      %v1621 = vmul.f32 %v1588, %v1592
      %v1622 = vmul.f32 %v1589, %v1592
      %v1623 = vmul.f32 %v1590, %v1592
      %v1624 = vmul.f32 %v1591, %v1592
      %v1625 = vadd.f32 %v1527, %v1593
      %v1626 = vadd.f32 %v1528, %v1594
      %v1627 = vadd.f32 %v1529, %v1595
      %v1628 = vadd.f32 %v1530, %v1596
      %v1629 = vadd.f32 %v1531, %v1597
      %v1630 = vadd.f32 %v1532, %v1598
      %v1631 = vadd.f32 %v1533, %v1599
      %v1632 = vadd.f32 %v1534, %v1600
      %v1633 = vadd.f32 %v1535, %v1601
      %v1634 = vadd.f32 %v1536, %v1602
      %v1635 = vadd.f32 %v1537, %v1603
      %v1636 = vadd.f32 %v1538, %v1604
      %v1637 = vadd.f32 %v1539, %v1605
      %v1638 = vadd.f32 %v1540, %v1606
      %v1639 = vadd.f32 %v1541, %v1607
      %v1640 = vadd.f32 %v1542, %v1608
      %v1641 = vadd.f32 %v1543, %v1609
      %v1642 = vadd.f32 %v1544, %v1610
      %v1643 = vadd.f32 %v1545, %v1611
      %v1644 = vadd.f32 %v1546, %v1612
      %v1645 = vadd.f32 %v1547, %v1613
      %v1646 = vadd.f32 %v1548, %v1614
      %v1647 = vadd.f32 %v1549, %v1615
      %v1648 = vadd.f32 %v1550, %v1616
      %v1649 = vadd.f32 %v1551, %v1617
      %v1650 = vadd.f32 %v1552, %v1618
      %v1651 = vadd.f32 %v1553, %v1619
      %v1652 = vadd.f32 %v1554, %v1620
      %v1653 = vadd.f32 %v1555, %v1621
      %v1654 = vadd.f32 %v1556, %v1622
      %v1655 = vadd.f32 %v1557, %v1623
      %v1656 = vadd.f32 %v1558, %v1624
      %v1657 = vld [vmem:[%s1459 + $0x2] sm:$0x1]
      %v1658 = vld [vmem:[%s1461 + $0x2] sm:$0xff]
      %v1659 = vld [vmem:[%s1461 + $0xa] sm:$0xff]
      %v1660 = vld [vmem:[%s1461 + $0x1a] sm:$0xff]
      %v1661 = vld [vmem:[%s1461 + $0x22] sm:$0xff]
      %v1662 = vld [vmem:[%s1461 + $0x32] sm:$0xff]
      %v1663 = vld [vmem:[%s1461 + $0x3a] sm:$0xff]
      %v1664 = vld [vmem:[%s1461 + $0x4a] sm:$0xff]
      %v1665 = vld [vmem:[%s1461 + $0x52] sm:$0xff]
      %v1666 = vld [vmem:[%s1461 + $0x62] sm:$0xff]
      %v1667 = vld [vmem:[%s1461 + $0x6a] sm:$0xff]
      %v1668 = vld [vmem:[%s1461 + $0x7a] sm:$0xff]
      %v1669 = vld [vmem:[%s1461 + $0x82] sm:$0xff]
      %v1670 = vld [vmem:[%s1461 + $0x92] sm:$0xff]
      %v1671 = vld [vmem:[%s1461 + $0x9a] sm:$0xff]
      %v1672 = vld [vmem:[%s1461 + $0xaa] sm:$0xff]
      %v1673 = vld [vmem:[%s1461 + $0xb2] sm:$0xff]
      %v1674 = vld [vmem:[%s1461 + $0xc2] sm:$0xff]
      %v1675 = vld [vmem:[%s1461 + $0xca] sm:$0xff]
      %v1676 = vld [vmem:[%s1461 + $0xda] sm:$0xff]
      %v1677 = vld [vmem:[%s1461 + $0xe2] sm:$0xff]
      %v1678 = vld [vmem:[%s1461 + $0xf2] sm:$0xff]
      %v1679 = vld [vmem:[%s1461 + $0xfa] sm:$0xff]
      %v1680 = vld [vmem:[%s1461 + $0x10a] sm:$0xff]
      %v1681 = vld [vmem:[%s1461 + $0x112] sm:$0xff]
      %v1682 = vld [vmem:[%s1461 + $0x122] sm:$0xff]
      %v1683 = vld [vmem:[%s1461 + $0x12a] sm:$0xff]
      %v1684 = vld [vmem:[%s1461 + $0x13a] sm:$0xff]
      %v1685 = vld [vmem:[%s1461 + $0x142] sm:$0xff]
      %v1686 = vld [vmem:[%s1461 + $0x152] sm:$0xff]
      %v1687 = vld [vmem:[%s1461 + $0x15a] sm:$0xff]
      %v1688 = vld [vmem:[%s1461 + $0x16a] sm:$0xff]
      %v1689 = vld [vmem:[%s1461 + $0x172] sm:$0xff]
      %v1690 = vperm.slane %v1657, 0
      %v1691 = vmul.f32 %v1658, %v1690
      %v1692 = vmul.f32 %v1659, %v1690
      %v1693 = vmul.f32 %v1660, %v1690
      %v1694 = vmul.f32 %v1661, %v1690
      %v1695 = vmul.f32 %v1662, %v1690
      %v1696 = vmul.f32 %v1663, %v1690
      %v1697 = vmul.f32 %v1664, %v1690
      %v1698 = vmul.f32 %v1665, %v1690
      %v1699 = vmul.f32 %v1666, %v1690
      %v1700 = vmul.f32 %v1667, %v1690
      %v1701 = vmul.f32 %v1668, %v1690
      %v1702 = vmul.f32 %v1669, %v1690
      %v1703 = vmul.f32 %v1670, %v1690
      %v1704 = vmul.f32 %v1671, %v1690
      %v1705 = vmul.f32 %v1672, %v1690
      %v1706 = vmul.f32 %v1673, %v1690
      %v1707 = vmul.f32 %v1674, %v1690
      %v1708 = vmul.f32 %v1675, %v1690
      %v1709 = vmul.f32 %v1676, %v1690
      %v1710 = vmul.f32 %v1677, %v1690
      %v1711 = vmul.f32 %v1678, %v1690
      %v1712 = vmul.f32 %v1679, %v1690
      %v1713 = vmul.f32 %v1680, %v1690
      %v1714 = vmul.f32 %v1681, %v1690
      %v1715 = vmul.f32 %v1682, %v1690
      %v1716 = vmul.f32 %v1683, %v1690
      %v1717 = vmul.f32 %v1684, %v1690
      %v1718 = vmul.f32 %v1685, %v1690
      %v1719 = vmul.f32 %v1686, %v1690
      %v1720 = vmul.f32 %v1687, %v1690
      %v1721 = vmul.f32 %v1688, %v1690
      %v1722 = vmul.f32 %v1689, %v1690
      %v1723 = vadd.f32 %v1625, %v1691
      %v1724 = vadd.f32 %v1626, %v1692
      %v1725 = vadd.f32 %v1627, %v1693
      %v1726 = vadd.f32 %v1628, %v1694
      %v1727 = vadd.f32 %v1629, %v1695
      %v1728 = vadd.f32 %v1630, %v1696
      %v1729 = vadd.f32 %v1631, %v1697
      %v1730 = vadd.f32 %v1632, %v1698
      %v1731 = vadd.f32 %v1633, %v1699
      %v1732 = vadd.f32 %v1634, %v1700
      %v1733 = vadd.f32 %v1635, %v1701
      %v1734 = vadd.f32 %v1636, %v1702
      %v1735 = vadd.f32 %v1637, %v1703
      %v1736 = vadd.f32 %v1638, %v1704
      %v1737 = vadd.f32 %v1639, %v1705
      %v1738 = vadd.f32 %v1640, %v1706
      %v1739 = vadd.f32 %v1641, %v1707
      %v1740 = vadd.f32 %v1642, %v1708
      %v1741 = vadd.f32 %v1643, %v1709
      %v1742 = vadd.f32 %v1644, %v1710
      %v1743 = vadd.f32 %v1645, %v1711
      %v1744 = vadd.f32 %v1646, %v1712
      %v1745 = vadd.f32 %v1647, %v1713
      %v1746 = vadd.f32 %v1648, %v1714
      %v1747 = vadd.f32 %v1649, %v1715
      %v1748 = vadd.f32 %v1650, %v1716
      %v1749 = vadd.f32 %v1651, %v1717
      %v1750 = vadd.f32 %v1652, %v1718
      %v1751 = vadd.f32 %v1653, %v1719
      %v1752 = vadd.f32 %v1654, %v1720
      %v1753 = vadd.f32 %v1655, %v1721
      %v1754 = vadd.f32 %v1656, %v1722
      %v1755 = vpack.c.bf16 %v1724, %v1723
      %v1756 = vpack.c.bf16 %v1726, %v1725
      %v1757 = vpack.c.bf16 %v1728, %v1727
      %v1758 = vpack.c.bf16 %v1730, %v1729
      %v1759 = vpack.c.bf16 %v1732, %v1731
      %v1760 = vpack.c.bf16 %v1734, %v1733
      %v1761 = vpack.c.bf16 %v1736, %v1735
      %v1762 = vpack.c.bf16 %v1738, %v1737
      %v1763 = vpack.c.bf16 %v1740, %v1739
      %v1764 = vpack.c.bf16 %v1742, %v1741
      %v1765 = vpack.c.bf16 %v1744, %v1743
      %v1766 = vpack.c.bf16 %v1746, %v1745
      %v1767 = vpack.c.bf16 %v1748, %v1747
      %v1768 = vpack.c.bf16 %v1750, %v1749
      %v1769 = vpack.c.bf16 %v1752, %v1751
      %v1770 = vpack.c.bf16 %v1754, %v1753
      %v1771 = vld [vmem:[%s4] sm:$0xf]
      %v1773 = vsel %vm813, %v1755, 0
      %v1776 = vsel %vm813, %v1756, 0
      %v1779 = vsel %vm813, %v1757, 0
      %v1782 = vsel %vm813, %v1758, 0
      %v1785 = vsel %vm813, %v1759, 0
      %v1788 = vsel %vm813, %v1760, 0
      %v1791 = vsel %vm813, %v1761, 0
      %v1794 = vsel %vm813, %v1762, 0
      %v1797 = vsel %vm813, %v1763, 0
      %v1800 = vsel %vm813, %v1764, 0
      %v1803 = vsel %vm813, %v1765, 0
      %v1806 = vsel %vm813, %v1766, 0
      %v1809 = vsel %vm813, %v1767, 0
      %v1812 = vsel %vm813, %v1768, 0
      %v1815 = vsel %vm813, %v1769, 0
      %v1818 = vsel %vm813, %v1770, 0
      %vm1820 = vcmask 1043456
      %v1822 = vsel %vm1820, %v1771, 0
      %1824 = vmatpush.bf16.msra.mxu0 0
      %1825 = vmatpush.bf16.msra.mxu0 0
      %1826 = vmatpush.bf16.msra.mxu0 0
      %1827 = vmatpush.bf16.msra.mxu0 0
      %1828 = vmatpush.bf16.msra.mxu0 0
      %1829 = vmatpush.bf16.msra.mxu0 0
      %1830 = vmatpush.bf16.msra.mxu0 0
      %1831 = vmatpush.bf16.msra.mxu0 %v1822
      %1832 = vmatmul.bf16.gmra.mxu0 %v1773
      %v1833 = vpop.f32.mrf.mxu0
      %v1834 = vadd.f32 0.0, %v1833
      %v1835 = vpop.f32.mrf.mxu0
      %v1836 = vadd.f32 0.0, %v1835
      %1837 = vmatmul.bf16.gmra.mxu0 %v1776
      %v1838 = vpop.f32.mrf.mxu0
      %v1839 = vadd.f32 0.0, %v1838
      %v1840 = vpop.f32.mrf.mxu0
      %v1841 = vadd.f32 0.0, %v1840
      %1842 = vmatmul.bf16.gmra.mxu0 %v1779
      %v1843 = vpop.f32.mrf.mxu0
      %v1844 = vadd.f32 0.0, %v1843
      %v1845 = vpop.f32.mrf.mxu0
      %v1846 = vadd.f32 0.0, %v1845
      %1847 = vmatmul.bf16.gmra.mxu0 %v1782
      %v1848 = vpop.f32.mrf.mxu0
      %v1849 = vadd.f32 0.0, %v1848
      %v1850 = vpop.f32.mrf.mxu0
      %v1851 = vadd.f32 0.0, %v1850
      %1852 = vmatmul.bf16.gmra.mxu0 %v1785
      %v1853 = vpop.f32.mrf.mxu0
      %v1854 = vadd.f32 0.0, %v1853
      %v1855 = vpop.f32.mrf.mxu0
      %v1856 = vadd.f32 0.0, %v1855
      %1857 = vmatmul.bf16.gmra.mxu0 %v1788
      %v1858 = vpop.f32.mrf.mxu0
      %v1859 = vadd.f32 0.0, %v1858
      %v1860 = vpop.f32.mrf.mxu0
      %v1861 = vadd.f32 0.0, %v1860
      %1862 = vmatmul.bf16.gmra.mxu0 %v1791
      %v1863 = vpop.f32.mrf.mxu0
      %v1864 = vadd.f32 0.0, %v1863
      %v1865 = vpop.f32.mrf.mxu0
      %v1866 = vadd.f32 0.0, %v1865
      %1867 = vmatmul.bf16.gmra.mxu0 %v1794
      %v1868 = vpop.f32.mrf.mxu0
      %v1869 = vadd.f32 0.0, %v1868
      %v1870 = vpop.f32.mrf.mxu0
      %v1871 = vadd.f32 0.0, %v1870
      %1872 = vmatmul.bf16.gmra.mxu0 %v1797
      %v1873 = vpop.f32.mrf.mxu0
      %v1874 = vadd.f32 0.0, %v1873
      %v1875 = vpop.f32.mrf.mxu0
      %v1876 = vadd.f32 0.0, %v1875
      %1877 = vmatmul.bf16.gmra.mxu0 %v1800
      %v1878 = vpop.f32.mrf.mxu0
      %v1879 = vadd.f32 0.0, %v1878
      %v1880 = vpop.f32.mrf.mxu0
      %v1881 = vadd.f32 0.0, %v1880
      %1882 = vmatmul.bf16.gmra.mxu0 %v1803
      %v1883 = vpop.f32.mrf.mxu0
      %v1884 = vadd.f32 0.0, %v1883
      %v1885 = vpop.f32.mrf.mxu0
      %v1886 = vadd.f32 0.0, %v1885
      %1887 = vmatmul.bf16.gmra.mxu0 %v1806
      %v1888 = vpop.f32.mrf.mxu0
      %v1889 = vadd.f32 0.0, %v1888
      %v1890 = vpop.f32.mrf.mxu0
      %v1891 = vadd.f32 0.0, %v1890
      %1892 = vmatmul.bf16.gmra.mxu0 %v1809
      %v1893 = vpop.f32.mrf.mxu0
      %v1894 = vadd.f32 0.0, %v1893
      %v1895 = vpop.f32.mrf.mxu0
      %v1896 = vadd.f32 0.0, %v1895
      %1897 = vmatmul.bf16.gmra.mxu0 %v1812
      %v1898 = vpop.f32.mrf.mxu0
      %v1899 = vadd.f32 0.0, %v1898
      %v1900 = vpop.f32.mrf.mxu0
      %v1901 = vadd.f32 0.0, %v1900
      %1902 = vmatmul.bf16.gmra.mxu0 %v1815
      %v1903 = vpop.f32.mrf.mxu0
      %v1904 = vadd.f32 0.0, %v1903
      %v1905 = vpop.f32.mrf.mxu0
      %v1906 = vadd.f32 0.0, %v1905
      %1907 = vmatmul.bf16.gmra.mxu0 %v1818
      %v1908 = vpop.f32.mrf.mxu0
      %v1909 = vadd.f32 0.0, %v1908
      %v1910 = vpop.f32.mrf.mxu0
      %v1911 = vadd.f32 0.0, %v1910
      %1912 = vdwg.mxu0
      %v1913 = vld [vmem:[%s5] sm:$0x1]
      %v1915 = vperm.slane %v1913, 0
      %v1917 = vmul.f32 %v1834, %v1915
      %v1918 = vmul.f32 %v1836, %v1915
      %v1919 = vmul.f32 %v1839, %v1915
      %v1920 = vmul.f32 %v1841, %v1915
      %v1921 = vmul.f32 %v1844, %v1915
      %v1922 = vmul.f32 %v1846, %v1915
      %v1923 = vmul.f32 %v1849, %v1915
      %v1924 = vmul.f32 %v1851, %v1915
      %v1925 = vmul.f32 %v1854, %v1915
      %v1926 = vmul.f32 %v1856, %v1915
      %v1927 = vmul.f32 %v1859, %v1915
      %v1928 = vmul.f32 %v1861, %v1915
      %v1929 = vmul.f32 %v1864, %v1915
      %v1930 = vmul.f32 %v1866, %v1915
      %v1931 = vmul.f32 %v1869, %v1915
      %v1932 = vmul.f32 %v1871, %v1915
      %v1933 = vmul.f32 %v1874, %v1915
      %v1934 = vmul.f32 %v1876, %v1915
      %v1935 = vmul.f32 %v1879, %v1915
      %v1936 = vmul.f32 %v1881, %v1915
      %v1937 = vmul.f32 %v1884, %v1915
      %v1938 = vmul.f32 %v1886, %v1915
      %v1939 = vmul.f32 %v1889, %v1915
      %v1940 = vmul.f32 %v1891, %v1915
      %v1941 = vmul.f32 %v1894, %v1915
      %v1942 = vmul.f32 %v1896, %v1915
      %v1943 = vmul.f32 %v1899, %v1915
      %v1944 = vmul.f32 %v1901, %v1915
      %v1945 = vmul.f32 %v1904, %v1915
      %v1946 = vmul.f32 %v1906, %v1915
      %v1947 = vmul.f32 %v1909, %v1915
      %v1948 = vmul.f32 %v1911, %v1915
      %v1949 = vld [vmem:[%s6] sm:$0x1]
      %v1951 = vperm.slane %v1949, 0
      %v1953 = vadd.f32 %v1917, %v1951
      %v1954 = vadd.f32 %v1918, %v1951
      %v1955 = vadd.f32 %v1919, %v1951
      %v1956 = vadd.f32 %v1920, %v1951
      %v1957 = vadd.f32 %v1921, %v1951
      %v1958 = vadd.f32 %v1922, %v1951
      %v1959 = vadd.f32 %v1923, %v1951
      %v1960 = vadd.f32 %v1924, %v1951
      %v1961 = vadd.f32 %v1925, %v1951
      %v1962 = vadd.f32 %v1926, %v1951
      %v1963 = vadd.f32 %v1927, %v1951
      %v1964 = vadd.f32 %v1928, %v1951
      %v1965 = vadd.f32 %v1929, %v1951
      %v1966 = vadd.f32 %v1930, %v1951
      %v1967 = vadd.f32 %v1931, %v1951
      %v1968 = vadd.f32 %v1932, %v1951
      %v1969 = vadd.f32 %v1933, %v1951
      %v1970 = vadd.f32 %v1934, %v1951
      %v1971 = vadd.f32 %v1935, %v1951
      %v1972 = vadd.f32 %v1936, %v1951
      %v1973 = vadd.f32 %v1937, %v1951
      %v1974 = vadd.f32 %v1938, %v1951
      %v1975 = vadd.f32 %v1939, %v1951
      %v1976 = vadd.f32 %v1940, %v1951
      %v1977 = vadd.f32 %v1941, %v1951
      %v1978 = vadd.f32 %v1942, %v1951
      %v1979 = vadd.f32 %v1943, %v1951
      %v1980 = vadd.f32 %v1944, %v1951
      %v1981 = vadd.f32 %v1945, %v1951
      %v1982 = vadd.f32 %v1946, %v1951
      %v1983 = vadd.f32 %v1947, %v1951
      %v1984 = vadd.f32 %v1948, %v1951
      %v1985 = vmax.f32 %v1953, 0.0
      %v1986 = vmax.f32 %v1954, 0.0
      %v1987 = vmax.f32 %v1955, 0.0
      %v1988 = vmax.f32 %v1956, 0.0
      %v1989 = vmax.f32 %v1957, 0.0
      %v1990 = vmax.f32 %v1958, 0.0
      %v1991 = vmax.f32 %v1959, 0.0
      %v1992 = vmax.f32 %v1960, 0.0
      %v1993 = vmax.f32 %v1961, 0.0
      %v1994 = vmax.f32 %v1962, 0.0
      %v1995 = vmax.f32 %v1963, 0.0
      %v1996 = vmax.f32 %v1964, 0.0
      %v1997 = vmax.f32 %v1965, 0.0
      %v1998 = vmax.f32 %v1966, 0.0
      %v1999 = vmax.f32 %v1967, 0.0
      %v2000 = vmax.f32 %v1968, 0.0
      %v2001 = vmax.f32 %v1969, 0.0
      %v2002 = vmax.f32 %v1970, 0.0
      %v2003 = vmax.f32 %v1971, 0.0
      %v2004 = vmax.f32 %v1972, 0.0
      %v2005 = vmax.f32 %v1973, 0.0
      %v2006 = vmax.f32 %v1974, 0.0
      %v2007 = vmax.f32 %v1975, 0.0
      %v2008 = vmax.f32 %v1976, 0.0
      %v2009 = vmax.f32 %v1977, 0.0
      %v2010 = vmax.f32 %v1978, 0.0
      %v2011 = vmax.f32 %v1979, 0.0
      %v2012 = vmax.f32 %v1980, 0.0
      %v2013 = vmax.f32 %v1981, 0.0
      %v2014 = vmax.f32 %v1982, 0.0
      %v2015 = vmax.f32 %v1983, 0.0
      %v2016 = vmax.f32 %v1984, 0.0
      %v2017 = vpack.c.bf16 %v1985, %v1985
      %v2018 = vpack.c.bf16 %v1986, %v1986
      %v2019 = vpack.c.bf16 %v1987, %v1987
      %v2020 = vpack.c.bf16 %v1988, %v1988
      %v2021 = vpack.c.bf16 %v1989, %v1989
      %v2022 = vpack.c.bf16 %v1990, %v1990
      %v2023 = vpack.c.bf16 %v1991, %v1991
      %v2024 = vpack.c.bf16 %v1992, %v1992
      %v2025 = vpack.c.bf16 %v1993, %v1993
      %v2026 = vpack.c.bf16 %v1994, %v1994
      %v2027 = vpack.c.bf16 %v1995, %v1995
      %v2028 = vpack.c.bf16 %v1996, %v1996
      %v2029 = vpack.c.bf16 %v1997, %v1997
      %v2030 = vpack.c.bf16 %v1998, %v1998
      %v2031 = vpack.c.bf16 %v1999, %v1999
      %v2032 = vpack.c.bf16 %v2000, %v2000
      %v2033 = vpack.c.bf16 %v2001, %v2001
      %v2034 = vpack.c.bf16 %v2002, %v2002
      %v2035 = vpack.c.bf16 %v2003, %v2003
      %v2036 = vpack.c.bf16 %v2004, %v2004
      %v2037 = vpack.c.bf16 %v2005, %v2005
      %v2038 = vpack.c.bf16 %v2006, %v2006
      %v2039 = vpack.c.bf16 %v2007, %v2007
      %v2040 = vpack.c.bf16 %v2008, %v2008
      %v2041 = vpack.c.bf16 %v2009, %v2009
      %v2042 = vpack.c.bf16 %v2010, %v2010
      %v2043 = vpack.c.bf16 %v2011, %v2011
      %v2044 = vpack.c.bf16 %v2012, %v2012
      %v2045 = vpack.c.bf16 %v2013, %v2013
      %v2046 = vpack.c.bf16 %v2014, %v2014
      %v2047 = vpack.c.bf16 %v2015, %v2015
      %v2048 = vpack.c.bf16 %v2016, %v2016
      %vm2049 = vcmask 27648
      %2050 = vst.msk [vmem:[%s526] sm:$0xf] %vm2049, %v2017
      %2051 = vst.msk [vmem:[%s526 + $0x4] sm:$0xf] %vm2049, %v2018
      %2052 = vst.msk [vmem:[%s526 + $0x8] sm:$0xf] %vm2049, %v2019
      %2053 = vst.msk [vmem:[%s526 + $0xc] sm:$0xf] %vm2049, %v2020
      %2054 = vst.msk [vmem:[%s526 + $0x10] sm:$0xf] %vm2049, %v2021
      %2055 = vst.msk [vmem:[%s526 + $0x14] sm:$0xf] %vm2049, %v2022
      %2056 = vst.msk [vmem:[%s526 + $0x18] sm:$0xf] %vm2049, %v2023
      %2057 = vst.msk [vmem:[%s526 + $0x1c] sm:$0xf] %vm2049, %v2024
      %2058 = vst.msk [vmem:[%s526 + $0x20] sm:$0xf] %vm2049, %v2025
      %2059 = vst.msk [vmem:[%s526 + $0x24] sm:$0xf] %vm2049, %v2026
      %2060 = vst.msk [vmem:[%s526 + $0x28] sm:$0xf] %vm2049, %v2027
      %2061 = vst.msk [vmem:[%s526 + $0x2c] sm:$0xf] %vm2049, %v2028
      %2062 = vst.msk [vmem:[%s526 + $0x30] sm:$0xf] %vm2049, %v2029
      %2063 = vst.msk [vmem:[%s526 + $0x34] sm:$0xf] %vm2049, %v2030
      %2064 = vst.msk [vmem:[%s526 + $0x38] sm:$0xf] %vm2049, %v2031
      %2065 = vst.msk [vmem:[%s526 + $0x3c] sm:$0xf] %vm2049, %v2032
      %2066 = vst.msk [vmem:[%s526 + $0x40] sm:$0xf] %vm2049, %v2033
      %2067 = vst.msk [vmem:[%s526 + $0x44] sm:$0xf] %vm2049, %v2034
      %2068 = vst.msk [vmem:[%s526 + $0x48] sm:$0xf] %vm2049, %v2035
      %2069 = vst.msk [vmem:[%s526 + $0x4c] sm:$0xf] %vm2049, %v2036
      %2070 = vst.msk [vmem:[%s526 + $0x50] sm:$0xf] %vm2049, %v2037
      %2071 = vst.msk [vmem:[%s526 + $0x54] sm:$0xf] %vm2049, %v2038
      %2072 = vst.msk [vmem:[%s526 + $0x58] sm:$0xf] %vm2049, %v2039
      %2073 = vst.msk [vmem:[%s526 + $0x5c] sm:$0xf] %vm2049, %v2040
      %2074 = vst.msk [vmem:[%s526 + $0x60] sm:$0xf] %vm2049, %v2041
      %2075 = vst.msk [vmem:[%s526 + $0x64] sm:$0xf] %vm2049, %v2042
      %2076 = vst.msk [vmem:[%s526 + $0x68] sm:$0xf] %vm2049, %v2043
      %2077 = vst.msk [vmem:[%s526 + $0x6c] sm:$0xf] %vm2049, %v2044
      %2078 = vst.msk [vmem:[%s526 + $0x70] sm:$0xf] %vm2049, %v2045
      %2079 = vst.msk [vmem:[%s526 + $0x74] sm:$0xf] %vm2049, %v2046
      %2080 = vst.msk [vmem:[%s526 + $0x78] sm:$0xf] %vm2049, %v2047
      %2081 = vst.msk [vmem:[%s526 + $0x7c] sm:$0xf] %vm2049, %v2048
      %vm2082 = vcmask 31744
      %v2083 = vsel %vm2082, %v1985, 0.0
      %v2084 = vsel %vm2082, %v1986, 0.0
      %v2085 = vadd.f32 %v2083, %v2084
      %v2086 = vrot.slane %v2085, 4
      %v2087 = vadd.f32 %v2085, %v2086
      %v2088 = vrot.slane %v2087, 2
      %v2089 = vadd.f32 %v2087, %v2088
      %v2090 = vrot.slane %v2089, 1
      %v2091 = vadd.f32 %v2089, %v2090
      %v2092 = vsel %vm2082, %v1987, 0.0
      %v2093 = vsel %vm2082, %v1988, 0.0
      %v2094 = vadd.f32 %v2092, %v2093
      %v2095 = vrot.slane %v2094, 4
      %v2096 = vadd.f32 %v2094, %v2095
      %v2097 = vrot.slane %v2096, 2
      %v2098 = vadd.f32 %v2096, %v2097
      %v2099 = vrot.slane %v2098, 1
      %v2100 = vadd.f32 %v2098, %v2099
      %v2101 = vsel %vm2082, %v1989, 0.0
      %v2102 = vsel %vm2082, %v1990, 0.0
      %v2103 = vadd.f32 %v2101, %v2102
      %v2104 = vrot.slane %v2103, 4
      %v2105 = vadd.f32 %v2103, %v2104
      %v2106 = vrot.slane %v2105, 2
      %v2107 = vadd.f32 %v2105, %v2106
      %v2108 = vrot.slane %v2107, 1
      %v2109 = vadd.f32 %v2107, %v2108
      %v2110 = vsel %vm2082, %v1991, 0.0
      %v2111 = vsel %vm2082, %v1992, 0.0
      %v2112 = vadd.f32 %v2110, %v2111
      %v2113 = vrot.slane %v2112, 4
      %v2114 = vadd.f32 %v2112, %v2113
      %v2115 = vrot.slane %v2114, 2
      %v2116 = vadd.f32 %v2114, %v2115
      %v2117 = vrot.slane %v2116, 1
      %v2118 = vadd.f32 %v2116, %v2117
      %v2119 = vsel %vm2082, %v1993, 0.0
      %v2120 = vsel %vm2082, %v1994, 0.0
      %v2121 = vadd.f32 %v2119, %v2120
      %v2122 = vrot.slane %v2121, 4
      %v2123 = vadd.f32 %v2121, %v2122
      %v2124 = vrot.slane %v2123, 2
      %v2125 = vadd.f32 %v2123, %v2124
      %v2126 = vrot.slane %v2125, 1
      %v2127 = vadd.f32 %v2125, %v2126
      %v2128 = vsel %vm2082, %v1995, 0.0
      %v2129 = vsel %vm2082, %v1996, 0.0
      %v2130 = vadd.f32 %v2128, %v2129
      %v2131 = vrot.slane %v2130, 4
      %v2132 = vadd.f32 %v2130, %v2131
      %v2133 = vrot.slane %v2132, 2
      %v2134 = vadd.f32 %v2132, %v2133
      %v2135 = vrot.slane %v2134, 1
      %v2136 = vadd.f32 %v2134, %v2135
      %v2137 = vsel %vm2082, %v1997, 0.0
      %v2138 = vsel %vm2082, %v1998, 0.0
      %v2139 = vadd.f32 %v2137, %v2138
      %v2140 = vrot.slane %v2139, 4
      %v2141 = vadd.f32 %v2139, %v2140
      %v2142 = vrot.slane %v2141, 2
      %v2143 = vadd.f32 %v2141, %v2142
      %v2144 = vrot.slane %v2143, 1
      %v2145 = vadd.f32 %v2143, %v2144
      %v2146 = vsel %vm2082, %v1999, 0.0
      %v2147 = vsel %vm2082, %v2000, 0.0
      %v2148 = vadd.f32 %v2146, %v2147
      %v2149 = vrot.slane %v2148, 4
      %v2150 = vadd.f32 %v2148, %v2149
      %v2151 = vrot.slane %v2150, 2
      %v2152 = vadd.f32 %v2150, %v2151
      %v2153 = vrot.slane %v2152, 1
      %v2154 = vadd.f32 %v2152, %v2153
      %v2155 = vsel %vm2082, %v2001, 0.0
      %v2156 = vsel %vm2082, %v2002, 0.0
      %v2157 = vadd.f32 %v2155, %v2156
      %v2158 = vrot.slane %v2157, 4
      %v2159 = vadd.f32 %v2157, %v2158
      %v2160 = vrot.slane %v2159, 2
      %v2161 = vadd.f32 %v2159, %v2160
      %v2162 = vrot.slane %v2161, 1
      %v2163 = vadd.f32 %v2161, %v2162
      %v2164 = vsel %vm2082, %v2003, 0.0
      %v2165 = vsel %vm2082, %v2004, 0.0
      %v2166 = vadd.f32 %v2164, %v2165
      %v2167 = vrot.slane %v2166, 4
      %v2168 = vadd.f32 %v2166, %v2167
      %v2169 = vrot.slane %v2168, 2
      %v2170 = vadd.f32 %v2168, %v2169
      %v2171 = vrot.slane %v2170, 1
      %v2172 = vadd.f32 %v2170, %v2171
      %v2173 = vsel %vm2082, %v2005, 0.0
      %v2174 = vsel %vm2082, %v2006, 0.0
      %v2175 = vadd.f32 %v2173, %v2174
      %v2176 = vrot.slane %v2175, 4
      %v2177 = vadd.f32 %v2175, %v2176
      %v2178 = vrot.slane %v2177, 2
      %v2179 = vadd.f32 %v2177, %v2178
      %v2180 = vrot.slane %v2179, 1
      %v2181 = vadd.f32 %v2179, %v2180
      %v2182 = vsel %vm2082, %v2007, 0.0
      %v2183 = vsel %vm2082, %v2008, 0.0
      %v2184 = vadd.f32 %v2182, %v2183
      %v2185 = vrot.slane %v2184, 4
      %v2186 = vadd.f32 %v2184, %v2185
      %v2187 = vrot.slane %v2186, 2
      %v2188 = vadd.f32 %v2186, %v2187
      %v2189 = vrot.slane %v2188, 1
      %v2190 = vadd.f32 %v2188, %v2189
      %v2191 = vsel %vm2082, %v2009, 0.0
      %v2192 = vsel %vm2082, %v2010, 0.0
      %v2193 = vadd.f32 %v2191, %v2192
      %v2194 = vrot.slane %v2193, 4
      %v2195 = vadd.f32 %v2193, %v2194
      %v2196 = vrot.slane %v2195, 2
      %v2197 = vadd.f32 %v2195, %v2196
      %v2198 = vrot.slane %v2197, 1
      %v2199 = vadd.f32 %v2197, %v2198
      %v2200 = vsel %vm2082, %v2011, 0.0
      %v2201 = vsel %vm2082, %v2012, 0.0
      %v2202 = vadd.f32 %v2200, %v2201
      %v2203 = vrot.slane %v2202, 4
      %v2204 = vadd.f32 %v2202, %v2203
      %v2205 = vrot.slane %v2204, 2
      %v2206 = vadd.f32 %v2204, %v2205
      %v2207 = vrot.slane %v2206, 1
      %v2208 = vadd.f32 %v2206, %v2207
      %v2209 = vsel %vm2082, %v2013, 0.0
      %v2210 = vsel %vm2082, %v2014, 0.0
      %v2211 = vadd.f32 %v2209, %v2210
      %v2212 = vrot.slane %v2211, 4
      %v2213 = vadd.f32 %v2211, %v2212
      %v2214 = vrot.slane %v2213, 2
      %v2215 = vadd.f32 %v2213, %v2214
      %v2216 = vrot.slane %v2215, 1
      %v2217 = vadd.f32 %v2215, %v2216
      %v2218 = vsel %vm2082, %v2015, 0.0
      %v2219 = vsel %vm2082, %v2016, 0.0
      %v2220 = vadd.f32 %v2218, %v2219
      %v2221 = vrot.slane %v2220, 4
      %v2222 = vadd.f32 %v2220, %v2221
      %v2223 = vrot.slane %v2222, 2
      %v2224 = vadd.f32 %v2222, %v2223
      %v2225 = vrot.slane %v2224, 1
      %v2226 = vadd.f32 %v2224, %v2225
      %v2227 = vmul.f32 %v2091, 0.0625
      %v2228 = vmul.f32 %v2100, 0.0625
      %v2229 = vmul.f32 %v2109, 0.0625
      %v2230 = vmul.f32 %v2118, 0.0625
      %v2231 = vmul.f32 %v2127, 0.0625
      %v2232 = vmul.f32 %v2136, 0.0625
      %v2233 = vmul.f32 %v2145, 0.0625
      %v2234 = vmul.f32 %v2154, 0.0625
      %v2235 = vmul.f32 %v2163, 0.0625
      %v2236 = vmul.f32 %v2172, 0.0625
      %v2237 = vmul.f32 %v2181, 0.0625
      %v2238 = vmul.f32 %v2190, 0.0625
      %v2239 = vmul.f32 %v2199, 0.0625
      %v2240 = vmul.f32 %v2208, 0.0625
      %v2241 = vmul.f32 %v2217, 0.0625
      %v2242 = vmul.f32 %v2226, 0.0625
      %vm2259 = vcmask 1041409
      %v2260 = vsel %vm2259, %v2228, %v2227
      %vm2261 = vcmask 1042434
      %v2262 = vsel %vm2261, %v2229, %v2260
      %vm2263 = vcmask 1043459
      %v2264 = vsel %vm2263, %v2230, %v2262
      %vm2265 = vcmask 1044484
      %v2266 = vsel %vm2265, %v2231, %v2264
      %vm2267 = vcmask 1045509
      %v2268 = vsel %vm2267, %v2232, %v2266
      %vm2269 = vcmask 1046534
      %v2270 = vsel %vm2269, %v2233, %v2268
      %vm2271 = vcmask 1047559
      %v2272 = vsel %vm2271, %v2234, %v2270
      %v2273 = vsel %vm2259, %v2236, %v2235
      %v2274 = vsel %vm2261, %v2237, %v2273
      %v2275 = vsel %vm2263, %v2238, %v2274
      %v2276 = vsel %vm2265, %v2239, %v2275
      %v2277 = vsel %vm2267, %v2240, %v2276
      %v2278 = vsel %vm2269, %v2241, %v2277
      %v2279 = vsel %vm2271, %v2242, %v2278
      %2282 = vst.msk [vmem:[%s536] sm:$0xff] %vm2082, %v2272
      %2283 = vst.msk [vmem:[%s536 + $0x8] sm:$0xff] %vm2082, %v2279
      %v2284 = vadd.f32 %v2083, %v2092
      %v2285 = vadd.f32 %v2284, %v2101
      %v2286 = vadd.f32 %v2285, %v2110
      %v2287 = vadd.f32 %v2286, %v2119
      %v2288 = vadd.f32 %v2287, %v2128
      %v2289 = vadd.f32 %v2288, %v2137
      %v2290 = vadd.f32 %v2289, %v2146
      %v2291 = vadd.f32 %v2290, %v2155
      %v2292 = vadd.f32 %v2291, %v2164
      %v2293 = vadd.f32 %v2292, %v2173
      %v2294 = vadd.f32 %v2293, %v2182
      %v2295 = vadd.f32 %v2294, %v2191
      %v2296 = vadd.f32 %v2295, %v2200
      %v2297 = vadd.f32 %v2296, %v2209
      %v2298 = vadd.f32 %v2297, %v2218
      %v2299 = vadd.f32 %v2084, %v2093
      %v2300 = vadd.f32 %v2299, %v2102
      %v2301 = vadd.f32 %v2300, %v2111
      %v2302 = vadd.f32 %v2301, %v2120
      %v2303 = vadd.f32 %v2302, %v2129
      %v2304 = vadd.f32 %v2303, %v2138
      %v2305 = vadd.f32 %v2304, %v2147
      %v2306 = vadd.f32 %v2305, %v2156
      %v2307 = vadd.f32 %v2306, %v2165
      %v2308 = vadd.f32 %v2307, %v2174
      %v2309 = vadd.f32 %v2308, %v2183
      %v2310 = vadd.f32 %v2309, %v2192
      %v2311 = vadd.f32 %v2310, %v2201
      %v2312 = vadd.f32 %v2311, %v2210
      %v2313 = vadd.f32 %v2312, %v2219
      %2314 = vst.msk [vmem:[%s546] sm:$0xff] %vm2082, %v2298
      %2315 = vst.msk [vmem:[%s546 + $0x8] sm:$0xff] %vm2082, %v2313
      %s2316 = smul.u32 16, %s26
      %p2317 = scmp.lt.s32.totalorder %s25, 1
      %s2318 = scalar_select %p2317, %s25, 1
      %p2319 = scmp.lt.s32.totalorder %s2316, 15
      %s2320 = scalar_select %p2319, %s2316, 15
      %s2321 = smul.addr %s2320, 2
      %s2322 = smul.addr %s2318, 32
      %s2323 = sadd.s32 %s2321, %s2322
      %s2324 = smul.addr %s2323, 4
      %s2325 = scalar_lea.vmem %s7, %s2324
      %s2326 = smul.u32 2, %s26
      %p2327 = scmp.lt.s32.totalorder %s25, 1
      %s2328 = scalar_select %p2327, %s25, 1
      %p2329 = scmp.lt.s32.totalorder %s2326, 1
      %s2330 = scalar_select %p2329, %s2326, 1
      %s2331 = smul.addr %s2328, 2
      %s2332 = sadd.s32 %s2330, %s2331
      %s2333 = smul.addr %s2332, 8
      %s2334 = scalar_lea.vmem %s8, %s2333
      %p2335 = scmp.lt.s32.totalorder %s25, 1
      %s2336 = scalar_select %p2335, %s25, 1
      %p2337 = scmp.lt.s32.totalorder %s26, 0
      %s2338 = scalar_select %p2337, %s26, 0
      %s2339 = smul.addr %s2338, 2
      %s2340 = smul.addr %s2336, 2
      %s2341 = sadd.s32 %s2339, %s2340
      %s2342 = smul.addr %s2341, 8
      %s2343 = scalar_lea.vmem %s9, %s2342
      // Predicated region
      $region49: #{up_forward.7} parent=47 // pred_check
        %p2344 = pneg %p237
      $region50: #{up_forward.7} parent=47 // pred_check_branch
        %2346 = sbr.rel (%p2344) target = $region52
      $region51: #{up_forward.7} parent=47 // pred_region
        %s2347 = smul.u32 16, %s26
      $region52: #{up_forward.7} parent=47 // pred_fallthru
        _
      // Predicated region
      $region53: #{up_forward.7} parent=47 // pred_check
        %p2348 = pneg %p265
      $region54: #{up_forward.7} parent=47 // pred_check_branch
        %2350 = sbr.rel (%p2348) target = $region56
      $region55: #{up_forward.7} parent=47 // pred_region
        %s2351 = smul.u32 2, %s26
      $region56: #{up_forward.7} parent=47 // pred_fallthru
        _
      // Predicated region
      $region57: #{up_forward.7} parent=47 // pred_check
        %p2352 = pneg %p293
      $region58: #{up_forward.7} parent=47 // pred_check_branch
        %2354 = sbr.rel (%p2352) target = $region60
      $region59: #{up_forward.7} parent=47 // pred_region
        _
      $region60: #{up_forward.7} parent=47 // pred_fallthru
        _
    $region48: #{up_forward.7} parent=5 // pred_fallthru
      _
    %p2355 = scmp.le.s32.totalorder 2, %s16
    // Predicated region
    $region61: #{up_forward.7} parent=5 // pred_check
      %p2356 = pneg %p2355
    $region62: #{up_forward.7} parent=5 // pred_check_branch
      %2358 = sbr.rel (%p2356) target = $region64
    $region63: #{up_forward.7} parent=5 // pred_region
      %s2359 = ssub.s32 %s16, 2
      // Predicated region
      $region65: #{up_forward.7} parent=63 // pred_check
        %p2360 = pneg %p243
      $region66: #{up_forward.7} parent=63 // pred_check_branch
        %2362 = sbr.rel (%p2360) target = $region68
      $region67: #{up_forward.7} parent=63 // pred_region
        %s2363 = smul.u32 16, %s28
        %p2364 = scmp.lt.s32.totalorder %s27, 1
        %s2365 = scalar_select %p2364, %s27, 1
        %p2366 = scmp.lt.s32.totalorder %s2363, 15
        %s2367 = scalar_select %p2366, %s2363, 15
        %s2368 = smul.addr %s2367, 2
        %s2369 = smul.addr %s2365, 32
        %s2370 = sadd.s32 %s2368, %s2369
        %s2371 = smul.addr %s2370, 4
        %s2372 = scalar_lea.vmem %s7, %s2371
      $region68: #{up_forward.7} parent=63 // pred_fallthru
        _
      // Predicated region
      $region69: #{up_forward.7} parent=63 // pred_check
        %p2373 = pneg %p271
      $region70: #{up_forward.7} parent=63 // pred_check_branch
        %2375 = sbr.rel (%p2373) target = $region72
      $region71: #{up_forward.7} parent=63 // pred_region
        %s2376 = smul.u32 2, %s28
        %p2377 = scmp.lt.s32.totalorder %s27, 1
        %s2378 = scalar_select %p2377, %s27, 1
        %p2379 = scmp.lt.s32.totalorder %s2376, 1
        %s2380 = scalar_select %p2379, %s2376, 1
        %s2381 = smul.addr %s2378, 2
        %s2382 = sadd.s32 %s2380, %s2381
        %s2383 = smul.addr %s2382, 8
        %s2384 = scalar_lea.vmem %s8, %s2383
      $region72: #{up_forward.7} parent=63 // pred_fallthru
        _
      // Predicated region
      $region73: #{up_forward.7} parent=63 // pred_check
        %p2385 = pneg %p299
      $region74: #{up_forward.7} parent=63 // pred_check_branch
        %2387 = sbr.rel (%p2385) target = $region76
      $region75: #{up_forward.7} parent=63 // pred_region
        %p2388 = scmp.lt.s32.totalorder %s27, 1
        %s2389 = scalar_select %p2388, %s27, 1
        %p2390 = scmp.lt.s32.totalorder %s28, 0
        %s2391 = scalar_select %p2390, %s28, 0
        %s2392 = smul.addr %s2391, 2
        %s2393 = smul.addr %s2389, 2
        %s2394 = sadd.s32 %s2392, %s2393
        %s2395 = smul.addr %s2394, 8
        %s2396 = scalar_lea.vmem %s9, %s2395
      $region76: #{up_forward.7} parent=63 // pred_fallthru
        _
    $region64: #{up_forward.7} parent=5 // pred_fallthru
      _
  $region6: #{up_forward.7} parent=0 // loop_footer
    %s20 = sadd.s32 1, %s16
  $region7: #{up_forward.7} parent=0 // loop_footer_branch
    %15 = sbr.rel target = $region3
  $region8: #{up_forward.7} parent=0 // loop_exit
    _

// kernel: up_forward.9
$region0: #{up_forward.9}
  #allocation0 [shape = 'u32[]', space=smem, size = 0x4, offset = 0x4, fixed_abs, tag = 'smem constant byte address 0x4 - core index']
  #allocation1 [shape = 'u32[72,128]{1,0:T(1,128)}', space=vmem, size = 0x9000, scoped, tag = 'internal scratch']
  #allocation2 [shape = 'f32[18,18,4]{2,1,0:T(8,128)}', space=vmem, size = 0x36000, scoped, tag = 'scratch operand']
  %s0 = inlined_call_operand.vmem [shape: bf16[2,16,16,4], index: 0, kind: input, shape index: {}, may-alias: {0,1,2}]
  %s1 = inlined_call_operand.vmem [shape: bf16[2,16,16,4], index: 1, kind: input, shape index: {}, may-alias: {0,1,2}]
  %s2 = inlined_call_operand.vmem [shape: bf16[2,16,16,4], index: 2, kind: input, shape index: {}, may-alias: {0,1,2}]
  %s3 = inlined_call_operand.vmem [shape: bf16[2,16,1,4], index: 3, kind: input, shape index: {}, may-alias: {3,4,5}]
  %s4 = inlined_call_operand.vmem [shape: bf16[2,16,1,4], index: 4, kind: input, shape index: {}, may-alias: {3,4,5}]
  %s5 = inlined_call_operand.vmem [shape: bf16[2,16,1,4], index: 5, kind: input, shape index: {}, may-alias: {3,4,5}]
  %s6 = inlined_call_operand.vmem [shape: bf16[2,16,4], index: 6, kind: input, shape index: {}]
  %s7 = inlined_call_operand.vmem [shape: f32[3,3,4], index: 7, kind: input, shape index: {}]
  %s8 = inlined_call_operand.vmem [shape: bf16[4,4], index: 8, kind: input, shape index: {}]
  %s9 = inlined_call_operand.vmem [shape: f32[1,4], index: 9, kind: input, shape index: {}]
  %s10 = inlined_call_operand.vmem [shape: f32[1,4], index: 10, kind: input, shape index: {}]
  %s11 = inlined_call_operand.vmem [shape: bf16[2,16,16,4], index: 11, kind: output, shape index: {0}]
  %s12 = inlined_call_operand.vmem [shape: f32[2,16,4], index: 12, kind: output, shape index: {1}]
  %s13 = inlined_call_operand.vmem [shape: f32[2,1,16,4], index: 13, kind: output, shape index: {2}]
  %14 = xla_tuple %s11, %s12, %s13
  %s15 = sld [smem:[#allocation0]]
  $region93: #{up_forward.9} parent=0
    _
  %s17 = ssub.s32 1, %s15
  %s18 = scalar_select 0, %s17, %s15
  loop: start=0, step=1, limit=4
  $region2: #{up_forward.9} parent=0 // loop_pre_header
    _
  $region3: #{up_forward.9} parent=0 // loop_header
    %s20 = sphi 0, %s24
    %p21 = scmp.ge.s32.totalorder %s20, 4
    %s27 = sphi 0, %s39
    %s28 = sphi 0, %s35
    %s29 = sphi 0, %s27
    %s30 = sphi 0, %s28
    %s31 = sphi 0, %s29
    %s32 = sphi 0, %s30
    %s44 = sphi 0, %s46
    %s47 = sphi 0, %s44
    %s48 = sphi 0, %s47
    %s64 = sphi 0, %s48
    %s80 = sphi 0, %s82
    %s83 = sphi 0, %s80
    %s84 = sphi 0, %s83
    %s100 = sphi 0, %s84
    %s116 = sphi 0, %s118
    %s119 = sphi 0, %s116
    %s120 = sphi 0, %s119
    %s136 = sphi 0, %s120
    %s144 = sphi 0, %s146
    %s147 = sphi 0, %s144
    %s148 = sphi 0, %s147
    %s164 = sphi 0, %s148
    %s180 = sphi 0, %s182
    %s183 = sphi 0, %s180
    %s184 = sphi 0, %s183
    %s200 = sphi 0, %s184
    %s216 = sphi 0, %s218
    %s219 = sphi 0, %s216
    %s220 = sphi 0, %s219
    %s236 = sphi 0, %s220
    %s242 = sphi 0, %s244
    %s245 = sphi 0, %s242
    %s246 = sphi 0, %s245
    %s262 = sphi 0, %s246
    %s266 = sphi 0, %s266
    %s268 = sphi 0, %s266
    %s269 = sphi 0, %s268
    %s283 = sphi 0, %s269
    %s287 = sphi 0, %s287
    %s289 = sphi 0, %s287
    %s290 = sphi 0, %s289
    %s304 = sphi 0, %s290
    %s308 = sphi 0, %s308
    %s310 = sphi 0, %s308
    %s311 = sphi 0, %s310
    %s325 = sphi 0, %s311
    %s329 = sphi 0, %s329
    %s331 = sphi 0, %s329
    %s332 = sphi 0, %s331
    %s346 = sphi 0, %s332
    %s354 = sphi 0, %s356
    %s357 = sphi 0, %s354
    %s358 = sphi 0, %s357
    %s374 = sphi 0, %s358
    %s382 = sphi 0, %s384
    %s385 = sphi 0, %s382
    %s386 = sphi 0, %s385
    %s402 = sphi 0, %s386
    %s410 = sphi 0, %s412
    %s413 = sphi 0, %s410
    %s414 = sphi 0, %s413
    %s430 = sphi 0, %s414
  $region4: #{up_forward.9} parent=0 // loop_header_branch
    %23 = sbr.rel (%p21) target = $region8
  $region5: #{up_forward.9} parent=0 // loop_body
    %s25 = ssub.s32 %s20, 1
    %s26 = ssub.s32 %s20, 2
    %s33 = sadd.s32 1, %s28
    %p34 = scmp.ge.s32.totalorder %s33, 1
    %s35 = scalar_select %p34, 0, %s33
    %s36 = sadd.s32 1, %s27
    %s37 = scalar_select %p34, %s36, %s27
    %p38 = scmp.ge.s32.totalorder %s37, 2
    %s39 = scalar_select %p38, 0, %s37
    %s40 = ssub.s32 %s27, %s39
    %s41 = ssub.s32 %s28, %s35
    %s42 = sor.u32 %s40, %s41
    %p43 = scmp.eq.s32.totalorder %s42, 0
    %s45 = sadd.s32 %s44, 1
    %s46 = scalar_select %p43, %s44, %s45
    %p49 = pneg %p43
    %p50 = scmp.eq.s32.totalorder %s20, 1
    %p51 = por %p49, %p50
    %p52 = scmp.ne.s32.totalorder %s44, %s47
    %p53 = scmp.eq.s32.totalorder %s20, 0
    %p54 = por %p52, %p53
    %p55 = scmp.ne.s32.totalorder %s44, %s47
    %p56 = scmp.eq.s32.totalorder %s25, 1
    %p57 = por %p55, %p56
    %p58 = scmp.ne.s32.totalorder %s47, %s48
    %p59 = scmp.eq.s32.totalorder %s25, 0
    %p60 = por %p58, %p59
    %p61 = scmp.ne.s32.totalorder %s47, %s48
    %p62 = scmp.eq.s32.totalorder %s26, 1
    %p63 = por %p61, %p62
    %p65 = scmp.ne.s32.totalorder %s48, %s64
    %p66 = scmp.eq.s32.totalorder %s26, 0
    %p67 = por %p65, %p66
    %s68 = smul.u32 %s28, 16
    %s69 = ssub.s32 %s68, 1
    %p70 = scmp.gt.s32.totalorder %s69, 0
    %s71 = scalar_select %p70, %s69, 0
    %s72 = smul.u32 %s35, 16
    %s73 = ssub.s32 %s72, 1
    %p74 = scmp.gt.s32.totalorder %s73, 0
    %s75 = scalar_select %p74, %s73, 0
    %s76 = ssub.s32 %s27, %s39
    %s77 = ssub.s32 %s71, %s75
    %s78 = sor.u32 %s76, %s77
    %p79 = scmp.eq.s32.totalorder %s78, 0
    %s81 = sadd.s32 %s80, 1
    %s82 = scalar_select %p79, %s80, %s81
    %p85 = pneg %p79
    %p86 = scmp.eq.s32.totalorder %s20, 1
    %p87 = por %p85, %p86
    %p88 = scmp.ne.s32.totalorder %s80, %s83
    %p89 = scmp.eq.s32.totalorder %s20, 0
    %p90 = por %p88, %p89
    %p91 = scmp.ne.s32.totalorder %s80, %s83
    %p92 = scmp.eq.s32.totalorder %s25, 1
    %p93 = por %p91, %p92
    %p94 = scmp.ne.s32.totalorder %s83, %s84
    %p95 = scmp.eq.s32.totalorder %s25, 0
    %p96 = por %p94, %p95
    %p97 = scmp.ne.s32.totalorder %s83, %s84
    %p98 = scmp.eq.s32.totalorder %s26, 1
    %p99 = por %p97, %p98
    %p101 = scmp.ne.s32.totalorder %s84, %s100
    %p102 = scmp.eq.s32.totalorder %s26, 0
    %p103 = por %p101, %p102
    %s104 = smul.u32 %s28, 16
    %s105 = sadd.s32 %s104, 16
    %p106 = scmp.lt.s32.totalorder %s105, 15
    %s107 = scalar_select %p106, %s105, 15
    %s108 = smul.u32 %s35, 16
    %s109 = sadd.s32 %s108, 16
    %p110 = scmp.lt.s32.totalorder %s109, 15
    %s111 = scalar_select %p110, %s109, 15
    %s112 = ssub.s32 %s27, %s39
    %s113 = ssub.s32 %s107, %s111
    %s114 = sor.u32 %s112, %s113
    %p115 = scmp.eq.s32.totalorder %s114, 0
    %s117 = sadd.s32 %s116, 1
    %s118 = scalar_select %p115, %s116, %s117
    %p121 = pneg %p115
    %p122 = scmp.eq.s32.totalorder %s20, 1
    %p123 = por %p121, %p122
    %p124 = scmp.ne.s32.totalorder %s116, %s119
    %p125 = scmp.eq.s32.totalorder %s20, 0
    %p126 = por %p124, %p125
    %p127 = scmp.ne.s32.totalorder %s116, %s119
    %p128 = scmp.eq.s32.totalorder %s25, 1
    %p129 = por %p127, %p128
    %p130 = scmp.ne.s32.totalorder %s119, %s120
    %p131 = scmp.eq.s32.totalorder %s25, 0
    %p132 = por %p130, %p131
    %p133 = scmp.ne.s32.totalorder %s119, %s120
    %p134 = scmp.eq.s32.totalorder %s26, 1
    %p135 = por %p133, %p134
    %p137 = scmp.ne.s32.totalorder %s120, %s136
    %p138 = scmp.eq.s32.totalorder %s26, 0
    %p139 = por %p137, %p138
    %s140 = ssub.s32 %s27, %s39
    %s141 = ssub.s32 %s28, %s35
    %s142 = sor.u32 %s140, %s141
    %p143 = scmp.eq.s32.totalorder %s142, 0
    %s145 = sadd.s32 %s144, 1
    %s146 = scalar_select %p143, %s144, %s145
    %p149 = pneg %p143
    %p150 = scmp.eq.s32.totalorder %s20, 1
    %p151 = por %p149, %p150
    %p152 = scmp.ne.s32.totalorder %s144, %s147
    %p153 = scmp.eq.s32.totalorder %s20, 0
    %p154 = por %p152, %p153
    %p155 = scmp.ne.s32.totalorder %s144, %s147
    %p156 = scmp.eq.s32.totalorder %s25, 1
    %p157 = por %p155, %p156
    %p158 = scmp.ne.s32.totalorder %s147, %s148
    %p159 = scmp.eq.s32.totalorder %s25, 0
    %p160 = por %p158, %p159
    %p161 = scmp.ne.s32.totalorder %s147, %s148
    %p162 = scmp.eq.s32.totalorder %s26, 1
    %p163 = por %p161, %p162
    %p165 = scmp.ne.s32.totalorder %s148, %s164
    %p166 = scmp.eq.s32.totalorder %s26, 0
    %p167 = por %p165, %p166
    %s168 = smul.u32 %s28, 16
    %s169 = ssub.s32 %s168, 1
    %p170 = scmp.gt.s32.totalorder %s169, 0
    %s171 = scalar_select %p170, %s169, 0
    %s172 = smul.u32 %s35, 16
    %s173 = ssub.s32 %s172, 1
    %p174 = scmp.gt.s32.totalorder %s173, 0
    %s175 = scalar_select %p174, %s173, 0
    %s176 = ssub.s32 %s27, %s39
    %s177 = ssub.s32 %s171, %s175
    %s178 = sor.u32 %s176, %s177
    %p179 = scmp.eq.s32.totalorder %s178, 0
    %s181 = sadd.s32 %s180, 1
    %s182 = scalar_select %p179, %s180, %s181
    %p185 = pneg %p179
    %p186 = scmp.eq.s32.totalorder %s20, 1
    %p187 = por %p185, %p186
    %p188 = scmp.ne.s32.totalorder %s180, %s183
    %p189 = scmp.eq.s32.totalorder %s20, 0
    %p190 = por %p188, %p189
    %p191 = scmp.ne.s32.totalorder %s180, %s183
    %p192 = scmp.eq.s32.totalorder %s25, 1
    %p193 = por %p191, %p192
    %p194 = scmp.ne.s32.totalorder %s183, %s184
    %p195 = scmp.eq.s32.totalorder %s25, 0
    %p196 = por %p194, %p195
    %p197 = scmp.ne.s32.totalorder %s183, %s184
    %p198 = scmp.eq.s32.totalorder %s26, 1
    %p199 = por %p197, %p198
    %p201 = scmp.ne.s32.totalorder %s184, %s200
    %p202 = scmp.eq.s32.totalorder %s26, 0
    %p203 = por %p201, %p202
    %s204 = smul.u32 %s28, 16
    %s205 = sadd.s32 %s204, 16
    %p206 = scmp.lt.s32.totalorder %s205, 15
    %s207 = scalar_select %p206, %s205, 15
    %s208 = smul.u32 %s35, 16
    %s209 = sadd.s32 %s208, 16
    %p210 = scmp.lt.s32.totalorder %s209, 15
    %s211 = scalar_select %p210, %s209, 15
    %s212 = ssub.s32 %s27, %s39
    %s213 = ssub.s32 %s207, %s211
    %s214 = sor.u32 %s212, %s213
    %p215 = scmp.eq.s32.totalorder %s214, 0
    %s217 = sadd.s32 %s216, 1
    %s218 = scalar_select %p215, %s216, %s217
    %p221 = pneg %p215
    %p222 = scmp.eq.s32.totalorder %s20, 1
    %p223 = por %p221, %p222
    %p224 = scmp.ne.s32.totalorder %s216, %s219
    %p225 = scmp.eq.s32.totalorder %s20, 0
    %p226 = por %p224, %p225
    %p227 = scmp.ne.s32.totalorder %s216, %s219
    %p228 = scmp.eq.s32.totalorder %s25, 1
    %p229 = por %p227, %p228
    %p230 = scmp.ne.s32.totalorder %s219, %s220
    %p231 = scmp.eq.s32.totalorder %s25, 0
    %p232 = por %p230, %p231
    %p233 = scmp.ne.s32.totalorder %s219, %s220
    %p234 = scmp.eq.s32.totalorder %s26, 1
    %p235 = por %p233, %p234
    %p237 = scmp.ne.s32.totalorder %s220, %s236
    %p238 = scmp.eq.s32.totalorder %s26, 0
    %p239 = por %p237, %p238
    %s240 = ssub.s32 %s27, %s39
    %p241 = scmp.eq.s32.totalorder %s240, 0
    %s243 = sadd.s32 %s242, 1
    %s244 = scalar_select %p241, %s242, %s243
    %p247 = pneg %p241
    %p248 = scmp.eq.s32.totalorder %s20, 1
    %p249 = por %p247, %p248
    %p250 = scmp.ne.s32.totalorder %s242, %s245
    %p251 = scmp.eq.s32.totalorder %s20, 0
    %p252 = por %p250, %p251
    %p253 = scmp.ne.s32.totalorder %s242, %s245
    %p254 = scmp.eq.s32.totalorder %s25, 1
    %p255 = por %p253, %p254
    %p256 = scmp.ne.s32.totalorder %s245, %s246
    %p257 = scmp.eq.s32.totalorder %s25, 0
    %p258 = por %p256, %p257
    %p259 = scmp.ne.s32.totalorder %s245, %s246
    %p260 = scmp.eq.s32.totalorder %s26, 1
    %p261 = por %p259, %p260
    %p263 = scmp.ne.s32.totalorder %s246, %s262
    %p264 = scmp.eq.s32.totalorder %s26, 0
    %p265 = por %p263, %p264
    %s267 = sadd.s32 %s266, 1
    %p270 = scmp.eq.s32.totalorder %s20, 1
    %p271 = scmp.ne.s32.totalorder %s266, %s268
    %p272 = scmp.eq.s32.totalorder %s20, 0
    %p273 = por %p271, %p272
    %p274 = scmp.ne.s32.totalorder %s266, %s268
    %p275 = scmp.eq.s32.totalorder %s25, 1
    %p276 = por %p274, %p275
    %p277 = scmp.ne.s32.totalorder %s268, %s269
    %p278 = scmp.eq.s32.totalorder %s25, 0
    %p279 = por %p277, %p278
    %p280 = scmp.ne.s32.totalorder %s268, %s269
    %p281 = scmp.eq.s32.totalorder %s26, 1
    %p282 = por %p280, %p281
    %p284 = scmp.ne.s32.totalorder %s269, %s283
    %p285 = scmp.eq.s32.totalorder %s26, 0
    %p286 = por %p284, %p285
    %s288 = sadd.s32 %s287, 1
    %p291 = scmp.eq.s32.totalorder %s20, 1
    %p292 = scmp.ne.s32.totalorder %s287, %s289
    %p293 = scmp.eq.s32.totalorder %s20, 0
    %p294 = por %p292, %p293
    %p295 = scmp.ne.s32.totalorder %s287, %s289
    %p296 = scmp.eq.s32.totalorder %s25, 1
    %p297 = por %p295, %p296
    %p298 = scmp.ne.s32.totalorder %s289, %s290
    %p299 = scmp.eq.s32.totalorder %s25, 0
    %p300 = por %p298, %p299
    %p301 = scmp.ne.s32.totalorder %s289, %s290
    %p302 = scmp.eq.s32.totalorder %s26, 1
    %p303 = por %p301, %p302
    %p305 = scmp.ne.s32.totalorder %s290, %s304
    %p306 = scmp.eq.s32.totalorder %s26, 0
    %p307 = por %p305, %p306
    %s309 = sadd.s32 %s308, 1
    %p312 = scmp.eq.s32.totalorder %s20, 1
    %p313 = scmp.ne.s32.totalorder %s308, %s310
    %p314 = scmp.eq.s32.totalorder %s20, 0
    %p315 = por %p313, %p314
    %p316 = scmp.ne.s32.totalorder %s308, %s310
    %p317 = scmp.eq.s32.totalorder %s25, 1
    %p318 = por %p316, %p317
    %p319 = scmp.ne.s32.totalorder %s310, %s311
    %p320 = scmp.eq.s32.totalorder %s25, 0
    %p321 = por %p319, %p320
    %p322 = scmp.ne.s32.totalorder %s310, %s311
    %p323 = scmp.eq.s32.totalorder %s26, 1
    %p324 = por %p322, %p323
    %p326 = scmp.ne.s32.totalorder %s311, %s325
    %p327 = scmp.eq.s32.totalorder %s26, 0
    %p328 = por %p326, %p327
    %s330 = sadd.s32 %s329, 1
    %p333 = scmp.eq.s32.totalorder %s20, 1
    %p334 = scmp.ne.s32.totalorder %s329, %s331
    %p335 = scmp.eq.s32.totalorder %s20, 0
    %p336 = por %p334, %p335
    %p337 = scmp.ne.s32.totalorder %s329, %s331
    %p338 = scmp.eq.s32.totalorder %s25, 1
    %p339 = por %p337, %p338
    %p340 = scmp.ne.s32.totalorder %s331, %s332
    %p341 = scmp.eq.s32.totalorder %s25, 0
    %p342 = por %p340, %p341
    %p343 = scmp.ne.s32.totalorder %s331, %s332
    %p344 = scmp.eq.s32.totalorder %s26, 1
    %p345 = por %p343, %p344
    %p347 = scmp.ne.s32.totalorder %s332, %s346
    %p348 = scmp.eq.s32.totalorder %s26, 0
    %p349 = por %p347, %p348
    %s350 = ssub.s32 %s27, %s39
    %s351 = ssub.s32 %s28, %s35
    %s352 = sor.u32 %s350, %s351
    %p353 = scmp.eq.s32.totalorder %s352, 0
    %s355 = sadd.s32 %s354, 1
    %s356 = scalar_select %p353, %s354, %s355
    %p359 = pneg %p353
    %p360 = scmp.eq.s32.totalorder %s20, 1
    %p361 = por %p359, %p360
    %p362 = scmp.ne.s32.totalorder %s354, %s357
    %p363 = scmp.eq.s32.totalorder %s20, 0
    %p364 = por %p362, %p363
    %p365 = scmp.ne.s32.totalorder %s354, %s357
    %p366 = scmp.eq.s32.totalorder %s25, 1
    %p367 = por %p365, %p366
    %p368 = scmp.ne.s32.totalorder %s357, %s358
    %p369 = scmp.eq.s32.totalorder %s25, 0
    %p370 = por %p368, %p369
    %p371 = scmp.ne.s32.totalorder %s357, %s358
    %p372 = scmp.eq.s32.totalorder %s26, 1
    %p373 = por %p371, %p372
    %p375 = scmp.ne.s32.totalorder %s358, %s374
    %p376 = scmp.eq.s32.totalorder %s26, 0
    %p377 = por %p375, %p376
    %s378 = ssub.s32 %s27, %s39
    %s379 = ssub.s32 %s28, %s35
    %s380 = sor.u32 %s378, %s379
    %p381 = scmp.eq.s32.totalorder %s380, 0
    %s383 = sadd.s32 %s382, 1
    %s384 = scalar_select %p381, %s382, %s383
    %p387 = pneg %p381
    %p388 = scmp.eq.s32.totalorder %s20, 1
    %p389 = por %p387, %p388
    %p390 = scmp.ne.s32.totalorder %s382, %s385
    %p391 = scmp.eq.s32.totalorder %s20, 0
    %p392 = por %p390, %p391
    %p393 = scmp.ne.s32.totalorder %s382, %s385
    %p394 = scmp.eq.s32.totalorder %s25, 1
    %p395 = por %p393, %p394
    %p396 = scmp.ne.s32.totalorder %s385, %s386
    %p397 = scmp.eq.s32.totalorder %s25, 0
    %p398 = por %p396, %p397
    %p399 = scmp.ne.s32.totalorder %s385, %s386
    %p400 = scmp.eq.s32.totalorder %s26, 1
    %p401 = por %p399, %p400
    %p403 = scmp.ne.s32.totalorder %s386, %s402
    %p404 = scmp.eq.s32.totalorder %s26, 0
    %p405 = por %p403, %p404
    %s406 = ssub.s32 %s27, %s39
    %s407 = ssub.s32 %s28, %s35
    %s408 = sor.u32 %s406, %s407
    %p409 = scmp.eq.s32.totalorder %s408, 0
    %s411 = sadd.s32 %s410, 1
    %s412 = scalar_select %p409, %s410, %s411
    %p415 = pneg %p409
    %p416 = scmp.eq.s32.totalorder %s20, 1
    %p417 = por %p415, %p416
    %p418 = scmp.ne.s32.totalorder %s410, %s413
    %p419 = scmp.eq.s32.totalorder %s20, 0
    %p420 = por %p418, %p419
    %p421 = scmp.ne.s32.totalorder %s410, %s413
    %p422 = scmp.eq.s32.totalorder %s25, 1
    %p423 = por %p421, %p422
    %p424 = scmp.ne.s32.totalorder %s413, %s414
    %p425 = scmp.eq.s32.totalorder %s25, 0
    %p426 = por %p424, %p425
    %p427 = scmp.ne.s32.totalorder %s413, %s414
    %p428 = scmp.eq.s32.totalorder %s26, 1
    %p429 = por %p427, %p428
    %p431 = scmp.ne.s32.totalorder %s414, %s430
    %p432 = scmp.eq.s32.totalorder %s26, 0
    %p433 = por %p431, %p432
    %p434 = scmp.le.s32.totalorder 1, %s20
    %p435 = scmp.lt.s32.totalorder %s20, 3
    %p436 = pnand %p434, %p435
    %p437 = pneg %p436
    // Predicated region
    $region9: #{up_forward.9} parent=5 // pred_check
      _
    $region10: #{up_forward.9} parent=5 // pred_check_branch
      %439 = sbr.rel (%p436) target = $region12
    $region11: #{up_forward.9} parent=5 // pred_region
      %s440 = ssub.s32 %s20, 1
      // Predicated region
      $region13: #{up_forward.9} parent=11 // pred_check
        %p441 = pneg %p279
      $region14: #{up_forward.9} parent=11 // pred_check_branch
        %443 = sbr.rel (%p441) target = $region16
      $region15: #{up_forward.9} parent=11 // pred_region
        _
      $region16: #{up_forward.9} parent=11 // pred_fallthru
        _
      // Predicated region
      $region17: #{up_forward.9} parent=11 // pred_check
        %p444 = pneg %p300
      $region18: #{up_forward.9} parent=11 // pred_check_branch
        %446 = sbr.rel (%p444) target = $region20
      $region19: #{up_forward.9} parent=11 // pred_region
        _
      $region20: #{up_forward.9} parent=11 // pred_fallthru
        _
      // Predicated region
      $region21: #{up_forward.9} parent=11 // pred_check
        %p447 = pneg %p321
      $region22: #{up_forward.9} parent=11 // pred_check_branch
        %449 = sbr.rel (%p447) target = $region24
      $region23: #{up_forward.9} parent=11 // pred_region
        _
      $region24: #{up_forward.9} parent=11 // pred_fallthru
        _
      // Predicated region
      $region25: #{up_forward.9} parent=11 // pred_check
        %p450 = pneg %p342
      $region26: #{up_forward.9} parent=11 // pred_check_branch
        %452 = sbr.rel (%p450) target = $region28
      $region27: #{up_forward.9} parent=11 // pred_region
        _
      $region28: #{up_forward.9} parent=11 // pred_fallthru
        _
    $region12: #{up_forward.9} parent=5 // pred_fallthru
      _
    %p453 = scmp.lt.s32.totalorder %s20, 2
    // Predicated region
    $region29: #{up_forward.9} parent=5 // pred_check
      %p454 = pneg %p453
    $region30: #{up_forward.9} parent=5 // pred_check_branch
      %456 = sbr.rel (%p454) target = $region32
    $region31: #{up_forward.9} parent=5 // pred_region
      // Predicated region
      $region33: #{up_forward.9} parent=31 // pred_check
        %p457 = pneg %p54
      $region34: #{up_forward.9} parent=31 // pred_check_branch
        %459 = sbr.rel (%p457) target = $region36
      $region35: #{up_forward.9} parent=31 // pred_region
        %s460 = smul.u32 16, %s28
        %p461 = scmp.lt.s32.totalorder %s27, 1
        %s462 = scalar_select %p461, %s27, 1
        %p463 = scmp.lt.s32.totalorder %s460, 15
        %s464 = scalar_select %p463, %s460, 15
        %s465 = smul.addr %s464, 2
        %s466 = smul.addr %s462, 32
        %s467 = sadd.s32 %s465, %s466
        %s468 = smul.addr %s467, 4
        %s469 = scalar_lea.vmem %s0, %s468
        %s470 = smul.u32 16, %s28
      $region36: #{up_forward.9} parent=31 // pred_fallthru
        _
      // Predicated region
      $region37: #{up_forward.9} parent=31 // pred_check
        %p471 = pneg %p90
      $region38: #{up_forward.9} parent=31 // pred_check_branch
        %473 = sbr.rel (%p471) target = $region40
      $region39: #{up_forward.9} parent=31 // pred_region
        %s474 = smul.u32 %s28, 16
        %s475 = ssub.s32 %s474, 1
        %p476 = scmp.gt.s32.totalorder %s475, 0
        %s477 = scalar_select %p476, %s475, 0
        %p478 = scmp.lt.s32.totalorder %s27, 1
        %s479 = scalar_select %p478, %s27, 1
        %p480 = scmp.lt.s32.totalorder %s477, 15
        %s481 = scalar_select %p480, %s477, 15
        %s482 = smul.addr %s481, 2
        %s483 = smul.addr %s479, 32
        %s484 = sadd.s32 %s482, %s483
        %s485 = smul.addr %s484, 4
        %s486 = scalar_lea.vmem %s1, %s485
        %s487 = smul.u32 %s28, 16
        %s488 = ssub.s32 %s487, 1
        %p489 = scmp.gt.s32.totalorder %s488, 0
        %s490 = scalar_select %p489, %s488, 0
      $region40: #{up_forward.9} parent=31 // pred_fallthru
        _
      // Predicated region
      $region41: #{up_forward.9} parent=31 // pred_check
        %p491 = pneg %p126
      $region42: #{up_forward.9} parent=31 // pred_check_branch
        %493 = sbr.rel (%p491) target = $region44
      $region43: #{up_forward.9} parent=31 // pred_region
        %s494 = smul.u32 %s28, 16
        %s495 = sadd.s32 %s494, 16
        %p496 = scmp.lt.s32.totalorder %s495, 15
        %s497 = scalar_select %p496, %s495, 15
        %p498 = scmp.lt.s32.totalorder %s27, 1
        %s499 = scalar_select %p498, %s27, 1
        %p500 = scmp.lt.s32.totalorder %s497, 15
        %s501 = scalar_select %p500, %s497, 15
        %s502 = smul.addr %s501, 2
        %s503 = smul.addr %s499, 32
        %s504 = sadd.s32 %s502, %s503
        %s505 = smul.addr %s504, 4
        %s506 = scalar_lea.vmem %s2, %s505
        %s507 = smul.u32 %s28, 16
        %s508 = sadd.s32 %s507, 16
        %p509 = scmp.lt.s32.totalorder %s508, 15
        %s510 = scalar_select %p509, %s508, 15
      $region44: #{up_forward.9} parent=31 // pred_fallthru
        _
      // Predicated region
      $region45: #{up_forward.9} parent=31 // pred_check
        %p511 = pneg %p154
      $region46: #{up_forward.9} parent=31 // pred_check_branch
        %513 = sbr.rel (%p511) target = $region48
      $region47: #{up_forward.9} parent=31 // pred_region
        %s514 = smul.u32 16, %s28
        %p515 = scmp.lt.s32.totalorder %s27, 1
        %s516 = scalar_select %p515, %s27, 1
        %p517 = scmp.lt.s32.totalorder %s514, 15
        %s518 = scalar_select %p517, %s514, 15
        %s519 = smul.addr %s516, 16
        %s520 = sadd.s32 %s518, %s519
        %s521 = scalar_lea.vmem %s3, %s520
        %s522 = smul.u32 16, %s28
      $region48: #{up_forward.9} parent=31 // pred_fallthru
        _
      // Predicated region
      $region49: #{up_forward.9} parent=31 // pred_check
        %p523 = pneg %p190
      $region50: #{up_forward.9} parent=31 // pred_check_branch
        %525 = sbr.rel (%p523) target = $region52
      $region51: #{up_forward.9} parent=31 // pred_region
        %s526 = smul.u32 %s28, 16
        %s527 = ssub.s32 %s526, 1
        %p528 = scmp.gt.s32.totalorder %s527, 0
        %s529 = scalar_select %p528, %s527, 0
        %p530 = scmp.lt.s32.totalorder %s27, 1
        %s531 = scalar_select %p530, %s27, 1
        %p532 = scmp.lt.s32.totalorder %s529, 15
        %s533 = scalar_select %p532, %s529, 15
        %s534 = smul.addr %s531, 16
        %s535 = sadd.s32 %s533, %s534
        %s536 = scalar_lea.vmem %s4, %s535
        %s537 = smul.u32 %s28, 16
        %s538 = ssub.s32 %s537, 1
        %p539 = scmp.gt.s32.totalorder %s538, 0
        %s540 = scalar_select %p539, %s538, 0
      $region52: #{up_forward.9} parent=31 // pred_fallthru
        _
      // Predicated region
      $region53: #{up_forward.9} parent=31 // pred_check
        %p541 = pneg %p226
      $region54: #{up_forward.9} parent=31 // pred_check_branch
        %543 = sbr.rel (%p541) target = $region56
      $region55: #{up_forward.9} parent=31 // pred_region
        %s544 = smul.u32 %s28, 16
        %s545 = sadd.s32 %s544, 16
        %p546 = scmp.lt.s32.totalorder %s545, 15
        %s547 = scalar_select %p546, %s545, 15
        %p548 = scmp.lt.s32.totalorder %s27, 1
        %s549 = scalar_select %p548, %s27, 1
        %p550 = scmp.lt.s32.totalorder %s547, 15
        %s551 = scalar_select %p550, %s547, 15
        %s552 = smul.addr %s549, 16
        %s553 = sadd.s32 %s551, %s552
        %s554 = scalar_lea.vmem %s5, %s553
        %s555 = smul.u32 %s28, 16
        %s556 = sadd.s32 %s555, 16
        %p557 = scmp.lt.s32.totalorder %s556, 15
        %s558 = scalar_select %p557, %s556, 15
      $region56: #{up_forward.9} parent=31 // pred_fallthru
        _
      // Predicated region
      $region57: #{up_forward.9} parent=31 // pred_check
        %p559 = pneg %p252
      $region58: #{up_forward.9} parent=31 // pred_check_branch
        %561 = sbr.rel (%p559) target = $region60
      $region59: #{up_forward.9} parent=31 // pred_region
        %p562 = scmp.lt.s32.totalorder %s27, 1
        %s563 = scalar_select %p562, %s27, 1
        %s564 = smul.addr %s563, 2
        %s565 = smul.addr %s564, 4
        %s566 = scalar_lea.vmem %s6, %s565
      $region60: #{up_forward.9} parent=31 // pred_fallthru
        _
    $region32: #{up_forward.9} parent=5 // pred_fallthru
      _
    %p567 = scmp.le.s32.totalorder 1, %s20
    %p568 = scmp.lt.s32.totalorder %s20, 3
    %p569 = pnand %p567, %p568
    %p570 = pneg %p569
    // Predicated region
    $region61: #{up_forward.9} parent=5 // pred_check
      _
    $region62: #{up_forward.9} parent=5 // pred_check_branch
      %572 = sbr.rel (%p569) target = $region64
    $region63: #{up_forward.9} parent=5 // pred_region
      %s573 = ssub.s32 %s20, 1
      %s574 = smul.u32 16, %s30
      %p575 = scmp.lt.s32.totalorder %s29, 1
      %s576 = scalar_select %p575, %s29, 1
      %p577 = scmp.lt.s32.totalorder %s574, 15
      %s578 = scalar_select %p577, %s574, 15
      %s579 = smul.addr %s578, 2
      %s580 = smul.addr %s576, 32
      %s581 = sadd.s32 %s579, %s580
      %s582 = smul.addr %s581, 4
      %s583 = scalar_lea.vmem %s0, %s582
      %p584 = pneg %p60
      %p585 = pneg %p57
      %s586 = smul.u32 %s30, 16
      %s587 = ssub.s32 %s586, 1
      %p588 = scmp.gt.s32.totalorder %s587, 0
      %s589 = scalar_select %p588, %s587, 0
      %p590 = scmp.lt.s32.totalorder %s29, 1
      %s591 = scalar_select %p590, %s29, 1
      %p592 = scmp.lt.s32.totalorder %s589, 15
      %s593 = scalar_select %p592, %s589, 15
      %s594 = smul.addr %s593, 2
      %s595 = smul.addr %s591, 32
      %s596 = sadd.s32 %s594, %s595
      %s597 = smul.addr %s596, 4
      %s598 = scalar_lea.vmem %s1, %s597
      %p599 = pneg %p96
      %p600 = pneg %p93
      %s601 = smul.u32 %s30, 16
      %s602 = sadd.s32 %s601, 16
      %p603 = scmp.lt.s32.totalorder %s602, 15
      %s604 = scalar_select %p603, %s602, 15
      %p605 = scmp.lt.s32.totalorder %s29, 1
      %s606 = scalar_select %p605, %s29, 1
      %p607 = scmp.lt.s32.totalorder %s604, 15
      %s608 = scalar_select %p607, %s604, 15
      %s609 = smul.addr %s608, 2
      %s610 = smul.addr %s606, 32
      %s611 = sadd.s32 %s609, %s610
      %s612 = smul.addr %s611, 4
      %s613 = scalar_lea.vmem %s2, %s612
      %p614 = pneg %p132
      %p615 = pneg %p129
      %s616 = smul.u32 16, %s30
      %p617 = scmp.lt.s32.totalorder %s29, 1
      %s618 = scalar_select %p617, %s29, 1
      %p619 = scmp.lt.s32.totalorder %s616, 15
      %s620 = scalar_select %p619, %s616, 15
      %s621 = smul.addr %s618, 16
      %s622 = sadd.s32 %s620, %s621
      %s623 = scalar_lea.vmem %s3, %s622
      %p624 = pneg %p160
      %p625 = pneg %p157
      %s626 = smul.u32 %s30, 16
      %s627 = ssub.s32 %s626, 1
      %p628 = scmp.gt.s32.totalorder %s627, 0
      %s629 = scalar_select %p628, %s627, 0
      %p630 = scmp.lt.s32.totalorder %s29, 1
      %s631 = scalar_select %p630, %s29, 1
      %p632 = scmp.lt.s32.totalorder %s629, 15
      %s633 = scalar_select %p632, %s629, 15
      %s634 = smul.addr %s631, 16
      %s635 = sadd.s32 %s633, %s634
      %s636 = scalar_lea.vmem %s4, %s635
      %p637 = pneg %p196
      %p638 = pneg %p193
      %s639 = smul.u32 %s30, 16
      %s640 = sadd.s32 %s639, 16
      %p641 = scmp.lt.s32.totalorder %s640, 15
      %s642 = scalar_select %p641, %s640, 15
      %p643 = scmp.lt.s32.totalorder %s29, 1
      %s644 = scalar_select %p643, %s29, 1
      %p645 = scmp.lt.s32.totalorder %s642, 15
      %s646 = scalar_select %p645, %s642, 15
      %s647 = smul.addr %s644, 16
      %s648 = sadd.s32 %s646, %s647
      %s649 = scalar_lea.vmem %s5, %s648
      %p650 = pneg %p232
      %p651 = pneg %p229
      %p652 = scmp.lt.s32.totalorder %s29, 1
      %s653 = scalar_select %p652, %s29, 1
      %s654 = smul.addr %s653, 2
      %s655 = smul.addr %s654, 4
      %s656 = scalar_lea.vmem %s6, %s655
      %p657 = pneg %p258
      %p658 = pneg %p255
      %p659 = pneg %p279
      %p660 = pneg %p276
      %p661 = pneg %p300
      %p662 = pneg %p297
      %p663 = pneg %p321
      %p664 = pneg %p318
      %p665 = pneg %p342
      %p666 = pneg %p339
      %p667 = pneg %p370
      %p668 = pneg %p367
      %s669 = smul.u32 16, %s30
      %p670 = scmp.lt.s32.totalorder %s29, 1
      %s671 = scalar_select %p670, %s29, 1
      %p672 = scmp.lt.s32.totalorder %s669, 15
      %s673 = scalar_select %p672, %s669, 15
      %s674 = smul.addr %s673, 2
      %s675 = smul.addr %s671, 32
      %s676 = sadd.s32 %s674, %s675
      %s677 = smul.addr %s676, 4
      %s678 = scalar_lea.vmem %s11, %s677
      %p679 = pneg %p398
      %p680 = pneg %p395
      %s681 = smul.u32 2, %s30
      %p682 = scmp.lt.s32.totalorder %s29, 1
      %s683 = scalar_select %p682, %s29, 1
      %p684 = scmp.lt.s32.totalorder %s681, 1
      %s685 = scalar_select %p684, %s681, 1
      %s686 = smul.addr %s683, 2
      %s687 = sadd.s32 %s685, %s686
      %s688 = smul.addr %s687, 8
      %s689 = scalar_lea.vmem %s12, %s688
      %p690 = pneg %p426
      %p691 = pneg %p423
      %p692 = scmp.lt.s32.totalorder %s29, 1
      %s693 = scalar_select %p692, %s29, 1
      %p694 = scmp.lt.s32.totalorder %s30, 0
      %s695 = scalar_select %p694, %s30, 0
      %s696 = smul.addr %s695, 2
      %s697 = smul.addr %s693, 2
      %s698 = sadd.s32 %s696, %s697
      %s699 = smul.addr %s698, 8
      %s700 = scalar_lea.vmem %s13, %s699
      %s701 = smul.u32 16, %s30
      %p702 = scmp.lt.s32.totalorder %s29, 1
      %s703 = scalar_select %p702, %s29, 1
      %p704 = scmp.lt.s32.totalorder %s701, 15
      %s705 = scalar_select %p704, %s701, 15
      %s706 = smul.addr %s705, 2
      %s707 = smul.addr %s703, 32
      %s708 = sadd.s32 %s706, %s707
      %s709 = smul.addr %s708, 4
      %s710 = scalar_lea.vmem %s0, %s709
      %s711 = smul.u32 16, %s30
      %s712 = smul.u32 %s30, 16
      %s713 = ssub.s32 %s712, 1
      %p714 = scmp.gt.s32.totalorder %s713, 0
      %s715 = scalar_select %p714, %s713, 0
      %p716 = scmp.lt.s32.totalorder %s29, 1
      %s717 = scalar_select %p716, %s29, 1
      %p718 = scmp.lt.s32.totalorder %s715, 15
      %s719 = scalar_select %p718, %s715, 15
      %s720 = smul.addr %s719, 2
      %s721 = smul.addr %s717, 32
      %s722 = sadd.s32 %s720, %s721
      %s723 = smul.addr %s722, 4
      %s724 = scalar_lea.vmem %s1, %s723
      %s725 = smul.u32 %s30, 16
      %s726 = ssub.s32 %s725, 1
      %p727 = scmp.gt.s32.totalorder %s726, 0
      %s728 = scalar_select %p727, %s726, 0
      %s729 = smul.u32 %s30, 16
      %s730 = sadd.s32 %s729, 16
      %p731 = scmp.lt.s32.totalorder %s730, 15
      %s732 = scalar_select %p731, %s730, 15
      %p733 = scmp.lt.s32.totalorder %s29, 1
      %s734 = scalar_select %p733, %s29, 1
      %p735 = scmp.lt.s32.totalorder %s732, 15
      %s736 = scalar_select %p735, %s732, 15
      %s737 = smul.addr %s736, 2
      %s738 = smul.addr %s734, 32
      %s739 = sadd.s32 %s737, %s738
      %s740 = smul.addr %s739, 4
      %s741 = scalar_lea.vmem %s2, %s740
      %s742 = smul.u32 %s30, 16
      %s743 = sadd.s32 %s742, 16
      %p744 = scmp.lt.s32.totalorder %s743, 15
      %s745 = scalar_select %p744, %s743, 15
      %s746 = smul.u32 16, %s30
      %p747 = scmp.lt.s32.totalorder %s29, 1
      %s748 = scalar_select %p747, %s29, 1
      %p749 = scmp.lt.s32.totalorder %s746, 15
      %s750 = scalar_select %p749, %s746, 15
      %s751 = smul.addr %s748, 16
      %s752 = sadd.s32 %s750, %s751
      %s753 = scalar_lea.vmem %s3, %s752
      %s754 = smul.u32 16, %s30
      %s755 = smul.u32 %s30, 16
      %s756 = ssub.s32 %s755, 1
      %p757 = scmp.gt.s32.totalorder %s756, 0
      %s758 = scalar_select %p757, %s756, 0
      %p759 = scmp.lt.s32.totalorder %s29, 1
      %s760 = scalar_select %p759, %s29, 1
      %p761 = scmp.lt.s32.totalorder %s758, 15
      %s762 = scalar_select %p761, %s758, 15
      %s763 = smul.addr %s760, 16
      %s764 = sadd.s32 %s762, %s763
      %s765 = scalar_lea.vmem %s4, %s764
      %s766 = smul.u32 %s30, 16
      %s767 = ssub.s32 %s766, 1
      %p768 = scmp.gt.s32.totalorder %s767, 0
      %s769 = scalar_select %p768, %s767, 0
      %s770 = smul.u32 %s30, 16
      %s771 = sadd.s32 %s770, 16
      %p772 = scmp.lt.s32.totalorder %s771, 15
      %s773 = scalar_select %p772, %s771, 15
      %p774 = scmp.lt.s32.totalorder %s29, 1
      %s775 = scalar_select %p774, %s29, 1
      %p776 = scmp.lt.s32.totalorder %s773, 15
      %s777 = scalar_select %p776, %s773, 15
      %s778 = smul.addr %s775, 16
      %s779 = sadd.s32 %s777, %s778
      %s780 = scalar_lea.vmem %s5, %s779
      %s781 = smul.u32 %s30, 16
      %s782 = sadd.s32 %s781, 16
      %p783 = scmp.lt.s32.totalorder %s782, 15
      %s784 = scalar_select %p783, %s782, 15
      %p785 = scmp.lt.s32.totalorder %s29, 1
      %s786 = scalar_select %p785, %s29, 1
      %s787 = smul.addr %s786, 2
      %s788 = smul.addr %s787, 4
      %s789 = scalar_lea.vmem %s6, %s788
      %s790 = smul.u32 16, %s30
      %p791 = scmp.lt.s32.totalorder %s29, 1
      %s792 = scalar_select %p791, %s29, 1
      %p793 = scmp.lt.s32.totalorder %s790, 15
      %s794 = scalar_select %p793, %s790, 15
      %s795 = smul.addr %s794, 2
      %s796 = smul.addr %s792, 32
      %s797 = sadd.s32 %s795, %s796
      %s798 = smul.addr %s797, 4
      %s799 = scalar_lea.vmem %s11, %s798
      %s800 = smul.u32 16, %s30
      %s801 = smul.u32 2, %s30
      %p802 = scmp.lt.s32.totalorder %s29, 1
      %s803 = scalar_select %p802, %s29, 1
      %p804 = scmp.lt.s32.totalorder %s801, 1
      %s805 = scalar_select %p804, %s801, 1
      %s806 = smul.addr %s803, 2
      %s807 = sadd.s32 %s805, %s806
      %s808 = smul.addr %s807, 8
      %s809 = scalar_lea.vmem %s12, %s808
      %s810 = smul.u32 2, %s30
      %p811 = scmp.lt.s32.totalorder %s29, 1
      %s812 = scalar_select %p811, %s29, 1
      %p813 = scmp.lt.s32.totalorder %s30, 0
      %s814 = scalar_select %p813, %s30, 0
      %s815 = smul.addr %s814, 2
      %s816 = smul.addr %s812, 2
      %s817 = sadd.s32 %s815, %s816
      %s818 = smul.addr %s817, 8
      %s819 = scalar_lea.vmem %s13, %s818
      %v821 = vld [vmem:[%s710] sm:$0xf]
      %v822 = vld [vmem:[%s710 + $0x4] sm:$0xf]
      %v823 = vld [vmem:[%s710 + $0x8] sm:$0xf]
      %v824 = vld [vmem:[%s710 + $0xc] sm:$0xf]
      %v825 = vld [vmem:[%s710 + $0x10] sm:$0xf]
      %v826 = vld [vmem:[%s710 + $0x14] sm:$0xf]
      %v827 = vld [vmem:[%s710 + $0x18] sm:$0xf]
      %v828 = vld [vmem:[%s710 + $0x1c] sm:$0xf]
      %v829 = vld [vmem:[%s710 + $0x20] sm:$0xf]
      %v830 = vld [vmem:[%s710 + $0x24] sm:$0xf]
      %v831 = vld [vmem:[%s710 + $0x28] sm:$0xf]
      %v832 = vld [vmem:[%s710 + $0x2c] sm:$0xf]
      %v833 = vld [vmem:[%s710 + $0x30] sm:$0xf]
      %v834 = vld [vmem:[%s710 + $0x34] sm:$0xf]
      %v835 = vld [vmem:[%s710 + $0x38] sm:$0xf]
      %v836 = vld [vmem:[%s710 + $0x3c] sm:$0xf]
      %v837 = vld [vmem:[%s710 + $0x40] sm:$0xf]
      %v838 = vld [vmem:[%s710 + $0x44] sm:$0xf]
      %v839 = vld [vmem:[%s710 + $0x48] sm:$0xf]
      %v840 = vld [vmem:[%s710 + $0x4c] sm:$0xf]
      %v841 = vld [vmem:[%s710 + $0x50] sm:$0xf]
      %v842 = vld [vmem:[%s710 + $0x54] sm:$0xf]
      %v843 = vld [vmem:[%s710 + $0x58] sm:$0xf]
      %v844 = vld [vmem:[%s710 + $0x5c] sm:$0xf]
      %v845 = vld [vmem:[%s710 + $0x60] sm:$0xf]
      %v846 = vld [vmem:[%s710 + $0x64] sm:$0xf]
      %v847 = vld [vmem:[%s710 + $0x68] sm:$0xf]
      %v848 = vld [vmem:[%s710 + $0x6c] sm:$0xf]
      %v849 = vld [vmem:[%s710 + $0x70] sm:$0xf]
      %v850 = vld [vmem:[%s710 + $0x74] sm:$0xf]
      %v851 = vld [vmem:[%s710 + $0x78] sm:$0xf]
      %v852 = vld [vmem:[%s710 + $0x7c] sm:$0xf]
      %v853 = vunpack.c.l.bf16 %v821
      %v854 = vunpack.c.l.bf16 %v822
      %v855 = vunpack.c.l.bf16 %v823
      %v856 = vunpack.c.l.bf16 %v824
      %v857 = vunpack.c.l.bf16 %v825
      %v858 = vunpack.c.l.bf16 %v826
      %v859 = vunpack.c.l.bf16 %v827
      %v860 = vunpack.c.l.bf16 %v828
      %v861 = vunpack.c.l.bf16 %v829
      %v862 = vunpack.c.l.bf16 %v830
      %v863 = vunpack.c.l.bf16 %v831
      %v864 = vunpack.c.l.bf16 %v832
      %v865 = vunpack.c.l.bf16 %v833
      %v866 = vunpack.c.l.bf16 %v834
      %v867 = vunpack.c.l.bf16 %v835
      %v868 = vunpack.c.l.bf16 %v836
      %v869 = vunpack.c.l.bf16 %v837
      %v870 = vunpack.c.l.bf16 %v838
      %v871 = vunpack.c.l.bf16 %v839
      %v872 = vunpack.c.l.bf16 %v840
      %v873 = vunpack.c.l.bf16 %v841
      %v874 = vunpack.c.l.bf16 %v842
      %v875 = vunpack.c.l.bf16 %v843
      %v876 = vunpack.c.l.bf16 %v844
      %v877 = vunpack.c.l.bf16 %v845
      %v878 = vunpack.c.l.bf16 %v846
      %v879 = vunpack.c.l.bf16 %v847
      %v880 = vunpack.c.l.bf16 %v848
      %v881 = vunpack.c.l.bf16 %v849
      %v882 = vunpack.c.l.bf16 %v850
      %v883 = vunpack.c.l.bf16 %v851
      %v884 = vunpack.c.l.bf16 %v852
      %v885 = vld [vmem:[%s724] sm:$0xf]
      %v886 = vld [vmem:[%s724 + $0x4] sm:$0xf]
      %v887 = vunpack.c.l.bf16 %v885
      %v888 = vunpack.c.l.bf16 %v886
      %v889 = vld [vmem:[%s741] sm:$0xf]
      %v890 = vld [vmem:[%s741 + $0x4] sm:$0xf]
      %v891 = vunpack.c.l.bf16 %v889
      %v892 = vunpack.c.l.bf16 %v890
      %v893 = vld [vmem:[%s789] sm:$0xf]
      %v894 = vld [vmem:[%s789 + $0x4] sm:$0xf]
      %v895 = vunpack.c.l.bf16 %v893
      %v896 = vunpack.c.l.bf16 %v894
      %v897 = vld [vmem:[%s753] sm:$0x1]
      %v898 = vld [vmem:[%s753 + $0x1] sm:$0x1]
      %v899 = vld [vmem:[%s753 + $0x2] sm:$0x1]
      %v900 = vld [vmem:[%s753 + $0x3] sm:$0x1]
      %v901 = vld [vmem:[%s753 + $0x4] sm:$0x1]
      %v902 = vld [vmem:[%s753 + $0x5] sm:$0x1]
      %v903 = vld [vmem:[%s753 + $0x6] sm:$0x1]
      %v904 = vld [vmem:[%s753 + $0x7] sm:$0x1]
      %v905 = vld [vmem:[%s753 + $0x8] sm:$0x1]
      %v906 = vld [vmem:[%s753 + $0x9] sm:$0x1]
      %v907 = vld [vmem:[%s753 + $0xa] sm:$0x1]
      %v908 = vld [vmem:[%s753 + $0xb] sm:$0x1]
      %v909 = vld [vmem:[%s753 + $0xc] sm:$0x1]
      %v910 = vld [vmem:[%s753 + $0xd] sm:$0x1]
      %v911 = vld [vmem:[%s753 + $0xe] sm:$0x1]
      %v912 = vld [vmem:[%s753 + $0xf] sm:$0x1]
      %v913 = vunpack.c.l.bf16 %v897
      %v914 = vunpack.c.l.bf16 %v898
      %v915 = vunpack.c.l.bf16 %v899
      %v916 = vunpack.c.l.bf16 %v900
      %v917 = vunpack.c.l.bf16 %v901
      %v918 = vunpack.c.l.bf16 %v902
      %v919 = vunpack.c.l.bf16 %v903
      %v920 = vunpack.c.l.bf16 %v904
      %v921 = vunpack.c.l.bf16 %v905
      %v922 = vunpack.c.l.bf16 %v906
      %v923 = vunpack.c.l.bf16 %v907
      %v924 = vunpack.c.l.bf16 %v908
      %v925 = vunpack.c.l.bf16 %v909
      %v926 = vunpack.c.l.bf16 %v910
      %v927 = vunpack.c.l.bf16 %v911
      %v928 = vunpack.c.l.bf16 %v912
      %v929 = vperm.slane %v913, 0
      %v930 = vperm.slane %v914, 0
      %v931 = vperm.slane %v915, 0
      %v932 = vperm.slane %v916, 0
      %v933 = vperm.slane %v917, 0
      %v934 = vperm.slane %v918, 0
      %v935 = vperm.slane %v919, 0
      %v936 = vperm.slane %v920, 0
      %v937 = vperm.slane %v921, 0
      %v938 = vperm.slane %v922, 0
      %v939 = vperm.slane %v923, 0
      %v940 = vperm.slane %v924, 0
      %v941 = vperm.slane %v925, 0
      %v942 = vperm.slane %v926, 0
      %v943 = vperm.slane %v927, 0
      %v944 = vperm.slane %v928, 0
      %v945 = vmul.f32 %v853, %v929
      %v946 = vmul.f32 %v854, %v929
      %v947 = vmul.f32 %v855, %v930
      %v948 = vmul.f32 %v856, %v930
      %v949 = vmul.f32 %v857, %v931
      %v950 = vmul.f32 %v858, %v931
      %v951 = vmul.f32 %v859, %v932
      %v952 = vmul.f32 %v860, %v932
      %v953 = vmul.f32 %v861, %v933
      %v954 = vmul.f32 %v862, %v933
      %v955 = vmul.f32 %v863, %v934
      %v956 = vmul.f32 %v864, %v934
      %v957 = vmul.f32 %v865, %v935
      %v958 = vmul.f32 %v866, %v935
      %v959 = vmul.f32 %v867, %v936
      %v960 = vmul.f32 %v868, %v936
      %v961 = vmul.f32 %v869, %v937
      %v962 = vmul.f32 %v870, %v937
      %v963 = vmul.f32 %v871, %v938
      %v964 = vmul.f32 %v872, %v938
      %v965 = vmul.f32 %v873, %v939
      %v966 = vmul.f32 %v874, %v939
      %v967 = vmul.f32 %v875, %v940
      %v968 = vmul.f32 %v876, %v940
      %v969 = vmul.f32 %v877, %v941
      %v970 = vmul.f32 %v878, %v941
      %v971 = vmul.f32 %v879, %v942
      %v972 = vmul.f32 %v880, %v942
      %v973 = vmul.f32 %v881, %v943
      %v974 = vmul.f32 %v882, %v943
      %v975 = vmul.f32 %v883, %v944
      %v976 = vmul.f32 %v884, %v944
      %v977 = vmul.f32 %v945, %v895
      %v978 = vmul.f32 %v946, %v896
      %v979 = vmul.f32 %v947, %v895
      %v980 = vmul.f32 %v948, %v896
      %v981 = vmul.f32 %v949, %v895
      %v982 = vmul.f32 %v950, %v896
      %v983 = vmul.f32 %v951, %v895
      %v984 = vmul.f32 %v952, %v896
      %v985 = vmul.f32 %v953, %v895
      %v986 = vmul.f32 %v954, %v896
      %v987 = vmul.f32 %v955, %v895
      %v988 = vmul.f32 %v956, %v896
      %v989 = vmul.f32 %v957, %v895
      %v990 = vmul.f32 %v958, %v896
      %v991 = vmul.f32 %v959, %v895
      %v992 = vmul.f32 %v960, %v896
      %v993 = vmul.f32 %v961, %v895
      %v994 = vmul.f32 %v962, %v896
      %v995 = vmul.f32 %v963, %v895
      %v996 = vmul.f32 %v964, %v896
      %v997 = vmul.f32 %v965, %v895
      %v998 = vmul.f32 %v966, %v896
      %v999 = vmul.f32 %v967, %v895
      %v1000 = vmul.f32 %v968, %v896
      %v1001 = vmul.f32 %v969, %v895
      %v1002 = vmul.f32 %v970, %v896
      %v1003 = vmul.f32 %v971, %v895
      %v1004 = vmul.f32 %v972, %v896
      %v1005 = vmul.f32 %v973, %v895
      %v1006 = vmul.f32 %v974, %v896
      %v1007 = vmul.f32 %v975, %v895
      %v1008 = vmul.f32 %v976, %v896
      %v1009 = vld [vmem:[%s765] sm:$0x1]
      %v1010 = vunpack.c.l.bf16 %v1009
      %v1011 = vperm.slane %v1010, 0
      %v1012 = vmul.f32 %v887, %v1011
      %v1013 = vmul.f32 %v888, %v1011
      %v1014 = vmul.f32 %v1012, %v895
      %v1015 = vmul.f32 %v1013, %v896
      %v1016 = vld [vmem:[%s780] sm:$0x1]
      %v1017 = vunpack.c.l.bf16 %v1016
      %v1018 = vperm.slane %v1017, 0
      %v1019 = vmul.f32 %v891, %v1018
      %v1020 = vmul.f32 %v892, %v1018
      %v1021 = vmul.f32 %v1019, %v895
      %v1022 = vmul.f32 %v1020, %v896
      %p1023 = scmp.gt.s32.totalorder %s30, 0
      %s1024 = scalar_select %p1023, 1.0, 0.0
      %v1025 = vstv %s1024
      %v1026 = vmul.f32 %v1014, %v1025
      %v1027 = vmul.f32 %v1015, %v1025
      %s1028 = smul.u32 %s30, 16
      %s1029 = sadd.s32 %s1028, 16
      %p1030 = scmp.lt.s32.totalorder %s1029, 16
      %s1031 = scalar_select %p1030, 1.0, 0.0
      %v1032 = vstv %s1031
      %v1033 = vmul.f32 %v1021, %v1032
      %v1034 = vmul.f32 %v1022, %v1032
      %vm1071 = vcmask 1040384
      %v1072 = vrot.slane %v1026, 7
      %v1073 = vrot.slane %v1027, 7
      %v1074 = vsel %vm1071, %v1072, %v1073
      %v1075 = vrot.slane %v977, 7
      %v1076 = vrot.slane %v978, 7
      %v1077 = vsel %vm1071, %v1075, %v1076
      %v1078 = vrot.slane %v979, 7
      %v1079 = vrot.slane %v980, 7
      %v1080 = vsel %vm1071, %v1078, %v1079
      %v1081 = vrot.slane %v981, 7
      %v1082 = vrot.slane %v982, 7
      %v1083 = vsel %vm1071, %v1081, %v1082
      %v1084 = vrot.slane %v983, 7
      %v1085 = vrot.slane %v984, 7
      %v1086 = vsel %vm1071, %v1084, %v1085
      %v1087 = vrot.slane %v985, 7
      %v1088 = vrot.slane %v986, 7
      %v1089 = vsel %vm1071, %v1087, %v1088
      %v1090 = vrot.slane %v987, 7
      %v1091 = vrot.slane %v988, 7
      %v1092 = vsel %vm1071, %v1090, %v1091
      %v1093 = vrot.slane %v989, 7
      %v1094 = vrot.slane %v990, 7
      %v1095 = vsel %vm1071, %v1093, %v1094
      %v1096 = vrot.slane %v991, 7
      %v1097 = vrot.slane %v992, 7
      %v1098 = vsel %vm1071, %v1096, %v1097
      %v1099 = vrot.slane %v993, 7
      %v1100 = vrot.slane %v994, 7
      %v1101 = vsel %vm1071, %v1099, %v1100
      %v1102 = vrot.slane %v995, 7
      %v1103 = vrot.slane %v996, 7
      %v1104 = vsel %vm1071, %v1102, %v1103
      %v1105 = vrot.slane %v997, 7
      %v1106 = vrot.slane %v998, 7
      %v1107 = vsel %vm1071, %v1105, %v1106
      %v1108 = vrot.slane %v999, 7
      %v1109 = vrot.slane %v1000, 7
      %v1110 = vsel %vm1071, %v1108, %v1109
      %v1111 = vrot.slane %v1001, 7
      %v1112 = vrot.slane %v1002, 7
      %v1113 = vsel %vm1071, %v1111, %v1112
      %v1114 = vrot.slane %v1003, 7
      %v1115 = vrot.slane %v1004, 7
      %v1116 = vsel %vm1071, %v1114, %v1115
      %v1117 = vrot.slane %v1005, 7
      %v1118 = vrot.slane %v1006, 7
      %v1119 = vsel %vm1071, %v1117, %v1118
      %v1120 = vrot.slane %v1007, 7
      %v1121 = vrot.slane %v1008, 7
      %v1122 = vsel %vm1071, %v1120, %v1121
      %v1123 = vrot.slane %v1033, 7
      %v1124 = vrot.slane %v1034, 7
      %v1125 = vsel %vm1071, %v1123, %v1124
      %v1180 = vsel %vm1071, 0.0, %v1072
      %v1181 = vsel %vm1071, 0.0, %v1075
      %v1182 = vsel %vm1071, 0.0, %v1078
      %v1183 = vsel %vm1071, 0.0, %v1081
      %v1184 = vsel %vm1071, 0.0, %v1084
      %v1185 = vsel %vm1071, 0.0, %v1087
      %v1186 = vsel %vm1071, 0.0, %v1090
      %v1187 = vsel %vm1071, 0.0, %v1093
      %v1188 = vsel %vm1071, 0.0, %v1096
      %v1189 = vsel %vm1071, 0.0, %v1099
      %v1190 = vsel %vm1071, 0.0, %v1102
      %v1191 = vsel %vm1071, 0.0, %v1105
      %v1192 = vsel %vm1071, 0.0, %v1108
      %v1193 = vsel %vm1071, 0.0, %v1111
      %v1194 = vsel %vm1071, 0.0, %v1114
      %v1195 = vsel %vm1071, 0.0, %v1117
      %v1196 = vsel %vm1071, 0.0, %v1120
      %v1197 = vsel %vm1071, 0.0, %v1123
      %v1198 = vsel %vm1071, %v1073, 0.0
      %v1199 = vsel %vm1071, %v1076, 0.0
      %v1200 = vsel %vm1071, %v1079, 0.0
      %v1201 = vsel %vm1071, %v1082, 0.0
      %v1202 = vsel %vm1071, %v1085, 0.0
      %v1203 = vsel %vm1071, %v1088, 0.0
      %v1204 = vsel %vm1071, %v1091, 0.0
      %v1205 = vsel %vm1071, %v1094, 0.0
      %v1206 = vsel %vm1071, %v1097, 0.0
      %v1207 = vsel %vm1071, %v1100, 0.0
      %v1208 = vsel %vm1071, %v1103, 0.0
      %v1209 = vsel %vm1071, %v1106, 0.0
      %v1210 = vsel %vm1071, %v1109, 0.0
      %v1211 = vsel %vm1071, %v1112, 0.0
      %v1212 = vsel %vm1071, %v1115, 0.0
      %v1213 = vsel %vm1071, %v1118, 0.0
      %v1214 = vsel %vm1071, %v1121, 0.0
      %v1215 = vsel %vm1071, %v1124, 0.0
      %vm1216 = vcmask 31744
      %1217 = vst.msk [vmem:[#allocation2] sm:$0xff] %vm1216, %v1180
      %1218 = vst.msk [vmem:[#allocation2 + $0x8] sm:$0xff] %vm1216, %v1074
      %vm1219 = vcmask 25600
      %1220 = vst.msk [vmem:[#allocation2 + $0x10] sm:$0x3] %vm1219, %v1198
      %1221 = vst.msk [vmem:[#allocation2 + $0x18] sm:$0xff] %vm1216, %v1181
      %1222 = vst.msk [vmem:[#allocation2 + $0x20] sm:$0xff] %vm1216, %v1077
      %1223 = vst.msk [vmem:[#allocation2 + $0x28] sm:$0x3] %vm1219, %v1199
      %1224 = vst.msk [vmem:[#allocation2 + $0x30] sm:$0xff] %vm1216, %v1182
      %1225 = vst.msk [vmem:[#allocation2 + $0x38] sm:$0xff] %vm1216, %v1080
      %1226 = vst.msk [vmem:[#allocation2 + $0x40] sm:$0x3] %vm1219, %v1200
      %1227 = vst.msk [vmem:[#allocation2 + $0x48] sm:$0xff] %vm1216, %v1183
      %1228 = vst.msk [vmem:[#allocation2 + $0x50] sm:$0xff] %vm1216, %v1083
      %1229 = vst.msk [vmem:[#allocation2 + $0x58] sm:$0x3] %vm1219, %v1201
      %1230 = vst.msk [vmem:[#allocation2 + $0x60] sm:$0xff] %vm1216, %v1184
      %1231 = vst.msk [vmem:[#allocation2 + $0x68] sm:$0xff] %vm1216, %v1086
      %1232 = vst.msk [vmem:[#allocation2 + $0x70] sm:$0x3] %vm1219, %v1202
      %1233 = vst.msk [vmem:[#allocation2 + $0x78] sm:$0xff] %vm1216, %v1185
      %1234 = vst.msk [vmem:[#allocation2 + $0x80] sm:$0xff] %vm1216, %v1089
      %1235 = vst.msk [vmem:[#allocation2 + $0x88] sm:$0x3] %vm1219, %v1203
      %1236 = vst.msk [vmem:[#allocation2 + $0x90] sm:$0xff] %vm1216, %v1186
      %1237 = vst.msk [vmem:[#allocation2 + $0x98] sm:$0xff] %vm1216, %v1092
      %1238 = vst.msk [vmem:[#allocation2 + $0xa0] sm:$0x3] %vm1219, %v1204
      %1239 = vst.msk [vmem:[#allocation2 + $0xa8] sm:$0xff] %vm1216, %v1187
      %1240 = vst.msk [vmem:[#allocation2 + $0xb0] sm:$0xff] %vm1216, %v1095
      %1241 = vst.msk [vmem:[#allocation2 + $0xb8] sm:$0x3] %vm1219, %v1205
      %1242 = vst.msk [vmem:[#allocation2 + $0xc0] sm:$0xff] %vm1216, %v1188
      %1243 = vst.msk [vmem:[#allocation2 + $0xc8] sm:$0xff] %vm1216, %v1098
      %1244 = vst.msk [vmem:[#allocation2 + $0xd0] sm:$0x3] %vm1219, %v1206
      %1245 = vst.msk [vmem:[#allocation2 + $0xd8] sm:$0xff] %vm1216, %v1189
      %1246 = vst.msk [vmem:[#allocation2 + $0xe0] sm:$0xff] %vm1216, %v1101
      %1247 = vst.msk [vmem:[#allocation2 + $0xe8] sm:$0x3] %vm1219, %v1207
      %1248 = vst.msk [vmem:[#allocation2 + $0xf0] sm:$0xff] %vm1216, %v1190
      %1249 = vst.msk [vmem:[#allocation2 + $0xf8] sm:$0xff] %vm1216, %v1104
      %1250 = vst.msk [vmem:[#allocation2 + $0x100] sm:$0x3] %vm1219, %v1208
      %1251 = vst.msk [vmem:[#allocation2 + $0x108] sm:$0xff] %vm1216, %v1191
      %1252 = vst.msk [vmem:[#allocation2 + $0x110] sm:$0xff] %vm1216, %v1107
      %1253 = vst.msk [vmem:[#allocation2 + $0x118] sm:$0x3] %vm1219, %v1209
      %1254 = vst.msk [vmem:[#allocation2 + $0x120] sm:$0xff] %vm1216, %v1192
      %1255 = vst.msk [vmem:[#allocation2 + $0x128] sm:$0xff] %vm1216, %v1110
      %1256 = vst.msk [vmem:[#allocation2 + $0x130] sm:$0x3] %vm1219, %v1210
      %1257 = vst.msk [vmem:[#allocation2 + $0x138] sm:$0xff] %vm1216, %v1193
      %1258 = vst.msk [vmem:[#allocation2 + $0x140] sm:$0xff] %vm1216, %v1113
      %1259 = vst.msk [vmem:[#allocation2 + $0x148] sm:$0x3] %vm1219, %v1211
      %1260 = vst.msk [vmem:[#allocation2 + $0x150] sm:$0xff] %vm1216, %v1194
      %1261 = vst.msk [vmem:[#allocation2 + $0x158] sm:$0xff] %vm1216, %v1116
      %1262 = vst.msk [vmem:[#allocation2 + $0x160] sm:$0x3] %vm1219, %v1212
      %1263 = vst.msk [vmem:[#allocation2 + $0x168] sm:$0xff] %vm1216, %v1195
      %1264 = vst.msk [vmem:[#allocation2 + $0x170] sm:$0xff] %vm1216, %v1119
      %1265 = vst.msk [vmem:[#allocation2 + $0x178] sm:$0x3] %vm1219, %v1213
      %1266 = vst.msk [vmem:[#allocation2 + $0x180] sm:$0xff] %vm1216, %v1196
      %1267 = vst.msk [vmem:[#allocation2 + $0x188] sm:$0xff] %vm1216, %v1122
      %1268 = vst.msk [vmem:[#allocation2 + $0x190] sm:$0x3] %vm1219, %v1214
      %1269 = vst.msk [vmem:[#allocation2 + $0x198] sm:$0xff] %vm1216, %v1197
      %1270 = vst.msk [vmem:[#allocation2 + $0x1a0] sm:$0xff] %vm1216, %v1125
      %1271 = vst.msk [vmem:[#allocation2 + $0x1a8] sm:$0x3] %vm1219, %v1215
      %v1272 = vld [vmem:[%s7] sm:$0x1]
      %v1273 = vld [vmem:[#allocation2] sm:$0xff]
      %v1274 = vld [vmem:[#allocation2 + $0x8] sm:$0xff]
      %v1275 = vld [vmem:[#allocation2 + $0x18] sm:$0xff]
      %v1276 = vld [vmem:[#allocation2 + $0x20] sm:$0xff]
      %v1277 = vld [vmem:[#allocation2 + $0x30] sm:$0xff]
      %v1278 = vld [vmem:[#allocation2 + $0x38] sm:$0xff]
      %v1279 = vld [vmem:[#allocation2 + $0x48] sm:$0xff]
      %v1280 = vld [vmem:[#allocation2 + $0x50] sm:$0xff]
      %v1281 = vld [vmem:[#allocation2 + $0x60] sm:$0xff]
      %v1282 = vld [vmem:[#allocation2 + $0x68] sm:$0xff]
      %v1283 = vld [vmem:[#allocation2 + $0x78] sm:$0xff]
      %v1284 = vld [vmem:[#allocation2 + $0x80] sm:$0xff]
      %v1285 = vld [vmem:[#allocation2 + $0x90] sm:$0xff]
      %v1286 = vld [vmem:[#allocation2 + $0x98] sm:$0xff]
      %v1287 = vld [vmem:[#allocation2 + $0xa8] sm:$0xff]
      %v1288 = vld [vmem:[#allocation2 + $0xb0] sm:$0xff]
      %v1289 = vld [vmem:[#allocation2 + $0xc0] sm:$0xff]
      %v1290 = vld [vmem:[#allocation2 + $0xc8] sm:$0xff]
      %v1291 = vld [vmem:[#allocation2 + $0xd8] sm:$0xff]
      %v1292 = vld [vmem:[#allocation2 + $0xe0] sm:$0xff]
      %v1293 = vld [vmem:[#allocation2 + $0xf0] sm:$0xff]
      %v1294 = vld [vmem:[#allocation2 + $0xf8] sm:$0xff]
      %v1295 = vld [vmem:[#allocation2 + $0x108] sm:$0xff]
      %v1296 = vld [vmem:[#allocation2 + $0x110] sm:$0xff]
      %v1297 = vld [vmem:[#allocation2 + $0x120] sm:$0xff]
      %v1298 = vld [vmem:[#allocation2 + $0x128] sm:$0xff]
      %v1299 = vld [vmem:[#allocation2 + $0x138] sm:$0xff]
      %v1300 = vld [vmem:[#allocation2 + $0x140] sm:$0xff]
      %v1301 = vld [vmem:[#allocation2 + $0x150] sm:$0xff]
      %v1302 = vld [vmem:[#allocation2 + $0x158] sm:$0xff]
      %v1303 = vld [vmem:[#allocation2 + $0x168] sm:$0xff]
      %v1304 = vld [vmem:[#allocation2 + $0x170] sm:$0xff]
      %v1305 = vperm.slane %v1272, 0
      %v1306 = vmul.f32 %v1273, %v1305
      %v1307 = vmul.f32 %v1274, %v1305
      %v1308 = vmul.f32 %v1275, %v1305
      %v1309 = vmul.f32 %v1276, %v1305
      %v1310 = vmul.f32 %v1277, %v1305
      %v1311 = vmul.f32 %v1278, %v1305
      %v1312 = vmul.f32 %v1279, %v1305
      %v1313 = vmul.f32 %v1280, %v1305
      %v1314 = vmul.f32 %v1281, %v1305
      %v1315 = vmul.f32 %v1282, %v1305
      %v1316 = vmul.f32 %v1283, %v1305
      %v1317 = vmul.f32 %v1284, %v1305
      %v1318 = vmul.f32 %v1285, %v1305
      %v1319 = vmul.f32 %v1286, %v1305
      %v1320 = vmul.f32 %v1287, %v1305
      %v1321 = vmul.f32 %v1288, %v1305
      %v1322 = vmul.f32 %v1289, %v1305
      %v1323 = vmul.f32 %v1290, %v1305
      %v1324 = vmul.f32 %v1291, %v1305
      %v1325 = vmul.f32 %v1292, %v1305
      %v1326 = vmul.f32 %v1293, %v1305
      %v1327 = vmul.f32 %v1294, %v1305
      %v1328 = vmul.f32 %v1295, %v1305
      %v1329 = vmul.f32 %v1296, %v1305
      %v1330 = vmul.f32 %v1297, %v1305
      %v1331 = vmul.f32 %v1298, %v1305
      %v1332 = vmul.f32 %v1299, %v1305
      %v1333 = vmul.f32 %v1300, %v1305
      %v1334 = vmul.f32 %v1301, %v1305
      %v1335 = vmul.f32 %v1302, %v1305
      %v1336 = vmul.f32 %v1303, %v1305
      %v1337 = vmul.f32 %v1304, %v1305
      %v1338 = vadd.f32 %v1306, 0.0
      %v1339 = vadd.f32 %v1307, 0.0
      %v1340 = vadd.f32 %v1308, 0.0
      %v1341 = vadd.f32 %v1309, 0.0
      %v1342 = vadd.f32 %v1310, 0.0
      %v1343 = vadd.f32 %v1311, 0.0
      %v1344 = vadd.f32 %v1312, 0.0
      %v1345 = vadd.f32 %v1313, 0.0
      %v1346 = vadd.f32 %v1314, 0.0
      %v1347 = vadd.f32 %v1315, 0.0
      %v1348 = vadd.f32 %v1316, 0.0
      %v1349 = vadd.f32 %v1317, 0.0
      %v1350 = vadd.f32 %v1318, 0.0
      %v1351 = vadd.f32 %v1319, 0.0
      %v1352 = vadd.f32 %v1320, 0.0
      %v1353 = vadd.f32 %v1321, 0.0
      %v1354 = vadd.f32 %v1322, 0.0
      %v1355 = vadd.f32 %v1323, 0.0
      %v1356 = vadd.f32 %v1324, 0.0
      %v1357 = vadd.f32 %v1325, 0.0
      %v1358 = vadd.f32 %v1326, 0.0
      %v1359 = vadd.f32 %v1327, 0.0
      %v1360 = vadd.f32 %v1328, 0.0
      %v1361 = vadd.f32 %v1329, 0.0
      %v1362 = vadd.f32 %v1330, 0.0
      %v1363 = vadd.f32 %v1331, 0.0
      %v1364 = vadd.f32 %v1332, 0.0
      %v1365 = vadd.f32 %v1333, 0.0
      %v1366 = vadd.f32 %v1334, 0.0
      %v1367 = vadd.f32 %v1335, 0.0
      %v1368 = vadd.f32 %v1336, 0.0
      %v1369 = vadd.f32 %v1337, 0.0
      %v1370 = vld [vmem:[%s7 + $0x1] sm:$0x1]
      %v1371 = vld [vmem:[#allocation2 + $0x1] sm:$0xff]
      %v1372 = vld [vmem:[#allocation2 + $0x9] sm:$0xff]
      %v1373 = vld [vmem:[#allocation2 + $0x19] sm:$0xff]
      %v1374 = vld [vmem:[#allocation2 + $0x21] sm:$0xff]
      %v1375 = vld [vmem:[#allocation2 + $0x31] sm:$0xff]
      %v1376 = vld [vmem:[#allocation2 + $0x39] sm:$0xff]
      %v1377 = vld [vmem:[#allocation2 + $0x49] sm:$0xff]
      %v1378 = vld [vmem:[#allocation2 + $0x51] sm:$0xff]
      %v1379 = vld [vmem:[#allocation2 + $0x61] sm:$0xff]
      %v1380 = vld [vmem:[#allocation2 + $0x69] sm:$0xff]
      %v1381 = vld [vmem:[#allocation2 + $0x79] sm:$0xff]
      %v1382 = vld [vmem:[#allocation2 + $0x81] sm:$0xff]
      %v1383 = vld [vmem:[#allocation2 + $0x91] sm:$0xff]
      %v1384 = vld [vmem:[#allocation2 + $0x99] sm:$0xff]
      %v1385 = vld [vmem:[#allocation2 + $0xa9] sm:$0xff]
      %v1386 = vld [vmem:[#allocation2 + $0xb1] sm:$0xff]
      %v1387 = vld [vmem:[#allocation2 + $0xc1] sm:$0xff]
      %v1388 = vld [vmem:[#allocation2 + $0xc9] sm:$0xff]
      %v1389 = vld [vmem:[#allocation2 + $0xd9] sm:$0xff]
      %v1390 = vld [vmem:[#allocation2 + $0xe1] sm:$0xff]
      %v1391 = vld [vmem:[#allocation2 + $0xf1] sm:$0xff]
      %v1392 = vld [vmem:[#allocation2 + $0xf9] sm:$0xff]
      %v1393 = vld [vmem:[#allocation2 + $0x109] sm:$0xff]
      %v1394 = vld [vmem:[#allocation2 + $0x111] sm:$0xff]
      %v1395 = vld [vmem:[#allocation2 + $0x121] sm:$0xff]
      %v1396 = vld [vmem:[#allocation2 + $0x129] sm:$0xff]
      %v1397 = vld [vmem:[#allocation2 + $0x139] sm:$0xff]
      %v1398 = vld [vmem:[#allocation2 + $0x141] sm:$0xff]
      %v1399 = vld [vmem:[#allocation2 + $0x151] sm:$0xff]
      %v1400 = vld [vmem:[#allocation2 + $0x159] sm:$0xff]
      %v1401 = vld [vmem:[#allocation2 + $0x169] sm:$0xff]
      %v1402 = vld [vmem:[#allocation2 + $0x171] sm:$0xff]
      %v1403 = vperm.slane %v1370, 0
      %v1404 = vmul.f32 %v1371, %v1403
      %v1405 = vmul.f32 %v1372, %v1403
      %v1406 = vmul.f32 %v1373, %v1403
      %v1407 = vmul.f32 %v1374, %v1403
      %v1408 = vmul.f32 %v1375, %v1403
      %v1409 = vmul.f32 %v1376, %v1403
      %v1410 = vmul.f32 %v1377, %v1403
      %v1411 = vmul.f32 %v1378, %v1403
      %v1412 = vmul.f32 %v1379, %v1403
      %v1413 = vmul.f32 %v1380, %v1403
      %v1414 = vmul.f32 %v1381, %v1403
      %v1415 = vmul.f32 %v1382, %v1403
      %v1416 = vmul.f32 %v1383, %v1403
      %v1417 = vmul.f32 %v1384, %v1403
      %v1418 = vmul.f32 %v1385, %v1403
      %v1419 = vmul.f32 %v1386, %v1403
      %v1420 = vmul.f32 %v1387, %v1403
      %v1421 = vmul.f32 %v1388, %v1403
      %v1422 = vmul.f32 %v1389, %v1403
      %v1423 = vmul.f32 %v1390, %v1403
      %v1424 = vmul.f32 %v1391, %v1403
      %v1425 = vmul.f32 %v1392, %v1403
      %v1426 = vmul.f32 %v1393, %v1403
      %v1427 = vmul.f32 %v1394, %v1403
      %v1428 = vmul.f32 %v1395, %v1403
      %v1429 = vmul.f32 %v1396, %v1403
      %v1430 = vmul.f32 %v1397, %v1403
      %v1431 = vmul.f32 %v1398, %v1403
      %v1432 = vmul.f32 %v1399, %v1403
      %v1433 = vmul.f32 %v1400, %v1403
      %v1434 = vmul.f32 %v1401, %v1403
      %v1435 = vmul.f32 %v1402, %v1403
      %v1436 = vadd.f32 %v1338, %v1404
      %v1437 = vadd.f32 %v1339, %v1405
      %v1438 = vadd.f32 %v1340, %v1406
      %v1439 = vadd.f32 %v1341, %v1407
      %v1440 = vadd.f32 %v1342, %v1408
      %v1441 = vadd.f32 %v1343, %v1409
      %v1442 = vadd.f32 %v1344, %v1410
      %v1443 = vadd.f32 %v1345, %v1411
      %v1444 = vadd.f32 %v1346, %v1412
      %v1445 = vadd.f32 %v1347, %v1413
      %v1446 = vadd.f32 %v1348, %v1414
      %v1447 = vadd.f32 %v1349, %v1415
      %v1448 = vadd.f32 %v1350, %v1416
      %v1449 = vadd.f32 %v1351, %v1417
      %v1450 = vadd.f32 %v1352, %v1418
      %v1451 = vadd.f32 %v1353, %v1419
      %v1452 = vadd.f32 %v1354, %v1420
      %v1453 = vadd.f32 %v1355, %v1421
      %v1454 = vadd.f32 %v1356, %v1422
      %v1455 = vadd.f32 %v1357, %v1423
      %v1456 = vadd.f32 %v1358, %v1424
      %v1457 = vadd.f32 %v1359, %v1425
      %v1458 = vadd.f32 %v1360, %v1426
      %v1459 = vadd.f32 %v1361, %v1427
      %v1460 = vadd.f32 %v1362, %v1428
      %v1461 = vadd.f32 %v1363, %v1429
      %v1462 = vadd.f32 %v1364, %v1430
      %v1463 = vadd.f32 %v1365, %v1431
      %v1464 = vadd.f32 %v1366, %v1432
      %v1465 = vadd.f32 %v1367, %v1433
      %v1466 = vadd.f32 %v1368, %v1434
      %v1467 = vadd.f32 %v1369, %v1435
      %v1468 = vld [vmem:[%s7 + $0x2] sm:$0x1]
      %v1469 = vld [vmem:[#allocation2 + $0x2] sm:$0xff]
      %v1470 = vld [vmem:[#allocation2 + $0xa] sm:$0xff]
      %v1471 = vld [vmem:[#allocation2 + $0x1a] sm:$0xff]
      %v1472 = vld [vmem:[#allocation2 + $0x22] sm:$0xff]
      %v1473 = vld [vmem:[#allocation2 + $0x32] sm:$0xff]
      %v1474 = vld [vmem:[#allocation2 + $0x3a] sm:$0xff]
      %v1475 = vld [vmem:[#allocation2 + $0x4a] sm:$0xff]
      %v1476 = vld [vmem:[#allocation2 + $0x52] sm:$0xff]
      %v1477 = vld [vmem:[#allocation2 + $0x62] sm:$0xff]
      %v1478 = vld [vmem:[#allocation2 + $0x6a] sm:$0xff]
      %v1479 = vld [vmem:[#allocation2 + $0x7a] sm:$0xff]
      %v1480 = vld [vmem:[#allocation2 + $0x82] sm:$0xff]
      %v1481 = vld [vmem:[#allocation2 + $0x92] sm:$0xff]
      %v1482 = vld [vmem:[#allocation2 + $0x9a] sm:$0xff]
      %v1483 = vld [vmem:[#allocation2 + $0xaa] sm:$0xff]
      %v1484 = vld [vmem:[#allocation2 + $0xb2] sm:$0xff]
      %v1485 = vld [vmem:[#allocation2 + $0xc2] sm:$0xff]
      %v1486 = vld [vmem:[#allocation2 + $0xca] sm:$0xff]
      %v1487 = vld [vmem:[#allocation2 + $0xda] sm:$0xff]
      %v1488 = vld [vmem:[#allocation2 + $0xe2] sm:$0xff]
      %v1489 = vld [vmem:[#allocation2 + $0xf2] sm:$0xff]
      %v1490 = vld [vmem:[#allocation2 + $0xfa] sm:$0xff]
      %v1491 = vld [vmem:[#allocation2 + $0x10a] sm:$0xff]
      %v1492 = vld [vmem:[#allocation2 + $0x112] sm:$0xff]
      %v1493 = vld [vmem:[#allocation2 + $0x122] sm:$0xff]
      %v1494 = vld [vmem:[#allocation2 + $0x12a] sm:$0xff]
      %v1495 = vld [vmem:[#allocation2 + $0x13a] sm:$0xff]
      %v1496 = vld [vmem:[#allocation2 + $0x142] sm:$0xff]
      %v1497 = vld [vmem:[#allocation2 + $0x152] sm:$0xff]
      %v1498 = vld [vmem:[#allocation2 + $0x15a] sm:$0xff]
      %v1499 = vld [vmem:[#allocation2 + $0x16a] sm:$0xff]
      %v1500 = vld [vmem:[#allocation2 + $0x172] sm:$0xff]
      %v1501 = vperm.slane %v1468, 0
      %v1502 = vmul.f32 %v1469, %v1501
      %v1503 = vmul.f32 %v1470, %v1501
      %v1504 = vmul.f32 %v1471, %v1501
      %v1505 = vmul.f32 %v1472, %v1501
      %v1506 = vmul.f32 %v1473, %v1501
      %v1507 = vmul.f32 %v1474, %v1501
      %v1508 = vmul.f32 %v1475, %v1501
      %v1509 = vmul.f32 %v1476, %v1501
      %v1510 = vmul.f32 %v1477, %v1501
      %v1511 = vmul.f32 %v1478, %v1501
      %v1512 = vmul.f32 %v1479, %v1501
      %v1513 = vmul.f32 %v1480, %v1501
      %v1514 = vmul.f32 %v1481, %v1501
      %v1515 = vmul.f32 %v1482, %v1501
      %v1516 = vmul.f32 %v1483, %v1501
      %v1517 = vmul.f32 %v1484, %v1501
      %v1518 = vmul.f32 %v1485, %v1501
      %v1519 = vmul.f32 %v1486, %v1501
      %v1520 = vmul.f32 %v1487, %v1501
      %v1521 = vmul.f32 %v1488, %v1501
      %v1522 = vmul.f32 %v1489, %v1501
      %v1523 = vmul.f32 %v1490, %v1501
      %v1524 = vmul.f32 %v1491, %v1501
      %v1525 = vmul.f32 %v1492, %v1501
      %v1526 = vmul.f32 %v1493, %v1501
      %v1527 = vmul.f32 %v1494, %v1501
      %v1528 = vmul.f32 %v1495, %v1501
      %v1529 = vmul.f32 %v1496, %v1501
      %v1530 = vmul.f32 %v1497, %v1501
      %v1531 = vmul.f32 %v1498, %v1501
      %v1532 = vmul.f32 %v1499, %v1501
      %v1533 = vmul.f32 %v1500, %v1501
      %v1534 = vadd.f32 %v1436, %v1502
      %v1535 = vadd.f32 %v1437, %v1503
      %v1536 = vadd.f32 %v1438, %v1504
      %v1537 = vadd.f32 %v1439, %v1505
      %v1538 = vadd.f32 %v1440, %v1506
      %v1539 = vadd.f32 %v1441, %v1507
      %v1540 = vadd.f32 %v1442, %v1508
      %v1541 = vadd.f32 %v1443, %v1509
      %v1542 = vadd.f32 %v1444, %v1510
      %v1543 = vadd.f32 %v1445, %v1511
      %v1544 = vadd.f32 %v1446, %v1512
      %v1545 = vadd.f32 %v1447, %v1513
      %v1546 = vadd.f32 %v1448, %v1514
      %v1547 = vadd.f32 %v1449, %v1515
      %v1548 = vadd.f32 %v1450, %v1516
      %v1549 = vadd.f32 %v1451, %v1517
      %v1550 = vadd.f32 %v1452, %v1518
      %v1551 = vadd.f32 %v1453, %v1519
      %v1552 = vadd.f32 %v1454, %v1520
      %v1553 = vadd.f32 %v1455, %v1521
      %v1554 = vadd.f32 %v1456, %v1522
      %v1555 = vadd.f32 %v1457, %v1523
      %v1556 = vadd.f32 %v1458, %v1524
      %v1557 = vadd.f32 %v1459, %v1525
      %v1558 = vadd.f32 %v1460, %v1526
      %v1559 = vadd.f32 %v1461, %v1527
      %v1560 = vadd.f32 %v1462, %v1528
      %v1561 = vadd.f32 %v1463, %v1529
      %v1562 = vadd.f32 %v1464, %v1530
      %v1563 = vadd.f32 %v1465, %v1531
      %v1564 = vadd.f32 %v1466, %v1532
      %v1565 = vadd.f32 %v1467, %v1533
      %s1566 = scalar_lea.vmem %s7, 4
      %v1567 = vld [vmem:[%s1566] sm:$0x1]
      %s1568 = scalar_lea.vmem [#allocation2], 24
      %v1569 = vld [vmem:[%s1568] sm:$0xff]
      %v1570 = vld [vmem:[%s1568 + $0x8] sm:$0xff]
      %v1571 = vld [vmem:[%s1568 + $0x18] sm:$0xff]
      %v1572 = vld [vmem:[%s1568 + $0x20] sm:$0xff]
      %v1573 = vld [vmem:[%s1568 + $0x30] sm:$0xff]
      %v1574 = vld [vmem:[%s1568 + $0x38] sm:$0xff]
      %v1575 = vld [vmem:[%s1568 + $0x48] sm:$0xff]
      %v1576 = vld [vmem:[%s1568 + $0x50] sm:$0xff]
      %v1577 = vld [vmem:[%s1568 + $0x60] sm:$0xff]
      %v1578 = vld [vmem:[%s1568 + $0x68] sm:$0xff]
      %v1579 = vld [vmem:[%s1568 + $0x78] sm:$0xff]
      %v1580 = vld [vmem:[%s1568 + $0x80] sm:$0xff]
      %v1581 = vld [vmem:[%s1568 + $0x90] sm:$0xff]
      %v1582 = vld [vmem:[%s1568 + $0x98] sm:$0xff]
      %v1583 = vld [vmem:[%s1568 + $0xa8] sm:$0xff]
      %v1584 = vld [vmem:[%s1568 + $0xb0] sm:$0xff]
      %v1585 = vld [vmem:[%s1568 + $0xc0] sm:$0xff]
      %v1586 = vld [vmem:[%s1568 + $0xc8] sm:$0xff]
      %v1587 = vld [vmem:[%s1568 + $0xd8] sm:$0xff]
      %v1588 = vld [vmem:[%s1568 + $0xe0] sm:$0xff]
      %v1589 = vld [vmem:[%s1568 + $0xf0] sm:$0xff]
      %v1590 = vld [vmem:[%s1568 + $0xf8] sm:$0xff]
      %v1591 = vld [vmem:[%s1568 + $0x108] sm:$0xff]
      %v1592 = vld [vmem:[%s1568 + $0x110] sm:$0xff]
      %v1593 = vld [vmem:[%s1568 + $0x120] sm:$0xff]
      %v1594 = vld [vmem:[%s1568 + $0x128] sm:$0xff]
      %v1595 = vld [vmem:[%s1568 + $0x138] sm:$0xff]
      %v1596 = vld [vmem:[%s1568 + $0x140] sm:$0xff]
      %v1597 = vld [vmem:[%s1568 + $0x150] sm:$0xff]
      %v1598 = vld [vmem:[%s1568 + $0x158] sm:$0xff]
      %v1599 = vld [vmem:[%s1568 + $0x168] sm:$0xff]
      %v1600 = vld [vmem:[%s1568 + $0x170] sm:$0xff]
      %v1601 = vperm.slane %v1567, 0
      %v1602 = vmul.f32 %v1569, %v1601
      %v1603 = vmul.f32 %v1570, %v1601
      %v1604 = vmul.f32 %v1571, %v1601
      %v1605 = vmul.f32 %v1572, %v1601
      %v1606 = vmul.f32 %v1573, %v1601
      %v1607 = vmul.f32 %v1574, %v1601
      %v1608 = vmul.f32 %v1575, %v1601
      %v1609 = vmul.f32 %v1576, %v1601
      %v1610 = vmul.f32 %v1577, %v1601
      %v1611 = vmul.f32 %v1578, %v1601
      %v1612 = vmul.f32 %v1579, %v1601
      %v1613 = vmul.f32 %v1580, %v1601
      %v1614 = vmul.f32 %v1581, %v1601
      %v1615 = vmul.f32 %v1582, %v1601
      %v1616 = vmul.f32 %v1583, %v1601
      %v1617 = vmul.f32 %v1584, %v1601
      %v1618 = vmul.f32 %v1585, %v1601
      %v1619 = vmul.f32 %v1586, %v1601
      %v1620 = vmul.f32 %v1587, %v1601
      %v1621 = vmul.f32 %v1588, %v1601
      %v1622 = vmul.f32 %v1589, %v1601
      %v1623 = vmul.f32 %v1590, %v1601
      %v1624 = vmul.f32 %v1591, %v1601
      %v1625 = vmul.f32 %v1592, %v1601
      %v1626 = vmul.f32 %v1593, %v1601
      %v1627 = vmul.f32 %v1594, %v1601
      %v1628 = vmul.f32 %v1595, %v1601
      %v1629 = vmul.f32 %v1596, %v1601
      %v1630 = vmul.f32 %v1597, %v1601
      %v1631 = vmul.f32 %v1598, %v1601
      %v1632 = vmul.f32 %v1599, %v1601
      %v1633 = vmul.f32 %v1600, %v1601
      %v1634 = vadd.f32 %v1534, %v1602
      %v1635 = vadd.f32 %v1535, %v1603
      %v1636 = vadd.f32 %v1536, %v1604
      %v1637 = vadd.f32 %v1537, %v1605
      %v1638 = vadd.f32 %v1538, %v1606
      %v1639 = vadd.f32 %v1539, %v1607
      %v1640 = vadd.f32 %v1540, %v1608
      %v1641 = vadd.f32 %v1541, %v1609
      %v1642 = vadd.f32 %v1542, %v1610
      %v1643 = vadd.f32 %v1543, %v1611
      %v1644 = vadd.f32 %v1544, %v1612
      %v1645 = vadd.f32 %v1545, %v1613
      %v1646 = vadd.f32 %v1546, %v1614
      %v1647 = vadd.f32 %v1547, %v1615
      %v1648 = vadd.f32 %v1548, %v1616
      %v1649 = vadd.f32 %v1549, %v1617
      %v1650 = vadd.f32 %v1550, %v1618
      %v1651 = vadd.f32 %v1551, %v1619
      %v1652 = vadd.f32 %v1552, %v1620
      %v1653 = vadd.f32 %v1553, %v1621
      %v1654 = vadd.f32 %v1554, %v1622
      %v1655 = vadd.f32 %v1555, %v1623
      %v1656 = vadd.f32 %v1556, %v1624
      %v1657 = vadd.f32 %v1557, %v1625
      %v1658 = vadd.f32 %v1558, %v1626
      %v1659 = vadd.f32 %v1559, %v1627
      %v1660 = vadd.f32 %v1560, %v1628
      %v1661 = vadd.f32 %v1561, %v1629
      %v1662 = vadd.f32 %v1562, %v1630
      %v1663 = vadd.f32 %v1563, %v1631
      %v1664 = vadd.f32 %v1564, %v1632
      %v1665 = vadd.f32 %v1565, %v1633
      %v1666 = vld [vmem:[%s1566 + $0x1] sm:$0x1]
      %v1667 = vld [vmem:[%s1568 + $0x1] sm:$0xff]
      %v1668 = vld [vmem:[%s1568 + $0x9] sm:$0xff]
      %v1669 = vld [vmem:[%s1568 + $0x19] sm:$0xff]
      %v1670 = vld [vmem:[%s1568 + $0x21] sm:$0xff]
      %v1671 = vld [vmem:[%s1568 + $0x31] sm:$0xff]
      %v1672 = vld [vmem:[%s1568 + $0x39] sm:$0xff]
      %v1673 = vld [vmem:[%s1568 + $0x49] sm:$0xff]
      %v1674 = vld [vmem:[%s1568 + $0x51] sm:$0xff]
      %v1675 = vld [vmem:[%s1568 + $0x61] sm:$0xff]
      %v1676 = vld [vmem:[%s1568 + $0x69] sm:$0xff]
      %v1677 = vld [vmem:[%s1568 + $0x79] sm:$0xff]
      %v1678 = vld [vmem:[%s1568 + $0x81] sm:$0xff]
      %v1679 = vld [vmem:[%s1568 + $0x91] sm:$0xff]
      %v1680 = vld [vmem:[%s1568 + $0x99] sm:$0xff]
      %v1681 = vld [vmem:[%s1568 + $0xa9] sm:$0xff]
      %v1682 = vld [vmem:[%s1568 + $0xb1] sm:$0xff]
      %v1683 = vld [vmem:[%s1568 + $0xc1] sm:$0xff]
      %v1684 = vld [vmem:[%s1568 + $0xc9] sm:$0xff]
      %v1685 = vld [vmem:[%s1568 + $0xd9] sm:$0xff]
      %v1686 = vld [vmem:[%s1568 + $0xe1] sm:$0xff]
      %v1687 = vld [vmem:[%s1568 + $0xf1] sm:$0xff]
      %v1688 = vld [vmem:[%s1568 + $0xf9] sm:$0xff]
      %v1689 = vld [vmem:[%s1568 + $0x109] sm:$0xff]
      %v1690 = vld [vmem:[%s1568 + $0x111] sm:$0xff]
      %v1691 = vld [vmem:[%s1568 + $0x121] sm:$0xff]
      %v1692 = vld [vmem:[%s1568 + $0x129] sm:$0xff]
      %v1693 = vld [vmem:[%s1568 + $0x139] sm:$0xff]
      %v1694 = vld [vmem:[%s1568 + $0x141] sm:$0xff]
      %v1695 = vld [vmem:[%s1568 + $0x151] sm:$0xff]
      %v1696 = vld [vmem:[%s1568 + $0x159] sm:$0xff]
      %v1697 = vld [vmem:[%s1568 + $0x169] sm:$0xff]
      %v1698 = vld [vmem:[%s1568 + $0x171] sm:$0xff]
      %v1699 = vperm.slane %v1666, 0
      %v1700 = vmul.f32 %v1667, %v1699
      %v1701 = vmul.f32 %v1668, %v1699
      %v1702 = vmul.f32 %v1669, %v1699
      %v1703 = vmul.f32 %v1670, %v1699
      %v1704 = vmul.f32 %v1671, %v1699
      %v1705 = vmul.f32 %v1672, %v1699
      %v1706 = vmul.f32 %v1673, %v1699
      %v1707 = vmul.f32 %v1674, %v1699
      %v1708 = vmul.f32 %v1675, %v1699
      %v1709 = vmul.f32 %v1676, %v1699
      %v1710 = vmul.f32 %v1677, %v1699
      %v1711 = vmul.f32 %v1678, %v1699
      %v1712 = vmul.f32 %v1679, %v1699
      %v1713 = vmul.f32 %v1680, %v1699
      %v1714 = vmul.f32 %v1681, %v1699
      %v1715 = vmul.f32 %v1682, %v1699
      %v1716 = vmul.f32 %v1683, %v1699
      %v1717 = vmul.f32 %v1684, %v1699
      %v1718 = vmul.f32 %v1685, %v1699
      %v1719 = vmul.f32 %v1686, %v1699
      %v1720 = vmul.f32 %v1687, %v1699
      %v1721 = vmul.f32 %v1688, %v1699
      %v1722 = vmul.f32 %v1689, %v1699
      %v1723 = vmul.f32 %v1690, %v1699
      %v1724 = vmul.f32 %v1691, %v1699
      %v1725 = vmul.f32 %v1692, %v1699
      %v1726 = vmul.f32 %v1693, %v1699
      %v1727 = vmul.f32 %v1694, %v1699
      %v1728 = vmul.f32 %v1695, %v1699
      %v1729 = vmul.f32 %v1696, %v1699
      %v1730 = vmul.f32 %v1697, %v1699
      %v1731 = vmul.f32 %v1698, %v1699
      %v1732 = vadd.f32 %v1634, %v1700
      %v1733 = vadd.f32 %v1635, %v1701
      %v1734 = vadd.f32 %v1636, %v1702
      %v1735 = vadd.f32 %v1637, %v1703
      %v1736 = vadd.f32 %v1638, %v1704
      %v1737 = vadd.f32 %v1639, %v1705
      %v1738 = vadd.f32 %v1640, %v1706
      %v1739 = vadd.f32 %v1641, %v1707
      %v1740 = vadd.f32 %v1642, %v1708
      %v1741 = vadd.f32 %v1643, %v1709
      %v1742 = vadd.f32 %v1644, %v1710
      %v1743 = vadd.f32 %v1645, %v1711
      %v1744 = vadd.f32 %v1646, %v1712
      %v1745 = vadd.f32 %v1647, %v1713
      %v1746 = vadd.f32 %v1648, %v1714
      %v1747 = vadd.f32 %v1649, %v1715
      %v1748 = vadd.f32 %v1650, %v1716
      %v1749 = vadd.f32 %v1651, %v1717
      %v1750 = vadd.f32 %v1652, %v1718
      %v1751 = vadd.f32 %v1653, %v1719
      %v1752 = vadd.f32 %v1654, %v1720
      %v1753 = vadd.f32 %v1655, %v1721
      %v1754 = vadd.f32 %v1656, %v1722
      %v1755 = vadd.f32 %v1657, %v1723
      %v1756 = vadd.f32 %v1658, %v1724
      %v1757 = vadd.f32 %v1659, %v1725
      %v1758 = vadd.f32 %v1660, %v1726
      %v1759 = vadd.f32 %v1661, %v1727
      %v1760 = vadd.f32 %v1662, %v1728
      %v1761 = vadd.f32 %v1663, %v1729
      %v1762 = vadd.f32 %v1664, %v1730
      %v1763 = vadd.f32 %v1665, %v1731
      %v1764 = vld [vmem:[%s1566 + $0x2] sm:$0x1]
      %v1765 = vld [vmem:[%s1568 + $0x2] sm:$0xff]
      %v1766 = vld [vmem:[%s1568 + $0xa] sm:$0xff]
      %v1767 = vld [vmem:[%s1568 + $0x1a] sm:$0xff]
      %v1768 = vld [vmem:[%s1568 + $0x22] sm:$0xff]
      %v1769 = vld [vmem:[%s1568 + $0x32] sm:$0xff]
      %v1770 = vld [vmem:[%s1568 + $0x3a] sm:$0xff]
      %v1771 = vld [vmem:[%s1568 + $0x4a] sm:$0xff]
      %v1772 = vld [vmem:[%s1568 + $0x52] sm:$0xff]
      %v1773 = vld [vmem:[%s1568 + $0x62] sm:$0xff]
      %v1774 = vld [vmem:[%s1568 + $0x6a] sm:$0xff]
      %v1775 = vld [vmem:[%s1568 + $0x7a] sm:$0xff]
      %v1776 = vld [vmem:[%s1568 + $0x82] sm:$0xff]
      %v1777 = vld [vmem:[%s1568 + $0x92] sm:$0xff]
      %v1778 = vld [vmem:[%s1568 + $0x9a] sm:$0xff]
      %v1779 = vld [vmem:[%s1568 + $0xaa] sm:$0xff]
      %v1780 = vld [vmem:[%s1568 + $0xb2] sm:$0xff]
      %v1781 = vld [vmem:[%s1568 + $0xc2] sm:$0xff]
      %v1782 = vld [vmem:[%s1568 + $0xca] sm:$0xff]
      %v1783 = vld [vmem:[%s1568 + $0xda] sm:$0xff]
      %v1784 = vld [vmem:[%s1568 + $0xe2] sm:$0xff]
      %v1785 = vld [vmem:[%s1568 + $0xf2] sm:$0xff]
      %v1786 = vld [vmem:[%s1568 + $0xfa] sm:$0xff]
      %v1787 = vld [vmem:[%s1568 + $0x10a] sm:$0xff]
      %v1788 = vld [vmem:[%s1568 + $0x112] sm:$0xff]
      %v1789 = vld [vmem:[%s1568 + $0x122] sm:$0xff]
      %v1790 = vld [vmem:[%s1568 + $0x12a] sm:$0xff]
      %v1791 = vld [vmem:[%s1568 + $0x13a] sm:$0xff]
      %v1792 = vld [vmem:[%s1568 + $0x142] sm:$0xff]
      %v1793 = vld [vmem:[%s1568 + $0x152] sm:$0xff]
      %v1794 = vld [vmem:[%s1568 + $0x15a] sm:$0xff]
      %v1795 = vld [vmem:[%s1568 + $0x16a] sm:$0xff]
      %v1796 = vld [vmem:[%s1568 + $0x172] sm:$0xff]
      %v1797 = vperm.slane %v1764, 0
      %v1798 = vmul.f32 %v1765, %v1797
      %v1799 = vmul.f32 %v1766, %v1797
      %v1800 = vmul.f32 %v1767, %v1797
      %v1801 = vmul.f32 %v1768, %v1797
      %v1802 = vmul.f32 %v1769, %v1797
      %v1803 = vmul.f32 %v1770, %v1797
      %v1804 = vmul.f32 %v1771, %v1797
      %v1805 = vmul.f32 %v1772, %v1797
      %v1806 = vmul.f32 %v1773, %v1797
      %v1807 = vmul.f32 %v1774, %v1797
      %v1808 = vmul.f32 %v1775, %v1797
      %v1809 = vmul.f32 %v1776, %v1797
      %v1810 = vmul.f32 %v1777, %v1797
      %v1811 = vmul.f32 %v1778, %v1797
      %v1812 = vmul.f32 %v1779, %v1797
      %v1813 = vmul.f32 %v1780, %v1797
      %v1814 = vmul.f32 %v1781, %v1797
      %v1815 = vmul.f32 %v1782, %v1797
      %v1816 = vmul.f32 %v1783, %v1797
      %v1817 = vmul.f32 %v1784, %v1797
      %v1818 = vmul.f32 %v1785, %v1797
      %v1819 = vmul.f32 %v1786, %v1797
      %v1820 = vmul.f32 %v1787, %v1797
      %v1821 = vmul.f32 %v1788, %v1797
      %v1822 = vmul.f32 %v1789, %v1797
      %v1823 = vmul.f32 %v1790, %v1797
      %v1824 = vmul.f32 %v1791, %v1797
      %v1825 = vmul.f32 %v1792, %v1797
      %v1826 = vmul.f32 %v1793, %v1797
      %v1827 = vmul.f32 %v1794, %v1797
      %v1828 = vmul.f32 %v1795, %v1797
      %v1829 = vmul.f32 %v1796, %v1797
      %v1830 = vadd.f32 %v1732, %v1798
      %v1831 = vadd.f32 %v1733, %v1799
      %v1832 = vadd.f32 %v1734, %v1800
      %v1833 = vadd.f32 %v1735, %v1801
      %v1834 = vadd.f32 %v1736, %v1802
      %v1835 = vadd.f32 %v1737, %v1803
      %v1836 = vadd.f32 %v1738, %v1804
      %v1837 = vadd.f32 %v1739, %v1805
      %v1838 = vadd.f32 %v1740, %v1806
      %v1839 = vadd.f32 %v1741, %v1807
      %v1840 = vadd.f32 %v1742, %v1808
      %v1841 = vadd.f32 %v1743, %v1809
      %v1842 = vadd.f32 %v1744, %v1810
      %v1843 = vadd.f32 %v1745, %v1811
      %v1844 = vadd.f32 %v1746, %v1812
      %v1845 = vadd.f32 %v1747, %v1813
      %v1846 = vadd.f32 %v1748, %v1814
      %v1847 = vadd.f32 %v1749, %v1815
      %v1848 = vadd.f32 %v1750, %v1816
      %v1849 = vadd.f32 %v1751, %v1817
      %v1850 = vadd.f32 %v1752, %v1818
      %v1851 = vadd.f32 %v1753, %v1819
      %v1852 = vadd.f32 %v1754, %v1820
      %v1853 = vadd.f32 %v1755, %v1821
      %v1854 = vadd.f32 %v1756, %v1822
      %v1855 = vadd.f32 %v1757, %v1823
      %v1856 = vadd.f32 %v1758, %v1824
      %v1857 = vadd.f32 %v1759, %v1825
      %v1858 = vadd.f32 %v1760, %v1826
      %v1859 = vadd.f32 %v1761, %v1827
      %v1860 = vadd.f32 %v1762, %v1828
      %v1861 = vadd.f32 %v1763, %v1829
      %s1862 = scalar_lea.vmem %s7, 8
      %v1863 = vld [vmem:[%s1862] sm:$0x1]
      %s1864 = scalar_lea.vmem [#allocation2], 48
      %v1865 = vld [vmem:[%s1864] sm:$0xff]
      %v1866 = vld [vmem:[%s1864 + $0x8] sm:$0xff]
      %v1867 = vld [vmem:[%s1864 + $0x18] sm:$0xff]
      %v1868 = vld [vmem:[%s1864 + $0x20] sm:$0xff]
      %v1869 = vld [vmem:[%s1864 + $0x30] sm:$0xff]
      %v1870 = vld [vmem:[%s1864 + $0x38] sm:$0xff]
      %v1871 = vld [vmem:[%s1864 + $0x48] sm:$0xff]
      %v1872 = vld [vmem:[%s1864 + $0x50] sm:$0xff]
      %v1873 = vld [vmem:[%s1864 + $0x60] sm:$0xff]
      %v1874 = vld [vmem:[%s1864 + $0x68] sm:$0xff]
      %v1875 = vld [vmem:[%s1864 + $0x78] sm:$0xff]
      %v1876 = vld [vmem:[%s1864 + $0x80] sm:$0xff]
      %v1877 = vld [vmem:[%s1864 + $0x90] sm:$0xff]
      %v1878 = vld [vmem:[%s1864 + $0x98] sm:$0xff]
      %v1879 = vld [vmem:[%s1864 + $0xa8] sm:$0xff]
      %v1880 = vld [vmem:[%s1864 + $0xb0] sm:$0xff]
      %v1881 = vld [vmem:[%s1864 + $0xc0] sm:$0xff]
      %v1882 = vld [vmem:[%s1864 + $0xc8] sm:$0xff]
      %v1883 = vld [vmem:[%s1864 + $0xd8] sm:$0xff]
      %v1884 = vld [vmem:[%s1864 + $0xe0] sm:$0xff]
      %v1885 = vld [vmem:[%s1864 + $0xf0] sm:$0xff]
      %v1886 = vld [vmem:[%s1864 + $0xf8] sm:$0xff]
      %v1887 = vld [vmem:[%s1864 + $0x108] sm:$0xff]
      %v1888 = vld [vmem:[%s1864 + $0x110] sm:$0xff]
      %v1889 = vld [vmem:[%s1864 + $0x120] sm:$0xff]
      %v1890 = vld [vmem:[%s1864 + $0x128] sm:$0xff]
      %v1891 = vld [vmem:[%s1864 + $0x138] sm:$0xff]
      %v1892 = vld [vmem:[%s1864 + $0x140] sm:$0xff]
      %v1893 = vld [vmem:[%s1864 + $0x150] sm:$0xff]
      %v1894 = vld [vmem:[%s1864 + $0x158] sm:$0xff]
      %v1895 = vld [vmem:[%s1864 + $0x168] sm:$0xff]
      %v1896 = vld [vmem:[%s1864 + $0x170] sm:$0xff]
      %v1897 = vperm.slane %v1863, 0
      %v1898 = vmul.f32 %v1865, %v1897
      %v1899 = vmul.f32 %v1866, %v1897
      %v1900 = vmul.f32 %v1867, %v1897
      %v1901 = vmul.f32 %v1868, %v1897
      %v1902 = vmul.f32 %v1869, %v1897
      %v1903 = vmul.f32 %v1870, %v1897
      %v1904 = vmul.f32 %v1871, %v1897
      %v1905 = vmul.f32 %v1872, %v1897
      %v1906 = vmul.f32 %v1873, %v1897
      %v1907 = vmul.f32 %v1874, %v1897
      %v1908 = vmul.f32 %v1875, %v1897
      %v1909 = vmul.f32 %v1876, %v1897
      %v1910 = vmul.f32 %v1877, %v1897
      %v1911 = vmul.f32 %v1878, %v1897
      %v1912 = vmul.f32 %v1879, %v1897
      %v1913 = vmul.f32 %v1880, %v1897
      %v1914 = vmul.f32 %v1881, %v1897
      %v1915 = vmul.f32 %v1882, %v1897
      %v1916 = vmul.f32 %v1883, %v1897
      %v1917 = vmul.f32 %v1884, %v1897
      %v1918 = vmul.f32 %v1885, %v1897
      %v1919 = vmul.f32 %v1886, %v1897
      %v1920 = vmul.f32 %v1887, %v1897
      %v1921 = vmul.f32 %v1888, %v1897
      %v1922 = vmul.f32 %v1889, %v1897
      %v1923 = vmul.f32 %v1890, %v1897
      %v1924 = vmul.f32 %v1891, %v1897
      %v1925 = vmul.f32 %v1892, %v1897
      %v1926 = vmul.f32 %v1893, %v1897
      %v1927 = vmul.f32 %v1894, %v1897
      %v1928 = vmul.f32 %v1895, %v1897
      %v1929 = vmul.f32 %v1896, %v1897
      %v1930 = vadd.f32 %v1830, %v1898
      %v1931 = vadd.f32 %v1831, %v1899
      %v1932 = vadd.f32 %v1832, %v1900
      %v1933 = vadd.f32 %v1833, %v1901
      %v1934 = vadd.f32 %v1834, %v1902
      %v1935 = vadd.f32 %v1835, %v1903
      %v1936 = vadd.f32 %v1836, %v1904
      %v1937 = vadd.f32 %v1837, %v1905
      %v1938 = vadd.f32 %v1838, %v1906
      %v1939 = vadd.f32 %v1839, %v1907
      %v1940 = vadd.f32 %v1840, %v1908
      %v1941 = vadd.f32 %v1841, %v1909
      %v1942 = vadd.f32 %v1842, %v1910
      %v1943 = vadd.f32 %v1843, %v1911
      %v1944 = vadd.f32 %v1844, %v1912
      %v1945 = vadd.f32 %v1845, %v1913
      %v1946 = vadd.f32 %v1846, %v1914
      %v1947 = vadd.f32 %v1847, %v1915
      %v1948 = vadd.f32 %v1848, %v1916
      %v1949 = vadd.f32 %v1849, %v1917
      %v1950 = vadd.f32 %v1850, %v1918
      %v1951 = vadd.f32 %v1851, %v1919
      %v1952 = vadd.f32 %v1852, %v1920
      %v1953 = vadd.f32 %v1853, %v1921
      %v1954 = vadd.f32 %v1854, %v1922
      %v1955 = vadd.f32 %v1855, %v1923
      %v1956 = vadd.f32 %v1856, %v1924
      %v1957 = vadd.f32 %v1857, %v1925
      %v1958 = vadd.f32 %v1858, %v1926
      %v1959 = vadd.f32 %v1859, %v1927
      %v1960 = vadd.f32 %v1860, %v1928
      %v1961 = vadd.f32 %v1861, %v1929
      %v1962 = vld [vmem:[%s1862 + $0x1] sm:$0x1]
      %v1963 = vld [vmem:[%s1864 + $0x1] sm:$0xff]
      %v1964 = vld [vmem:[%s1864 + $0x9] sm:$0xff]
      %v1965 = vld [vmem:[%s1864 + $0x19] sm:$0xff]
      %v1966 = vld [vmem:[%s1864 + $0x21] sm:$0xff]
      %v1967 = vld [vmem:[%s1864 + $0x31] sm:$0xff]
      %v1968 = vld [vmem:[%s1864 + $0x39] sm:$0xff]
      %v1969 = vld [vmem:[%s1864 + $0x49] sm:$0xff]
      %v1970 = vld [vmem:[%s1864 + $0x51] sm:$0xff]
      %v1971 = vld [vmem:[%s1864 + $0x61] sm:$0xff]
      %v1972 = vld [vmem:[%s1864 + $0x69] sm:$0xff]
      %v1973 = vld [vmem:[%s1864 + $0x79] sm:$0xff]
      %v1974 = vld [vmem:[%s1864 + $0x81] sm:$0xff]
      %v1975 = vld [vmem:[%s1864 + $0x91] sm:$0xff]
      %v1976 = vld [vmem:[%s1864 + $0x99] sm:$0xff]
      %v1977 = vld [vmem:[%s1864 + $0xa9] sm:$0xff]
      %v1978 = vld [vmem:[%s1864 + $0xb1] sm:$0xff]
      %v1979 = vld [vmem:[%s1864 + $0xc1] sm:$0xff]
      %v1980 = vld [vmem:[%s1864 + $0xc9] sm:$0xff]
      %v1981 = vld [vmem:[%s1864 + $0xd9] sm:$0xff]
      %v1982 = vld [vmem:[%s1864 + $0xe1] sm:$0xff]
      %v1983 = vld [vmem:[%s1864 + $0xf1] sm:$0xff]
      %v1984 = vld [vmem:[%s1864 + $0xf9] sm:$0xff]
      %v1985 = vld [vmem:[%s1864 + $0x109] sm:$0xff]
      %v1986 = vld [vmem:[%s1864 + $0x111] sm:$0xff]
      %v1987 = vld [vmem:[%s1864 + $0x121] sm:$0xff]
      %v1988 = vld [vmem:[%s1864 + $0x129] sm:$0xff]
      %v1989 = vld [vmem:[%s1864 + $0x139] sm:$0xff]
      %v1990 = vld [vmem:[%s1864 + $0x141] sm:$0xff]
      %v1991 = vld [vmem:[%s1864 + $0x151] sm:$0xff]
      %v1992 = vld [vmem:[%s1864 + $0x159] sm:$0xff]
      %v1993 = vld [vmem:[%s1864 + $0x169] sm:$0xff]
      %v1994 = vld [vmem:[%s1864 + $0x171] sm:$0xff]
      %v1995 = vperm.slane %v1962, 0
      %v1996 = vmul.f32 %v1963, %v1995
      %v1997 = vmul.f32 %v1964, %v1995
      %v1998 = vmul.f32 %v1965, %v1995
      %v1999 = vmul.f32 %v1966, %v1995
      %v2000 = vmul.f32 %v1967, %v1995
      %v2001 = vmul.f32 %v1968, %v1995
      %v2002 = vmul.f32 %v1969, %v1995
      %v2003 = vmul.f32 %v1970, %v1995
      %v2004 = vmul.f32 %v1971, %v1995
      %v2005 = vmul.f32 %v1972, %v1995
      %v2006 = vmul.f32 %v1973, %v1995
      %v2007 = vmul.f32 %v1974, %v1995
      %v2008 = vmul.f32 %v1975, %v1995
      %v2009 = vmul.f32 %v1976, %v1995
      %v2010 = vmul.f32 %v1977, %v1995
      %v2011 = vmul.f32 %v1978, %v1995
      %v2012 = vmul.f32 %v1979, %v1995
      %v2013 = vmul.f32 %v1980, %v1995
      %v2014 = vmul.f32 %v1981, %v1995
      %v2015 = vmul.f32 %v1982, %v1995
      %v2016 = vmul.f32 %v1983, %v1995
      %v2017 = vmul.f32 %v1984, %v1995
      %v2018 = vmul.f32 %v1985, %v1995
      %v2019 = vmul.f32 %v1986, %v1995
      %v2020 = vmul.f32 %v1987, %v1995
      %v2021 = vmul.f32 %v1988, %v1995
      %v2022 = vmul.f32 %v1989, %v1995
      %v2023 = vmul.f32 %v1990, %v1995
      %v2024 = vmul.f32 %v1991, %v1995
      %v2025 = vmul.f32 %v1992, %v1995
      %v2026 = vmul.f32 %v1993, %v1995
      %v2027 = vmul.f32 %v1994, %v1995
      %v2028 = vadd.f32 %v1930, %v1996
      %v2029 = vadd.f32 %v1931, %v1997
      %v2030 = vadd.f32 %v1932, %v1998
      %v2031 = vadd.f32 %v1933, %v1999
      %v2032 = vadd.f32 %v1934, %v2000
      %v2033 = vadd.f32 %v1935, %v2001
      %v2034 = vadd.f32 %v1936, %v2002
      %v2035 = vadd.f32 %v1937, %v2003
      %v2036 = vadd.f32 %v1938, %v2004
      %v2037 = vadd.f32 %v1939, %v2005
      %v2038 = vadd.f32 %v1940, %v2006
      %v2039 = vadd.f32 %v1941, %v2007
      %v2040 = vadd.f32 %v1942, %v2008
      %v2041 = vadd.f32 %v1943, %v2009
      %v2042 = vadd.f32 %v1944, %v2010
      %v2043 = vadd.f32 %v1945, %v2011
      %v2044 = vadd.f32 %v1946, %v2012
      %v2045 = vadd.f32 %v1947, %v2013
      %v2046 = vadd.f32 %v1948, %v2014
      %v2047 = vadd.f32 %v1949, %v2015
      %v2048 = vadd.f32 %v1950, %v2016
      %v2049 = vadd.f32 %v1951, %v2017
      %v2050 = vadd.f32 %v1952, %v2018
      %v2051 = vadd.f32 %v1953, %v2019
      %v2052 = vadd.f32 %v1954, %v2020
      %v2053 = vadd.f32 %v1955, %v2021
      %v2054 = vadd.f32 %v1956, %v2022
      %v2055 = vadd.f32 %v1957, %v2023
      %v2056 = vadd.f32 %v1958, %v2024
      %v2057 = vadd.f32 %v1959, %v2025
      %v2058 = vadd.f32 %v1960, %v2026
      %v2059 = vadd.f32 %v1961, %v2027
      %v2060 = vld [vmem:[%s1862 + $0x2] sm:$0x1]
      %v2061 = vld [vmem:[%s1864 + $0x2] sm:$0xff]
      %v2062 = vld [vmem:[%s1864 + $0xa] sm:$0xff]
      %v2063 = vld [vmem:[%s1864 + $0x1a] sm:$0xff]
      %v2064 = vld [vmem:[%s1864 + $0x22] sm:$0xff]
      %v2065 = vld [vmem:[%s1864 + $0x32] sm:$0xff]
      %v2066 = vld [vmem:[%s1864 + $0x3a] sm:$0xff]
      %v2067 = vld [vmem:[%s1864 + $0x4a] sm:$0xff]
      %v2068 = vld [vmem:[%s1864 + $0x52] sm:$0xff]
      %v2069 = vld [vmem:[%s1864 + $0x62] sm:$0xff]
      %v2070 = vld [vmem:[%s1864 + $0x6a] sm:$0xff]
      %v2071 = vld [vmem:[%s1864 + $0x7a] sm:$0xff]
      %v2072 = vld [vmem:[%s1864 + $0x82] sm:$0xff]
      %v2073 = vld [vmem:[%s1864 + $0x92] sm:$0xff]
      %v2074 = vld [vmem:[%s1864 + $0x9a] sm:$0xff]
      %v2075 = vld [vmem:[%s1864 + $0xaa] sm:$0xff]
      %v2076 = vld [vmem:[%s1864 + $0xb2] sm:$0xff]
      %v2077 = vld [vmem:[%s1864 + $0xc2] sm:$0xff]
      %v2078 = vld [vmem:[%s1864 + $0xca] sm:$0xff]
      %v2079 = vld [vmem:[%s1864 + $0xda] sm:$0xff]
      %v2080 = vld [vmem:[%s1864 + $0xe2] sm:$0xff]
      %v2081 = vld [vmem:[%s1864 + $0xf2] sm:$0xff]
      %v2082 = vld [vmem:[%s1864 + $0xfa] sm:$0xff]
      %v2083 = vld [vmem:[%s1864 + $0x10a] sm:$0xff]
      %v2084 = vld [vmem:[%s1864 + $0x112] sm:$0xff]
      %v2085 = vld [vmem:[%s1864 + $0x122] sm:$0xff]
      %v2086 = vld [vmem:[%s1864 + $0x12a] sm:$0xff]
      %v2087 = vld [vmem:[%s1864 + $0x13a] sm:$0xff]
      %v2088 = vld [vmem:[%s1864 + $0x142] sm:$0xff]
      %v2089 = vld [vmem:[%s1864 + $0x152] sm:$0xff]
      %v2090 = vld [vmem:[%s1864 + $0x15a] sm:$0xff]
      %v2091 = vld [vmem:[%s1864 + $0x16a] sm:$0xff]
      %v2092 = vld [vmem:[%s1864 + $0x172] sm:$0xff]
      %v2093 = vperm.slane %v2060, 0
      %v2094 = vmul.f32 %v2061, %v2093
      %v2095 = vmul.f32 %v2062, %v2093
      %v2096 = vmul.f32 %v2063, %v2093
      %v2097 = vmul.f32 %v2064, %v2093
      %v2098 = vmul.f32 %v2065, %v2093
      %v2099 = vmul.f32 %v2066, %v2093
      %v2100 = vmul.f32 %v2067, %v2093
      %v2101 = vmul.f32 %v2068, %v2093
      %v2102 = vmul.f32 %v2069, %v2093
      %v2103 = vmul.f32 %v2070, %v2093
      %v2104 = vmul.f32 %v2071, %v2093
      %v2105 = vmul.f32 %v2072, %v2093
      %v2106 = vmul.f32 %v2073, %v2093
      %v2107 = vmul.f32 %v2074, %v2093
      %v2108 = vmul.f32 %v2075, %v2093
      %v2109 = vmul.f32 %v2076, %v2093
      %v2110 = vmul.f32 %v2077, %v2093
      %v2111 = vmul.f32 %v2078, %v2093
      %v2112 = vmul.f32 %v2079, %v2093
      %v2113 = vmul.f32 %v2080, %v2093
      %v2114 = vmul.f32 %v2081, %v2093
      %v2115 = vmul.f32 %v2082, %v2093
      %v2116 = vmul.f32 %v2083, %v2093
      %v2117 = vmul.f32 %v2084, %v2093
      %v2118 = vmul.f32 %v2085, %v2093
      %v2119 = vmul.f32 %v2086, %v2093
      %v2120 = vmul.f32 %v2087, %v2093
      %v2121 = vmul.f32 %v2088, %v2093
      %v2122 = vmul.f32 %v2089, %v2093
      %v2123 = vmul.f32 %v2090, %v2093
      %v2124 = vmul.f32 %v2091, %v2093
      %v2125 = vmul.f32 %v2092, %v2093
      %v2126 = vadd.f32 %v2028, %v2094
      %v2127 = vadd.f32 %v2029, %v2095
      %v2128 = vadd.f32 %v2030, %v2096
      %v2129 = vadd.f32 %v2031, %v2097
      %v2130 = vadd.f32 %v2032, %v2098
      %v2131 = vadd.f32 %v2033, %v2099
      %v2132 = vadd.f32 %v2034, %v2100
      %v2133 = vadd.f32 %v2035, %v2101
      %v2134 = vadd.f32 %v2036, %v2102
      %v2135 = vadd.f32 %v2037, %v2103
      %v2136 = vadd.f32 %v2038, %v2104
      %v2137 = vadd.f32 %v2039, %v2105
      %v2138 = vadd.f32 %v2040, %v2106
      %v2139 = vadd.f32 %v2041, %v2107
      %v2140 = vadd.f32 %v2042, %v2108
      %v2141 = vadd.f32 %v2043, %v2109
      %v2142 = vadd.f32 %v2044, %v2110
      %v2143 = vadd.f32 %v2045, %v2111
      %v2144 = vadd.f32 %v2046, %v2112
      %v2145 = vadd.f32 %v2047, %v2113
      %v2146 = vadd.f32 %v2048, %v2114
      %v2147 = vadd.f32 %v2049, %v2115
      %v2148 = vadd.f32 %v2050, %v2116
      %v2149 = vadd.f32 %v2051, %v2117
      %v2150 = vadd.f32 %v2052, %v2118
      %v2151 = vadd.f32 %v2053, %v2119
      %v2152 = vadd.f32 %v2054, %v2120
      %v2153 = vadd.f32 %v2055, %v2121
      %v2154 = vadd.f32 %v2056, %v2122
      %v2155 = vadd.f32 %v2057, %v2123
      %v2156 = vadd.f32 %v2058, %v2124
      %v2157 = vadd.f32 %v2059, %v2125
      %v2158 = vpack.c.bf16 %v2127, %v2126
      %v2159 = vpack.c.bf16 %v2129, %v2128
      %v2160 = vpack.c.bf16 %v2131, %v2130
      %v2161 = vpack.c.bf16 %v2133, %v2132
      %v2162 = vpack.c.bf16 %v2135, %v2134
      %v2163 = vpack.c.bf16 %v2137, %v2136
      %v2164 = vpack.c.bf16 %v2139, %v2138
      %v2165 = vpack.c.bf16 %v2141, %v2140
      %v2166 = vpack.c.bf16 %v2143, %v2142
      %v2167 = vpack.c.bf16 %v2145, %v2144
      %v2168 = vpack.c.bf16 %v2147, %v2146
      %v2169 = vpack.c.bf16 %v2149, %v2148
      %v2170 = vpack.c.bf16 %v2151, %v2150
      %v2171 = vpack.c.bf16 %v2153, %v2152
      %v2172 = vpack.c.bf16 %v2155, %v2154
      %v2173 = vpack.c.bf16 %v2157, %v2156
      %v2174 = vld [vmem:[%s8] sm:$0x3]
      %v2176 = vsel %vm1216, %v2158, 0
      %v2179 = vsel %vm1216, %v2159, 0
      %v2182 = vsel %vm1216, %v2160, 0
      %v2185 = vsel %vm1216, %v2161, 0
      %v2188 = vsel %vm1216, %v2162, 0
      %v2191 = vsel %vm1216, %v2163, 0
      %v2194 = vsel %vm1216, %v2164, 0
      %v2197 = vsel %vm1216, %v2165, 0
      %v2200 = vsel %vm1216, %v2166, 0
      %v2203 = vsel %vm1216, %v2167, 0
      %v2206 = vsel %vm1216, %v2168, 0
      %v2209 = vsel %vm1216, %v2169, 0
      %v2212 = vsel %vm1216, %v2170, 0
      %v2215 = vsel %vm1216, %v2171, 0
      %v2218 = vsel %vm1216, %v2172, 0
      %v2221 = vsel %vm1216, %v2173, 0
      %vm2223 = vcmask 1041408
      %v2225 = vsel %vm2223, %v2174, 0
      %2227 = vmatpush.bf16.msra.mxu0 0
      %2228 = vmatpush.bf16.msra.mxu0 0
      %2229 = vmatpush.bf16.msra.mxu0 0
      %2230 = vmatpush.bf16.msra.mxu0 0
      %2231 = vmatpush.bf16.msra.mxu0 0
      %2232 = vmatpush.bf16.msra.mxu0 0
      %2233 = vmatpush.bf16.msra.mxu0 0
      %2234 = vmatpush.bf16.msra.mxu0 %v2225
      %2235 = vmatmul.bf16.gmra.mxu0 %v2176
      %v2236 = vpop.f32.mrf.mxu0
      %v2237 = vadd.f32 0.0, %v2236
      %v2238 = vpop.f32.mrf.mxu0
      %v2239 = vadd.f32 0.0, %v2238
      %2240 = vmatmul.bf16.gmra.mxu0 %v2179
      %v2241 = vpop.f32.mrf.mxu0
      %v2242 = vadd.f32 0.0, %v2241
      %v2243 = vpop.f32.mrf.mxu0
      %v2244 = vadd.f32 0.0, %v2243
      %2245 = vmatmul.bf16.gmra.mxu0 %v2182
      %v2246 = vpop.f32.mrf.mxu0
      %v2247 = vadd.f32 0.0, %v2246
      %v2248 = vpop.f32.mrf.mxu0
      %v2249 = vadd.f32 0.0, %v2248
      %2250 = vmatmul.bf16.gmra.mxu0 %v2185
      %v2251 = vpop.f32.mrf.mxu0
      %v2252 = vadd.f32 0.0, %v2251
      %v2253 = vpop.f32.mrf.mxu0
      %v2254 = vadd.f32 0.0, %v2253
      %2255 = vmatmul.bf16.gmra.mxu0 %v2188
      %v2256 = vpop.f32.mrf.mxu0
      %v2257 = vadd.f32 0.0, %v2256
      %v2258 = vpop.f32.mrf.mxu0
      %v2259 = vadd.f32 0.0, %v2258
      %2260 = vmatmul.bf16.gmra.mxu0 %v2191
      %v2261 = vpop.f32.mrf.mxu0
      %v2262 = vadd.f32 0.0, %v2261
      %v2263 = vpop.f32.mrf.mxu0
      %v2264 = vadd.f32 0.0, %v2263
      %2265 = vmatmul.bf16.gmra.mxu0 %v2194
      %v2266 = vpop.f32.mrf.mxu0
      %v2267 = vadd.f32 0.0, %v2266
      %v2268 = vpop.f32.mrf.mxu0
      %v2269 = vadd.f32 0.0, %v2268
      %2270 = vmatmul.bf16.gmra.mxu0 %v2197
      %v2271 = vpop.f32.mrf.mxu0
      %v2272 = vadd.f32 0.0, %v2271
      %v2273 = vpop.f32.mrf.mxu0
      %v2274 = vadd.f32 0.0, %v2273
      %2275 = vmatmul.bf16.gmra.mxu0 %v2200
      %v2276 = vpop.f32.mrf.mxu0
      %v2277 = vadd.f32 0.0, %v2276
      %v2278 = vpop.f32.mrf.mxu0
      %v2279 = vadd.f32 0.0, %v2278
      %2280 = vmatmul.bf16.gmra.mxu0 %v2203
      %v2281 = vpop.f32.mrf.mxu0
      %v2282 = vadd.f32 0.0, %v2281
      %v2283 = vpop.f32.mrf.mxu0
      %v2284 = vadd.f32 0.0, %v2283
      %2285 = vmatmul.bf16.gmra.mxu0 %v2206
      %v2286 = vpop.f32.mrf.mxu0
      %v2287 = vadd.f32 0.0, %v2286
      %v2288 = vpop.f32.mrf.mxu0
      %v2289 = vadd.f32 0.0, %v2288
      %2290 = vmatmul.bf16.gmra.mxu0 %v2209
      %v2291 = vpop.f32.mrf.mxu0
      %v2292 = vadd.f32 0.0, %v2291
      %v2293 = vpop.f32.mrf.mxu0
      %v2294 = vadd.f32 0.0, %v2293
      %2295 = vmatmul.bf16.gmra.mxu0 %v2212
      %v2296 = vpop.f32.mrf.mxu0
      %v2297 = vadd.f32 0.0, %v2296
      %v2298 = vpop.f32.mrf.mxu0
      %v2299 = vadd.f32 0.0, %v2298
      %2300 = vmatmul.bf16.gmra.mxu0 %v2215
      %v2301 = vpop.f32.mrf.mxu0
      %v2302 = vadd.f32 0.0, %v2301
      %v2303 = vpop.f32.mrf.mxu0
      %v2304 = vadd.f32 0.0, %v2303
      %2305 = vmatmul.bf16.gmra.mxu0 %v2218
      %v2306 = vpop.f32.mrf.mxu0
      %v2307 = vadd.f32 0.0, %v2306
      %v2308 = vpop.f32.mrf.mxu0
      %v2309 = vadd.f32 0.0, %v2308
      %2310 = vmatmul.bf16.gmra.mxu0 %v2221
      %v2311 = vpop.f32.mrf.mxu0
      %v2312 = vadd.f32 0.0, %v2311
      %v2313 = vpop.f32.mrf.mxu0
      %v2314 = vadd.f32 0.0, %v2313
      %2315 = vdwg.mxu0
      %v2316 = vld [vmem:[%s9] sm:$0x1]
      %v2318 = vperm.slane %v2316, 0
      %v2320 = vmul.f32 %v2237, %v2318
      %v2321 = vmul.f32 %v2239, %v2318
      %v2322 = vmul.f32 %v2242, %v2318
      %v2323 = vmul.f32 %v2244, %v2318
      %v2324 = vmul.f32 %v2247, %v2318
      %v2325 = vmul.f32 %v2249, %v2318
      %v2326 = vmul.f32 %v2252, %v2318
      %v2327 = vmul.f32 %v2254, %v2318
      %v2328 = vmul.f32 %v2257, %v2318
      %v2329 = vmul.f32 %v2259, %v2318
      %v2330 = vmul.f32 %v2262, %v2318
      %v2331 = vmul.f32 %v2264, %v2318
      %v2332 = vmul.f32 %v2267, %v2318
      %v2333 = vmul.f32 %v2269, %v2318
      %v2334 = vmul.f32 %v2272, %v2318
      %v2335 = vmul.f32 %v2274, %v2318
      %v2336 = vmul.f32 %v2277, %v2318
      %v2337 = vmul.f32 %v2279, %v2318
      %v2338 = vmul.f32 %v2282, %v2318
      %v2339 = vmul.f32 %v2284, %v2318
      %v2340 = vmul.f32 %v2287, %v2318
      %v2341 = vmul.f32 %v2289, %v2318
      %v2342 = vmul.f32 %v2292, %v2318
      %v2343 = vmul.f32 %v2294, %v2318
      %v2344 = vmul.f32 %v2297, %v2318
      %v2345 = vmul.f32 %v2299, %v2318
      %v2346 = vmul.f32 %v2302, %v2318
      %v2347 = vmul.f32 %v2304, %v2318
      %v2348 = vmul.f32 %v2307, %v2318
      %v2349 = vmul.f32 %v2309, %v2318
      %v2350 = vmul.f32 %v2312, %v2318
      %v2351 = vmul.f32 %v2314, %v2318
      %v2352 = vld [vmem:[%s10] sm:$0x1]
      %v2354 = vperm.slane %v2352, 0
      %v2356 = vadd.f32 %v2320, %v2354
      %v2357 = vadd.f32 %v2321, %v2354
      %v2358 = vadd.f32 %v2322, %v2354
      %v2359 = vadd.f32 %v2323, %v2354
      %v2360 = vadd.f32 %v2324, %v2354
      %v2361 = vadd.f32 %v2325, %v2354
      %v2362 = vadd.f32 %v2326, %v2354
      %v2363 = vadd.f32 %v2327, %v2354
      %v2364 = vadd.f32 %v2328, %v2354
      %v2365 = vadd.f32 %v2329, %v2354
      %v2366 = vadd.f32 %v2330, %v2354
      %v2367 = vadd.f32 %v2331, %v2354
      %v2368 = vadd.f32 %v2332, %v2354
      %v2369 = vadd.f32 %v2333, %v2354
      %v2370 = vadd.f32 %v2334, %v2354
      %v2371 = vadd.f32 %v2335, %v2354
      %v2372 = vadd.f32 %v2336, %v2354
      %v2373 = vadd.f32 %v2337, %v2354
      %v2374 = vadd.f32 %v2338, %v2354
      %v2375 = vadd.f32 %v2339, %v2354
      %v2376 = vadd.f32 %v2340, %v2354
      %v2377 = vadd.f32 %v2341, %v2354
      %v2378 = vadd.f32 %v2342, %v2354
      %v2379 = vadd.f32 %v2343, %v2354
      %v2380 = vadd.f32 %v2344, %v2354
      %v2381 = vadd.f32 %v2345, %v2354
      %v2382 = vadd.f32 %v2346, %v2354
      %v2383 = vadd.f32 %v2347, %v2354
      %v2384 = vadd.f32 %v2348, %v2354
      %v2385 = vadd.f32 %v2349, %v2354
      %v2386 = vadd.f32 %v2350, %v2354
      %v2387 = vadd.f32 %v2351, %v2354
      %v2388 = vmax.f32 %v2356, 0.0
      %v2389 = vmax.f32 %v2357, 0.0
      %v2390 = vmax.f32 %v2358, 0.0
      %v2391 = vmax.f32 %v2359, 0.0
      %v2392 = vmax.f32 %v2360, 0.0
      %v2393 = vmax.f32 %v2361, 0.0
      %v2394 = vmax.f32 %v2362, 0.0
      %v2395 = vmax.f32 %v2363, 0.0
      %v2396 = vmax.f32 %v2364, 0.0
      %v2397 = vmax.f32 %v2365, 0.0
      %v2398 = vmax.f32 %v2366, 0.0
      %v2399 = vmax.f32 %v2367, 0.0
      %v2400 = vmax.f32 %v2368, 0.0
      %v2401 = vmax.f32 %v2369, 0.0
      %v2402 = vmax.f32 %v2370, 0.0
      %v2403 = vmax.f32 %v2371, 0.0
      %v2404 = vmax.f32 %v2372, 0.0
      %v2405 = vmax.f32 %v2373, 0.0
      %v2406 = vmax.f32 %v2374, 0.0
      %v2407 = vmax.f32 %v2375, 0.0
      %v2408 = vmax.f32 %v2376, 0.0
      %v2409 = vmax.f32 %v2377, 0.0
      %v2410 = vmax.f32 %v2378, 0.0
      %v2411 = vmax.f32 %v2379, 0.0
      %v2412 = vmax.f32 %v2380, 0.0
      %v2413 = vmax.f32 %v2381, 0.0
      %v2414 = vmax.f32 %v2382, 0.0
      %v2415 = vmax.f32 %v2383, 0.0
      %v2416 = vmax.f32 %v2384, 0.0
      %v2417 = vmax.f32 %v2385, 0.0
      %v2418 = vmax.f32 %v2386, 0.0
      %v2419 = vmax.f32 %v2387, 0.0
      %v2420 = vpack.c.bf16 %v2388, %v2388
      %v2421 = vpack.c.bf16 %v2389, %v2389
      %v2422 = vpack.c.bf16 %v2390, %v2390
      %v2423 = vpack.c.bf16 %v2391, %v2391
      %v2424 = vpack.c.bf16 %v2392, %v2392
      %v2425 = vpack.c.bf16 %v2393, %v2393
      %v2426 = vpack.c.bf16 %v2394, %v2394
      %v2427 = vpack.c.bf16 %v2395, %v2395
      %v2428 = vpack.c.bf16 %v2396, %v2396
      %v2429 = vpack.c.bf16 %v2397, %v2397
      %v2430 = vpack.c.bf16 %v2398, %v2398
      %v2431 = vpack.c.bf16 %v2399, %v2399
      %v2432 = vpack.c.bf16 %v2400, %v2400
      %v2433 = vpack.c.bf16 %v2401, %v2401
      %v2434 = vpack.c.bf16 %v2402, %v2402
      %v2435 = vpack.c.bf16 %v2403, %v2403
      %v2436 = vpack.c.bf16 %v2404, %v2404
      %v2437 = vpack.c.bf16 %v2405, %v2405
      %v2438 = vpack.c.bf16 %v2406, %v2406
      %v2439 = vpack.c.bf16 %v2407, %v2407
      %v2440 = vpack.c.bf16 %v2408, %v2408
      %v2441 = vpack.c.bf16 %v2409, %v2409
      %v2442 = vpack.c.bf16 %v2410, %v2410
      %v2443 = vpack.c.bf16 %v2411, %v2411
      %v2444 = vpack.c.bf16 %v2412, %v2412
      %v2445 = vpack.c.bf16 %v2413, %v2413
      %v2446 = vpack.c.bf16 %v2414, %v2414
      %v2447 = vpack.c.bf16 %v2415, %v2415
      %v2448 = vpack.c.bf16 %v2416, %v2416
      %v2449 = vpack.c.bf16 %v2417, %v2417
      %v2450 = vpack.c.bf16 %v2418, %v2418
      %v2451 = vpack.c.bf16 %v2419, %v2419
      %vm2452 = vcmask 27648
      %2453 = vst.msk [vmem:[%s799] sm:$0xf] %vm2452, %v2420
      %2454 = vst.msk [vmem:[%s799 + $0x4] sm:$0xf] %vm2452, %v2421
      %2455 = vst.msk [vmem:[%s799 + $0x8] sm:$0xf] %vm2452, %v2422
      %2456 = vst.msk [vmem:[%s799 + $0xc] sm:$0xf] %vm2452, %v2423
      %2457 = vst.msk [vmem:[%s799 + $0x10] sm:$0xf] %vm2452, %v2424
      %2458 = vst.msk [vmem:[%s799 + $0x14] sm:$0xf] %vm2452, %v2425
      %2459 = vst.msk [vmem:[%s799 + $0x18] sm:$0xf] %vm2452, %v2426
      %2460 = vst.msk [vmem:[%s799 + $0x1c] sm:$0xf] %vm2452, %v2427
      %2461 = vst.msk [vmem:[%s799 + $0x20] sm:$0xf] %vm2452, %v2428
      %2462 = vst.msk [vmem:[%s799 + $0x24] sm:$0xf] %vm2452, %v2429
      %2463 = vst.msk [vmem:[%s799 + $0x28] sm:$0xf] %vm2452, %v2430
      %2464 = vst.msk [vmem:[%s799 + $0x2c] sm:$0xf] %vm2452, %v2431
      %2465 = vst.msk [vmem:[%s799 + $0x30] sm:$0xf] %vm2452, %v2432
      %2466 = vst.msk [vmem:[%s799 + $0x34] sm:$0xf] %vm2452, %v2433
      %2467 = vst.msk [vmem:[%s799 + $0x38] sm:$0xf] %vm2452, %v2434
      %2468 = vst.msk [vmem:[%s799 + $0x3c] sm:$0xf] %vm2452, %v2435
      %2469 = vst.msk [vmem:[%s799 + $0x40] sm:$0xf] %vm2452, %v2436
      %2470 = vst.msk [vmem:[%s799 + $0x44] sm:$0xf] %vm2452, %v2437
      %2471 = vst.msk [vmem:[%s799 + $0x48] sm:$0xf] %vm2452, %v2438
      %2472 = vst.msk [vmem:[%s799 + $0x4c] sm:$0xf] %vm2452, %v2439
      %2473 = vst.msk [vmem:[%s799 + $0x50] sm:$0xf] %vm2452, %v2440
      %2474 = vst.msk [vmem:[%s799 + $0x54] sm:$0xf] %vm2452, %v2441
      %2475 = vst.msk [vmem:[%s799 + $0x58] sm:$0xf] %vm2452, %v2442
      %2476 = vst.msk [vmem:[%s799 + $0x5c] sm:$0xf] %vm2452, %v2443
      %2477 = vst.msk [vmem:[%s799 + $0x60] sm:$0xf] %vm2452, %v2444
      %2478 = vst.msk [vmem:[%s799 + $0x64] sm:$0xf] %vm2452, %v2445
      %2479 = vst.msk [vmem:[%s799 + $0x68] sm:$0xf] %vm2452, %v2446
      %2480 = vst.msk [vmem:[%s799 + $0x6c] sm:$0xf] %vm2452, %v2447
      %2481 = vst.msk [vmem:[%s799 + $0x70] sm:$0xf] %vm2452, %v2448
      %2482 = vst.msk [vmem:[%s799 + $0x74] sm:$0xf] %vm2452, %v2449
      %2483 = vst.msk [vmem:[%s799 + $0x78] sm:$0xf] %vm2452, %v2450
      %2484 = vst.msk [vmem:[%s799 + $0x7c] sm:$0xf] %vm2452, %v2451
      %v2485 = vsel %vm1216, %v2388, 0.0
      %v2486 = vsel %vm1216, %v2389, 0.0
      %v2487 = vadd.f32 %v2485, %v2486
      %v2488 = vrot.slane %v2487, 4
      %v2489 = vadd.f32 %v2487, %v2488
      %v2490 = vrot.slane %v2489, 2
      %v2491 = vadd.f32 %v2489, %v2490
      %v2492 = vrot.slane %v2491, 1
      %v2493 = vadd.f32 %v2491, %v2492
      %v2494 = vsel %vm1216, %v2390, 0.0
      %v2495 = vsel %vm1216, %v2391, 0.0
      %v2496 = vadd.f32 %v2494, %v2495
      %v2497 = vrot.slane %v2496, 4
      %v2498 = vadd.f32 %v2496, %v2497
      %v2499 = vrot.slane %v2498, 2
      %v2500 = vadd.f32 %v2498, %v2499
      %v2501 = vrot.slane %v2500, 1
      %v2502 = vadd.f32 %v2500, %v2501
      %v2503 = vsel %vm1216, %v2392, 0.0
      %v2504 = vsel %vm1216, %v2393, 0.0
      %v2505 = vadd.f32 %v2503, %v2504
      %v2506 = vrot.slane %v2505, 4
      %v2507 = vadd.f32 %v2505, %v2506
      %v2508 = vrot.slane %v2507, 2
      %v2509 = vadd.f32 %v2507, %v2508
      %v2510 = vrot.slane %v2509, 1
      %v2511 = vadd.f32 %v2509, %v2510
      %v2512 = vsel %vm1216, %v2394, 0.0
      %v2513 = vsel %vm1216, %v2395, 0.0
      %v2514 = vadd.f32 %v2512, %v2513
      %v2515 = vrot.slane %v2514, 4
      %v2516 = vadd.f32 %v2514, %v2515
      %v2517 = vrot.slane %v2516, 2
      %v2518 = vadd.f32 %v2516, %v2517
      %v2519 = vrot.slane %v2518, 1
      %v2520 = vadd.f32 %v2518, %v2519
      %v2521 = vsel %vm1216, %v2396, 0.0
      %v2522 = vsel %vm1216, %v2397, 0.0
      %v2523 = vadd.f32 %v2521, %v2522
      %v2524 = vrot.slane %v2523, 4
      %v2525 = vadd.f32 %v2523, %v2524
      %v2526 = vrot.slane %v2525, 2
      %v2527 = vadd.f32 %v2525, %v2526
      %v2528 = vrot.slane %v2527, 1
      %v2529 = vadd.f32 %v2527, %v2528
      %v2530 = vsel %vm1216, %v2398, 0.0
      %v2531 = vsel %vm1216, %v2399, 0.0
      %v2532 = vadd.f32 %v2530, %v2531
      %v2533 = vrot.slane %v2532, 4
      %v2534 = vadd.f32 %v2532, %v2533
      %v2535 = vrot.slane %v2534, 2
      %v2536 = vadd.f32 %v2534, %v2535
      %v2537 = vrot.slane %v2536, 1
      %v2538 = vadd.f32 %v2536, %v2537
      %v2539 = vsel %vm1216, %v2400, 0.0
      %v2540 = vsel %vm1216, %v2401, 0.0
      %v2541 = vadd.f32 %v2539, %v2540
      %v2542 = vrot.slane %v2541, 4
      %v2543 = vadd.f32 %v2541, %v2542
      %v2544 = vrot.slane %v2543, 2
      %v2545 = vadd.f32 %v2543, %v2544
      %v2546 = vrot.slane %v2545, 1
      %v2547 = vadd.f32 %v2545, %v2546
      %v2548 = vsel %vm1216, %v2402, 0.0
      %v2549 = vsel %vm1216, %v2403, 0.0
      %v2550 = vadd.f32 %v2548, %v2549
      %v2551 = vrot.slane %v2550, 4
      %v2552 = vadd.f32 %v2550, %v2551
      %v2553 = vrot.slane %v2552, 2
      %v2554 = vadd.f32 %v2552, %v2553
      %v2555 = vrot.slane %v2554, 1
      %v2556 = vadd.f32 %v2554, %v2555
      %v2557 = vsel %vm1216, %v2404, 0.0
      %v2558 = vsel %vm1216, %v2405, 0.0
      %v2559 = vadd.f32 %v2557, %v2558
      %v2560 = vrot.slane %v2559, 4
      %v2561 = vadd.f32 %v2559, %v2560
      %v2562 = vrot.slane %v2561, 2
      %v2563 = vadd.f32 %v2561, %v2562
      %v2564 = vrot.slane %v2563, 1
      %v2565 = vadd.f32 %v2563, %v2564
      %v2566 = vsel %vm1216, %v2406, 0.0
      %v2567 = vsel %vm1216, %v2407, 0.0
      %v2568 = vadd.f32 %v2566, %v2567
      %v2569 = vrot.slane %v2568, 4
      %v2570 = vadd.f32 %v2568, %v2569
      %v2571 = vrot.slane %v2570, 2
      %v2572 = vadd.f32 %v2570, %v2571
      %v2573 = vrot.slane %v2572, 1
      %v2574 = vadd.f32 %v2572, %v2573
      %v2575 = vsel %vm1216, %v2408, 0.0
      %v2576 = vsel %vm1216, %v2409, 0.0
      %v2577 = vadd.f32 %v2575, %v2576
      %v2578 = vrot.slane %v2577, 4
      %v2579 = vadd.f32 %v2577, %v2578
      %v2580 = vrot.slane %v2579, 2
      %v2581 = vadd.f32 %v2579, %v2580
      %v2582 = vrot.slane %v2581, 1
      %v2583 = vadd.f32 %v2581, %v2582
      %v2584 = vsel %vm1216, %v2410, 0.0
      %v2585 = vsel %vm1216, %v2411, 0.0
      %v2586 = vadd.f32 %v2584, %v2585
      %v2587 = vrot.slane %v2586, 4
      %v2588 = vadd.f32 %v2586, %v2587
      %v2589 = vrot.slane %v2588, 2
      %v2590 = vadd.f32 %v2588, %v2589
      %v2591 = vrot.slane %v2590, 1
      %v2592 = vadd.f32 %v2590, %v2591
      %v2593 = vsel %vm1216, %v2412, 0.0
      %v2594 = vsel %vm1216, %v2413, 0.0
      %v2595 = vadd.f32 %v2593, %v2594
      %v2596 = vrot.slane %v2595, 4
      %v2597 = vadd.f32 %v2595, %v2596
      %v2598 = vrot.slane %v2597, 2
      %v2599 = vadd.f32 %v2597, %v2598
      %v2600 = vrot.slane %v2599, 1
      %v2601 = vadd.f32 %v2599, %v2600
      %v2602 = vsel %vm1216, %v2414, 0.0
      %v2603 = vsel %vm1216, %v2415, 0.0
      %v2604 = vadd.f32 %v2602, %v2603
      %v2605 = vrot.slane %v2604, 4
      %v2606 = vadd.f32 %v2604, %v2605
      %v2607 = vrot.slane %v2606, 2
      %v2608 = vadd.f32 %v2606, %v2607
      %v2609 = vrot.slane %v2608, 1
      %v2610 = vadd.f32 %v2608, %v2609
      %v2611 = vsel %vm1216, %v2416, 0.0
      %v2612 = vsel %vm1216, %v2417, 0.0
      %v2613 = vadd.f32 %v2611, %v2612
      %v2614 = vrot.slane %v2613, 4
      %v2615 = vadd.f32 %v2613, %v2614
      %v2616 = vrot.slane %v2615, 2
      %v2617 = vadd.f32 %v2615, %v2616
      %v2618 = vrot.slane %v2617, 1
      %v2619 = vadd.f32 %v2617, %v2618
      %v2620 = vsel %vm1216, %v2418, 0.0
      %v2621 = vsel %vm1216, %v2419, 0.0
      %v2622 = vadd.f32 %v2620, %v2621
      %v2623 = vrot.slane %v2622, 4
      %v2624 = vadd.f32 %v2622, %v2623
      %v2625 = vrot.slane %v2624, 2
      %v2626 = vadd.f32 %v2624, %v2625
      %v2627 = vrot.slane %v2626, 1
      %v2628 = vadd.f32 %v2626, %v2627
      %v2629 = vmul.f32 %v2493, 0.0625
      %v2630 = vmul.f32 %v2502, 0.0625
      %v2631 = vmul.f32 %v2511, 0.0625
      %v2632 = vmul.f32 %v2520, 0.0625
      %v2633 = vmul.f32 %v2529, 0.0625
      %v2634 = vmul.f32 %v2538, 0.0625
      %v2635 = vmul.f32 %v2547, 0.0625
      %v2636 = vmul.f32 %v2556, 0.0625
      %v2637 = vmul.f32 %v2565, 0.0625
      %v2638 = vmul.f32 %v2574, 0.0625
      %v2639 = vmul.f32 %v2583, 0.0625
      %v2640 = vmul.f32 %v2592, 0.0625
      %v2641 = vmul.f32 %v2601, 0.0625
      %v2642 = vmul.f32 %v2610, 0.0625
      %v2643 = vmul.f32 %v2619, 0.0625
      %v2644 = vmul.f32 %v2628, 0.0625
      %vm2661 = vcmask 1041409
      %v2662 = vsel %vm2661, %v2630, %v2629
      %vm2663 = vcmask 1042434
      %v2664 = vsel %vm2663, %v2631, %v2662
      %vm2665 = vcmask 1043459
      %v2666 = vsel %vm2665, %v2632, %v2664
      %vm2667 = vcmask 1044484
      %v2668 = vsel %vm2667, %v2633, %v2666
      %vm2669 = vcmask 1045509
      %v2670 = vsel %vm2669, %v2634, %v2668
      %vm2671 = vcmask 1046534
      %v2672 = vsel %vm2671, %v2635, %v2670
      %vm2673 = vcmask 1047559
      %v2674 = vsel %vm2673, %v2636, %v2672
      %v2675 = vsel %vm2661, %v2638, %v2637
      %v2676 = vsel %vm2663, %v2639, %v2675
      %v2677 = vsel %vm2665, %v2640, %v2676
      %v2678 = vsel %vm2667, %v2641, %v2677
      %v2679 = vsel %vm2669, %v2642, %v2678
      %v2680 = vsel %vm2671, %v2643, %v2679
      %v2681 = vsel %vm2673, %v2644, %v2680
      %2684 = vst.msk [vmem:[%s809] sm:$0xff] %vm1216, %v2674
      %2685 = vst.msk [vmem:[%s809 + $0x8] sm:$0xff] %vm1216, %v2681
      %v2686 = vadd.f32 %v2485, %v2494
      %v2687 = vadd.f32 %v2686, %v2503
      %v2688 = vadd.f32 %v2687, %v2512
      %v2689 = vadd.f32 %v2688, %v2521
      %v2690 = vadd.f32 %v2689, %v2530
      %v2691 = vadd.f32 %v2690, %v2539
      %v2692 = vadd.f32 %v2691, %v2548
      %v2693 = vadd.f32 %v2692, %v2557
      %v2694 = vadd.f32 %v2693, %v2566
      %v2695 = vadd.f32 %v2694, %v2575
      %v2696 = vadd.f32 %v2695, %v2584
      %v2697 = vadd.f32 %v2696, %v2593
      %v2698 = vadd.f32 %v2697, %v2602
      %v2699 = vadd.f32 %v2698, %v2611
      %v2700 = vadd.f32 %v2699, %v2620
      %v2701 = vadd.f32 %v2486, %v2495
      %v2702 = vadd.f32 %v2701, %v2504
      %v2703 = vadd.f32 %v2702, %v2513
      %v2704 = vadd.f32 %v2703, %v2522
      %v2705 = vadd.f32 %v2704, %v2531
      %v2706 = vadd.f32 %v2705, %v2540
      %v2707 = vadd.f32 %v2706, %v2549
      %v2708 = vadd.f32 %v2707, %v2558
      %v2709 = vadd.f32 %v2708, %v2567
      %v2710 = vadd.f32 %v2709, %v2576
      %v2711 = vadd.f32 %v2710, %v2585
      %v2712 = vadd.f32 %v2711, %v2594
      %v2713 = vadd.f32 %v2712, %v2603
      %v2714 = vadd.f32 %v2713, %v2612
      %v2715 = vadd.f32 %v2714, %v2621
      %2716 = vst.msk [vmem:[%s819] sm:$0xff] %vm1216, %v2700
      %2717 = vst.msk [vmem:[%s819 + $0x8] sm:$0xff] %vm1216, %v2715
      %s2718 = smul.u32 16, %s30
      %p2719 = scmp.lt.s32.totalorder %s29, 1
      %s2720 = scalar_select %p2719, %s29, 1
      %p2721 = scmp.lt.s32.totalorder %s2718, 15
      %s2722 = scalar_select %p2721, %s2718, 15
      %s2723 = smul.addr %s2722, 2
      %s2724 = smul.addr %s2720, 32
      %s2725 = sadd.s32 %s2723, %s2724
      %s2726 = smul.addr %s2725, 4
      %s2727 = scalar_lea.vmem %s11, %s2726
      %s2728 = smul.u32 2, %s30
      %p2729 = scmp.lt.s32.totalorder %s29, 1
      %s2730 = scalar_select %p2729, %s29, 1
      %p2731 = scmp.lt.s32.totalorder %s2728, 1
      %s2732 = scalar_select %p2731, %s2728, 1
      %s2733 = smul.addr %s2730, 2
      %s2734 = sadd.s32 %s2732, %s2733
      %s2735 = smul.addr %s2734, 8
      %s2736 = scalar_lea.vmem %s12, %s2735
      %p2737 = scmp.lt.s32.totalorder %s29, 1
      %s2738 = scalar_select %p2737, %s29, 1
      %p2739 = scmp.lt.s32.totalorder %s30, 0
      %s2740 = scalar_select %p2739, %s30, 0
      %s2741 = smul.addr %s2740, 2
      %s2742 = smul.addr %s2738, 2
      %s2743 = sadd.s32 %s2741, %s2742
      %s2744 = smul.addr %s2743, 8
      %s2745 = scalar_lea.vmem %s13, %s2744
      // Predicated region
      $region65: #{up_forward.9} parent=63 // pred_check
        %p2746 = pneg %p367
      $region66: #{up_forward.9} parent=63 // pred_check_branch
        %2748 = sbr.rel (%p2746) target = $region68
      $region67: #{up_forward.9} parent=63 // pred_region
        %s2749 = smul.u32 16, %s30
      $region68: #{up_forward.9} parent=63 // pred_fallthru
        _
      // Predicated region
      $region69: #{up_forward.9} parent=63 // pred_check
        %p2750 = pneg %p395
      $region70: #{up_forward.9} parent=63 // pred_check_branch
        %2752 = sbr.rel (%p2750) target = $region72
      $region71: #{up_forward.9} parent=63 // pred_region
        %s2753 = smul.u32 2, %s30
      $region72: #{up_forward.9} parent=63 // pred_fallthru
        _
      // Predicated region
      $region73: #{up_forward.9} parent=63 // pred_check
        %p2754 = pneg %p423
      $region74: #{up_forward.9} parent=63 // pred_check_branch
        %2756 = sbr.rel (%p2754) target = $region76
      $region75: #{up_forward.9} parent=63 // pred_region
        _
      $region76: #{up_forward.9} parent=63 // pred_fallthru
        _
    $region64: #{up_forward.9} parent=5 // pred_fallthru
      _
    %p2757 = scmp.le.s32.totalorder 2, %s20
    // Predicated region
    $region77: #{up_forward.9} parent=5 // pred_check
      %p2758 = pneg %p2757
    $region78: #{up_forward.9} parent=5 // pred_check_branch
      %2760 = sbr.rel (%p2758) target = $region80
    $region79: #{up_forward.9} parent=5 // pred_region
      %s2761 = ssub.s32 %s20, 2
      // Predicated region
      $region81: #{up_forward.9} parent=79 // pred_check
        %p2762 = pneg %p373
      $region82: #{up_forward.9} parent=79 // pred_check_branch
        %2764 = sbr.rel (%p2762) target = $region84
      $region83: #{up_forward.9} parent=79 // pred_region
        %s2765 = smul.u32 16, %s32
        %p2766 = scmp.lt.s32.totalorder %s31, 1
        %s2767 = scalar_select %p2766, %s31, 1
        %p2768 = scmp.lt.s32.totalorder %s2765, 15
        %s2769 = scalar_select %p2768, %s2765, 15
        %s2770 = smul.addr %s2769, 2
        %s2771 = smul.addr %s2767, 32
        %s2772 = sadd.s32 %s2770, %s2771
        %s2773 = smul.addr %s2772, 4
        %s2774 = scalar_lea.vmem %s11, %s2773
      $region84: #{up_forward.9} parent=79 // pred_fallthru
        _
      // Predicated region
      $region85: #{up_forward.9} parent=79 // pred_check
        %p2775 = pneg %p401
      $region86: #{up_forward.9} parent=79 // pred_check_branch
        %2777 = sbr.rel (%p2775) target = $region88
      $region87: #{up_forward.9} parent=79 // pred_region
        %s2778 = smul.u32 2, %s32
        %p2779 = scmp.lt.s32.totalorder %s31, 1
        %s2780 = scalar_select %p2779, %s31, 1
        %p2781 = scmp.lt.s32.totalorder %s2778, 1
        %s2782 = scalar_select %p2781, %s2778, 1
        %s2783 = smul.addr %s2780, 2
        %s2784 = sadd.s32 %s2782, %s2783
        %s2785 = smul.addr %s2784, 8
        %s2786 = scalar_lea.vmem %s12, %s2785
      $region88: #{up_forward.9} parent=79 // pred_fallthru
        _
      // Predicated region
      $region89: #{up_forward.9} parent=79 // pred_check
        %p2787 = pneg %p429
      $region90: #{up_forward.9} parent=79 // pred_check_branch
        %2789 = sbr.rel (%p2787) target = $region92
      $region91: #{up_forward.9} parent=79 // pred_region
        %p2790 = scmp.lt.s32.totalorder %s31, 1
        %s2791 = scalar_select %p2790, %s31, 1
        %p2792 = scmp.lt.s32.totalorder %s32, 0
        %s2793 = scalar_select %p2792, %s32, 0
        %s2794 = smul.addr %s2793, 2
        %s2795 = smul.addr %s2791, 2
        %s2796 = sadd.s32 %s2794, %s2795
        %s2797 = smul.addr %s2796, 8
        %s2798 = scalar_lea.vmem %s13, %s2797
      $region92: #{up_forward.9} parent=79 // pred_fallthru
        _
    $region80: #{up_forward.9} parent=5 // pred_fallthru
      _
  $region6: #{up_forward.9} parent=0 // loop_footer
    %s24 = sadd.s32 1, %s20
  $region7: #{up_forward.9} parent=0 // loop_footer_branch
    %19 = sbr.rel target = $region3
  $region8: #{up_forward.9} parent=0 // loop_exit
    _

</llo_original>
